<compile_context>
chip_gen: v6e
topology: v6e:2x2x1
jax: 0.10.0
libtpu: 0.0.40
codegen_flags: <defaults>
</compile_context>

<pallas_src>
import jax
import jax.numpy as jnp
from jax import lax
from jax.experimental import pallas as pl
from jax.experimental.pallas import tpu as pltpu

LEAKY_SLOPE = 0.01   # torch.nn.LeakyReLU default
GN_EPS = 1e-5        # torch.nn.GroupNorm default
LANE = 128
_TAPS = tuple((kh, kw) for kh in range(3) for kw in range(3))


def _round_up(x, m):
    return (x + m - 1) // m * m


# ---------------------------------------------------------------------------
# In-kernel fused 3x3 conv (9 shifted MXU matmuls) + GroupNorm(group size 1)
# + LeakyReLU.  bf16 matmul inputs, fp32 accumulation and statistics.
# ---------------------------------------------------------------------------
def _conv_gn_lrelu(load_window, w_ref, g_ref, b_ref, nb, s, cout_p):
    # load_window(tap) -> (nb*s, cin_p) bf16 ; w_ref: (9, cin_p, cout_p) bf16
    acc = jnp.zeros((nb * s, cout_p), jnp.float32)
    for t, tap in enumerate(_TAPS):
        win = load_window(tap)
        acc = acc + jnp.dot(win, w_ref[t], preferred_element_type=jnp.float32)

    y = acc.reshape(nb, s, cout_p)                      # per-sample view
    inv_s = 1.0 / float(s)
    s1 = jnp.sum(y, axis=1, keepdims=True)              # (nb, 1, cout_p)
    s2 = jnp.sum(y * y, axis=1, keepdims=True)
    mean = s1 * inv_s
    var = jnp.maximum(s2 * inv_s - mean * mean, 0.0)
    scale = g_ref[...] * lax.rsqrt(var + GN_EPS)        # (nb, 1, cout_p)
    shift = b_ref[...] - mean * scale
    out = y * scale + shift
    return jnp.where(out >= 0.0, out, LEAKY_SLOPE * out)  # (nb, s, cout_p) f32


# ---------------------------------------------------------------------------
# Layer 0: stride-2 Conv + GN + LeakyReLU.
# Input is pre-split into the 4 stride-2 phases (even/odd rows x even/odd
# cols of the zero-padded image), concatenated along the row axis, so every
# tap is a contiguous stride-1 slice.  Output carries a 1-pixel zero halo so
# the ResBlock kernel can run its own 3x3 taps without re-padding in HBM.
# ---------------------------------------------------------------------------
def _make_conv0_kernel(nb, hout, wout, cin_p, cout_p):
    s = hout * wout
    prows = hout + 1   # rows per phase inside the concatenated phase tensor

    def kernel(ph_ref, w_ref, g_ref, b_ref, o_ref):
        # ph_ref: (nb, 4*(hout+1), wout+1, cin_p) bf16
        # o_ref : (nb, hout+2, wout+2, cout_p)    bf16 (zero halo)
        def window(tap):
            kh, kw = tap
            phase = (kh % 2) * 2 + (kw % 2)
            r0 = phase * prows + kh // 2
            c0 = kw // 2
            win = ph_ref[:, r0:r0 + hout, c0:c0 + wout, :]
            return win.reshape(nb * s, cin_p)

        act = _conv_gn_lrelu(window, w_ref, g_ref, b_ref, nb, s, cout_p)
        o_ref[...] = jnp.zeros(o_ref.shape, o_ref.dtype)          # zero halo
        o_ref[:, 1:1 + hout, 1:1 + wout, :] = (
            act.reshape(nb, hout, wout, cout_p).astype(o_ref.dtype))

    return kernel


# ---------------------------------------------------------------------------
# ResBlock: y = y0 + c2(c1(y0)); c1 output stays in a VMEM scratch (zero halo)
# so it never round-trips through HBM.
# ---------------------------------------------------------------------------
def _make_resblock_kernel(nb, hout, wout, c_p):
    s = hout * wout

    def kernel(x_ref, w1_ref, g1_ref, b1_ref, w2_ref, g2_ref, b2_ref,
               o_ref, y1_ref):
        # x_ref : (nb, hout+2, wout+2, c_p) bf16  (= y0 with zero halo)
        # y1_ref: VMEM scratch, same shape, bf16
        # o_ref : (nb, hout, wout, c_p) f32
        def window(src_ref, tap):
            kh, kw = tap
            win = src_ref[:, kh:kh + hout, kw:kw + wout, :]
            return win.reshape(nb * s, c_p)

        a1 = _conv_gn_lrelu(lambda t: window(x_ref, t),
                            w1_ref, g1_ref, b1_ref, nb, s, c_p)
        y1_ref[...] = jnp.zeros(y1_ref.shape, y1_ref.dtype)        # zero halo
        y1_ref[:, 1:1 + hout, 1:1 + wout, :] = (
            a1.reshape(nb, hout, wout, c_p).astype(y1_ref.dtype))

        a2 = _conv_gn_lrelu(lambda t: window(y1_ref, t),
                            w2_ref, g2_ref, b2_ref, nb, s, c_p)

        resid = x_ref[:, 1:1 + hout, 1:1 + wout, :].astype(jnp.float32)
        out = resid.reshape(nb, s, c_p) + a2
        o_ref[...] = out.reshape(nb, hout, wout, c_p).astype(o_ref.dtype)

    return kernel


# ---------------------------------------------------------------------------
# pallas_call wrappers
# ---------------------------------------------------------------------------
def _conv0_call(phases, w_taps, gamma, beta, nb, hout, wout):
    n = phases.shape[0]
    cin_p = phases.shape[-1]
    cout_p = w_taps.shape[-1]
    kernel = _make_conv0_kernel(nb, hout, wout, cin_p, cout_p)
    return pl.pallas_call(
        kernel,
        out_shape=jax.ShapeDtypeStruct((n, hout + 2, wout + 2, cout_p),
                                       jnp.bfloat16),
        grid=(n // nb,),
        in_specs=[
            pl.BlockSpec((nb, 4 * (hout + 1), wout + 1, cin_p),
                         lambda i: (i, 0, 0, 0)),
            pl.BlockSpec((9, cin_p, cout_p), lambda i: (0, 0, 0)),
            pl.BlockSpec((1, cout_p), lambda i: (0, 0)),
            pl.BlockSpec((1, cout_p), lambda i: (0, 0)),
        ],
        out_specs=pl.BlockSpec((nb, hout + 2, wout + 2, cout_p),
                               lambda i: (i, 0, 0, 0)),
        compiler_params=pltpu.CompilerParams(
            dimension_semantics=("parallel",)),
    )(phases, w_taps, gamma, beta)


def _resblock_call(y0_pad, w1, g1, b1, w2, g2, b2, nb, hout, wout):
    n, hp, wp, c_p = y0_pad.shape
    kernel = _make_resblock_kernel(nb, hout, wout, c_p)
    wspec = pl.BlockSpec((9, c_p, c_p), lambda i: (0, 0, 0))
    vspec = pl.BlockSpec((1, c_p), lambda i: (0, 0))
    return pl.pallas_call(
        kernel,
        out_shape=jax.ShapeDtypeStruct((n, hout, wout, c_p), jnp.float32),
        grid=(n // nb,),
        in_specs=[
            pl.BlockSpec((nb, hp, wp, c_p), lambda i: (i, 0, 0, 0)),
            wspec, vspec, vspec, wspec, vspec, vspec,
        ],
        out_specs=pl.BlockSpec((nb, hout, wout, c_p), lambda i: (i, 0, 0, 0)),
        scratch_shapes=[pltpu.VMEM((nb, hout + 2, wout + 2, c_p),
                                   jnp.bfloat16)],
        compiler_params=pltpu.CompilerParams(
            dimension_semantics=("parallel",)),
    )(y0_pad, w1, g1, b1, w2, g2, b2)


# ---------------------------------------------------------------------------
# Parameter / input preparation (plain JAX glue)
# ---------------------------------------------------------------------------
def _weight_taps(w_oihw, cin_p, cout_p):
    """(Cout, Cin, 3, 3) -> (9, cin_p, cout_p) bf16, tap index = kh*3+kw."""
    cout, cin, kh, kw = w_oihw.shape
    w = jnp.transpose(w_oihw, (2, 3, 1, 0)).reshape(kh * kw, cin, cout)
    w = jnp.pad(w, ((0, 0), (0, cin_p - cin), (0, cout_p - cout)))
    return w.astype(jnp.bfloat16)


def _pad_vec(v, c_p, fill):
    c = v.shape[0]
    return jnp.pad(v, (0, c_p - c),
                   constant_values=fill).reshape(1, c_p).astype(jnp.float32)


def _pick_batch_block(n, per_sample_bytes, budget_bytes=8 * 1024 * 1024):
    nb = max(1, min(n, budget_bytes // max(per_sample_bytes, 1)))
    if n >= 2:                      # keep >=2 grid steps for v7x's 2 TCs
        nb = min(nb, n // 2)
    nb = max(nb, 1)
    while n % nb:                   # need a divisor of n
        nb -= 1
    return nb


@jax.jit
def conv_res_block_forward(x_nchw, params):
    """x: (N, C_in, H, W) -> (N, C_out, H//2, W//2)  (NCHW, like PyTorch)."""
    x = jnp.transpose(x_nchw, (0, 2, 3, 1))            # NCHW -> NHWC
    n, h, w, cin = x.shape
    cout = params["w0"].shape[0]
    assert h % 2 == 0 and w % 2 == 0, "stride-2 path assumes even H, W"
    hout, wout = h // 2, w // 2
    cin_p = _round_up(cin, LANE)
    c_p = _round_up(cout, LANE)

    # Layer-0 input: pad channels to 128 lanes, 1px zero halo, bf16, and split
    # into the 4 stride-2 phases (concatenated along the row axis).
    xp = jnp.pad(x, ((0, 0), (1, 1), (1, 1),
                     (0, cin_p - cin))).astype(jnp.bfloat16)
    phases = jnp.concatenate(
        [xp[:, 0::2, 0::2, :], xp[:, 0::2, 1::2, :],
         xp[:, 1::2, 0::2, :], xp[:, 1::2, 1::2, :]], axis=1)

    w0 = _weight_taps(params["w0"], cin_p, c_p)
    w1 = _weight_taps(params["w1"], c_p, c_p)
    w2 = _weight_taps(params["w2"], c_p, c_p)
    g0, b0 = _pad_vec(params["g0"], c_p, 1.0), _pad_vec(params["b0"], c_p, 0.0)
    g1, b1 = _pad_vec(params["g1"], c_p, 1.0), _pad_vec(params["b1"], c_p, 0.0)
    g2, b2 = _pad_vec(params["g2"], c_p, 1.0), _pad_vec(params["b2"], c_p, 0.0)

    # crude per-sample VMEM footprint (activations, double-buffer margin x3)
    per_sample = (4 * (hout + 1) * (wout + 1) * cin_p * 2
                  + 3 * (hout + 2) * (wout + 2) * c_p * 2
                  + hout * wout * c_p * 4)
    nb = _pick_batch_block(n, 3 * per_sample)

    y0 = _conv0_call(phases, w0, g0, b0, nb, hout, wout)          # bf16, halo
    y = _resblock_call(y0, w1, g1, b1, w2, g2, b2, nb, hout, wout)  # f32
    y = y[..., :cout]                                              # drop lane pad
    return jnp.transpose(y, (0, 3, 1, 2))                          # NHWC -> NCHW


# ---------------------------------------------------------------------------
# Pure-JAX reference (mirrors the kernel's bf16 matmul / bf16 inter-layer
# activation storage so the comparison isolates structural correctness).
# ---------------------------------------------------------------------------
def _conv3x3_ref(x_nhwc, w_oihw, stride):
    w_hwio = jnp.transpose(w_oihw, (2, 3, 1, 0)).astype(jnp.bfloat16)
    return lax.conv_general_dilated(
        x_nhwc.astype(jnp.bfloat16), w_hwio,
        window_strides=(stride, stride), padding=((1, 1), (1, 1)),
        dimension_numbers=("NHWC", "HWIO", "NHWC"),
        preferred_element_type=jnp.float32)


def _gn_lrelu_ref(y, gamma, beta):
    mean = jnp.mean(y, axis=(1, 2), keepdims=True)
    var = jnp.mean(jnp.square(y - mean), axis=(1, 2), keepdims=True)
    out = (y - mean) * lax.rsqrt(var + GN_EPS) * gamma + beta
    return jnp.where(out >= 0.0, out, LEAKY_SLOPE * out)


def conv_res_block_reference(x_nchw, params):
    x = jnp.transpose(x_nchw, (0, 2, 3, 1))
    y0 = _gn_lrelu_ref(_conv3x3_ref(x, params["w0"], 2),
                       params["g0"], params["b0"])
    y0 = y0.astype(jnp.bfloat16).astype(jnp.float32)
    y1 = _gn_lrelu_ref(_conv3x3_ref(y0, params["w1"], 1),
                       params["g1"], params["b1"])
    y1 = y1.astype(jnp.bfloat16).astype(jnp.float32)
    y2 = _gn_lrelu_ref(_conv3x3_ref(y1, params["w2"], 1),
                       params["g2"], params["b2"])
    return jnp.transpose(y0 + y2, (0, 3, 1, 2))


# ---------------------------------------------------------------------------
def init_params(key, in_c, out_c):
    ks = jax.random.split(key, 9)

    def w(k, co, ci):
        return 0.1 * jax.random.normal(k, (co, ci, 3, 3), dtype=jnp.float32)

    return {
        "w0": w(ks[0], out_c, in_c),
        "g0": 1.0 + 0.1 * jax.random.normal(ks[1], (out_c,), dtype=jnp.float32),
        "b0": 0.1 * jax.random.normal(ks[2], (out_c,), dtype=jnp.float32),
        "w1": w(ks[3], out_c, out_c),
        "g1": 1.0 + 0.1 * jax.random.normal(ks[4], (out_c,), dtype=jnp.float32),
        "b1": 0.1 * jax.random.normal(ks[5], (out_c,), dtype=jnp.float32),
        "w2": w(ks[6], out_c, out_c),
        "g2": 1.0 + 0.1 * jax.random.normal(ks[7], (out_c,), dtype=jnp.float32),
        "b2": 0.1 * jax.random.normal(ks[8], (out_c,), dtype=jnp.float32),
    }


if __name__ == "__main__":
    key = jax.random.PRNGKey(0)
    k_x, k_p = jax.random.split(key)

    N, C_IN, C_OUT, H, W = 2, 4, 8, 16, 16
    x = jax.random.normal(k_x, (N, C_IN, H, W), dtype=jnp.float32)
    params = init_params(k_p, C_IN, C_OUT)

    out = conv_res_block_forward(x, params)
    jax.block_until_ready(out)

    expected = (N, C_OUT, H // 2, W // 2)
    assert out.shape == expected, (out.shape, expected)
    assert bool(jnp.all(jnp.isfinite(out)))

    ref = conv_res_block_reference(x, params)
    max_err = float(jnp.max(jnp.abs(out - ref)))
    assert max_err < 1e-2, f"mismatch vs reference: max abs err = {max_err}"
    print("KERNEL_OK")
</pallas_src>

<mosaic_0001>
module attributes {stable_mosaic.version = 11 : i64} {
  func.func @kernel(%arg0: i32, %arg1: memref<1x36x9x128xbf16, #tpu.memory_space<vmem>>, %arg2: memref<9x128x128xbf16, #tpu.memory_space<vmem>>, %arg3: memref<1x128xf32, #tpu.memory_space<vmem>>, %arg4: memref<1x128xf32, #tpu.memory_space<vmem>>, %arg5: memref<1x10x10x128xbf16, #tpu.memory_space<vmem>>) attributes {dimension_semantics = [#tpu.dimension_semantics<parallel>], iteration_bounds = array<i64: 2>, scalar_prefetch = 0 : i64, scratch_operands = 0 : i64, tpu.core_type = #tpu.core_type<tc>, window_params = [{transform_indices = @transform_0, window_bounds = array<i64: 1, 36, 9, 128>}, {pipeline_mode = #tpu.pipeline_mode<synchronous>, transform_indices = @transform_1, window_bounds = array<i64: 9, 128, 128>}, {pipeline_mode = #tpu.pipeline_mode<synchronous>, transform_indices = @transform_2, window_bounds = array<i64: 1, 128>}, {pipeline_mode = #tpu.pipeline_mode<synchronous>, transform_indices = @transform_3, window_bounds = array<i64: 1, 128>}, {transform_indices = @transform_4, window_bounds = array<i64: 1, 10, 10, 128>}]} {
    %cst = arith.constant 0.000000e+00 : f32
    %0 = vector.broadcast %cst : f32 to vector<64x128xf32>
    %c0 = arith.constant 0 : index
    %c0_0 = arith.constant 0 : index
    %c0_1 = arith.constant 0 : index
    %c0_2 = arith.constant 0 : index
    %1 = vector.load %arg1[%c0, %c0_0, %c0_1, %c0_2] : memref<1x36x9x128xbf16, #tpu.memory_space<vmem>>, vector<1x8x8x128xbf16>
    %2 = vector.shape_cast %1 : vector<1x8x8x128xbf16> to vector<64x128xbf16>
    %c0_3 = arith.constant 0 : index
    %c0_4 = arith.constant 0 : index
    %c0_5 = arith.constant 0 : index
    %3 = vector.load %arg2[%c0_3, %c0_4, %c0_5] : memref<9x128x128xbf16, #tpu.memory_space<vmem>>, vector<1x128x128xbf16>
    %4 = vector.shape_cast %3 : vector<1x128x128xbf16> to vector<128x128xbf16>
    %cst_6 = arith.constant dense<0.000000e+00> : vector<64x128xf32>
    %5 = tpu.matmul %2, %4, %cst_6 {dimension_numbers = #tpu.dot_dimension_numbers<[1], [0], [0], [1], [0, 0, 1, 1], [], []>} : vector<64x128xbf16>, vector<128x128xbf16>, vector<64x128xf32> -> vector<64x128xf32>
    %6 = arith.addf %0, %5 : vector<64x128xf32>
    %c0_7 = arith.constant 0 : index
    %c9 = arith.constant 9 : index
    %c0_8 = arith.constant 0 : index
    %c0_9 = arith.constant 0 : index
    %7 = vector.load %arg1[%c0_7, %c9, %c0_8, %c0_9] : memref<1x36x9x128xbf16, #tpu.memory_space<vmem>>, vector<1x8x8x128xbf16>
    %8 = vector.shape_cast %7 : vector<1x8x8x128xbf16> to vector<64x128xbf16>
    %c1 = arith.constant 1 : index
    %c0_10 = arith.constant 0 : index
    %c0_11 = arith.constant 0 : index
    %9 = vector.load %arg2[%c1, %c0_10, %c0_11] : memref<9x128x128xbf16, #tpu.memory_space<vmem>>, vector<1x128x128xbf16>
    %10 = vector.shape_cast %9 : vector<1x128x128xbf16> to vector<128x128xbf16>
    %cst_12 = arith.constant dense<0.000000e+00> : vector<64x128xf32>
    %11 = tpu.matmul %8, %10, %cst_12 {dimension_numbers = #tpu.dot_dimension_numbers<[1], [0], [0], [1], [0, 0, 1, 1], [], []>} : vector<64x128xbf16>, vector<128x128xbf16>, vector<64x128xf32> -> vector<64x128xf32>
    %12 = arith.addf %6, %11 : vector<64x128xf32>
    %c0_13 = arith.constant 0 : index
    %c0_14 = arith.constant 0 : index
    %c1_15 = arith.constant 1 : index
    %c0_16 = arith.constant 0 : index
    %13 = vector.load %arg1[%c0_13, %c0_14, %c1_15, %c0_16] : memref<1x36x9x128xbf16, #tpu.memory_space<vmem>>, vector<1x8x8x128xbf16>
    %14 = vector.shape_cast %13 : vector<1x8x8x128xbf16> to vector<64x128xbf16>
    %c2 = arith.constant 2 : index
    %c0_17 = arith.constant 0 : index
    %c0_18 = arith.constant 0 : index
    %15 = vector.load %arg2[%c2, %c0_17, %c0_18] : memref<9x128x128xbf16, #tpu.memory_space<vmem>>, vector<1x128x128xbf16>
    %16 = vector.shape_cast %15 : vector<1x128x128xbf16> to vector<128x128xbf16>
    %cst_19 = arith.constant dense<0.000000e+00> : vector<64x128xf32>
    %17 = tpu.matmul %14, %16, %cst_19 {dimension_numbers = #tpu.dot_dimension_numbers<[1], [0], [0], [1], [0, 0, 1, 1], [], []>} : vector<64x128xbf16>, vector<128x128xbf16>, vector<64x128xf32> -> vector<64x128xf32>
    %18 = arith.addf %12, %17 : vector<64x128xf32>
    %c0_20 = arith.constant 0 : index
    %c18 = arith.constant 18 : index
    %c0_21 = arith.constant 0 : index
    %c0_22 = arith.constant 0 : index
    %19 = vector.load %arg1[%c0_20, %c18, %c0_21, %c0_22] : memref<1x36x9x128xbf16, #tpu.memory_space<vmem>>, vector<1x8x8x128xbf16>
    %20 = vector.shape_cast %19 : vector<1x8x8x128xbf16> to vector<64x128xbf16>
    %c3 = arith.constant 3 : index
    %c0_23 = arith.constant 0 : index
    %c0_24 = arith.constant 0 : index
    %21 = vector.load %arg2[%c3, %c0_23, %c0_24] : memref<9x128x128xbf16, #tpu.memory_space<vmem>>, vector<1x128x128xbf16>
    %22 = vector.shape_cast %21 : vector<1x128x128xbf16> to vector<128x128xbf16>
    %cst_25 = arith.constant dense<0.000000e+00> : vector<64x128xf32>
    %23 = tpu.matmul %20, %22, %cst_25 {dimension_numbers = #tpu.dot_dimension_numbers<[1], [0], [0], [1], [0, 0, 1, 1], [], []>} : vector<64x128xbf16>, vector<128x128xbf16>, vector<64x128xf32> -> vector<64x128xf32>
    %24 = arith.addf %18, %23 : vector<64x128xf32>
    %c0_26 = arith.constant 0 : index
    %c27 = arith.constant 27 : index
    %c0_27 = arith.constant 0 : index
    %c0_28 = arith.constant 0 : index
    %25 = vector.load %arg1[%c0_26, %c27, %c0_27, %c0_28] : memref<1x36x9x128xbf16, #tpu.memory_space<vmem>>, vector<1x8x8x128xbf16>
    %26 = vector.shape_cast %25 : vector<1x8x8x128xbf16> to vector<64x128xbf16>
    %c4 = arith.constant 4 : index
    %c0_29 = arith.constant 0 : index
    %c0_30 = arith.constant 0 : index
    %27 = vector.load %arg2[%c4, %c0_29, %c0_30] : memref<9x128x128xbf16, #tpu.memory_space<vmem>>, vector<1x128x128xbf16>
    %28 = vector.shape_cast %27 : vector<1x128x128xbf16> to vector<128x128xbf16>
    %cst_31 = arith.constant dense<0.000000e+00> : vector<64x128xf32>
    %29 = tpu.matmul %26, %28, %cst_31 {dimension_numbers = #tpu.dot_dimension_numbers<[1], [0], [0], [1], [0, 0, 1, 1], [], []>} : vector<64x128xbf16>, vector<128x128xbf16>, vector<64x128xf32> -> vector<64x128xf32>
    %30 = arith.addf %24, %29 : vector<64x128xf32>
    %c0_32 = arith.constant 0 : index
    %c18_33 = arith.constant 18 : index
    %c1_34 = arith.constant 1 : index
    %c0_35 = arith.constant 0 : index
    %31 = vector.load %arg1[%c0_32, %c18_33, %c1_34, %c0_35] : memref<1x36x9x128xbf16, #tpu.memory_space<vmem>>, vector<1x8x8x128xbf16>
    %32 = vector.shape_cast %31 : vector<1x8x8x128xbf16> to vector<64x128xbf16>
    %c5 = arith.constant 5 : index
    %c0_36 = arith.constant 0 : index
    %c0_37 = arith.constant 0 : index
    %33 = vector.load %arg2[%c5, %c0_36, %c0_37] : memref<9x128x128xbf16, #tpu.memory_space<vmem>>, vector<1x128x128xbf16>
    %34 = vector.shape_cast %33 : vector<1x128x128xbf16> to vector<128x128xbf16>
    %cst_38 = arith.constant dense<0.000000e+00> : vector<64x128xf32>
    %35 = tpu.matmul %32, %34, %cst_38 {dimension_numbers = #tpu.dot_dimension_numbers<[1], [0], [0], [1], [0, 0, 1, 1], [], []>} : vector<64x128xbf16>, vector<128x128xbf16>, vector<64x128xf32> -> vector<64x128xf32>
    %36 = arith.addf %30, %35 : vector<64x128xf32>
    %c0_39 = arith.constant 0 : index
    %c1_40 = arith.constant 1 : index
    %c0_41 = arith.constant 0 : index
    %c0_42 = arith.constant 0 : index
    %37 = vector.load %arg1[%c0_39, %c1_40, %c0_41, %c0_42] : memref<1x36x9x128xbf16, #tpu.memory_space<vmem>>, vector<1x8x8x128xbf16>
    %38 = vector.shape_cast %37 : vector<1x8x8x128xbf16> to vector<64x128xbf16>
    %c6 = arith.constant 6 : index
    %c0_43 = arith.constant 0 : index
    %c0_44 = arith.constant 0 : index
    %39 = vector.load %arg2[%c6, %c0_43, %c0_44] : memref<9x128x128xbf16, #tpu.memory_space<vmem>>, vector<1x128x128xbf16>
    %40 = vector.shape_cast %39 : vector<1x128x128xbf16> to vector<128x128xbf16>
    %cst_45 = arith.constant dense<0.000000e+00> : vector<64x128xf32>
    %41 = tpu.matmul %38, %40, %cst_45 {dimension_numbers = #tpu.dot_dimension_numbers<[1], [0], [0], [1], [0, 0, 1, 1], [], []>} : vector<64x128xbf16>, vector<128x128xbf16>, vector<64x128xf32> -> vector<64x128xf32>
    %42 = arith.addf %36, %41 : vector<64x128xf32>
    %c0_46 = arith.constant 0 : index
    %c10 = arith.constant 10 : index
    %c0_47 = arith.constant 0 : index
    %c0_48 = arith.constant 0 : index
    %43 = vector.load %arg1[%c0_46, %c10, %c0_47, %c0_48] : memref<1x36x9x128xbf16, #tpu.memory_space<vmem>>, vector<1x8x8x128xbf16>
    %44 = vector.shape_cast %43 : vector<1x8x8x128xbf16> to vector<64x128xbf16>
    %c7 = arith.constant 7 : index
    %c0_49 = arith.constant 0 : index
    %c0_50 = arith.constant 0 : index
    %45 = vector.load %arg2[%c7, %c0_49, %c0_50] : memref<9x128x128xbf16, #tpu.memory_space<vmem>>, vector<1x128x128xbf16>
    %46 = vector.shape_cast %45 : vector<1x128x128xbf16> to vector<128x128xbf16>
    %cst_51 = arith.constant dense<0.000000e+00> : vector<64x128xf32>
    %47 = tpu.matmul %44, %46, %cst_51 {dimension_numbers = #tpu.dot_dimension_numbers<[1], [0], [0], [1], [0, 0, 1, 1], [], []>} : vector<64x128xbf16>, vector<128x128xbf16>, vector<64x128xf32> -> vector<64x128xf32>
    %48 = arith.addf %42, %47 : vector<64x128xf32>
    %c0_52 = arith.constant 0 : index
    %c1_53 = arith.constant 1 : index
    %c1_54 = arith.constant 1 : index
    %c0_55 = arith.constant 0 : index
    %49 = vector.load %arg1[%c0_52, %c1_53, %c1_54, %c0_55] : memref<1x36x9x128xbf16, #tpu.memory_space<vmem>>, vector<1x8x8x128xbf16>
    %50 = vector.shape_cast %49 : vector<1x8x8x128xbf16> to vector<64x128xbf16>
    %c8 = arith.constant 8 : index
    %c0_56 = arith.constant 0 : index
    %c0_57 = arith.constant 0 : index
    %51 = vector.load %arg2[%c8, %c0_56, %c0_57] : memref<9x128x128xbf16, #tpu.memory_space<vmem>>, vector<1x128x128xbf16>
    %52 = vector.shape_cast %51 : vector<1x128x128xbf16> to vector<128x128xbf16>
    %cst_58 = arith.constant dense<0.000000e+00> : vector<64x128xf32>
    %53 = tpu.matmul %50, %52, %cst_58 {dimension_numbers = #tpu.dot_dimension_numbers<[1], [0], [0], [1], [0, 0, 1, 1], [], []>} : vector<64x128xbf16>, vector<128x128xbf16>, vector<64x128xf32> -> vector<64x128xf32>
    %54 = arith.addf %48, %53 : vector<64x128xf32>
    %55 = vector.shape_cast %54 : vector<64x128xf32> to vector<1x64x128xf32>
    %cst_59 = arith.constant dense<0.000000e+00> : vector<1x128xf32>
    %56 = vector.multi_reduction <add>, %55, %cst_59 [1] : vector<1x64x128xf32> to vector<1x128xf32>
    %57 = vector.shape_cast %56 : vector<1x128xf32> to vector<1x1x128xf32>
    %58 = arith.mulf %55, %55 : vector<1x64x128xf32>
    %cst_60 = arith.constant dense<0.000000e+00> : vector<1x128xf32>
    %59 = vector.multi_reduction <add>, %58, %cst_60 [1] : vector<1x64x128xf32> to vector<1x128xf32>
    %60 = vector.shape_cast %59 : vector<1x128xf32> to vector<1x1x128xf32>
    %cst_61 = arith.constant 1.562500e-02 : f32
    %61 = vector.broadcast %cst_61 : f32 to vector<1x1x128xf32>
    %62 = arith.mulf %57, %61 : vector<1x1x128xf32>
    %cst_62 = arith.constant 1.562500e-02 : f32
    %63 = vector.broadcast %cst_62 : f32 to vector<1x1x128xf32>
    %64 = arith.mulf %60, %63 : vector<1x1x128xf32>
    %65 = arith.mulf %62, %62 : vector<1x1x128xf32>
    %66 = arith.subf %64, %65 : vector<1x1x128xf32>
    %cst_63 = arith.constant 0.000000e+00 : f32
    %67 = vector.broadcast %cst_63 : f32 to vector<1x1x128xf32>
    %68 = arith.maximumf %66, %67 : vector<1x1x128xf32>
    %c0_64 = arith.constant 0 : index
    %c0_65 = arith.constant 0 : index
    %69 = vector.load %arg3[%c0_64, %c0_65] : memref<1x128xf32, #tpu.memory_space<vmem>>, vector<1x128xf32>
    %cst_66 = arith.constant 9.99999974E-6 : f32
    %70 = vector.broadcast %cst_66 : f32 to vector<1x1x128xf32>
    %71 = arith.addf %68, %70 : vector<1x1x128xf32>
    %72 = math.rsqrt %71 : vector<1x1x128xf32>
    %73 = vector.shape_cast %69 : vector<1x128xf32> to vector<1x1x128xf32>
    %74 = arith.mulf %73, %72 : vector<1x1x128xf32>
    %c0_67 = arith.constant 0 : index
    %c0_68 = arith.constant 0 : index
    %75 = vector.load %arg4[%c0_67, %c0_68] : memref<1x128xf32, #tpu.memory_space<vmem>>, vector<1x128xf32>
    %76 = arith.mulf %62, %74 : vector<1x1x128xf32>
    %77 = vector.shape_cast %75 : vector<1x128xf32> to vector<1x1x128xf32>
    %78 = arith.subf %77, %76 : vector<1x1x128xf32>
    %79 = vector.broadcast %74 : vector<1x1x128xf32> to vector<1x64x128xf32>
    %80 = arith.mulf %55, %79 : vector<1x64x128xf32>
    %81 = vector.broadcast %78 : vector<1x1x128xf32> to vector<1x64x128xf32>
    %82 = arith.addf %80, %81 : vector<1x64x128xf32>
    %cst_69 = arith.constant 0.000000e+00 : f32
    %83 = vector.broadcast %cst_69 : f32 to vector<1x64x128xf32>
    %84 = arith.cmpf oge, %82, %83 : vector<1x64x128xf32>
    %cst_70 = arith.constant 0.00999999977 : f32
    %85 = vector.broadcast %cst_70 : f32 to vector<1x64x128xf32>
    %86 = arith.mulf %85, %82 : vector<1x64x128xf32>
    %87 = arith.select %84, %82, %86 : vector<1x64x128xi1>, vector<1x64x128xf32>
    %cst_71 = arith.constant 0.000000e+00 : bf16
    %88 = vector.broadcast %cst_71 : bf16 to vector<1x10x10x128xbf16>
    %c0_72 = arith.constant 0 : index
    %c0_73 = arith.constant 0 : index
    %c0_74 = arith.constant 0 : index
    %c0_75 = arith.constant 0 : index
    %89 = vector.load %arg5[%c0_72, %c0_73, %c0_74, %c0_75] : memref<1x10x10x128xbf16, #tpu.memory_space<vmem>>, vector<1x10x10x128xbf16>
    tpu.vector_store %arg5[%c0_72, %c0_73, %c0_74, %c0_75], %88 {strides = array<i32>} : memref<1x10x10x128xbf16, #tpu.memory_space<vmem>>, vector<1x10x10x128xbf16>,
    %90 = vector.shape_cast %87 : vector<1x64x128xf32> to vector<1x8x8x128xf32>
    %91 = arith.truncf %90 : vector<1x8x8x128xf32> to vector<1x8x8x128xbf16>
    %c0_76 = arith.constant 0 : index
    %c1_77 = arith.constant 1 : index
    %c1_78 = arith.constant 1 : index
    %c0_79 = arith.constant 0 : index
    %92 = vector.load %arg5[%c0_76, %c1_77, %c1_78, %c0_79] : memref<1x10x10x128xbf16, #tpu.memory_space<vmem>>, vector<1x8x8x128xbf16>
    tpu.vector_store %arg5[%c0_76, %c1_77, %c1_78, %c0_79], %91 {strides = array<i32>} : memref<1x10x10x128xbf16, #tpu.memory_space<vmem>>, vector<1x8x8x128xbf16>,
    return
  }
  func.func @transform_0(%arg0: i32) -> (i32, i32, i32, i32) {
    %c0_i32 = arith.constant 0 : i32
    %c0_i32_0 = arith.constant 0 : i32
    %c0_i32_1 = arith.constant 0 : i32
    %c0_i32_2 = arith.constant 0 : i32
    return %arg0, %c0_i32, %c0_i32_0, %c0_i32_1 : i32, i32, i32, i32
  }
  func.func @transform_1(%arg0: i32) -> (i32, i32, i32) {
    %c0_i32 = arith.constant 0 : i32
    %c0_i32_0 = arith.constant 0 : i32
    %c0_i32_1 = arith.constant 0 : i32
    %c0_i32_2 = arith.constant 0 : i32
    return %c0_i32, %c0_i32_0, %c0_i32_1 : i32, i32, i32
  }
  func.func @transform_2(%arg0: i32) -> (i32, i32) {
    %c0_i32 = arith.constant 0 : i32
    %c0_i32_0 = arith.constant 0 : i32
    %c0_i32_1 = arith.constant 0 : i32
    return %c0_i32, %c0_i32_0 : i32, i32
  }
  func.func @transform_3(%arg0: i32) -> (i32, i32) {
    %c0_i32 = arith.constant 0 : i32
    %c0_i32_0 = arith.constant 0 : i32
    %c0_i32_1 = arith.constant 0 : i32
    return %c0_i32, %c0_i32_0 : i32, i32
  }
  func.func @transform_4(%arg0: i32) -> (i32, i32, i32, i32) {
    %c0_i32 = arith.constant 0 : i32
    %c0_i32_0 = arith.constant 0 : i32
    %c0_i32_1 = arith.constant 0 : i32
    %c0_i32_2 = arith.constant 0 : i32
    return %arg0, %c0_i32, %c0_i32_0, %c0_i32_1 : i32, i32, i32, i32
  }
}

module attributes {stable_mosaic.version = 11 : i64} {
  func.func @kernel(%arg0: i32, %arg1: memref<1x10x10x128xbf16, #tpu.memory_space<vmem>>, %arg2: memref<9x128x128xbf16, #tpu.memory_space<vmem>>, %arg3: memref<1x128xf32, #tpu.memory_space<vmem>>, %arg4: memref<1x128xf32, #tpu.memory_space<vmem>>, %arg5: memref<9x128x128xbf16, #tpu.memory_space<vmem>>, %arg6: memref<1x128xf32, #tpu.memory_space<vmem>>, %arg7: memref<1x128xf32, #tpu.memory_space<vmem>>, %arg8: memref<1x8x8x128xf32, #tpu.memory_space<vmem>>, %arg9: memref<1x10x10x128xbf16, #tpu.memory_space<vmem>>) attributes {dimension_semantics = [#tpu.dimension_semantics<parallel>], iteration_bounds = array<i64: 2>, scalar_prefetch = 0 : i64, scratch_operands = 1 : i64, tpu.core_type = #tpu.core_type<tc>, window_params = [{transform_indices = @transform_0, window_bounds = array<i64: 1, 10, 10, 128>}, {pipeline_mode = #tpu.pipeline_mode<synchronous>, transform_indices = @transform_1, window_bounds = array<i64: 9, 128, 128>}, {pipeline_mode = #tpu.pipeline_mode<synchronous>, transform_indices = @transform_2, window_bounds = array<i64: 1, 128>}, {pipeline_mode = #tpu.pipeline_mode<synchronous>, transform_indices = @transform_3, window_bounds = array<i64: 1, 128>}, {pipeline_mode = #tpu.pipeline_mode<synchronous>, transform_indices = @transform_4, window_bounds = array<i64: 9, 128, 128>}, {pipeline_mode = #tpu.pipeline_mode<synchronous>, transform_indices = @transform_5, window_bounds = array<i64: 1, 128>}, {pipeline_mode = #tpu.pipeline_mode<synchronous>, transform_indices = @transform_6, window_bounds = array<i64: 1, 128>}, {transform_indices = @transform_7, window_bounds = array<i64: 1, 8, 8, 128>}]} {
    %cst = arith.constant 0.000000e+00 : f32
    %0 = vector.broadcast %cst : f32 to vector<64x128xf32>
    %c0 = arith.constant 0 : index
    %c0_0 = arith.constant 0 : index
    %c0_1 = arith.constant 0 : index
    %c0_2 = arith.constant 0 : index
    %1 = vector.load %arg1[%c0, %c0_0, %c0_1, %c0_2] : memref<1x10x10x128xbf16, #tpu.memory_space<vmem>>, vector<1x8x8x128xbf16>
    %2 = vector.shape_cast %1 : vector<1x8x8x128xbf16> to vector<64x128xbf16>
    %c0_3 = arith.constant 0 : index
    %c0_4 = arith.constant 0 : index
    %c0_5 = arith.constant 0 : index
    %3 = vector.load %arg2[%c0_3, %c0_4, %c0_5] : memref<9x128x128xbf16, #tpu.memory_space<vmem>>, vector<1x128x128xbf16>
    %4 = vector.shape_cast %3 : vector<1x128x128xbf16> to vector<128x128xbf16>
    %cst_6 = arith.constant dense<0.000000e+00> : vector<64x128xf32>
    %5 = tpu.matmul %2, %4, %cst_6 {dimension_numbers = #tpu.dot_dimension_numbers<[1], [0], [0], [1], [0, 0, 1, 1], [], []>} : vector<64x128xbf16>, vector<128x128xbf16>, vector<64x128xf32> -> vector<64x128xf32>
    %6 = arith.addf %0, %5 : vector<64x128xf32>
    %c0_7 = arith.constant 0 : index
    %c0_8 = arith.constant 0 : index
    %c1 = arith.constant 1 : index
    %c0_9 = arith.constant 0 : index
    %7 = vector.load %arg1[%c0_7, %c0_8, %c1, %c0_9] : memref<1x10x10x128xbf16, #tpu.memory_space<vmem>>, vector<1x8x8x128xbf16>
    %8 = vector.shape_cast %7 : vector<1x8x8x128xbf16> to vector<64x128xbf16>
    %c1_10 = arith.constant 1 : index
    %c0_11 = arith.constant 0 : index
    %c0_12 = arith.constant 0 : index
    %9 = vector.load %arg2[%c1_10, %c0_11, %c0_12] : memref<9x128x128xbf16, #tpu.memory_space<vmem>>, vector<1x128x128xbf16>
    %10 = vector.shape_cast %9 : vector<1x128x128xbf16> to vector<128x128xbf16>
    %cst_13 = arith.constant dense<0.000000e+00> : vector<64x128xf32>
    %11 = tpu.matmul %8, %10, %cst_13 {dimension_numbers = #tpu.dot_dimension_numbers<[1], [0], [0], [1], [0, 0, 1, 1], [], []>} : vector<64x128xbf16>, vector<128x128xbf16>, vector<64x128xf32> -> vector<64x128xf32>
    %12 = arith.addf %6, %11 : vector<64x128xf32>
    %c0_14 = arith.constant 0 : index
    %c0_15 = arith.constant 0 : index
    %c2 = arith.constant 2 : index
    %c0_16 = arith.constant 0 : index
    %13 = vector.load %arg1[%c0_14, %c0_15, %c2, %c0_16] : memref<1x10x10x128xbf16, #tpu.memory_space<vmem>>, vector<1x8x8x128xbf16>
    %14 = vector.shape_cast %13 : vector<1x8x8x128xbf16> to vector<64x128xbf16>
    %c2_17 = arith.constant 2 : index
    %c0_18 = arith.constant 0 : index
    %c0_19 = arith.constant 0 : index
    %15 = vector.load %arg2[%c2_17, %c0_18, %c0_19] : memref<9x128x128xbf16, #tpu.memory_space<vmem>>, vector<1x128x128xbf16>
    %16 = vector.shape_cast %15 : vector<1x128x128xbf16> to vector<128x128xbf16>
    %cst_20 = arith.constant dense<0.000000e+00> : vector<64x128xf32>
    %17 = tpu.matmul %14, %16, %cst_20 {dimension_numbers = #tpu.dot_dimension_numbers<[1], [0], [0], [1], [0, 0, 1, 1], [], []>} : vector<64x128xbf16>, vector<128x128xbf16>, vector<64x128xf32> -> vector<64x128xf32>
    %18 = arith.addf %12, %17 : vector<64x128xf32>
    %c0_21 = arith.constant 0 : index
    %c1_22 = arith.constant 1 : index
    %c0_23 = arith.constant 0 : index
    %c0_24 = arith.constant 0 : index
    %19 = vector.load %arg1[%c0_21, %c1_22, %c0_23, %c0_24] : memref<1x10x10x128xbf16, #tpu.memory_space<vmem>>, vector<1x8x8x128xbf16>
    %20 = vector.shape_cast %19 : vector<1x8x8x128xbf16> to vector<64x128xbf16>
    %c3 = arith.constant 3 : index
    %c0_25 = arith.constant 0 : index
    %c0_26 = arith.constant 0 : index
    %21 = vector.load %arg2[%c3, %c0_25, %c0_26] : memref<9x128x128xbf16, #tpu.memory_space<vmem>>, vector<1x128x128xbf16>
    %22 = vector.shape_cast %21 : vector<1x128x128xbf16> to vector<128x128xbf16>
    %cst_27 = arith.constant dense<0.000000e+00> : vector<64x128xf32>
    %23 = tpu.matmul %20, %22, %cst_27 {dimension_numbers = #tpu.dot_dimension_numbers<[1], [0], [0], [1], [0, 0, 1, 1], [], []>} : vector<64x128xbf16>, vector<128x128xbf16>, vector<64x128xf32> -> vector<64x128xf32>
    %24 = arith.addf %18, %23 : vector<64x128xf32>
    %c0_28 = arith.constant 0 : index
    %c1_29 = arith.constant 1 : index
    %c1_30 = arith.constant 1 : index
    %c0_31 = arith.constant 0 : index
    %25 = vector.load %arg1[%c0_28, %c1_29, %c1_30, %c0_31] : memref<1x10x10x128xbf16, #tpu.memory_space<vmem>>, vector<1x8x8x128xbf16>
    %26 = vector.shape_cast %25 : vector<1x8x8x128xbf16> to vector<64x128xbf16>
    %c4 = arith.constant 4 : index
    %c0_32 = arith.constant 0 : index
    %c0_33 = arith.constant 0 : index
    %27 = vector.load %arg2[%c4, %c0_32, %c0_33] : memref<9x128x128xbf16, #tpu.memory_space<vmem>>, vector<1x128x128xbf16>
    %28 = vector.shape_cast %27 : vector<1x128x128xbf16> to vector<128x128xbf16>
    %cst_34 = arith.constant dense<0.000000e+00> : vector<64x128xf32>
    %29 = tpu.matmul %26, %28, %cst_34 {dimension_numbers = #tpu.dot_dimension_numbers<[1], [0], [0], [1], [0, 0, 1, 1], [], []>} : vector<64x128xbf16>, vector<128x128xbf16>, vector<64x128xf32> -> vector<64x128xf32>
    %30 = arith.addf %24, %29 : vector<64x128xf32>
    %c0_35 = arith.constant 0 : index
    %c1_36 = arith.constant 1 : index
    %c2_37 = arith.constant 2 : index
    %c0_38 = arith.constant 0 : index
    %31 = vector.load %arg1[%c0_35, %c1_36, %c2_37, %c0_38] : memref<1x10x10x128xbf16, #tpu.memory_space<vmem>>, vector<1x8x8x128xbf16>
    %32 = vector.shape_cast %31 : vector<1x8x8x128xbf16> to vector<64x128xbf16>
    %c5 = arith.constant 5 : index
    %c0_39 = arith.constant 0 : index
    %c0_40 = arith.constant 0 : index
    %33 = vector.load %arg2[%c5, %c0_39, %c0_40] : memref<9x128x128xbf16, #tpu.memory_space<vmem>>, vector<1x128x128xbf16>
    %34 = vector.shape_cast %33 : vector<1x128x128xbf16> to vector<128x128xbf16>
    %cst_41 = arith.constant dense<0.000000e+00> : vector<64x128xf32>
    %35 = tpu.matmul %32, %34, %cst_41 {dimension_numbers = #tpu.dot_dimension_numbers<[1], [0], [0], [1], [0, 0, 1, 1], [], []>} : vector<64x128xbf16>, vector<128x128xbf16>, vector<64x128xf32> -> vector<64x128xf32>
    %36 = arith.addf %30, %35 : vector<64x128xf32>
    %c0_42 = arith.constant 0 : index
    %c2_43 = arith.constant 2 : index
    %c0_44 = arith.constant 0 : index
    %c0_45 = arith.constant 0 : index
    %37 = vector.load %arg1[%c0_42, %c2_43, %c0_44, %c0_45] : memref<1x10x10x128xbf16, #tpu.memory_space<vmem>>, vector<1x8x8x128xbf16>
    %38 = vector.shape_cast %37 : vector<1x8x8x128xbf16> to vector<64x128xbf16>
    %c6 = arith.constant 6 : index
    %c0_46 = arith.constant 0 : index
    %c0_47 = arith.constant 0 : index
    %39 = vector.load %arg2[%c6, %c0_46, %c0_47] : memref<9x128x128xbf16, #tpu.memory_space<vmem>>, vector<1x128x128xbf16>
    %40 = vector.shape_cast %39 : vector<1x128x128xbf16> to vector<128x128xbf16>
    %cst_48 = arith.constant dense<0.000000e+00> : vector<64x128xf32>
    %41 = tpu.matmul %38, %40, %cst_48 {dimension_numbers = #tpu.dot_dimension_numbers<[1], [0], [0], [1], [0, 0, 1, 1], [], []>} : vector<64x128xbf16>, vector<128x128xbf16>, vector<64x128xf32> -> vector<64x128xf32>
    %42 = arith.addf %36, %41 : vector<64x128xf32>
    %c0_49 = arith.constant 0 : index
    %c2_50 = arith.constant 2 : index
    %c1_51 = arith.constant 1 : index
    %c0_52 = arith.constant 0 : index
    %43 = vector.load %arg1[%c0_49, %c2_50, %c1_51, %c0_52] : memref<1x10x10x128xbf16, #tpu.memory_space<vmem>>, vector<1x8x8x128xbf16>
    %44 = vector.shape_cast %43 : vector<1x8x8x128xbf16> to vector<64x128xbf16>
    %c7 = arith.constant 7 : index
    %c0_53 = arith.constant 0 : index
    %c0_54 = arith.constant 0 : index
    %45 = vector.load %arg2[%c7, %c0_53, %c0_54] : memref<9x128x128xbf16, #tpu.memory_space<vmem>>, vector<1x128x128xbf16>
    %46 = vector.shape_cast %45 : vector<1x128x128xbf16> to vector<128x128xbf16>
    %cst_55 = arith.constant dense<0.000000e+00> : vector<64x128xf32>
    %47 = tpu.matmul %44, %46, %cst_55 {dimension_numbers = #tpu.dot_dimension_numbers<[1], [0], [0], [1], [0, 0, 1, 1], [], []>} : vector<64x128xbf16>, vector<128x128xbf16>, vector<64x128xf32> -> vector<64x128xf32>
    %48 = arith.addf %42, %47 : vector<64x128xf32>
    %c0_56 = arith.constant 0 : index
    %c2_57 = arith.constant 2 : index
    %c2_58 = arith.constant 2 : index
    %c0_59 = arith.constant 0 : index
    %49 = vector.load %arg1[%c0_56, %c2_57, %c2_58, %c0_59] : memref<1x10x10x128xbf16, #tpu.memory_space<vmem>>, vector<1x8x8x128xbf16>
    %50 = vector.shape_cast %49 : vector<1x8x8x128xbf16> to vector<64x128xbf16>
    %c8 = arith.constant 8 : index
    %c0_60 = arith.constant 0 : index
    %c0_61 = arith.constant 0 : index
    %51 = vector.load %arg2[%c8, %c0_60, %c0_61] : memref<9x128x128xbf16, #tpu.memory_space<vmem>>, vector<1x128x128xbf16>
    %52 = vector.shape_cast %51 : vector<1x128x128xbf16> to vector<128x128xbf16>
    %cst_62 = arith.constant dense<0.000000e+00> : vector<64x128xf32>
    %53 = tpu.matmul %50, %52, %cst_62 {dimension_numbers = #tpu.dot_dimension_numbers<[1], [0], [0], [1], [0, 0, 1, 1], [], []>} : vector<64x128xbf16>, vector<128x128xbf16>, vector<64x128xf32> -> vector<64x128xf32>
    %54 = arith.addf %48, %53 : vector<64x128xf32>
    %55 = vector.shape_cast %54 : vector<64x128xf32> to vector<1x64x128xf32>
    %cst_63 = arith.constant dense<0.000000e+00> : vector<1x128xf32>
    %56 = vector.multi_reduction <add>, %55, %cst_63 [1] : vector<1x64x128xf32> to vector<1x128xf32>
    %57 = vector.shape_cast %56 : vector<1x128xf32> to vector<1x1x128xf32>
    %58 = arith.mulf %55, %55 : vector<1x64x128xf32>
    %cst_64 = arith.constant dense<0.000000e+00> : vector<1x128xf32>
    %59 = vector.multi_reduction <add>, %58, %cst_64 [1] : vector<1x64x128xf32> to vector<1x128xf32>
    %60 = vector.shape_cast %59 : vector<1x128xf32> to vector<1x1x128xf32>
    %cst_65 = arith.constant 1.562500e-02 : f32
    %61 = vector.broadcast %cst_65 : f32 to vector<1x1x128xf32>
    %62 = arith.mulf %57, %61 : vector<1x1x128xf32>
    %cst_66 = arith.constant 1.562500e-02 : f32
    %63 = vector.broadcast %cst_66 : f32 to vector<1x1x128xf32>
    %64 = arith.mulf %60, %63 : vector<1x1x128xf32>
    %65 = arith.mulf %62, %62 : vector<1x1x128xf32>
    %66 = arith.subf %64, %65 : vector<1x1x128xf32>
    %cst_67 = arith.constant 0.000000e+00 : f32
    %67 = vector.broadcast %cst_67 : f32 to vector<1x1x128xf32>
    %68 = arith.maximumf %66, %67 : vector<1x1x128xf32>
    %c0_68 = arith.constant 0 : index
    %c0_69 = arith.constant 0 : index
    %69 = vector.load %arg3[%c0_68, %c0_69] : memref<1x128xf32, #tpu.memory_space<vmem>>, vector<1x128xf32>
    %cst_70 = arith.constant 9.99999974E-6 : f32
    %70 = vector.broadcast %cst_70 : f32 to vector<1x1x128xf32>
    %71 = arith.addf %68, %70 : vector<1x1x128xf32>
    %72 = math.rsqrt %71 : vector<1x1x128xf32>
    %73 = vector.shape_cast %69 : vector<1x128xf32> to vector<1x1x128xf32>
    %74 = arith.mulf %73, %72 : vector<1x1x128xf32>
    %c0_71 = arith.constant 0 : index
    %c0_72 = arith.constant 0 : index
    %75 = vector.load %arg4[%c0_71, %c0_72] : memref<1x128xf32, #tpu.memory_space<vmem>>, vector<1x128xf32>
    %76 = arith.mulf %62, %74 : vector<1x1x128xf32>
    %77 = vector.shape_cast %75 : vector<1x128xf32> to vector<1x1x128xf32>
    %78 = arith.subf %77, %76 : vector<1x1x128xf32>
    %79 = vector.broadcast %74 : vector<1x1x128xf32> to vector<1x64x128xf32>
    %80 = arith.mulf %55, %79 : vector<1x64x128xf32>
    %81 = vector.broadcast %78 : vector<1x1x128xf32> to vector<1x64x128xf32>
    %82 = arith.addf %80, %81 : vector<1x64x128xf32>
    %cst_73 = arith.constant 0.000000e+00 : f32
    %83 = vector.broadcast %cst_73 : f32 to vector<1x64x128xf32>
    %84 = arith.cmpf oge, %82, %83 : vector<1x64x128xf32>
    %cst_74 = arith.constant 0.00999999977 : f32
    %85 = vector.broadcast %cst_74 : f32 to vector<1x64x128xf32>
    %86 = arith.mulf %85, %82 : vector<1x64x128xf32>
    %87 = arith.select %84, %82, %86 : vector<1x64x128xi1>, vector<1x64x128xf32>
    %cst_75 = arith.constant 0.000000e+00 : bf16
    %88 = vector.broadcast %cst_75 : bf16 to vector<1x10x10x128xbf16>
    %c0_76 = arith.constant 0 : index
    %c0_77 = arith.constant 0 : index
    %c0_78 = arith.constant 0 : index
    %c0_79 = arith.constant 0 : index
    %89 = vector.load %arg9[%c0_76, %c0_77, %c0_78, %c0_79] : memref<1x10x10x128xbf16, #tpu.memory_space<vmem>>, vector<1x10x10x128xbf16>
    tpu.vector_store %arg9[%c0_76, %c0_77, %c0_78, %c0_79], %88 {strides = array<i32>} : memref<1x10x10x128xbf16, #tpu.memory_space<vmem>>, vector<1x10x10x128xbf16>,
    %90 = vector.shape_cast %87 : vector<1x64x128xf32> to vector<1x8x8x128xf32>
    %91 = arith.truncf %90 : vector<1x8x8x128xf32> to vector<1x8x8x128xbf16>
    %c0_80 = arith.constant 0 : index
    %c1_81 = arith.constant 1 : index
    %c1_82 = arith.constant 1 : index
    %c0_83 = arith.constant 0 : index
    %92 = vector.load %arg9[%c0_80, %c1_81, %c1_82, %c0_83] : memref<1x10x10x128xbf16, #tpu.memory_space<vmem>>, vector<1x8x8x128xbf16>
    tpu.vector_store %arg9[%c0_80, %c1_81, %c1_82, %c0_83], %91 {strides = array<i32>} : memref<1x10x10x128xbf16, #tpu.memory_space<vmem>>, vector<1x8x8x128xbf16>,
    %cst_84 = arith.constant 0.000000e+00 : f32
    %93 = vector.broadcast %cst_84 : f32 to vector<64x128xf32>
    %c0_85 = arith.constant 0 : index
    %c0_86 = arith.constant 0 : index
    %c0_87 = arith.constant 0 : index
    %c0_88 = arith.constant 0 : index
    %94 = vector.load %arg9[%c0_85, %c0_86, %c0_87, %c0_88] : memref<1x10x10x128xbf16, #tpu.memory_space<vmem>>, vector<1x8x8x128xbf16>
    %95 = vector.shape_cast %94 : vector<1x8x8x128xbf16> to vector<64x128xbf16>
    %c0_89 = arith.constant 0 : index
    %c0_90 = arith.constant 0 : index
    %c0_91 = arith.constant 0 : index
    %96 = vector.load %arg5[%c0_89, %c0_90, %c0_91] : memref<9x128x128xbf16, #tpu.memory_space<vmem>>, vector<1x128x128xbf16>
    %97 = vector.shape_cast %96 : vector<1x128x128xbf16> to vector<128x128xbf16>
    %cst_92 = arith.constant dense<0.000000e+00> : vector<64x128xf32>
    %98 = tpu.matmul %95, %97, %cst_92 {dimension_numbers = #tpu.dot_dimension_numbers<[1], [0], [0], [1], [0, 0, 1, 1], [], []>} : vector<64x128xbf16>, vector<128x128xbf16>, vector<64x128xf32> -> vector<64x128xf32>
    %99 = arith.addf %93, %98 : vector<64x128xf32>
    %c0_93 = arith.constant 0 : index
    %c0_94 = arith.constant 0 : index
    %c1_95 = arith.constant 1 : index
    %c0_96 = arith.constant 0 : index
    %100 = vector.load %arg9[%c0_93, %c0_94, %c1_95, %c0_96] : memref<1x10x10x128xbf16, #tpu.memory_space<vmem>>, vector<1x8x8x128xbf16>
    %101 = vector.shape_cast %100 : vector<1x8x8x128xbf16> to vector<64x128xbf16>
    %c1_97 = arith.constant 1 : index
    %c0_98 = arith.constant 0 : index
    %c0_99 = arith.constant 0 : index
    %102 = vector.load %arg5[%c1_97, %c0_98, %c0_99] : memref<9x128x128xbf16, #tpu.memory_space<vmem>>, vector<1x128x128xbf16>
    %103 = vector.shape_cast %102 : vector<1x128x128xbf16> to vector<128x128xbf16>
    %cst_100 = arith.constant dense<0.000000e+00> : vector<64x128xf32>
    %104 = tpu.matmul %101, %103, %cst_100 {dimension_numbers = #tpu.dot_dimension_numbers<[1], [0], [0], [1], [0, 0, 1, 1], [], []>} : vector<64x128xbf16>, vector<128x128xbf16>, vector<64x128xf32> -> vector<64x128xf32>
    %105 = arith.addf %99, %104 : vector<64x128xf32>
    %c0_101 = arith.constant 0 : index
    %c0_102 = arith.constant 0 : index
    %c2_103 = arith.constant 2 : index
    %c0_104 = arith.constant 0 : index
    %106 = vector.load %arg9[%c0_101, %c0_102, %c2_103, %c0_104] : memref<1x10x10x128xbf16, #tpu.memory_space<vmem>>, vector<1x8x8x128xbf16>
    %107 = vector.shape_cast %106 : vector<1x8x8x128xbf16> to vector<64x128xbf16>
    %c2_105 = arith.constant 2 : index
    %c0_106 = arith.constant 0 : index
    %c0_107 = arith.constant 0 : index
    %108 = vector.load %arg5[%c2_105, %c0_106, %c0_107] : memref<9x128x128xbf16, #tpu.memory_space<vmem>>, vector<1x128x128xbf16>
    %109 = vector.shape_cast %108 : vector<1x128x128xbf16> to vector<128x128xbf16>
    %cst_108 = arith.constant dense<0.000000e+00> : vector<64x128xf32>
    %110 = tpu.matmul %107, %109, %cst_108 {dimension_numbers = #tpu.dot_dimension_numbers<[1], [0], [0], [1], [0, 0, 1, 1], [], []>} : vector<64x128xbf16>, vector<128x128xbf16>, vector<64x128xf32> -> vector<64x128xf32>
    %111 = arith.addf %105, %110 : vector<64x128xf32>
    %c0_109 = arith.constant 0 : index
    %c1_110 = arith.constant 1 : index
    %c0_111 = arith.constant 0 : index
    %c0_112 = arith.constant 0 : index
    %112 = vector.load %arg9[%c0_109, %c1_110, %c0_111, %c0_112] : memref<1x10x10x128xbf16, #tpu.memory_space<vmem>>, vector<1x8x8x128xbf16>
    %113 = vector.shape_cast %112 : vector<1x8x8x128xbf16> to vector<64x128xbf16>
    %c3_113 = arith.constant 3 : index
    %c0_114 = arith.constant 0 : index
    %c0_115 = arith.constant 0 : index
    %114 = vector.load %arg5[%c3_113, %c0_114, %c0_115] : memref<9x128x128xbf16, #tpu.memory_space<vmem>>, vector<1x128x128xbf16>
    %115 = vector.shape_cast %114 : vector<1x128x128xbf16> to vector<128x128xbf16>
    %cst_116 = arith.constant dense<0.000000e+00> : vector<64x128xf32>
    %116 = tpu.matmul %113, %115, %cst_116 {dimension_numbers = #tpu.dot_dimension_numbers<[1], [0], [0], [1], [0, 0, 1, 1], [], []>} : vector<64x128xbf16>, vector<128x128xbf16>, vector<64x128xf32> -> vector<64x128xf32>
    %117 = arith.addf %111, %116 : vector<64x128xf32>
    %c0_117 = arith.constant 0 : index
    %c1_118 = arith.constant 1 : index
    %c1_119 = arith.constant 1 : index
    %c0_120 = arith.constant 0 : index
    %118 = vector.load %arg9[%c0_117, %c1_118, %c1_119, %c0_120] : memref<1x10x10x128xbf16, #tpu.memory_space<vmem>>, vector<1x8x8x128xbf16>
    %119 = vector.shape_cast %118 : vector<1x8x8x128xbf16> to vector<64x128xbf16>
    %c4_121 = arith.constant 4 : index
    %c0_122 = arith.constant 0 : index
    %c0_123 = arith.constant 0 : index
    %120 = vector.load %arg5[%c4_121, %c0_122, %c0_123] : memref<9x128x128xbf16, #tpu.memory_space<vmem>>, vector<1x128x128xbf16>
    %121 = vector.shape_cast %120 : vector<1x128x128xbf16> to vector<128x128xbf16>
    %cst_124 = arith.constant dense<0.000000e+00> : vector<64x128xf32>
    %122 = tpu.matmul %119, %121, %cst_124 {dimension_numbers = #tpu.dot_dimension_numbers<[1], [0], [0], [1], [0, 0, 1, 1], [], []>} : vector<64x128xbf16>, vector<128x128xbf16>, vector<64x128xf32> -> vector<64x128xf32>
    %123 = arith.addf %117, %122 : vector<64x128xf32>
    %c0_125 = arith.constant 0 : index
    %c1_126 = arith.constant 1 : index
    %c2_127 = arith.constant 2 : index
    %c0_128 = arith.constant 0 : index
    %124 = vector.load %arg9[%c0_125, %c1_126, %c2_127, %c0_128] : memref<1x10x10x128xbf16, #tpu.memory_space<vmem>>, vector<1x8x8x128xbf16>
    %125 = vector.shape_cast %124 : vector<1x8x8x128xbf16> to vector<64x128xbf16>
    %c5_129 = arith.constant 5 : index
    %c0_130 = arith.constant 0 : index
    %c0_131 = arith.constant 0 : index
    %126 = vector.load %arg5[%c5_129, %c0_130, %c0_131] : memref<9x128x128xbf16, #tpu.memory_space<vmem>>, vector<1x128x128xbf16>
    %127 = vector.shape_cast %126 : vector<1x128x128xbf16> to vector<128x128xbf16>
    %cst_132 = arith.constant dense<0.000000e+00> : vector<64x128xf32>
    %128 = tpu.matmul %125, %127, %cst_132 {dimension_numbers = #tpu.dot_dimension_numbers<[1], [0], [0], [1], [0, 0, 1, 1], [], []>} : vector<64x128xbf16>, vector<128x128xbf16>, vector<64x128xf32> -> vector<64x128xf32>
    %129 = arith.addf %123, %128 : vector<64x128xf32>
    %c0_133 = arith.constant 0 : index
    %c2_134 = arith.constant 2 : index
    %c0_135 = arith.constant 0 : index
    %c0_136 = arith.constant 0 : index
    %130 = vector.load %arg9[%c0_133, %c2_134, %c0_135, %c0_136] : memref<1x10x10x128xbf16, #tpu.memory_space<vmem>>, vector<1x8x8x128xbf16>
    %131 = vector.shape_cast %130 : vector<1x8x8x128xbf16> to vector<64x128xbf16>
    %c6_137 = arith.constant 6 : index
    %c0_138 = arith.constant 0 : index
    %c0_139 = arith.constant 0 : index
    %132 = vector.load %arg5[%c6_137, %c0_138, %c0_139] : memref<9x128x128xbf16, #tpu.memory_space<vmem>>, vector<1x128x128xbf16>
    %133 = vector.shape_cast %132 : vector<1x128x128xbf16> to vector<128x128xbf16>
    %cst_140 = arith.constant dense<0.000000e+00> : vector<64x128xf32>
    %134 = tpu.matmul %131, %133, %cst_140 {dimension_numbers = #tpu.dot_dimension_numbers<[1], [0], [0], [1], [0, 0, 1, 1], [], []>} : vector<64x128xbf16>, vector<128x128xbf16>, vector<64x128xf32> -> vector<64x128xf32>
    %135 = arith.addf %129, %134 : vector<64x128xf32>
    %c0_141 = arith.constant 0 : index
    %c2_142 = arith.constant 2 : index
    %c1_143 = arith.constant 1 : index
    %c0_144 = arith.constant 0 : index
    %136 = vector.load %arg9[%c0_141, %c2_142, %c1_143, %c0_144] : memref<1x10x10x128xbf16, #tpu.memory_space<vmem>>, vector<1x8x8x128xbf16>
    %137 = vector.shape_cast %136 : vector<1x8x8x128xbf16> to vector<64x128xbf16>
    %c7_145 = arith.constant 7 : index
    %c0_146 = arith.constant 0 : index
    %c0_147 = arith.constant 0 : index
    %138 = vector.load %arg5[%c7_145, %c0_146, %c0_147] : memref<9x128x128xbf16, #tpu.memory_space<vmem>>, vector<1x128x128xbf16>
    %139 = vector.shape_cast %138 : vector<1x128x128xbf16> to vector<128x128xbf16>
    %cst_148 = arith.constant dense<0.000000e+00> : vector<64x128xf32>
    %140 = tpu.matmul %137, %139, %cst_148 {dimension_numbers = #tpu.dot_dimension_numbers<[1], [0], [0], [1], [0, 0, 1, 1], [], []>} : vector<64x128xbf16>, vector<128x128xbf16>, vector<64x128xf32> -> vector<64x128xf32>
    %141 = arith.addf %135, %140 : vector<64x128xf32>
    %c0_149 = arith.constant 0 : index
    %c2_150 = arith.constant 2 : index
    %c2_151 = arith.constant 2 : index
    %c0_152 = arith.constant 0 : index
    %142 = vector.load %arg9[%c0_149, %c2_150, %c2_151, %c0_152] : memref<1x10x10x128xbf16, #tpu.memory_space<vmem>>, vector<1x8x8x128xbf16>
    %143 = vector.shape_cast %142 : vector<1x8x8x128xbf16> to vector<64x128xbf16>
    %c8_153 = arith.constant 8 : index
    %c0_154 = arith.constant 0 : index
    %c0_155 = arith.constant 0 : index
    %144 = vector.load %arg5[%c8_153, %c0_154, %c0_155] : memref<9x128x128xbf16, #tpu.memory_space<vmem>>, vector<1x128x128xbf16>
    %145 = vector.shape_cast %144 : vector<1x128x128xbf16> to vector<128x128xbf16>
    %cst_156 = arith.constant dense<0.000000e+00> : vector<64x128xf32>
    %146 = tpu.matmul %143, %145, %cst_156 {dimension_numbers = #tpu.dot_dimension_numbers<[1], [0], [0], [1], [0, 0, 1, 1], [], []>} : vector<64x128xbf16>, vector<128x128xbf16>, vector<64x128xf32> -> vector<64x128xf32>
    %147 = arith.addf %141, %146 : vector<64x128xf32>
    %148 = vector.shape_cast %147 : vector<64x128xf32> to vector<1x64x128xf32>
    %cst_157 = arith.constant dense<0.000000e+00> : vector<1x128xf32>
    %149 = vector.multi_reduction <add>, %148, %cst_157 [1] : vector<1x64x128xf32> to vector<1x128xf32>
    %150 = vector.shape_cast %149 : vector<1x128xf32> to vector<1x1x128xf32>
    %151 = arith.mulf %148, %148 : vector<1x64x128xf32>
    %cst_158 = arith.constant dense<0.000000e+00> : vector<1x128xf32>
    %152 = vector.multi_reduction <add>, %151, %cst_158 [1] : vector<1x64x128xf32> to vector<1x128xf32>
    %153 = vector.shape_cast %152 : vector<1x128xf32> to vector<1x1x128xf32>
    %cst_159 = arith.constant 1.562500e-02 : f32
    %154 = vector.broadcast %cst_159 : f32 to vector<1x1x128xf32>
    %155 = arith.mulf %150, %154 : vector<1x1x128xf32>
    %cst_160 = arith.constant 1.562500e-02 : f32
    %156 = vector.broadcast %cst_160 : f32 to vector<1x1x128xf32>
    %157 = arith.mulf %153, %156 : vector<1x1x128xf32>
    %158 = arith.mulf %155, %155 : vector<1x1x128xf32>
    %159 = arith.subf %157, %158 : vector<1x1x128xf32>
    %cst_161 = arith.constant 0.000000e+00 : f32
    %160 = vector.broadcast %cst_161 : f32 to vector<1x1x128xf32>
    %161 = arith.maximumf %159, %160 : vector<1x1x128xf32>
    %c0_162 = arith.constant 0 : index
    %c0_163 = arith.constant 0 : index
    %162 = vector.load %arg6[%c0_162, %c0_163] : memref<1x128xf32, #tpu.memory_space<vmem>>, vector<1x128xf32>
    %cst_164 = arith.constant 9.99999974E-6 : f32
    %163 = vector.broadcast %cst_164 : f32 to vector<1x1x128xf32>
    %164 = arith.addf %161, %163 : vector<1x1x128xf32>
    %165 = math.rsqrt %164 : vector<1x1x128xf32>
    %166 = vector.shape_cast %162 : vector<1x128xf32> to vector<1x1x128xf32>
    %167 = arith.mulf %166, %165 : vector<1x1x128xf32>
    %c0_165 = arith.constant 0 : index
    %c0_166 = arith.constant 0 : index
    %168 = vector.load %arg7[%c0_165, %c0_166] : memref<1x128xf32, #tpu.memory_space<vmem>>, vector<1x128xf32>
    %169 = arith.mulf %155, %167 : vector<1x1x128xf32>
    %170 = vector.shape_cast %168 : vector<1x128xf32> to vector<1x1x128xf32>
    %171 = arith.subf %170, %169 : vector<1x1x128xf32>
    %172 = vector.broadcast %167 : vector<1x1x128xf32> to vector<1x64x128xf32>
    %173 = arith.mulf %148, %172 : vector<1x64x128xf32>
    %174 = vector.broadcast %171 : vector<1x1x128xf32> to vector<1x64x128xf32>
    %175 = arith.addf %173, %174 : vector<1x64x128xf32>
    %cst_167 = arith.constant 0.000000e+00 : f32
    %176 = vector.broadcast %cst_167 : f32 to vector<1x64x128xf32>
    %177 = arith.cmpf oge, %175, %176 : vector<1x64x128xf32>
    %cst_168 = arith.constant 0.00999999977 : f32
    %178 = vector.broadcast %cst_168 : f32 to vector<1x64x128xf32>
    %179 = arith.mulf %178, %175 : vector<1x64x128xf32>
    %180 = arith.select %177, %175, %179 : vector<1x64x128xi1>, vector<1x64x128xf32>
    %c0_169 = arith.constant 0 : index
    %c1_170 = arith.constant 1 : index
    %c1_171 = arith.constant 1 : index
    %c0_172 = arith.constant 0 : index
    %181 = vector.load %arg1[%c0_169, %c1_170, %c1_171, %c0_172] : memref<1x10x10x128xbf16, #tpu.memory_space<vmem>>, vector<1x8x8x128xbf16>
    %182 = arith.extf %181 : vector<1x8x8x128xbf16> to vector<1x8x8x128xf32>
    %183 = vector.shape_cast %182 : vector<1x8x8x128xf32> to vector<1x64x128xf32>
    %184 = arith.addf %183, %180 : vector<1x64x128xf32>
    %185 = vector.shape_cast %184 : vector<1x64x128xf32> to vector<1x8x8x128xf32>
    %c0_173 = arith.constant 0 : index
    %c0_174 = arith.constant 0 : index
    %c0_175 = arith.constant 0 : index
    %c0_176 = arith.constant 0 : index
    %186 = vector.load %arg8[%c0_173, %c0_174, %c0_175, %c0_176] : memref<1x8x8x128xf32, #tpu.memory_space<vmem>>, vector<1x8x8x128xf32>
    tpu.vector_store %arg8[%c0_173, %c0_174, %c0_175, %c0_176], %185 {strides = array<i32>} : memref<1x8x8x128xf32, #tpu.memory_space<vmem>>, vector<1x8x8x128xf32>,
    return
  }
  func.func @transform_0(%arg0: i32) -> (i32, i32, i32, i32) {
    %c0_i32 = arith.constant 0 : i32
    %c0_i32_0 = arith.constant 0 : i32
    %c0_i32_1 = arith.constant 0 : i32
    %c0_i32_2 = arith.constant 0 : i32
    return %arg0, %c0_i32, %c0_i32_0, %c0_i32_1 : i32, i32, i32, i32
  }
  func.func @transform_1(%arg0: i32) -> (i32, i32, i32) {
    %c0_i32 = arith.constant 0 : i32
    %c0_i32_0 = arith.constant 0 : i32
    %c0_i32_1 = arith.constant 0 : i32
    %c0_i32_2 = arith.constant 0 : i32
    return %c0_i32, %c0_i32_0, %c0_i32_1 : i32, i32, i32
  }
  func.func @transform_2(%arg0: i32) -> (i32, i32) {
    %c0_i32 = arith.constant 0 : i32
    %c0_i32_0 = arith.constant 0 : i32
    %c0_i32_1 = arith.constant 0 : i32
    return %c0_i32, %c0_i32_0 : i32, i32
  }
  func.func @transform_3(%arg0: i32) -> (i32, i32) {
    %c0_i32 = arith.constant 0 : i32
    %c0_i32_0 = arith.constant 0 : i32
    %c0_i32_1 = arith.constant 0 : i32
    return %c0_i32, %c0_i32_0 : i32, i32
  }
  func.func @transform_4(%arg0: i32) -> (i32, i32, i32) {
    %c0_i32 = arith.constant 0 : i32
    %c0_i32_0 = arith.constant 0 : i32
    %c0_i32_1 = arith.constant 0 : i32
    %c0_i32_2 = arith.constant 0 : i32
    return %c0_i32, %c0_i32_0, %c0_i32_1 : i32, i32, i32
  }
  func.func @transform_5(%arg0: i32) -> (i32, i32) {
    %c0_i32 = arith.constant 0 : i32
    %c0_i32_0 = arith.constant 0 : i32
    %c0_i32_1 = arith.constant 0 : i32
    return %c0_i32, %c0_i32_0 : i32, i32
  }
  func.func @transform_6(%arg0: i32) -> (i32, i32) {
    %c0_i32 = arith.constant 0 : i32
    %c0_i32_0 = arith.constant 0 : i32
    %c0_i32_1 = arith.constant 0 : i32
    return %c0_i32, %c0_i32_0 : i32, i32
  }
  func.func @transform_7(%arg0: i32) -> (i32, i32, i32, i32) {
    %c0_i32 = arith.constant 0 : i32
    %c0_i32_0 = arith.constant 0 : i32
    %c0_i32_1 = arith.constant 0 : i32
    %c0_i32_2 = arith.constant 0 : i32
    return %arg0, %c0_i32, %c0_i32_0, %c0_i32_1 : i32, i32, i32, i32
  }
}

</mosaic_0001>

<llo_original>
// kernel: conv_res_block_forward.2
$region0: #{conv_res_block_forward.2}
  #allocation0 [shape = 'u32[]', space=smem, size = 0x4, offset = 0x4, fixed_abs, tag = 'smem constant byte address 0x4 - core index']
  #allocation1 [shape = 'u32[144,128]{1,0:T(1,128)}', space=vmem, size = 0x12000, scoped, tag = 'internal scratch']
  %s0 = inlined_call_operand.vmem [shape: bf16[2,36,9,128], index: 0, kind: input, shape index: {}]
  %s1 = inlined_call_operand.vmem [shape: bf16[9,128,128], index: 1, kind: input, shape index: {}]
  %s2 = inlined_call_operand.vmem [shape: f32[1,128], index: 2, kind: input, shape index: {}]
  %s3 = inlined_call_operand.vmem [shape: f32[1,128], index: 3, kind: input, shape index: {}]
  %s4 = inlined_call_operand.vmem [shape: bf16[2,10,10,128], index: 4, kind: output, shape index: {}]
  %s5 = sld [smem:[#allocation0]]
  $region49: #{conv_res_block_forward.2} parent=0
    _
  %s7 = ssub.s32 1, %s5
  %s8 = scalar_select 0, %s7, %s5
  loop: start=0, step=1, limit=4
  $region2: #{conv_res_block_forward.2} parent=0 // loop_pre_header
    _
  $region3: #{conv_res_block_forward.2} parent=0 // loop_header
    %s10 = sphi 0, %s14
    %p11 = scmp.ge.s32.totalorder %s10, 4
    %s20 = sphi 0, %s22
    %s23 = sphi 0, %s20
    %s24 = sphi 0, %s23
    %s40 = sphi 0, %s24
    %s44 = sphi 0, %s44
    %s46 = sphi 0, %s44
    %s47 = sphi 0, %s46
    %s61 = sphi 0, %s47
    %s65 = sphi 0, %s65
    %s67 = sphi 0, %s65
    %s68 = sphi 0, %s67
    %s82 = sphi 0, %s68
    %s86 = sphi 0, %s86
    %s88 = sphi 0, %s86
    %s89 = sphi 0, %s88
    %s103 = sphi 0, %s89
    %s109 = sphi 0, %s111
    %s112 = sphi 0, %s109
    %s113 = sphi 0, %s112
    %s129 = sphi 0, %s113
  $region4: #{conv_res_block_forward.2} parent=0 // loop_header_branch
    %13 = sbr.rel (%p11) target = $region8
  $region5: #{conv_res_block_forward.2} parent=0 // loop_body
    %s15 = ssub.s32 %s10, 1
    %s16 = ssub.s32 %s10, 2
    %s17 = sadd.s32 %s10, 1
    %s18 = ssub.s32 %s10, %s17
    %p19 = scmp.eq.s32.totalorder %s18, 0
    %s21 = sadd.s32 %s20, 1
    %s22 = scalar_select %p19, %s20, %s21
    %p25 = pneg %p19
    %p26 = scmp.eq.s32.totalorder %s10, 1
    %p27 = por %p25, %p26
    %p28 = scmp.ne.s32.totalorder %s20, %s23
    %p29 = scmp.eq.s32.totalorder %s10, 0
    %p30 = por %p28, %p29
    %p31 = scmp.ne.s32.totalorder %s20, %s23
    %p32 = scmp.eq.s32.totalorder %s15, 1
    %p33 = por %p31, %p32
    %p34 = scmp.ne.s32.totalorder %s23, %s24
    %p35 = scmp.eq.s32.totalorder %s15, 0
    %p36 = por %p34, %p35
    %p37 = scmp.ne.s32.totalorder %s23, %s24
    %p38 = scmp.eq.s32.totalorder %s16, 1
    %p39 = por %p37, %p38
    %p41 = scmp.ne.s32.totalorder %s24, %s40
    %p42 = scmp.eq.s32.totalorder %s16, 0
    %p43 = por %p41, %p42
    %s45 = sadd.s32 %s44, 1
    %p48 = scmp.eq.s32.totalorder %s10, 1
    %p49 = scmp.ne.s32.totalorder %s44, %s46
    %p50 = scmp.eq.s32.totalorder %s10, 0
    %p51 = por %p49, %p50
    %p52 = scmp.ne.s32.totalorder %s44, %s46
    %p53 = scmp.eq.s32.totalorder %s15, 1
    %p54 = por %p52, %p53
    %p55 = scmp.ne.s32.totalorder %s46, %s47
    %p56 = scmp.eq.s32.totalorder %s15, 0
    %p57 = por %p55, %p56
    %p58 = scmp.ne.s32.totalorder %s46, %s47
    %p59 = scmp.eq.s32.totalorder %s16, 1
    %p60 = por %p58, %p59
    %p62 = scmp.ne.s32.totalorder %s47, %s61
    %p63 = scmp.eq.s32.totalorder %s16, 0
    %p64 = por %p62, %p63
    %s66 = sadd.s32 %s65, 1
    %p69 = scmp.eq.s32.totalorder %s10, 1
    %p70 = scmp.ne.s32.totalorder %s65, %s67
    %p71 = scmp.eq.s32.totalorder %s10, 0
    %p72 = por %p70, %p71
    %p73 = scmp.ne.s32.totalorder %s65, %s67
    %p74 = scmp.eq.s32.totalorder %s15, 1
    %p75 = por %p73, %p74
    %p76 = scmp.ne.s32.totalorder %s67, %s68
    %p77 = scmp.eq.s32.totalorder %s15, 0
    %p78 = por %p76, %p77
    %p79 = scmp.ne.s32.totalorder %s67, %s68
    %p80 = scmp.eq.s32.totalorder %s16, 1
    %p81 = por %p79, %p80
    %p83 = scmp.ne.s32.totalorder %s68, %s82
    %p84 = scmp.eq.s32.totalorder %s16, 0
    %p85 = por %p83, %p84
    %s87 = sadd.s32 %s86, 1
    %p90 = scmp.eq.s32.totalorder %s10, 1
    %p91 = scmp.ne.s32.totalorder %s86, %s88
    %p92 = scmp.eq.s32.totalorder %s10, 0
    %p93 = por %p91, %p92
    %p94 = scmp.ne.s32.totalorder %s86, %s88
    %p95 = scmp.eq.s32.totalorder %s15, 1
    %p96 = por %p94, %p95
    %p97 = scmp.ne.s32.totalorder %s88, %s89
    %p98 = scmp.eq.s32.totalorder %s15, 0
    %p99 = por %p97, %p98
    %p100 = scmp.ne.s32.totalorder %s88, %s89
    %p101 = scmp.eq.s32.totalorder %s16, 1
    %p102 = por %p100, %p101
    %p104 = scmp.ne.s32.totalorder %s89, %s103
    %p105 = scmp.eq.s32.totalorder %s16, 0
    %p106 = por %p104, %p105
    %s107 = ssub.s32 %s10, %s17
    %p108 = scmp.eq.s32.totalorder %s107, 0
    %s110 = sadd.s32 %s109, 1
    %s111 = scalar_select %p108, %s109, %s110
    %p114 = pneg %p108
    %p115 = scmp.eq.s32.totalorder %s10, 1
    %p116 = por %p114, %p115
    %p117 = scmp.ne.s32.totalorder %s109, %s112
    %p118 = scmp.eq.s32.totalorder %s10, 0
    %p119 = por %p117, %p118
    %p120 = scmp.ne.s32.totalorder %s109, %s112
    %p121 = scmp.eq.s32.totalorder %s15, 1
    %p122 = por %p120, %p121
    %p123 = scmp.ne.s32.totalorder %s112, %s113
    %p124 = scmp.eq.s32.totalorder %s15, 0
    %p125 = por %p123, %p124
    %p126 = scmp.ne.s32.totalorder %s112, %s113
    %p127 = scmp.eq.s32.totalorder %s16, 1
    %p128 = por %p126, %p127
    %p130 = scmp.ne.s32.totalorder %s113, %s129
    %p131 = scmp.eq.s32.totalorder %s16, 0
    %p132 = por %p130, %p131
    %p133 = scmp.le.s32.totalorder 1, %s10
    %p134 = scmp.lt.s32.totalorder %s10, 3
    %p135 = pnand %p133, %p134
    %p136 = pneg %p135
    // Predicated region
    $region9: #{conv_res_block_forward.2} parent=5 // pred_check
      _
    $region10: #{conv_res_block_forward.2} parent=5 // pred_check_branch
      %138 = sbr.rel (%p135) target = $region12
    $region11: #{conv_res_block_forward.2} parent=5 // pred_region
      %s139 = ssub.s32 %s10, 1
      // Predicated region
      $region13: #{conv_res_block_forward.2} parent=11 // pred_check
        %p140 = pneg %p57
      $region14: #{conv_res_block_forward.2} parent=11 // pred_check_branch
        %142 = sbr.rel (%p140) target = $region16
      $region15: #{conv_res_block_forward.2} parent=11 // pred_region
        _
      $region16: #{conv_res_block_forward.2} parent=11 // pred_fallthru
        _
      // Predicated region
      $region17: #{conv_res_block_forward.2} parent=11 // pred_check
        %p143 = pneg %p78
      $region18: #{conv_res_block_forward.2} parent=11 // pred_check_branch
        %145 = sbr.rel (%p143) target = $region20
      $region19: #{conv_res_block_forward.2} parent=11 // pred_region
        _
      $region20: #{conv_res_block_forward.2} parent=11 // pred_fallthru
        _
      // Predicated region
      $region21: #{conv_res_block_forward.2} parent=11 // pred_check
        %p146 = pneg %p99
      $region22: #{conv_res_block_forward.2} parent=11 // pred_check_branch
        %148 = sbr.rel (%p146) target = $region24
      $region23: #{conv_res_block_forward.2} parent=11 // pred_region
        _
      $region24: #{conv_res_block_forward.2} parent=11 // pred_fallthru
        _
    $region12: #{conv_res_block_forward.2} parent=5 // pred_fallthru
      _
    %p149 = scmp.lt.s32.totalorder %s10, 2
    // Predicated region
    $region25: #{conv_res_block_forward.2} parent=5 // pred_check
      %p150 = pneg %p149
    $region26: #{conv_res_block_forward.2} parent=5 // pred_check_branch
      %152 = sbr.rel (%p150) target = $region28
    $region27: #{conv_res_block_forward.2} parent=5 // pred_region
      // Predicated region
      $region29: #{conv_res_block_forward.2} parent=27 // pred_check
        %p153 = pneg %p30
      $region30: #{conv_res_block_forward.2} parent=27 // pred_check_branch
        %155 = sbr.rel (%p153) target = $region32
      $region31: #{conv_res_block_forward.2} parent=27 // pred_region
        %p156 = scmp.lt.s32.totalorder %s10, 1
        %s157 = scalar_select %p156, %s10, 1
        %s158 = smul.addr %s157, 72
        %s159 = smul.addr %s158, 4
        %s160 = scalar_lea.vmem %s0, %s159
      $region32: #{conv_res_block_forward.2} parent=27 // pred_fallthru
        _
    $region28: #{conv_res_block_forward.2} parent=5 // pred_fallthru
      _
    %p161 = scmp.le.s32.totalorder 1, %s10
    %p162 = scmp.lt.s32.totalorder %s10, 3
    %p163 = pnand %p161, %p162
    %p164 = pneg %p163
    // Predicated region
    $region33: #{conv_res_block_forward.2} parent=5 // pred_check
      _
    $region34: #{conv_res_block_forward.2} parent=5 // pred_check_branch
      %166 = sbr.rel (%p163) target = $region36
    $region35: #{conv_res_block_forward.2} parent=5 // pred_region
      %s167 = ssub.s32 %s10, 1
      %p168 = scmp.lt.s32.totalorder %s15, 1
      %s169 = scalar_select %p168, %s15, 1
      %s170 = smul.addr %s169, 72
      %s171 = smul.addr %s170, 4
      %s172 = scalar_lea.vmem %s0, %s171
      %p173 = pneg %p36
      %p174 = pneg %p33
      %p175 = pneg %p57
      %p176 = pneg %p54
      %p177 = pneg %p78
      %p178 = pneg %p75
      %p179 = pneg %p99
      %p180 = pneg %p96
      %p181 = pneg %p125
      %p182 = pneg %p122
      %p183 = scmp.lt.s32.totalorder %s15, 1
      %s184 = scalar_select %p183, %s15, 1
      %s185 = smul.addr %s184, 20
      %s186 = smul.addr %s185, 4
      %s187 = scalar_lea.vmem %s4, %s186
      %p188 = scmp.lt.s32.totalorder %s15, 1
      %s189 = scalar_select %p188, %s15, 1
      %s190 = smul.addr %s189, 72
      %s191 = smul.addr %s190, 4
      %s192 = scalar_lea.vmem %s0, %s191
      %p193 = scmp.lt.s32.totalorder %s15, 1
      %s194 = scalar_select %p193, %s15, 1
      %s195 = smul.addr %s194, 20
      %s196 = smul.addr %s195, 4
      %s197 = scalar_lea.vmem %s4, %s196
      %v199 = vld [vmem:[%s192] sm:$0xf]
      %v200 = vld [vmem:[%s192 + $0x8] sm:$0xf]
      %v201 = vld [vmem:[%s192 + $0x10] sm:$0xf]
      %v202 = vld [vmem:[%s192 + $0x18] sm:$0xf]
      %v203 = vld [vmem:[%s192 + $0x20] sm:$0xf]
      %v204 = vld [vmem:[%s192 + $0x28] sm:$0xf]
      %v205 = vld [vmem:[%s192 + $0x30] sm:$0xf]
      %v206 = vld [vmem:[%s192 + $0x38] sm:$0xf]
      %v207 = vld [vmem:[%s1] sm:$0xf]
      %v208 = vld [vmem:[%s1 + $0x4] sm:$0xf]
      %v209 = vld [vmem:[%s1 + $0x8] sm:$0xf]
      %v210 = vld [vmem:[%s1 + $0xc] sm:$0xf]
      %v211 = vld [vmem:[%s1 + $0x10] sm:$0xf]
      %v212 = vld [vmem:[%s1 + $0x14] sm:$0xf]
      %v213 = vld [vmem:[%s1 + $0x18] sm:$0xf]
      %v214 = vld [vmem:[%s1 + $0x1c] sm:$0xf]
      %v215 = vld [vmem:[%s1 + $0x20] sm:$0xf]
      %v216 = vld [vmem:[%s1 + $0x24] sm:$0xf]
      %v217 = vld [vmem:[%s1 + $0x28] sm:$0xf]
      %v218 = vld [vmem:[%s1 + $0x2c] sm:$0xf]
      %v219 = vld [vmem:[%s1 + $0x30] sm:$0xf]
      %v220 = vld [vmem:[%s1 + $0x34] sm:$0xf]
      %v221 = vld [vmem:[%s1 + $0x38] sm:$0xf]
      %v222 = vld [vmem:[%s1 + $0x3c] sm:$0xf]
      %s223 = scalar_lea.vmem %s192, 72
      %v224 = vld [vmem:[%s223] sm:$0xf]
      %v225 = vld [vmem:[%s223 + $0x8] sm:$0xf]
      %v226 = vld [vmem:[%s223 + $0x10] sm:$0xf]
      %v227 = vld [vmem:[%s223 + $0x18] sm:$0xf]
      %v228 = vld [vmem:[%s223 + $0x20] sm:$0xf]
      %v229 = vld [vmem:[%s223 + $0x28] sm:$0xf]
      %v230 = vld [vmem:[%s223 + $0x30] sm:$0xf]
      %v231 = vld [vmem:[%s223 + $0x38] sm:$0xf]
      %s232 = scalar_lea.vmem %s1, 64
      %v233 = vld [vmem:[%s232] sm:$0xf]
      %v234 = vld [vmem:[%s232 + $0x4] sm:$0xf]
      %v235 = vld [vmem:[%s232 + $0x8] sm:$0xf]
      %v236 = vld [vmem:[%s232 + $0xc] sm:$0xf]
      %v237 = vld [vmem:[%s232 + $0x10] sm:$0xf]
      %v238 = vld [vmem:[%s232 + $0x14] sm:$0xf]
      %v239 = vld [vmem:[%s232 + $0x18] sm:$0xf]
      %v240 = vld [vmem:[%s232 + $0x1c] sm:$0xf]
      %v241 = vld [vmem:[%s232 + $0x20] sm:$0xf]
      %v242 = vld [vmem:[%s232 + $0x24] sm:$0xf]
      %v243 = vld [vmem:[%s232 + $0x28] sm:$0xf]
      %v244 = vld [vmem:[%s232 + $0x2c] sm:$0xf]
      %v245 = vld [vmem:[%s232 + $0x30] sm:$0xf]
      %v246 = vld [vmem:[%s232 + $0x34] sm:$0xf]
      %v247 = vld [vmem:[%s232 + $0x38] sm:$0xf]
      %v248 = vld [vmem:[%s232 + $0x3c] sm:$0xf]
      %v257 = vunpack.c.l.b16 %v224
      %v258 = vunpack.c.l.b16 %v225
      %v259 = vunpack.c.l.b16 %v226
      %v260 = vunpack.c.l.b16 %v227
      %v261 = vunpack.c.l.b16 %v228
      %v262 = vunpack.c.l.b16 %v229
      %v263 = vunpack.c.l.b16 %v230
      %v264 = vunpack.c.l.b16 %v231
      %v265 = vpack.c.b16 %v258, %v257
      %v266 = vpack.c.b16 %v260, %v259
      %v267 = vpack.c.b16 %v262, %v261
      %v268 = vpack.c.b16 %v264, %v263
      %v289 = vunpack.c.l.b16 %v233
      %v290 = vunpack.c.l.b16 %v234
      %v291 = vunpack.c.l.b16 %v235
      %v292 = vunpack.c.l.b16 %v236
      %v293 = vunpack.c.l.b16 %v237
      %v294 = vunpack.c.l.b16 %v238
      %v295 = vunpack.c.l.b16 %v239
      %v296 = vunpack.c.l.b16 %v240
      %v297 = vunpack.c.l.b16 %v241
      %v298 = vunpack.c.l.b16 %v242
      %v299 = vunpack.c.l.b16 %v243
      %v300 = vunpack.c.l.b16 %v244
      %v301 = vunpack.c.l.b16 %v245
      %v302 = vunpack.c.l.b16 %v246
      %v303 = vunpack.c.l.b16 %v247
      %v304 = vunpack.c.l.b16 %v248
      %v305 = vpack.c.b16 %v290, %v289
      %v306 = vpack.c.b16 %v292, %v291
      %v307 = vpack.c.b16 %v294, %v293
      %v308 = vpack.c.b16 %v296, %v295
      %v309 = vpack.c.b16 %v298, %v297
      %v310 = vpack.c.b16 %v300, %v299
      %v311 = vpack.c.b16 %v302, %v301
      %v312 = vpack.c.b16 %v304, %v303
      %321 = vmatprep.subr.bf16.mxu0 0
      %322 = vmatpush1.bf16.msra.mxu0 %v312
      %323 = vmatprep.subr.bf16.mxu0 0
      %324 = vmatpush1.bf16.msra.mxu0 %v311
      %325 = vmatprep.subr.bf16.mxu0 0
      %326 = vmatpush1.bf16.msra.mxu0 %v310
      %327 = vmatprep.subr.bf16.mxu0 0
      %328 = vmatpush1.bf16.msra.mxu0 %v309
      %329 = vmatprep.subr.bf16.mxu0 0
      %330 = vmatpush1.bf16.msra.mxu0 %v308
      %331 = vmatprep.subr.bf16.mxu0 0
      %332 = vmatpush1.bf16.msra.mxu0 %v307
      %333 = vmatprep.subr.bf16.mxu0 0
      %334 = vmatpush1.bf16.msra.mxu0 %v306
      %335 = vmatprep.subr.bf16.mxu0 0
      %336 = vmatpush1.bf16.msra.mxu0 %v305
      %337 = vmatprep.subr.bf16.mxu0 0
      %338 = vmatpush2.bf16.msra.mxu0 0
      %339 = vmatprep.subr.bf16.mxu0 0
      %340 = vmatpush2.bf16.msra.mxu0 0
      %341 = vmatprep.subr.bf16.mxu0 0
      %342 = vmatpush2.bf16.msra.mxu0 0
      %343 = vmatprep.subr.bf16.mxu0 0
      %344 = vmatpush2.bf16.msra.mxu0 0
      %345 = vmatprep.subr.bf16.mxu0 0
      %346 = vmatpush2.bf16.msra.mxu0 0
      %347 = vmatprep.subr.bf16.mxu0 0
      %348 = vmatpush2.bf16.msra.mxu0 0
      %349 = vmatprep.subr.bf16.mxu0 0
      %350 = vmatpush2.bf16.msra.mxu0 0
      %351 = vmatprep.subr.bf16.mxu0 0
      %352 = vmatpush2.bf16.msra.mxu0 0
      %353 = vmatprep.mubr.bf16.mxu0 0
      %354 = vmatmul.mubr.bf16.gmra.mxu0 %v265
      %v355 = vpop.f32.mrf.mxu0
      %v356 = vadd.f32 0.0, %v355
      %v357 = vpop.f32.mrf.mxu0
      %v358 = vpop.f32.mrf.mxu0
      %v359 = vadd.f32 0.0, %v358
      %v360 = vpop.f32.mrf.mxu0
      %361 = vmatprep.mubr.bf16.mxu0 0
      %362 = vmatmul.mubr.bf16.gmra.mxu0 %v266
      %v363 = vpop.f32.mrf.mxu0
      %v364 = vadd.f32 0.0, %v363
      %v365 = vpop.f32.mrf.mxu0
      %v366 = vpop.f32.mrf.mxu0
      %v367 = vadd.f32 0.0, %v366
      %v368 = vpop.f32.mrf.mxu0
      %369 = vmatprep.mubr.bf16.mxu0 0
      %370 = vmatmul.mubr.bf16.gmra.mxu0 %v267
      %v371 = vpop.f32.mrf.mxu0
      %v372 = vadd.f32 0.0, %v371
      %v373 = vpop.f32.mrf.mxu0
      %v374 = vpop.f32.mrf.mxu0
      %v375 = vadd.f32 0.0, %v374
      %v376 = vpop.f32.mrf.mxu0
      %377 = vmatprep.mubr.bf16.mxu0 0
      %378 = vmatmul.mubr.bf16.gmra.mxu0 %v268
      %v379 = vpop.f32.mrf.mxu0
      %v380 = vadd.f32 0.0, %v379
      %v381 = vpop.f32.mrf.mxu0
      %v382 = vpop.f32.mrf.mxu0
      %v383 = vadd.f32 0.0, %v382
      %v384 = vpop.f32.mrf.mxu0
      %385 = vdwg.mxu0
      %v394 = vunpack.c.l.b16 %v199
      %v395 = vunpack.c.l.b16 %v200
      %v396 = vunpack.c.l.b16 %v201
      %v397 = vunpack.c.l.b16 %v202
      %v398 = vunpack.c.l.b16 %v203
      %v399 = vunpack.c.l.b16 %v204
      %v400 = vunpack.c.l.b16 %v205
      %v401 = vunpack.c.l.b16 %v206
      %v402 = vpack.c.b16 %v395, %v394
      %v403 = vpack.c.b16 %v397, %v396
      %v404 = vpack.c.b16 %v399, %v398
      %v405 = vpack.c.b16 %v401, %v400
      %v426 = vunpack.c.l.b16 %v207
      %v427 = vunpack.c.l.b16 %v208
      %v428 = vunpack.c.l.b16 %v209
      %v429 = vunpack.c.l.b16 %v210
      %v430 = vunpack.c.l.b16 %v211
      %v431 = vunpack.c.l.b16 %v212
      %v432 = vunpack.c.l.b16 %v213
      %v433 = vunpack.c.l.b16 %v214
      %v434 = vunpack.c.l.b16 %v215
      %v435 = vunpack.c.l.b16 %v216
      %v436 = vunpack.c.l.b16 %v217
      %v437 = vunpack.c.l.b16 %v218
      %v438 = vunpack.c.l.b16 %v219
      %v439 = vunpack.c.l.b16 %v220
      %v440 = vunpack.c.l.b16 %v221
      %v441 = vunpack.c.l.b16 %v222
      %v442 = vpack.c.b16 %v427, %v426
      %v443 = vpack.c.b16 %v429, %v428
      %v444 = vpack.c.b16 %v431, %v430
      %v445 = vpack.c.b16 %v433, %v432
      %v446 = vpack.c.b16 %v435, %v434
      %v447 = vpack.c.b16 %v437, %v436
      %v448 = vpack.c.b16 %v439, %v438
      %v449 = vpack.c.b16 %v441, %v440
      %458 = vmatprep.subr.bf16.mxu0 0
      %459 = vmatpush1.bf16.msra.mxu0 %v449
      %460 = vmatprep.subr.bf16.mxu0 0
      %461 = vmatpush1.bf16.msra.mxu0 %v448
      %462 = vmatprep.subr.bf16.mxu0 0
      %463 = vmatpush1.bf16.msra.mxu0 %v447
      %464 = vmatprep.subr.bf16.mxu0 0
      %465 = vmatpush1.bf16.msra.mxu0 %v446
      %466 = vmatprep.subr.bf16.mxu0 0
      %467 = vmatpush1.bf16.msra.mxu0 %v445
      %468 = vmatprep.subr.bf16.mxu0 0
      %469 = vmatpush1.bf16.msra.mxu0 %v444
      %470 = vmatprep.subr.bf16.mxu0 0
      %471 = vmatpush1.bf16.msra.mxu0 %v443
      %472 = vmatprep.subr.bf16.mxu0 0
      %473 = vmatpush1.bf16.msra.mxu0 %v442
      %474 = vmatprep.subr.bf16.mxu0 0
      %475 = vmatpush2.bf16.msra.mxu0 0
      %476 = vmatprep.subr.bf16.mxu0 0
      %477 = vmatpush2.bf16.msra.mxu0 0
      %478 = vmatprep.subr.bf16.mxu0 0
      %479 = vmatpush2.bf16.msra.mxu0 0
      %480 = vmatprep.subr.bf16.mxu0 0
      %481 = vmatpush2.bf16.msra.mxu0 0
      %482 = vmatprep.subr.bf16.mxu0 0
      %483 = vmatpush2.bf16.msra.mxu0 0
      %484 = vmatprep.subr.bf16.mxu0 0
      %485 = vmatpush2.bf16.msra.mxu0 0
      %486 = vmatprep.subr.bf16.mxu0 0
      %487 = vmatpush2.bf16.msra.mxu0 0
      %488 = vmatprep.subr.bf16.mxu0 0
      %489 = vmatpush2.bf16.msra.mxu0 0
      %490 = vmatprep.mubr.bf16.mxu0 0
      %491 = vmatmul.mubr.bf16.gmra.mxu0 %v402
      %v492 = vpop.f32.mrf.mxu0
      %v493 = vadd.f32 %v356, %v492
      %v494 = vpop.f32.mrf.mxu0
      %v495 = vpop.f32.mrf.mxu0
      %v496 = vadd.f32 %v359, %v495
      %v497 = vpop.f32.mrf.mxu0
      %498 = vmatprep.mubr.bf16.mxu0 0
      %499 = vmatmul.mubr.bf16.gmra.mxu0 %v403
      %v500 = vpop.f32.mrf.mxu0
      %v501 = vadd.f32 %v364, %v500
      %v502 = vpop.f32.mrf.mxu0
      %v503 = vpop.f32.mrf.mxu0
      %v504 = vadd.f32 %v367, %v503
      %v505 = vpop.f32.mrf.mxu0
      %506 = vmatprep.mubr.bf16.mxu0 0
      %507 = vmatmul.mubr.bf16.gmra.mxu0 %v404
      %v508 = vpop.f32.mrf.mxu0
      %v509 = vadd.f32 %v372, %v508
      %v510 = vpop.f32.mrf.mxu0
      %v511 = vpop.f32.mrf.mxu0
      %v512 = vadd.f32 %v375, %v511
      %v513 = vpop.f32.mrf.mxu0
      %514 = vmatprep.mubr.bf16.mxu0 0
      %515 = vmatmul.mubr.bf16.gmra.mxu0 %v405
      %v516 = vpop.f32.mrf.mxu0
      %v517 = vadd.f32 %v380, %v516
      %v518 = vpop.f32.mrf.mxu0
      %v519 = vpop.f32.mrf.mxu0
      %v520 = vadd.f32 %v383, %v519
      %v521 = vpop.f32.mrf.mxu0
      %522 = vdwg.mxu0
      %v523 = vld [vmem:[%s192] sm:$0xf]
      %v524 = vld [vmem:[%s192 + $0x4] sm:$0x1]
      %v525 = vld [vmem:[%s192 + $0x8] sm:$0xf]
      %v526 = vld [vmem:[%s192 + $0xc] sm:$0x1]
      %v527 = vld [vmem:[%s192 + $0x10] sm:$0xf]
      %v528 = vld [vmem:[%s192 + $0x14] sm:$0x1]
      %v529 = vld [vmem:[%s192 + $0x18] sm:$0xf]
      %v530 = vld [vmem:[%s192 + $0x1c] sm:$0x1]
      %v531 = vld [vmem:[%s192 + $0x20] sm:$0xf]
      %v532 = vld [vmem:[%s192 + $0x24] sm:$0x1]
      %v533 = vld [vmem:[%s192 + $0x28] sm:$0xf]
      %v534 = vld [vmem:[%s192 + $0x2c] sm:$0x1]
      %v535 = vld [vmem:[%s192 + $0x30] sm:$0xf]
      %v536 = vld [vmem:[%s192 + $0x34] sm:$0x1]
      %v537 = vld [vmem:[%s192 + $0x38] sm:$0xf]
      %v538 = vld [vmem:[%s192 + $0x3c] sm:$0x1]
      %vm539 = vsmask.f32 3328
      %vm540 = vsmask.f32 7440
      %vm541 = vmor %vm539, %vm540
      %v543 = vshrl.u32 %v523, 16
      %v545 = vrot.slane %v543, 4
      %v546 = vshll.u32 %v523, 16
      %v548 = vrot.slane %v546, 5
      %v549 = vor.u32 %v545, %v548
      %v550 = vrot.slane %v549, 4
      %v552 = vshll.u32 %v524, 16
      %v554 = vrot.slane %v552, 5
      %v555 = vsel %vm541, %v550, %v554
      %v557 = vshrl.u32 %v525, 16
      %v559 = vrot.slane %v557, 4
      %v560 = vshll.u32 %v525, 16
      %v562 = vrot.slane %v560, 5
      %v563 = vor.u32 %v559, %v562
      %v564 = vrot.slane %v563, 4
      %v566 = vshll.u32 %v526, 16
      %v568 = vrot.slane %v566, 5
      %v569 = vsel %vm541, %v564, %v568
      %v571 = vshrl.u32 %v527, 16
      %v573 = vrot.slane %v571, 4
      %v574 = vshll.u32 %v527, 16
      %v576 = vrot.slane %v574, 5
      %v577 = vor.u32 %v573, %v576
      %v578 = vrot.slane %v577, 4
      %v580 = vshll.u32 %v528, 16
      %v582 = vrot.slane %v580, 5
      %v583 = vsel %vm541, %v578, %v582
      %v585 = vshrl.u32 %v529, 16
      %v587 = vrot.slane %v585, 4
      %v588 = vshll.u32 %v529, 16
      %v590 = vrot.slane %v588, 5
      %v591 = vor.u32 %v587, %v590
      %v592 = vrot.slane %v591, 4
      %v594 = vshll.u32 %v530, 16
      %v596 = vrot.slane %v594, 5
      %v597 = vsel %vm541, %v592, %v596
      %v599 = vshrl.u32 %v531, 16
      %v601 = vrot.slane %v599, 4
      %v602 = vshll.u32 %v531, 16
      %v604 = vrot.slane %v602, 5
      %v605 = vor.u32 %v601, %v604
      %v606 = vrot.slane %v605, 4
      %v608 = vshll.u32 %v532, 16
      %v610 = vrot.slane %v608, 5
      %v611 = vsel %vm541, %v606, %v610
      %v613 = vshrl.u32 %v533, 16
      %v615 = vrot.slane %v613, 4
      %v616 = vshll.u32 %v533, 16
      %v618 = vrot.slane %v616, 5
      %v619 = vor.u32 %v615, %v618
      %v620 = vrot.slane %v619, 4
      %v622 = vshll.u32 %v534, 16
      %v624 = vrot.slane %v622, 5
      %v625 = vsel %vm541, %v620, %v624
      %v627 = vshrl.u32 %v535, 16
      %v629 = vrot.slane %v627, 4
      %v630 = vshll.u32 %v535, 16
      %v632 = vrot.slane %v630, 5
      %v633 = vor.u32 %v629, %v632
      %v634 = vrot.slane %v633, 4
      %v636 = vshll.u32 %v536, 16
      %v638 = vrot.slane %v636, 5
      %v639 = vsel %vm541, %v634, %v638
      %v641 = vshrl.u32 %v537, 16
      %v643 = vrot.slane %v641, 4
      %v644 = vshll.u32 %v537, 16
      %v646 = vrot.slane %v644, 5
      %v647 = vor.u32 %v643, %v646
      %v648 = vrot.slane %v647, 4
      %v650 = vshll.u32 %v538, 16
      %v652 = vrot.slane %v650, 5
      %v653 = vsel %vm541, %v648, %v652
      %s654 = scalar_lea.vmem %s1, 128
      %v655 = vld [vmem:[%s654] sm:$0xf]
      %v656 = vld [vmem:[%s654 + $0x4] sm:$0xf]
      %v657 = vld [vmem:[%s654 + $0x8] sm:$0xf]
      %v658 = vld [vmem:[%s654 + $0xc] sm:$0xf]
      %v659 = vld [vmem:[%s654 + $0x10] sm:$0xf]
      %v660 = vld [vmem:[%s654 + $0x14] sm:$0xf]
      %v661 = vld [vmem:[%s654 + $0x18] sm:$0xf]
      %v662 = vld [vmem:[%s654 + $0x1c] sm:$0xf]
      %v663 = vld [vmem:[%s654 + $0x20] sm:$0xf]
      %v664 = vld [vmem:[%s654 + $0x24] sm:$0xf]
      %v665 = vld [vmem:[%s654 + $0x28] sm:$0xf]
      %v666 = vld [vmem:[%s654 + $0x2c] sm:$0xf]
      %v667 = vld [vmem:[%s654 + $0x30] sm:$0xf]
      %v668 = vld [vmem:[%s654 + $0x34] sm:$0xf]
      %v669 = vld [vmem:[%s654 + $0x38] sm:$0xf]
      %v670 = vld [vmem:[%s654 + $0x3c] sm:$0xf]
      %v671 = vunpack.c.l.b16 %v555
      %v672 = vunpack.c.l.b16 %v569
      %v673 = vunpack.c.l.b16 %v583
      %v674 = vunpack.c.l.b16 %v597
      %v675 = vunpack.c.l.b16 %v611
      %v676 = vunpack.c.l.b16 %v625
      %v677 = vunpack.c.l.b16 %v639
      %v678 = vunpack.c.l.b16 %v653
      %v679 = vpack.c.b16 %v672, %v671
      %v680 = vpack.c.b16 %v674, %v673
      %v681 = vpack.c.b16 %v676, %v675
      %v682 = vpack.c.b16 %v678, %v677
      %v703 = vunpack.c.l.b16 %v655
      %v704 = vunpack.c.l.b16 %v656
      %v705 = vunpack.c.l.b16 %v657
      %v706 = vunpack.c.l.b16 %v658
      %v707 = vunpack.c.l.b16 %v659
      %v708 = vunpack.c.l.b16 %v660
      %v709 = vunpack.c.l.b16 %v661
      %v710 = vunpack.c.l.b16 %v662
      %v711 = vunpack.c.l.b16 %v663
      %v712 = vunpack.c.l.b16 %v664
      %v713 = vunpack.c.l.b16 %v665
      %v714 = vunpack.c.l.b16 %v666
      %v715 = vunpack.c.l.b16 %v667
      %v716 = vunpack.c.l.b16 %v668
      %v717 = vunpack.c.l.b16 %v669
      %v718 = vunpack.c.l.b16 %v670
      %v719 = vpack.c.b16 %v704, %v703
      %v720 = vpack.c.b16 %v706, %v705
      %v721 = vpack.c.b16 %v708, %v707
      %v722 = vpack.c.b16 %v710, %v709
      %v723 = vpack.c.b16 %v712, %v711
      %v724 = vpack.c.b16 %v714, %v713
      %v725 = vpack.c.b16 %v716, %v715
      %v726 = vpack.c.b16 %v718, %v717
      %735 = vmatprep.subr.bf16.mxu0 0
      %736 = vmatpush1.bf16.msra.mxu0 %v726
      %737 = vmatprep.subr.bf16.mxu0 0
      %738 = vmatpush1.bf16.msra.mxu0 %v725
      %739 = vmatprep.subr.bf16.mxu0 0
      %740 = vmatpush1.bf16.msra.mxu0 %v724
      %741 = vmatprep.subr.bf16.mxu0 0
      %742 = vmatpush1.bf16.msra.mxu0 %v723
      %743 = vmatprep.subr.bf16.mxu0 0
      %744 = vmatpush1.bf16.msra.mxu0 %v722
      %745 = vmatprep.subr.bf16.mxu0 0
      %746 = vmatpush1.bf16.msra.mxu0 %v721
      %747 = vmatprep.subr.bf16.mxu0 0
      %748 = vmatpush1.bf16.msra.mxu0 %v720
      %749 = vmatprep.subr.bf16.mxu0 0
      %750 = vmatpush1.bf16.msra.mxu0 %v719
      %751 = vmatprep.subr.bf16.mxu0 0
      %752 = vmatpush2.bf16.msra.mxu0 0
      %753 = vmatprep.subr.bf16.mxu0 0
      %754 = vmatpush2.bf16.msra.mxu0 0
      %755 = vmatprep.subr.bf16.mxu0 0
      %756 = vmatpush2.bf16.msra.mxu0 0
      %757 = vmatprep.subr.bf16.mxu0 0
      %758 = vmatpush2.bf16.msra.mxu0 0
      %759 = vmatprep.subr.bf16.mxu0 0
      %760 = vmatpush2.bf16.msra.mxu0 0
      %761 = vmatprep.subr.bf16.mxu0 0
      %762 = vmatpush2.bf16.msra.mxu0 0
      %763 = vmatprep.subr.bf16.mxu0 0
      %764 = vmatpush2.bf16.msra.mxu0 0
      %765 = vmatprep.subr.bf16.mxu0 0
      %766 = vmatpush2.bf16.msra.mxu0 0
      %767 = vmatprep.mubr.bf16.mxu0 0
      %768 = vmatmul.mubr.bf16.gmra.mxu0 %v679
      %v769 = vpop.f32.mrf.mxu0
      %v770 = vadd.f32 0.0, %v769
      %v771 = vpop.f32.mrf.mxu0
      %v772 = vpop.f32.mrf.mxu0
      %v773 = vadd.f32 0.0, %v772
      %v774 = vpop.f32.mrf.mxu0
      %775 = vmatprep.mubr.bf16.mxu0 0
      %776 = vmatmul.mubr.bf16.gmra.mxu0 %v680
      %v777 = vpop.f32.mrf.mxu0
      %v778 = vadd.f32 0.0, %v777
      %v779 = vpop.f32.mrf.mxu0
      %v780 = vpop.f32.mrf.mxu0
      %v781 = vadd.f32 0.0, %v780
      %v782 = vpop.f32.mrf.mxu0
      %783 = vmatprep.mubr.bf16.mxu0 0
      %784 = vmatmul.mubr.bf16.gmra.mxu0 %v681
      %v785 = vpop.f32.mrf.mxu0
      %v786 = vadd.f32 0.0, %v785
      %v787 = vpop.f32.mrf.mxu0
      %v788 = vpop.f32.mrf.mxu0
      %v789 = vadd.f32 0.0, %v788
      %v790 = vpop.f32.mrf.mxu0
      %791 = vmatprep.mubr.bf16.mxu0 0
      %792 = vmatmul.mubr.bf16.gmra.mxu0 %v682
      %v793 = vpop.f32.mrf.mxu0
      %v794 = vadd.f32 0.0, %v793
      %v795 = vpop.f32.mrf.mxu0
      %v796 = vpop.f32.mrf.mxu0
      %v797 = vadd.f32 0.0, %v796
      %v798 = vpop.f32.mrf.mxu0
      %799 = vdwg.mxu0
      %v800 = vadd.f32 %v493, %v770
      %v801 = vadd.f32 %v496, %v773
      %v802 = vadd.f32 %v501, %v778
      %v803 = vadd.f32 %v504, %v781
      %v804 = vadd.f32 %v509, %v786
      %v805 = vadd.f32 %v512, %v789
      %v806 = vadd.f32 %v517, %v794
      %v807 = vadd.f32 %v520, %v797
      %s808 = scalar_lea.vmem %s192, 144
      %v809 = vld [vmem:[%s808] sm:$0xf]
      %v810 = vld [vmem:[%s808 + $0x8] sm:$0xf]
      %v811 = vld [vmem:[%s808 + $0x10] sm:$0xf]
      %v812 = vld [vmem:[%s808 + $0x18] sm:$0xf]
      %v813 = vld [vmem:[%s808 + $0x20] sm:$0xf]
      %v814 = vld [vmem:[%s808 + $0x28] sm:$0xf]
      %v815 = vld [vmem:[%s808 + $0x30] sm:$0xf]
      %v816 = vld [vmem:[%s808 + $0x38] sm:$0xf]
      %s817 = scalar_lea.vmem %s1, 192
      %v818 = vld [vmem:[%s817] sm:$0xf]
      %v819 = vld [vmem:[%s817 + $0x4] sm:$0xf]
      %v820 = vld [vmem:[%s817 + $0x8] sm:$0xf]
      %v821 = vld [vmem:[%s817 + $0xc] sm:$0xf]
      %v822 = vld [vmem:[%s817 + $0x10] sm:$0xf]
      %v823 = vld [vmem:[%s817 + $0x14] sm:$0xf]
      %v824 = vld [vmem:[%s817 + $0x18] sm:$0xf]
      %v825 = vld [vmem:[%s817 + $0x1c] sm:$0xf]
      %v826 = vld [vmem:[%s817 + $0x20] sm:$0xf]
      %v827 = vld [vmem:[%s817 + $0x24] sm:$0xf]
      %v828 = vld [vmem:[%s817 + $0x28] sm:$0xf]
      %v829 = vld [vmem:[%s817 + $0x2c] sm:$0xf]
      %v830 = vld [vmem:[%s817 + $0x30] sm:$0xf]
      %v831 = vld [vmem:[%s817 + $0x34] sm:$0xf]
      %v832 = vld [vmem:[%s817 + $0x38] sm:$0xf]
      %v833 = vld [vmem:[%s817 + $0x3c] sm:$0xf]
      %v842 = vunpack.c.l.b16 %v809
      %v843 = vunpack.c.l.b16 %v810
      %v844 = vunpack.c.l.b16 %v811
      %v845 = vunpack.c.l.b16 %v812
      %v846 = vunpack.c.l.b16 %v813
      %v847 = vunpack.c.l.b16 %v814
      %v848 = vunpack.c.l.b16 %v815
      %v849 = vunpack.c.l.b16 %v816
      %v850 = vpack.c.b16 %v843, %v842
      %v851 = vpack.c.b16 %v845, %v844
      %v852 = vpack.c.b16 %v847, %v846
      %v853 = vpack.c.b16 %v849, %v848
      %v874 = vunpack.c.l.b16 %v818
      %v875 = vunpack.c.l.b16 %v819
      %v876 = vunpack.c.l.b16 %v820
      %v877 = vunpack.c.l.b16 %v821
      %v878 = vunpack.c.l.b16 %v822
      %v879 = vunpack.c.l.b16 %v823
      %v880 = vunpack.c.l.b16 %v824
      %v881 = vunpack.c.l.b16 %v825
      %v882 = vunpack.c.l.b16 %v826
      %v883 = vunpack.c.l.b16 %v827
      %v884 = vunpack.c.l.b16 %v828
      %v885 = vunpack.c.l.b16 %v829
      %v886 = vunpack.c.l.b16 %v830
      %v887 = vunpack.c.l.b16 %v831
      %v888 = vunpack.c.l.b16 %v832
      %v889 = vunpack.c.l.b16 %v833
      %v890 = vpack.c.b16 %v875, %v874
      %v891 = vpack.c.b16 %v877, %v876
      %v892 = vpack.c.b16 %v879, %v878
      %v893 = vpack.c.b16 %v881, %v880
      %v894 = vpack.c.b16 %v883, %v882
      %v895 = vpack.c.b16 %v885, %v884
      %v896 = vpack.c.b16 %v887, %v886
      %v897 = vpack.c.b16 %v889, %v888
      %906 = vmatprep.subr.bf16.mxu0 0
      %907 = vmatpush1.bf16.msra.mxu0 %v897
      %908 = vmatprep.subr.bf16.mxu0 0
      %909 = vmatpush1.bf16.msra.mxu0 %v896
      %910 = vmatprep.subr.bf16.mxu0 0
      %911 = vmatpush1.bf16.msra.mxu0 %v895
      %912 = vmatprep.subr.bf16.mxu0 0
      %913 = vmatpush1.bf16.msra.mxu0 %v894
      %914 = vmatprep.subr.bf16.mxu0 0
      %915 = vmatpush1.bf16.msra.mxu0 %v893
      %916 = vmatprep.subr.bf16.mxu0 0
      %917 = vmatpush1.bf16.msra.mxu0 %v892
      %918 = vmatprep.subr.bf16.mxu0 0
      %919 = vmatpush1.bf16.msra.mxu0 %v891
      %920 = vmatprep.subr.bf16.mxu0 0
      %921 = vmatpush1.bf16.msra.mxu0 %v890
      %922 = vmatprep.subr.bf16.mxu0 0
      %923 = vmatpush2.bf16.msra.mxu0 0
      %924 = vmatprep.subr.bf16.mxu0 0
      %925 = vmatpush2.bf16.msra.mxu0 0
      %926 = vmatprep.subr.bf16.mxu0 0
      %927 = vmatpush2.bf16.msra.mxu0 0
      %928 = vmatprep.subr.bf16.mxu0 0
      %929 = vmatpush2.bf16.msra.mxu0 0
      %930 = vmatprep.subr.bf16.mxu0 0
      %931 = vmatpush2.bf16.msra.mxu0 0
      %932 = vmatprep.subr.bf16.mxu0 0
      %933 = vmatpush2.bf16.msra.mxu0 0
      %934 = vmatprep.subr.bf16.mxu0 0
      %935 = vmatpush2.bf16.msra.mxu0 0
      %936 = vmatprep.subr.bf16.mxu0 0
      %937 = vmatpush2.bf16.msra.mxu0 0
      %938 = vmatprep.mubr.bf16.mxu0 0
      %939 = vmatmul.mubr.bf16.gmra.mxu0 %v850
      %v940 = vpop.f32.mrf.mxu0
      %v941 = vadd.f32 0.0, %v940
      %v942 = vpop.f32.mrf.mxu0
      %v943 = vpop.f32.mrf.mxu0
      %v944 = vadd.f32 0.0, %v943
      %v945 = vpop.f32.mrf.mxu0
      %946 = vmatprep.mubr.bf16.mxu0 0
      %947 = vmatmul.mubr.bf16.gmra.mxu0 %v851
      %v948 = vpop.f32.mrf.mxu0
      %v949 = vadd.f32 0.0, %v948
      %v950 = vpop.f32.mrf.mxu0
      %v951 = vpop.f32.mrf.mxu0
      %v952 = vadd.f32 0.0, %v951
      %v953 = vpop.f32.mrf.mxu0
      %954 = vmatprep.mubr.bf16.mxu0 0
      %955 = vmatmul.mubr.bf16.gmra.mxu0 %v852
      %v956 = vpop.f32.mrf.mxu0
      %v957 = vadd.f32 0.0, %v956
      %v958 = vpop.f32.mrf.mxu0
      %v959 = vpop.f32.mrf.mxu0
      %v960 = vadd.f32 0.0, %v959
      %v961 = vpop.f32.mrf.mxu0
      %962 = vmatprep.mubr.bf16.mxu0 0
      %963 = vmatmul.mubr.bf16.gmra.mxu0 %v853
      %v964 = vpop.f32.mrf.mxu0
      %v965 = vadd.f32 0.0, %v964
      %v966 = vpop.f32.mrf.mxu0
      %v967 = vpop.f32.mrf.mxu0
      %v968 = vadd.f32 0.0, %v967
      %v969 = vpop.f32.mrf.mxu0
      %970 = vdwg.mxu0
      %v971 = vadd.f32 %v800, %v941
      %v972 = vadd.f32 %v801, %v944
      %v973 = vadd.f32 %v802, %v949
      %v974 = vadd.f32 %v803, %v952
      %v975 = vadd.f32 %v804, %v957
      %v976 = vadd.f32 %v805, %v960
      %v977 = vadd.f32 %v806, %v965
      %v978 = vadd.f32 %v807, %v968
      %s979 = scalar_lea.vmem %s192, 216
      %v980 = vld [vmem:[%s979] sm:$0xf]
      %v981 = vld [vmem:[%s979 + $0x8] sm:$0xf]
      %v982 = vld [vmem:[%s979 + $0x10] sm:$0xf]
      %v983 = vld [vmem:[%s979 + $0x18] sm:$0xf]
      %v984 = vld [vmem:[%s979 + $0x20] sm:$0xf]
      %v985 = vld [vmem:[%s979 + $0x28] sm:$0xf]
      %v986 = vld [vmem:[%s979 + $0x30] sm:$0xf]
      %v987 = vld [vmem:[%s979 + $0x38] sm:$0xf]
      %s988 = scalar_lea.vmem %s1, 256
      %v989 = vld [vmem:[%s988] sm:$0xf]
      %v990 = vld [vmem:[%s988 + $0x4] sm:$0xf]
      %v991 = vld [vmem:[%s988 + $0x8] sm:$0xf]
      %v992 = vld [vmem:[%s988 + $0xc] sm:$0xf]
      %v993 = vld [vmem:[%s988 + $0x10] sm:$0xf]
      %v994 = vld [vmem:[%s988 + $0x14] sm:$0xf]
      %v995 = vld [vmem:[%s988 + $0x18] sm:$0xf]
      %v996 = vld [vmem:[%s988 + $0x1c] sm:$0xf]
      %v997 = vld [vmem:[%s988 + $0x20] sm:$0xf]
      %v998 = vld [vmem:[%s988 + $0x24] sm:$0xf]
      %v999 = vld [vmem:[%s988 + $0x28] sm:$0xf]
      %v1000 = vld [vmem:[%s988 + $0x2c] sm:$0xf]
      %v1001 = vld [vmem:[%s988 + $0x30] sm:$0xf]
      %v1002 = vld [vmem:[%s988 + $0x34] sm:$0xf]
      %v1003 = vld [vmem:[%s988 + $0x38] sm:$0xf]
      %v1004 = vld [vmem:[%s988 + $0x3c] sm:$0xf]
      %v1013 = vunpack.c.l.b16 %v980
      %v1014 = vunpack.c.l.b16 %v981
      %v1015 = vunpack.c.l.b16 %v982
      %v1016 = vunpack.c.l.b16 %v983
      %v1017 = vunpack.c.l.b16 %v984
      %v1018 = vunpack.c.l.b16 %v985
      %v1019 = vunpack.c.l.b16 %v986
      %v1020 = vunpack.c.l.b16 %v987
      %v1021 = vpack.c.b16 %v1014, %v1013
      %v1022 = vpack.c.b16 %v1016, %v1015
      %v1023 = vpack.c.b16 %v1018, %v1017
      %v1024 = vpack.c.b16 %v1020, %v1019
      %v1045 = vunpack.c.l.b16 %v989
      %v1046 = vunpack.c.l.b16 %v990
      %v1047 = vunpack.c.l.b16 %v991
      %v1048 = vunpack.c.l.b16 %v992
      %v1049 = vunpack.c.l.b16 %v993
      %v1050 = vunpack.c.l.b16 %v994
      %v1051 = vunpack.c.l.b16 %v995
      %v1052 = vunpack.c.l.b16 %v996
      %v1053 = vunpack.c.l.b16 %v997
      %v1054 = vunpack.c.l.b16 %v998
      %v1055 = vunpack.c.l.b16 %v999
      %v1056 = vunpack.c.l.b16 %v1000
      %v1057 = vunpack.c.l.b16 %v1001
      %v1058 = vunpack.c.l.b16 %v1002
      %v1059 = vunpack.c.l.b16 %v1003
      %v1060 = vunpack.c.l.b16 %v1004
      %v1061 = vpack.c.b16 %v1046, %v1045
      %v1062 = vpack.c.b16 %v1048, %v1047
      %v1063 = vpack.c.b16 %v1050, %v1049
      %v1064 = vpack.c.b16 %v1052, %v1051
      %v1065 = vpack.c.b16 %v1054, %v1053
      %v1066 = vpack.c.b16 %v1056, %v1055
      %v1067 = vpack.c.b16 %v1058, %v1057
      %v1068 = vpack.c.b16 %v1060, %v1059
      %1077 = vmatprep.subr.bf16.mxu0 0
      %1078 = vmatpush1.bf16.msra.mxu0 %v1068
      %1079 = vmatprep.subr.bf16.mxu0 0
      %1080 = vmatpush1.bf16.msra.mxu0 %v1067
      %1081 = vmatprep.subr.bf16.mxu0 0
      %1082 = vmatpush1.bf16.msra.mxu0 %v1066
      %1083 = vmatprep.subr.bf16.mxu0 0
      %1084 = vmatpush1.bf16.msra.mxu0 %v1065
      %1085 = vmatprep.subr.bf16.mxu0 0
      %1086 = vmatpush1.bf16.msra.mxu0 %v1064
      %1087 = vmatprep.subr.bf16.mxu0 0
      %1088 = vmatpush1.bf16.msra.mxu0 %v1063
      %1089 = vmatprep.subr.bf16.mxu0 0
      %1090 = vmatpush1.bf16.msra.mxu0 %v1062
      %1091 = vmatprep.subr.bf16.mxu0 0
      %1092 = vmatpush1.bf16.msra.mxu0 %v1061
      %1093 = vmatprep.subr.bf16.mxu0 0
      %1094 = vmatpush2.bf16.msra.mxu0 0
      %1095 = vmatprep.subr.bf16.mxu0 0
      %1096 = vmatpush2.bf16.msra.mxu0 0
      %1097 = vmatprep.subr.bf16.mxu0 0
      %1098 = vmatpush2.bf16.msra.mxu0 0
      %1099 = vmatprep.subr.bf16.mxu0 0
      %1100 = vmatpush2.bf16.msra.mxu0 0
      %1101 = vmatprep.subr.bf16.mxu0 0
      %1102 = vmatpush2.bf16.msra.mxu0 0
      %1103 = vmatprep.subr.bf16.mxu0 0
      %1104 = vmatpush2.bf16.msra.mxu0 0
      %1105 = vmatprep.subr.bf16.mxu0 0
      %1106 = vmatpush2.bf16.msra.mxu0 0
      %1107 = vmatprep.subr.bf16.mxu0 0
      %1108 = vmatpush2.bf16.msra.mxu0 0
      %1109 = vmatprep.mubr.bf16.mxu0 0
      %1110 = vmatmul.mubr.bf16.gmra.mxu0 %v1021
      %v1111 = vpop.f32.mrf.mxu0
      %v1112 = vadd.f32 0.0, %v1111
      %v1113 = vpop.f32.mrf.mxu0
      %v1114 = vpop.f32.mrf.mxu0
      %v1115 = vadd.f32 0.0, %v1114
      %v1116 = vpop.f32.mrf.mxu0
      %1117 = vmatprep.mubr.bf16.mxu0 0
      %1118 = vmatmul.mubr.bf16.gmra.mxu0 %v1022
      %v1119 = vpop.f32.mrf.mxu0
      %v1120 = vadd.f32 0.0, %v1119
      %v1121 = vpop.f32.mrf.mxu0
      %v1122 = vpop.f32.mrf.mxu0
      %v1123 = vadd.f32 0.0, %v1122
      %v1124 = vpop.f32.mrf.mxu0
      %1125 = vmatprep.mubr.bf16.mxu0 0
      %1126 = vmatmul.mubr.bf16.gmra.mxu0 %v1023
      %v1127 = vpop.f32.mrf.mxu0
      %v1128 = vadd.f32 0.0, %v1127
      %v1129 = vpop.f32.mrf.mxu0
      %v1130 = vpop.f32.mrf.mxu0
      %v1131 = vadd.f32 0.0, %v1130
      %v1132 = vpop.f32.mrf.mxu0
      %1133 = vmatprep.mubr.bf16.mxu0 0
      %1134 = vmatmul.mubr.bf16.gmra.mxu0 %v1024
      %v1135 = vpop.f32.mrf.mxu0
      %v1136 = vadd.f32 0.0, %v1135
      %v1137 = vpop.f32.mrf.mxu0
      %v1138 = vpop.f32.mrf.mxu0
      %v1139 = vadd.f32 0.0, %v1138
      %v1140 = vpop.f32.mrf.mxu0
      %1141 = vdwg.mxu0
      %v1142 = vadd.f32 %v971, %v1112
      %v1143 = vadd.f32 %v972, %v1115
      %v1144 = vadd.f32 %v973, %v1120
      %v1145 = vadd.f32 %v974, %v1123
      %v1146 = vadd.f32 %v975, %v1128
      %v1147 = vadd.f32 %v976, %v1131
      %v1148 = vadd.f32 %v977, %v1136
      %v1149 = vadd.f32 %v978, %v1139
      %v1150 = vld [vmem:[%s808] sm:$0xf]
      %v1151 = vld [vmem:[%s808 + $0x4] sm:$0x1]
      %v1152 = vld [vmem:[%s808 + $0x8] sm:$0xf]
      %v1153 = vld [vmem:[%s808 + $0xc] sm:$0x1]
      %v1154 = vld [vmem:[%s808 + $0x10] sm:$0xf]
      %v1155 = vld [vmem:[%s808 + $0x14] sm:$0x1]
      %v1156 = vld [vmem:[%s808 + $0x18] sm:$0xf]
      %v1157 = vld [vmem:[%s808 + $0x1c] sm:$0x1]
      %v1158 = vld [vmem:[%s808 + $0x20] sm:$0xf]
      %v1159 = vld [vmem:[%s808 + $0x24] sm:$0x1]
      %v1160 = vld [vmem:[%s808 + $0x28] sm:$0xf]
      %v1161 = vld [vmem:[%s808 + $0x2c] sm:$0x1]
      %v1162 = vld [vmem:[%s808 + $0x30] sm:$0xf]
      %v1163 = vld [vmem:[%s808 + $0x34] sm:$0x1]
      %v1164 = vld [vmem:[%s808 + $0x38] sm:$0xf]
      %v1165 = vld [vmem:[%s808 + $0x3c] sm:$0x1]
      %v1167 = vshrl.u32 %v1150, 16
      %v1169 = vrot.slane %v1167, 4
      %v1170 = vshll.u32 %v1150, 16
      %v1172 = vrot.slane %v1170, 5
      %v1173 = vor.u32 %v1169, %v1172
      %v1174 = vrot.slane %v1173, 4
      %v1176 = vshll.u32 %v1151, 16
      %v1178 = vrot.slane %v1176, 5
      %v1179 = vsel %vm541, %v1174, %v1178
      %v1181 = vshrl.u32 %v1152, 16
      %v1183 = vrot.slane %v1181, 4
      %v1184 = vshll.u32 %v1152, 16
      %v1186 = vrot.slane %v1184, 5
      %v1187 = vor.u32 %v1183, %v1186
      %v1188 = vrot.slane %v1187, 4
      %v1190 = vshll.u32 %v1153, 16
      %v1192 = vrot.slane %v1190, 5
      %v1193 = vsel %vm541, %v1188, %v1192
      %v1195 = vshrl.u32 %v1154, 16
      %v1197 = vrot.slane %v1195, 4
      %v1198 = vshll.u32 %v1154, 16
      %v1200 = vrot.slane %v1198, 5
      %v1201 = vor.u32 %v1197, %v1200
      %v1202 = vrot.slane %v1201, 4
      %v1204 = vshll.u32 %v1155, 16
      %v1206 = vrot.slane %v1204, 5
      %v1207 = vsel %vm541, %v1202, %v1206
      %v1209 = vshrl.u32 %v1156, 16
      %v1211 = vrot.slane %v1209, 4
      %v1212 = vshll.u32 %v1156, 16
      %v1214 = vrot.slane %v1212, 5
      %v1215 = vor.u32 %v1211, %v1214
      %v1216 = vrot.slane %v1215, 4
      %v1218 = vshll.u32 %v1157, 16
      %v1220 = vrot.slane %v1218, 5
      %v1221 = vsel %vm541, %v1216, %v1220
      %v1223 = vshrl.u32 %v1158, 16
      %v1225 = vrot.slane %v1223, 4
      %v1226 = vshll.u32 %v1158, 16
      %v1228 = vrot.slane %v1226, 5
      %v1229 = vor.u32 %v1225, %v1228
      %v1230 = vrot.slane %v1229, 4
      %v1232 = vshll.u32 %v1159, 16
      %v1234 = vrot.slane %v1232, 5
      %v1235 = vsel %vm541, %v1230, %v1234
      %v1237 = vshrl.u32 %v1160, 16
      %v1239 = vrot.slane %v1237, 4
      %v1240 = vshll.u32 %v1160, 16
      %v1242 = vrot.slane %v1240, 5
      %v1243 = vor.u32 %v1239, %v1242
      %v1244 = vrot.slane %v1243, 4
      %v1246 = vshll.u32 %v1161, 16
      %v1248 = vrot.slane %v1246, 5
      %v1249 = vsel %vm541, %v1244, %v1248
      %v1251 = vshrl.u32 %v1162, 16
      %v1253 = vrot.slane %v1251, 4
      %v1254 = vshll.u32 %v1162, 16
      %v1256 = vrot.slane %v1254, 5
      %v1257 = vor.u32 %v1253, %v1256
      %v1258 = vrot.slane %v1257, 4
      %v1260 = vshll.u32 %v1163, 16
      %v1262 = vrot.slane %v1260, 5
      %v1263 = vsel %vm541, %v1258, %v1262
      %v1265 = vshrl.u32 %v1164, 16
      %v1267 = vrot.slane %v1265, 4
      %v1268 = vshll.u32 %v1164, 16
      %v1270 = vrot.slane %v1268, 5
      %v1271 = vor.u32 %v1267, %v1270
      %v1272 = vrot.slane %v1271, 4
      %v1274 = vshll.u32 %v1165, 16
      %v1276 = vrot.slane %v1274, 5
      %v1277 = vsel %vm541, %v1272, %v1276
      %s1278 = scalar_lea.vmem %s1, 320
      %v1279 = vld [vmem:[%s1278] sm:$0xf]
      %v1280 = vld [vmem:[%s1278 + $0x4] sm:$0xf]
      %v1281 = vld [vmem:[%s1278 + $0x8] sm:$0xf]
      %v1282 = vld [vmem:[%s1278 + $0xc] sm:$0xf]
      %v1283 = vld [vmem:[%s1278 + $0x10] sm:$0xf]
      %v1284 = vld [vmem:[%s1278 + $0x14] sm:$0xf]
      %v1285 = vld [vmem:[%s1278 + $0x18] sm:$0xf]
      %v1286 = vld [vmem:[%s1278 + $0x1c] sm:$0xf]
      %v1287 = vld [vmem:[%s1278 + $0x20] sm:$0xf]
      %v1288 = vld [vmem:[%s1278 + $0x24] sm:$0xf]
      %v1289 = vld [vmem:[%s1278 + $0x28] sm:$0xf]
      %v1290 = vld [vmem:[%s1278 + $0x2c] sm:$0xf]
      %v1291 = vld [vmem:[%s1278 + $0x30] sm:$0xf]
      %v1292 = vld [vmem:[%s1278 + $0x34] sm:$0xf]
      %v1293 = vld [vmem:[%s1278 + $0x38] sm:$0xf]
      %v1294 = vld [vmem:[%s1278 + $0x3c] sm:$0xf]
      %v1295 = vunpack.c.l.b16 %v1179
      %v1296 = vunpack.c.l.b16 %v1193
      %v1297 = vunpack.c.l.b16 %v1207
      %v1298 = vunpack.c.l.b16 %v1221
      %v1299 = vunpack.c.l.b16 %v1235
      %v1300 = vunpack.c.l.b16 %v1249
      %v1301 = vunpack.c.l.b16 %v1263
      %v1302 = vunpack.c.l.b16 %v1277
      %v1303 = vpack.c.b16 %v1296, %v1295
      %v1304 = vpack.c.b16 %v1298, %v1297
      %v1305 = vpack.c.b16 %v1300, %v1299
      %v1306 = vpack.c.b16 %v1302, %v1301
      %v1327 = vunpack.c.l.b16 %v1279
      %v1328 = vunpack.c.l.b16 %v1280
      %v1329 = vunpack.c.l.b16 %v1281
      %v1330 = vunpack.c.l.b16 %v1282
      %v1331 = vunpack.c.l.b16 %v1283
      %v1332 = vunpack.c.l.b16 %v1284
      %v1333 = vunpack.c.l.b16 %v1285
      %v1334 = vunpack.c.l.b16 %v1286
      %v1335 = vunpack.c.l.b16 %v1287
      %v1336 = vunpack.c.l.b16 %v1288
      %v1337 = vunpack.c.l.b16 %v1289
      %v1338 = vunpack.c.l.b16 %v1290
      %v1339 = vunpack.c.l.b16 %v1291
      %v1340 = vunpack.c.l.b16 %v1292
      %v1341 = vunpack.c.l.b16 %v1293
      %v1342 = vunpack.c.l.b16 %v1294
      %v1343 = vpack.c.b16 %v1328, %v1327
      %v1344 = vpack.c.b16 %v1330, %v1329
      %v1345 = vpack.c.b16 %v1332, %v1331
      %v1346 = vpack.c.b16 %v1334, %v1333
      %v1347 = vpack.c.b16 %v1336, %v1335
      %v1348 = vpack.c.b16 %v1338, %v1337
      %v1349 = vpack.c.b16 %v1340, %v1339
      %v1350 = vpack.c.b16 %v1342, %v1341
      %1359 = vmatprep.subr.bf16.mxu0 0
      %1360 = vmatpush1.bf16.msra.mxu0 %v1350
      %1361 = vmatprep.subr.bf16.mxu0 0
      %1362 = vmatpush1.bf16.msra.mxu0 %v1349
      %1363 = vmatprep.subr.bf16.mxu0 0
      %1364 = vmatpush1.bf16.msra.mxu0 %v1348
      %1365 = vmatprep.subr.bf16.mxu0 0
      %1366 = vmatpush1.bf16.msra.mxu0 %v1347
      %1367 = vmatprep.subr.bf16.mxu0 0
      %1368 = vmatpush1.bf16.msra.mxu0 %v1346
      %1369 = vmatprep.subr.bf16.mxu0 0
      %1370 = vmatpush1.bf16.msra.mxu0 %v1345
      %1371 = vmatprep.subr.bf16.mxu0 0
      %1372 = vmatpush1.bf16.msra.mxu0 %v1344
      %1373 = vmatprep.subr.bf16.mxu0 0
      %1374 = vmatpush1.bf16.msra.mxu0 %v1343
      %1375 = vmatprep.subr.bf16.mxu0 0
      %1376 = vmatpush2.bf16.msra.mxu0 0
      %1377 = vmatprep.subr.bf16.mxu0 0
      %1378 = vmatpush2.bf16.msra.mxu0 0
      %1379 = vmatprep.subr.bf16.mxu0 0
      %1380 = vmatpush2.bf16.msra.mxu0 0
      %1381 = vmatprep.subr.bf16.mxu0 0
      %1382 = vmatpush2.bf16.msra.mxu0 0
      %1383 = vmatprep.subr.bf16.mxu0 0
      %1384 = vmatpush2.bf16.msra.mxu0 0
      %1385 = vmatprep.subr.bf16.mxu0 0
      %1386 = vmatpush2.bf16.msra.mxu0 0
      %1387 = vmatprep.subr.bf16.mxu0 0
      %1388 = vmatpush2.bf16.msra.mxu0 0
      %1389 = vmatprep.subr.bf16.mxu0 0
      %1390 = vmatpush2.bf16.msra.mxu0 0
      %1391 = vmatprep.mubr.bf16.mxu0 0
      %1392 = vmatmul.mubr.bf16.gmra.mxu0 %v1303
      %v1393 = vpop.f32.mrf.mxu0
      %v1394 = vadd.f32 0.0, %v1393
      %v1395 = vpop.f32.mrf.mxu0
      %v1396 = vpop.f32.mrf.mxu0
      %v1397 = vadd.f32 0.0, %v1396
      %v1398 = vpop.f32.mrf.mxu0
      %1399 = vmatprep.mubr.bf16.mxu0 0
      %1400 = vmatmul.mubr.bf16.gmra.mxu0 %v1304
      %v1401 = vpop.f32.mrf.mxu0
      %v1402 = vadd.f32 0.0, %v1401
      %v1403 = vpop.f32.mrf.mxu0
      %v1404 = vpop.f32.mrf.mxu0
      %v1405 = vadd.f32 0.0, %v1404
      %v1406 = vpop.f32.mrf.mxu0
      %1407 = vmatprep.mubr.bf16.mxu0 0
      %1408 = vmatmul.mubr.bf16.gmra.mxu0 %v1305
      %v1409 = vpop.f32.mrf.mxu0
      %v1410 = vadd.f32 0.0, %v1409
      %v1411 = vpop.f32.mrf.mxu0
      %v1412 = vpop.f32.mrf.mxu0
      %v1413 = vadd.f32 0.0, %v1412
      %v1414 = vpop.f32.mrf.mxu0
      %1415 = vmatprep.mubr.bf16.mxu0 0
      %1416 = vmatmul.mubr.bf16.gmra.mxu0 %v1306
      %v1417 = vpop.f32.mrf.mxu0
      %v1418 = vadd.f32 0.0, %v1417
      %v1419 = vpop.f32.mrf.mxu0
      %v1420 = vpop.f32.mrf.mxu0
      %v1421 = vadd.f32 0.0, %v1420
      %v1422 = vpop.f32.mrf.mxu0
      %1423 = vdwg.mxu0
      %v1424 = vadd.f32 %v1142, %v1394
      %v1425 = vadd.f32 %v1143, %v1397
      %v1426 = vadd.f32 %v1144, %v1402
      %v1427 = vadd.f32 %v1145, %v1405
      %v1428 = vadd.f32 %v1146, %v1410
      %v1429 = vadd.f32 %v1147, %v1413
      %v1430 = vadd.f32 %v1148, %v1418
      %v1431 = vadd.f32 %v1149, %v1421
      %s1432 = scalar_lea.vmem %s192, 8
      %v1433 = vld [vmem:[%s1432] sm:$0xf]
      %v1434 = vld [vmem:[%s1432 + $0x8] sm:$0xf]
      %v1435 = vld [vmem:[%s1432 + $0x10] sm:$0xf]
      %v1436 = vld [vmem:[%s1432 + $0x18] sm:$0xf]
      %v1437 = vld [vmem:[%s1432 + $0x20] sm:$0xf]
      %v1438 = vld [vmem:[%s1432 + $0x28] sm:$0xf]
      %v1439 = vld [vmem:[%s1432 + $0x30] sm:$0xf]
      %v1440 = vld [vmem:[%s1432 + $0x38] sm:$0xf]
      %s1441 = scalar_lea.vmem %s1, 384
      %v1442 = vld [vmem:[%s1441] sm:$0xf]
      %v1443 = vld [vmem:[%s1441 + $0x4] sm:$0xf]
      %v1444 = vld [vmem:[%s1441 + $0x8] sm:$0xf]
      %v1445 = vld [vmem:[%s1441 + $0xc] sm:$0xf]
      %v1446 = vld [vmem:[%s1441 + $0x10] sm:$0xf]
      %v1447 = vld [vmem:[%s1441 + $0x14] sm:$0xf]
      %v1448 = vld [vmem:[%s1441 + $0x18] sm:$0xf]
      %v1449 = vld [vmem:[%s1441 + $0x1c] sm:$0xf]
      %v1450 = vld [vmem:[%s1441 + $0x20] sm:$0xf]
      %v1451 = vld [vmem:[%s1441 + $0x24] sm:$0xf]
      %v1452 = vld [vmem:[%s1441 + $0x28] sm:$0xf]
      %v1453 = vld [vmem:[%s1441 + $0x2c] sm:$0xf]
      %v1454 = vld [vmem:[%s1441 + $0x30] sm:$0xf]
      %v1455 = vld [vmem:[%s1441 + $0x34] sm:$0xf]
      %v1456 = vld [vmem:[%s1441 + $0x38] sm:$0xf]
      %v1457 = vld [vmem:[%s1441 + $0x3c] sm:$0xf]
      %v1466 = vunpack.c.l.b16 %v1433
      %v1467 = vunpack.c.l.b16 %v1434
      %v1468 = vunpack.c.l.b16 %v1435
      %v1469 = vunpack.c.l.b16 %v1436
      %v1470 = vunpack.c.l.b16 %v1437
      %v1471 = vunpack.c.l.b16 %v1438
      %v1472 = vunpack.c.l.b16 %v1439
      %v1473 = vunpack.c.l.b16 %v1440
      %v1474 = vpack.c.b16 %v1467, %v1466
      %v1475 = vpack.c.b16 %v1469, %v1468
      %v1476 = vpack.c.b16 %v1471, %v1470
      %v1477 = vpack.c.b16 %v1473, %v1472
      %v1498 = vunpack.c.l.b16 %v1442
      %v1499 = vunpack.c.l.b16 %v1443
      %v1500 = vunpack.c.l.b16 %v1444
      %v1501 = vunpack.c.l.b16 %v1445
      %v1502 = vunpack.c.l.b16 %v1446
      %v1503 = vunpack.c.l.b16 %v1447
      %v1504 = vunpack.c.l.b16 %v1448
      %v1505 = vunpack.c.l.b16 %v1449
      %v1506 = vunpack.c.l.b16 %v1450
      %v1507 = vunpack.c.l.b16 %v1451
      %v1508 = vunpack.c.l.b16 %v1452
      %v1509 = vunpack.c.l.b16 %v1453
      %v1510 = vunpack.c.l.b16 %v1454
      %v1511 = vunpack.c.l.b16 %v1455
      %v1512 = vunpack.c.l.b16 %v1456
      %v1513 = vunpack.c.l.b16 %v1457
      %v1514 = vpack.c.b16 %v1499, %v1498
      %v1515 = vpack.c.b16 %v1501, %v1500
      %v1516 = vpack.c.b16 %v1503, %v1502
      %v1517 = vpack.c.b16 %v1505, %v1504
      %v1518 = vpack.c.b16 %v1507, %v1506
      %v1519 = vpack.c.b16 %v1509, %v1508
      %v1520 = vpack.c.b16 %v1511, %v1510
      %v1521 = vpack.c.b16 %v1513, %v1512
      %1530 = vmatprep.subr.bf16.mxu0 0
      %1531 = vmatpush1.bf16.msra.mxu0 %v1521
      %1532 = vmatprep.subr.bf16.mxu0 0
      %1533 = vmatpush1.bf16.msra.mxu0 %v1520
      %1534 = vmatprep.subr.bf16.mxu0 0
      %1535 = vmatpush1.bf16.msra.mxu0 %v1519
      %1536 = vmatprep.subr.bf16.mxu0 0
      %1537 = vmatpush1.bf16.msra.mxu0 %v1518
      %1538 = vmatprep.subr.bf16.mxu0 0
      %1539 = vmatpush1.bf16.msra.mxu0 %v1517
      %1540 = vmatprep.subr.bf16.mxu0 0
      %1541 = vmatpush1.bf16.msra.mxu0 %v1516
      %1542 = vmatprep.subr.bf16.mxu0 0
      %1543 = vmatpush1.bf16.msra.mxu0 %v1515
      %1544 = vmatprep.subr.bf16.mxu0 0
      %1545 = vmatpush1.bf16.msra.mxu0 %v1514
      %1546 = vmatprep.subr.bf16.mxu0 0
      %1547 = vmatpush2.bf16.msra.mxu0 0
      %1548 = vmatprep.subr.bf16.mxu0 0
      %1549 = vmatpush2.bf16.msra.mxu0 0
      %1550 = vmatprep.subr.bf16.mxu0 0
      %1551 = vmatpush2.bf16.msra.mxu0 0
      %1552 = vmatprep.subr.bf16.mxu0 0
      %1553 = vmatpush2.bf16.msra.mxu0 0
      %1554 = vmatprep.subr.bf16.mxu0 0
      %1555 = vmatpush2.bf16.msra.mxu0 0
      %1556 = vmatprep.subr.bf16.mxu0 0
      %1557 = vmatpush2.bf16.msra.mxu0 0
      %1558 = vmatprep.subr.bf16.mxu0 0
      %1559 = vmatpush2.bf16.msra.mxu0 0
      %1560 = vmatprep.subr.bf16.mxu0 0
      %1561 = vmatpush2.bf16.msra.mxu0 0
      %1562 = vmatprep.mubr.bf16.mxu0 0
      %1563 = vmatmul.mubr.bf16.gmra.mxu0 %v1474
      %v1564 = vpop.f32.mrf.mxu0
      %v1565 = vadd.f32 0.0, %v1564
      %v1566 = vpop.f32.mrf.mxu0
      %v1567 = vpop.f32.mrf.mxu0
      %v1568 = vadd.f32 0.0, %v1567
      %v1569 = vpop.f32.mrf.mxu0
      %1570 = vmatprep.mubr.bf16.mxu0 0
      %1571 = vmatmul.mubr.bf16.gmra.mxu0 %v1475
      %v1572 = vpop.f32.mrf.mxu0
      %v1573 = vadd.f32 0.0, %v1572
      %v1574 = vpop.f32.mrf.mxu0
      %v1575 = vpop.f32.mrf.mxu0
      %v1576 = vadd.f32 0.0, %v1575
      %v1577 = vpop.f32.mrf.mxu0
      %1578 = vmatprep.mubr.bf16.mxu0 0
      %1579 = vmatmul.mubr.bf16.gmra.mxu0 %v1476
      %v1580 = vpop.f32.mrf.mxu0
      %v1581 = vadd.f32 0.0, %v1580
      %v1582 = vpop.f32.mrf.mxu0
      %v1583 = vpop.f32.mrf.mxu0
      %v1584 = vadd.f32 0.0, %v1583
      %v1585 = vpop.f32.mrf.mxu0
      %1586 = vmatprep.mubr.bf16.mxu0 0
      %1587 = vmatmul.mubr.bf16.gmra.mxu0 %v1477
      %v1588 = vpop.f32.mrf.mxu0
      %v1589 = vadd.f32 0.0, %v1588
      %v1590 = vpop.f32.mrf.mxu0
      %v1591 = vpop.f32.mrf.mxu0
      %v1592 = vadd.f32 0.0, %v1591
      %v1593 = vpop.f32.mrf.mxu0
      %1594 = vdwg.mxu0
      %v1595 = vadd.f32 %v1424, %v1565
      %v1596 = vadd.f32 %v1425, %v1568
      %v1597 = vadd.f32 %v1426, %v1573
      %v1598 = vadd.f32 %v1427, %v1576
      %v1599 = vadd.f32 %v1428, %v1581
      %v1600 = vadd.f32 %v1429, %v1584
      %v1601 = vadd.f32 %v1430, %v1589
      %v1602 = vadd.f32 %v1431, %v1592
      %s1603 = scalar_lea.vmem %s192, 80
      %v1604 = vld [vmem:[%s1603] sm:$0xf]
      %v1605 = vld [vmem:[%s1603 + $0x8] sm:$0xf]
      %v1606 = vld [vmem:[%s1603 + $0x10] sm:$0xf]
      %v1607 = vld [vmem:[%s1603 + $0x18] sm:$0xf]
      %v1608 = vld [vmem:[%s1603 + $0x20] sm:$0xf]
      %v1609 = vld [vmem:[%s1603 + $0x28] sm:$0xf]
      %v1610 = vld [vmem:[%s1603 + $0x30] sm:$0xf]
      %v1611 = vld [vmem:[%s1603 + $0x38] sm:$0xf]
      %s1612 = scalar_lea.vmem %s1, 448
      %v1613 = vld [vmem:[%s1612] sm:$0xf]
      %v1614 = vld [vmem:[%s1612 + $0x4] sm:$0xf]
      %v1615 = vld [vmem:[%s1612 + $0x8] sm:$0xf]
      %v1616 = vld [vmem:[%s1612 + $0xc] sm:$0xf]
      %v1617 = vld [vmem:[%s1612 + $0x10] sm:$0xf]
      %v1618 = vld [vmem:[%s1612 + $0x14] sm:$0xf]
      %v1619 = vld [vmem:[%s1612 + $0x18] sm:$0xf]
      %v1620 = vld [vmem:[%s1612 + $0x1c] sm:$0xf]
      %v1621 = vld [vmem:[%s1612 + $0x20] sm:$0xf]
      %v1622 = vld [vmem:[%s1612 + $0x24] sm:$0xf]
      %v1623 = vld [vmem:[%s1612 + $0x28] sm:$0xf]
      %v1624 = vld [vmem:[%s1612 + $0x2c] sm:$0xf]
      %v1625 = vld [vmem:[%s1612 + $0x30] sm:$0xf]
      %v1626 = vld [vmem:[%s1612 + $0x34] sm:$0xf]
      %v1627 = vld [vmem:[%s1612 + $0x38] sm:$0xf]
      %v1628 = vld [vmem:[%s1612 + $0x3c] sm:$0xf]
      %v1637 = vunpack.c.l.b16 %v1604
      %v1638 = vunpack.c.l.b16 %v1605
      %v1639 = vunpack.c.l.b16 %v1606
      %v1640 = vunpack.c.l.b16 %v1607
      %v1641 = vunpack.c.l.b16 %v1608
      %v1642 = vunpack.c.l.b16 %v1609
      %v1643 = vunpack.c.l.b16 %v1610
      %v1644 = vunpack.c.l.b16 %v1611
      %v1645 = vpack.c.b16 %v1638, %v1637
      %v1646 = vpack.c.b16 %v1640, %v1639
      %v1647 = vpack.c.b16 %v1642, %v1641
      %v1648 = vpack.c.b16 %v1644, %v1643
      %v1669 = vunpack.c.l.b16 %v1613
      %v1670 = vunpack.c.l.b16 %v1614
      %v1671 = vunpack.c.l.b16 %v1615
      %v1672 = vunpack.c.l.b16 %v1616
      %v1673 = vunpack.c.l.b16 %v1617
      %v1674 = vunpack.c.l.b16 %v1618
      %v1675 = vunpack.c.l.b16 %v1619
      %v1676 = vunpack.c.l.b16 %v1620
      %v1677 = vunpack.c.l.b16 %v1621
      %v1678 = vunpack.c.l.b16 %v1622
      %v1679 = vunpack.c.l.b16 %v1623
      %v1680 = vunpack.c.l.b16 %v1624
      %v1681 = vunpack.c.l.b16 %v1625
      %v1682 = vunpack.c.l.b16 %v1626
      %v1683 = vunpack.c.l.b16 %v1627
      %v1684 = vunpack.c.l.b16 %v1628
      %v1685 = vpack.c.b16 %v1670, %v1669
      %v1686 = vpack.c.b16 %v1672, %v1671
      %v1687 = vpack.c.b16 %v1674, %v1673
      %v1688 = vpack.c.b16 %v1676, %v1675
      %v1689 = vpack.c.b16 %v1678, %v1677
      %v1690 = vpack.c.b16 %v1680, %v1679
      %v1691 = vpack.c.b16 %v1682, %v1681
      %v1692 = vpack.c.b16 %v1684, %v1683
      %1701 = vmatprep.subr.bf16.mxu0 0
      %1702 = vmatpush1.bf16.msra.mxu0 %v1692
      %1703 = vmatprep.subr.bf16.mxu0 0
      %1704 = vmatpush1.bf16.msra.mxu0 %v1691
      %1705 = vmatprep.subr.bf16.mxu0 0
      %1706 = vmatpush1.bf16.msra.mxu0 %v1690
      %1707 = vmatprep.subr.bf16.mxu0 0
      %1708 = vmatpush1.bf16.msra.mxu0 %v1689
      %1709 = vmatprep.subr.bf16.mxu0 0
      %1710 = vmatpush1.bf16.msra.mxu0 %v1688
      %1711 = vmatprep.subr.bf16.mxu0 0
      %1712 = vmatpush1.bf16.msra.mxu0 %v1687
      %1713 = vmatprep.subr.bf16.mxu0 0
      %1714 = vmatpush1.bf16.msra.mxu0 %v1686
      %1715 = vmatprep.subr.bf16.mxu0 0
      %1716 = vmatpush1.bf16.msra.mxu0 %v1685
      %1717 = vmatprep.subr.bf16.mxu0 0
      %1718 = vmatpush2.bf16.msra.mxu0 0
      %1719 = vmatprep.subr.bf16.mxu0 0
      %1720 = vmatpush2.bf16.msra.mxu0 0
      %1721 = vmatprep.subr.bf16.mxu0 0
      %1722 = vmatpush2.bf16.msra.mxu0 0
      %1723 = vmatprep.subr.bf16.mxu0 0
      %1724 = vmatpush2.bf16.msra.mxu0 0
      %1725 = vmatprep.subr.bf16.mxu0 0
      %1726 = vmatpush2.bf16.msra.mxu0 0
      %1727 = vmatprep.subr.bf16.mxu0 0
      %1728 = vmatpush2.bf16.msra.mxu0 0
      %1729 = vmatprep.subr.bf16.mxu0 0
      %1730 = vmatpush2.bf16.msra.mxu0 0
      %1731 = vmatprep.subr.bf16.mxu0 0
      %1732 = vmatpush2.bf16.msra.mxu0 0
      %1733 = vmatprep.mubr.bf16.mxu0 0
      %1734 = vmatmul.mubr.bf16.gmra.mxu0 %v1645
      %v1735 = vpop.f32.mrf.mxu0
      %v1736 = vadd.f32 0.0, %v1735
      %v1737 = vpop.f32.mrf.mxu0
      %v1738 = vpop.f32.mrf.mxu0
      %v1739 = vadd.f32 0.0, %v1738
      %v1740 = vpop.f32.mrf.mxu0
      %1741 = vmatprep.mubr.bf16.mxu0 0
      %1742 = vmatmul.mubr.bf16.gmra.mxu0 %v1646
      %v1743 = vpop.f32.mrf.mxu0
      %v1744 = vadd.f32 0.0, %v1743
      %v1745 = vpop.f32.mrf.mxu0
      %v1746 = vpop.f32.mrf.mxu0
      %v1747 = vadd.f32 0.0, %v1746
      %v1748 = vpop.f32.mrf.mxu0
      %1749 = vmatprep.mubr.bf16.mxu0 0
      %1750 = vmatmul.mubr.bf16.gmra.mxu0 %v1647
      %v1751 = vpop.f32.mrf.mxu0
      %v1752 = vadd.f32 0.0, %v1751
      %v1753 = vpop.f32.mrf.mxu0
      %v1754 = vpop.f32.mrf.mxu0
      %v1755 = vadd.f32 0.0, %v1754
      %v1756 = vpop.f32.mrf.mxu0
      %1757 = vmatprep.mubr.bf16.mxu0 0
      %1758 = vmatmul.mubr.bf16.gmra.mxu0 %v1648
      %v1759 = vpop.f32.mrf.mxu0
      %v1760 = vadd.f32 0.0, %v1759
      %v1761 = vpop.f32.mrf.mxu0
      %v1762 = vpop.f32.mrf.mxu0
      %v1763 = vadd.f32 0.0, %v1762
      %v1764 = vpop.f32.mrf.mxu0
      %1765 = vdwg.mxu0
      %v1766 = vadd.f32 %v1595, %v1736
      %v1767 = vadd.f32 %v1596, %v1739
      %v1768 = vadd.f32 %v1597, %v1744
      %v1769 = vadd.f32 %v1598, %v1747
      %v1770 = vadd.f32 %v1599, %v1752
      %v1771 = vadd.f32 %v1600, %v1755
      %v1772 = vadd.f32 %v1601, %v1760
      %v1773 = vadd.f32 %v1602, %v1763
      %v1774 = vld [vmem:[%s1432] sm:$0xf]
      %v1775 = vld [vmem:[%s1432 + $0x4] sm:$0x1]
      %v1776 = vld [vmem:[%s1432 + $0x8] sm:$0xf]
      %v1777 = vld [vmem:[%s1432 + $0xc] sm:$0x1]
      %v1778 = vld [vmem:[%s1432 + $0x10] sm:$0xf]
      %v1779 = vld [vmem:[%s1432 + $0x14] sm:$0x1]
      %v1780 = vld [vmem:[%s1432 + $0x18] sm:$0xf]
      %v1781 = vld [vmem:[%s1432 + $0x1c] sm:$0x1]
      %v1782 = vld [vmem:[%s1432 + $0x20] sm:$0xf]
      %v1783 = vld [vmem:[%s1432 + $0x24] sm:$0x1]
      %v1784 = vld [vmem:[%s1432 + $0x28] sm:$0xf]
      %v1785 = vld [vmem:[%s1432 + $0x2c] sm:$0x1]
      %v1786 = vld [vmem:[%s1432 + $0x30] sm:$0xf]
      %v1787 = vld [vmem:[%s1432 + $0x34] sm:$0x1]
      %v1788 = vld [vmem:[%s1432 + $0x38] sm:$0xf]
      %v1789 = vld [vmem:[%s1432 + $0x3c] sm:$0x1]
      %v1791 = vshrl.u32 %v1774, 16
      %v1793 = vrot.slane %v1791, 4
      %v1794 = vshll.u32 %v1774, 16
      %v1796 = vrot.slane %v1794, 5
      %v1797 = vor.u32 %v1793, %v1796
      %v1798 = vrot.slane %v1797, 4
      %v1800 = vshll.u32 %v1775, 16
      %v1802 = vrot.slane %v1800, 5
      %v1803 = vsel %vm541, %v1798, %v1802
      %v1805 = vshrl.u32 %v1776, 16
      %v1807 = vrot.slane %v1805, 4
      %v1808 = vshll.u32 %v1776, 16
      %v1810 = vrot.slane %v1808, 5
      %v1811 = vor.u32 %v1807, %v1810
      %v1812 = vrot.slane %v1811, 4
      %v1814 = vshll.u32 %v1777, 16
      %v1816 = vrot.slane %v1814, 5
      %v1817 = vsel %vm541, %v1812, %v1816
      %v1819 = vshrl.u32 %v1778, 16
      %v1821 = vrot.slane %v1819, 4
      %v1822 = vshll.u32 %v1778, 16
      %v1824 = vrot.slane %v1822, 5
      %v1825 = vor.u32 %v1821, %v1824
      %v1826 = vrot.slane %v1825, 4
      %v1828 = vshll.u32 %v1779, 16
      %v1830 = vrot.slane %v1828, 5
      %v1831 = vsel %vm541, %v1826, %v1830
      %v1833 = vshrl.u32 %v1780, 16
      %v1835 = vrot.slane %v1833, 4
      %v1836 = vshll.u32 %v1780, 16
      %v1838 = vrot.slane %v1836, 5
      %v1839 = vor.u32 %v1835, %v1838
      %v1840 = vrot.slane %v1839, 4
      %v1842 = vshll.u32 %v1781, 16
      %v1844 = vrot.slane %v1842, 5
      %v1845 = vsel %vm541, %v1840, %v1844
      %v1847 = vshrl.u32 %v1782, 16
      %v1849 = vrot.slane %v1847, 4
      %v1850 = vshll.u32 %v1782, 16
      %v1852 = vrot.slane %v1850, 5
      %v1853 = vor.u32 %v1849, %v1852
      %v1854 = vrot.slane %v1853, 4
      %v1856 = vshll.u32 %v1783, 16
      %v1858 = vrot.slane %v1856, 5
      %v1859 = vsel %vm541, %v1854, %v1858
      %v1861 = vshrl.u32 %v1784, 16
      %v1863 = vrot.slane %v1861, 4
      %v1864 = vshll.u32 %v1784, 16
      %v1866 = vrot.slane %v1864, 5
      %v1867 = vor.u32 %v1863, %v1866
      %v1868 = vrot.slane %v1867, 4
      %v1870 = vshll.u32 %v1785, 16
      %v1872 = vrot.slane %v1870, 5
      %v1873 = vsel %vm541, %v1868, %v1872
      %v1875 = vshrl.u32 %v1786, 16
      %v1877 = vrot.slane %v1875, 4
      %v1878 = vshll.u32 %v1786, 16
      %v1880 = vrot.slane %v1878, 5
      %v1881 = vor.u32 %v1877, %v1880
      %v1882 = vrot.slane %v1881, 4
      %v1884 = vshll.u32 %v1787, 16
      %v1886 = vrot.slane %v1884, 5
      %v1887 = vsel %vm541, %v1882, %v1886
      %v1889 = vshrl.u32 %v1788, 16
      %v1891 = vrot.slane %v1889, 4
      %v1892 = vshll.u32 %v1788, 16
      %v1894 = vrot.slane %v1892, 5
      %v1895 = vor.u32 %v1891, %v1894
      %v1896 = vrot.slane %v1895, 4
      %v1898 = vshll.u32 %v1789, 16
      %v1900 = vrot.slane %v1898, 5
      %v1901 = vsel %vm541, %v1896, %v1900
      %s1902 = scalar_lea.vmem %s1, 512
      %v1903 = vld [vmem:[%s1902] sm:$0xf]
      %v1904 = vld [vmem:[%s1902 + $0x4] sm:$0xf]
      %v1905 = vld [vmem:[%s1902 + $0x8] sm:$0xf]
      %v1906 = vld [vmem:[%s1902 + $0xc] sm:$0xf]
      %v1907 = vld [vmem:[%s1902 + $0x10] sm:$0xf]
      %v1908 = vld [vmem:[%s1902 + $0x14] sm:$0xf]
      %v1909 = vld [vmem:[%s1902 + $0x18] sm:$0xf]
      %v1910 = vld [vmem:[%s1902 + $0x1c] sm:$0xf]
      %v1911 = vld [vmem:[%s1902 + $0x20] sm:$0xf]
      %v1912 = vld [vmem:[%s1902 + $0x24] sm:$0xf]
      %v1913 = vld [vmem:[%s1902 + $0x28] sm:$0xf]
      %v1914 = vld [vmem:[%s1902 + $0x2c] sm:$0xf]
      %v1915 = vld [vmem:[%s1902 + $0x30] sm:$0xf]
      %v1916 = vld [vmem:[%s1902 + $0x34] sm:$0xf]
      %v1917 = vld [vmem:[%s1902 + $0x38] sm:$0xf]
      %v1918 = vld [vmem:[%s1902 + $0x3c] sm:$0xf]
      %v1919 = vunpack.c.l.b16 %v1803
      %v1920 = vunpack.c.l.b16 %v1817
      %v1921 = vunpack.c.l.b16 %v1831
      %v1922 = vunpack.c.l.b16 %v1845
      %v1923 = vunpack.c.l.b16 %v1859
      %v1924 = vunpack.c.l.b16 %v1873
      %v1925 = vunpack.c.l.b16 %v1887
      %v1926 = vunpack.c.l.b16 %v1901
      %v1927 = vpack.c.b16 %v1920, %v1919
      %v1928 = vpack.c.b16 %v1922, %v1921
      %v1929 = vpack.c.b16 %v1924, %v1923
      %v1930 = vpack.c.b16 %v1926, %v1925
      %v1951 = vunpack.c.l.b16 %v1903
      %v1952 = vunpack.c.l.b16 %v1904
      %v1953 = vunpack.c.l.b16 %v1905
      %v1954 = vunpack.c.l.b16 %v1906
      %v1955 = vunpack.c.l.b16 %v1907
      %v1956 = vunpack.c.l.b16 %v1908
      %v1957 = vunpack.c.l.b16 %v1909
      %v1958 = vunpack.c.l.b16 %v1910
      %v1959 = vunpack.c.l.b16 %v1911
      %v1960 = vunpack.c.l.b16 %v1912
      %v1961 = vunpack.c.l.b16 %v1913
      %v1962 = vunpack.c.l.b16 %v1914
      %v1963 = vunpack.c.l.b16 %v1915
      %v1964 = vunpack.c.l.b16 %v1916
      %v1965 = vunpack.c.l.b16 %v1917
      %v1966 = vunpack.c.l.b16 %v1918
      %v1967 = vpack.c.b16 %v1952, %v1951
      %v1968 = vpack.c.b16 %v1954, %v1953
      %v1969 = vpack.c.b16 %v1956, %v1955
      %v1970 = vpack.c.b16 %v1958, %v1957
      %v1971 = vpack.c.b16 %v1960, %v1959
      %v1972 = vpack.c.b16 %v1962, %v1961
      %v1973 = vpack.c.b16 %v1964, %v1963
      %v1974 = vpack.c.b16 %v1966, %v1965
      %1983 = vmatprep.subr.bf16.mxu0 0
      %1984 = vmatpush1.bf16.msra.mxu0 %v1974
      %1985 = vmatprep.subr.bf16.mxu0 0
      %1986 = vmatpush1.bf16.msra.mxu0 %v1973
      %1987 = vmatprep.subr.bf16.mxu0 0
      %1988 = vmatpush1.bf16.msra.mxu0 %v1972
      %1989 = vmatprep.subr.bf16.mxu0 0
      %1990 = vmatpush1.bf16.msra.mxu0 %v1971
      %1991 = vmatprep.subr.bf16.mxu0 0
      %1992 = vmatpush1.bf16.msra.mxu0 %v1970
      %1993 = vmatprep.subr.bf16.mxu0 0
      %1994 = vmatpush1.bf16.msra.mxu0 %v1969
      %1995 = vmatprep.subr.bf16.mxu0 0
      %1996 = vmatpush1.bf16.msra.mxu0 %v1968
      %1997 = vmatprep.subr.bf16.mxu0 0
      %1998 = vmatpush1.bf16.msra.mxu0 %v1967
      %1999 = vmatprep.subr.bf16.mxu0 0
      %2000 = vmatpush2.bf16.msra.mxu0 0
      %2001 = vmatprep.subr.bf16.mxu0 0
      %2002 = vmatpush2.bf16.msra.mxu0 0
      %2003 = vmatprep.subr.bf16.mxu0 0
      %2004 = vmatpush2.bf16.msra.mxu0 0
      %2005 = vmatprep.subr.bf16.mxu0 0
      %2006 = vmatpush2.bf16.msra.mxu0 0
      %2007 = vmatprep.subr.bf16.mxu0 0
      %2008 = vmatpush2.bf16.msra.mxu0 0
      %2009 = vmatprep.subr.bf16.mxu0 0
      %2010 = vmatpush2.bf16.msra.mxu0 0
      %2011 = vmatprep.subr.bf16.mxu0 0
      %2012 = vmatpush2.bf16.msra.mxu0 0
      %2013 = vmatprep.subr.bf16.mxu0 0
      %2014 = vmatpush2.bf16.msra.mxu0 0
      %2015 = vmatprep.mubr.bf16.mxu0 0
      %2016 = vmatmul.mubr.bf16.gmra.mxu0 %v1927
      %v2017 = vpop.f32.mrf.mxu0
      %v2018 = vadd.f32 0.0, %v2017
      %v2019 = vpop.f32.mrf.mxu0
      %v2020 = vpop.f32.mrf.mxu0
      %v2021 = vadd.f32 0.0, %v2020
      %v2022 = vpop.f32.mrf.mxu0
      %2023 = vmatprep.mubr.bf16.mxu0 0
      %2024 = vmatmul.mubr.bf16.gmra.mxu0 %v1928
      %v2025 = vpop.f32.mrf.mxu0
      %v2026 = vadd.f32 0.0, %v2025
      %v2027 = vpop.f32.mrf.mxu0
      %v2028 = vpop.f32.mrf.mxu0
      %v2029 = vadd.f32 0.0, %v2028
      %v2030 = vpop.f32.mrf.mxu0
      %2031 = vmatprep.mubr.bf16.mxu0 0
      %2032 = vmatmul.mubr.bf16.gmra.mxu0 %v1929
      %v2033 = vpop.f32.mrf.mxu0
      %v2034 = vadd.f32 0.0, %v2033
      %v2035 = vpop.f32.mrf.mxu0
      %v2036 = vpop.f32.mrf.mxu0
      %v2037 = vadd.f32 0.0, %v2036
      %v2038 = vpop.f32.mrf.mxu0
      %2039 = vmatprep.mubr.bf16.mxu0 0
      %2040 = vmatmul.mubr.bf16.gmra.mxu0 %v1930
      %v2041 = vpop.f32.mrf.mxu0
      %v2042 = vadd.f32 0.0, %v2041
      %v2043 = vpop.f32.mrf.mxu0
      %v2044 = vpop.f32.mrf.mxu0
      %v2045 = vadd.f32 0.0, %v2044
      %v2046 = vpop.f32.mrf.mxu0
      %2047 = vdwg.mxu0
      %v2048 = vadd.f32 %v1766, %v2018
      %v2049 = vadd.f32 %v1767, %v2021
      %v2050 = vadd.f32 %v1768, %v2026
      %v2051 = vadd.f32 %v1769, %v2029
      %v2052 = vadd.f32 %v1770, %v2034
      %v2053 = vadd.f32 %v1771, %v2037
      %v2054 = vadd.f32 %v1772, %v2042
      %v2055 = vadd.f32 %v1773, %v2045
      %v2056 = vadd.f32 %v2048, %v2049
      %v2057 = vadd.f32 %v2056, %v2050
      %v2058 = vadd.f32 %v2057, %v2051
      %v2059 = vadd.f32 %v2058, %v2052
      %v2060 = vadd.f32 %v2059, %v2053
      %v2061 = vadd.f32 %v2060, %v2054
      %v2062 = vadd.f32 %v2061, %v2055
      %v2063 = vrot.slane %v2062, 4
      %v2064 = vadd.f32 %v2062, %v2063
      %v2065 = vrot.slane %v2064, 2
      %v2066 = vadd.f32 %v2064, %v2065
      %v2067 = vrot.slane %v2066, 1
      %v2068 = vadd.f32 %v2066, %v2067
      %v2069 = vmul.f32 %v2048, %v2048
      %v2070 = vmul.f32 %v2049, %v2049
      %v2071 = vmul.f32 %v2050, %v2050
      %v2072 = vmul.f32 %v2051, %v2051
      %v2073 = vmul.f32 %v2052, %v2052
      %v2074 = vmul.f32 %v2053, %v2053
      %v2075 = vmul.f32 %v2054, %v2054
      %v2076 = vmul.f32 %v2055, %v2055
      %v2077 = vadd.f32 %v2069, %v2070
      %v2078 = vadd.f32 %v2077, %v2071
      %v2079 = vadd.f32 %v2078, %v2072
      %v2080 = vadd.f32 %v2079, %v2073
      %v2081 = vadd.f32 %v2080, %v2074
      %v2082 = vadd.f32 %v2081, %v2075
      %v2083 = vadd.f32 %v2082, %v2076
      %v2084 = vrot.slane %v2083, 4
      %v2085 = vadd.f32 %v2083, %v2084
      %v2086 = vrot.slane %v2085, 2
      %v2087 = vadd.f32 %v2085, %v2086
      %v2088 = vrot.slane %v2087, 1
      %v2089 = vadd.f32 %v2087, %v2088
      %v2090 = vmul.f32 %v2068, 0.015625
      %v2091 = vmul.f32 %v2089, 0.015625
      %v2092 = vmul.f32 %v2090, %v2090
      %v2093 = vsub.f32 %v2091, %v2092
      %v2094 = vmax.f32 %v2093, 0.0
      %v2095 = vld [vmem:[%s2] sm:$0x1]
      %v2096 = vadd.f32 %v2094, 1e-05
      %v2097 = vrsqrt.pop %v2096
      %v2098 = vmul.f32 %v2095, %v2097
      %v2099 = vld [vmem:[%s3] sm:$0x1]
      %v2100 = vmul.f32 %v2090, %v2098
      %v2101 = vsub.f32 %v2099, %v2100
      %v2103 = vlaneseq
      %v2104 = vshrl.u32 %v2103, 7
      %v2105 = vsub.s32 0, %v2104
      %v2106 = vrot.slane %v2098, %v2105
      %v2108 = vmul.f32 %v2048, %v2106
      %v2109 = vmul.f32 %v2049, %v2106
      %v2110 = vmul.f32 %v2050, %v2106
      %v2111 = vmul.f32 %v2051, %v2106
      %v2112 = vmul.f32 %v2052, %v2106
      %v2113 = vmul.f32 %v2053, %v2106
      %v2114 = vmul.f32 %v2054, %v2106
      %v2115 = vmul.f32 %v2055, %v2106
      %v2117 = vlaneseq
      %v2118 = vshrl.u32 %v2117, 7
      %v2119 = vsub.s32 0, %v2118
      %v2120 = vrot.slane %v2101, %v2119
      %v2122 = vadd.f32 %v2108, %v2120
      %v2123 = vadd.f32 %v2109, %v2120
      %v2124 = vadd.f32 %v2110, %v2120
      %v2125 = vadd.f32 %v2111, %v2120
      %v2126 = vadd.f32 %v2112, %v2120
      %v2127 = vadd.f32 %v2113, %v2120
      %v2128 = vadd.f32 %v2114, %v2120
      %v2129 = vadd.f32 %v2115, %v2120
      %vm2130 = vcmp.ge.f32.partialorder %v2122, 0.0
      %vm2131 = vcmp.ge.f32.partialorder %v2123, 0.0
      %vm2132 = vcmp.ge.f32.partialorder %v2124, 0.0
      %vm2133 = vcmp.ge.f32.partialorder %v2125, 0.0
      %vm2134 = vcmp.ge.f32.partialorder %v2126, 0.0
      %vm2135 = vcmp.ge.f32.partialorder %v2127, 0.0
      %vm2136 = vcmp.ge.f32.partialorder %v2128, 0.0
      %vm2137 = vcmp.ge.f32.partialorder %v2129, 0.0
      %v2138 = vmul.f32 %v2122, 0.01
      %v2139 = vmul.f32 %v2123, 0.01
      %v2140 = vmul.f32 %v2124, 0.01
      %v2141 = vmul.f32 %v2125, 0.01
      %v2142 = vmul.f32 %v2126, 0.01
      %v2143 = vmul.f32 %v2127, 0.01
      %v2144 = vmul.f32 %v2128, 0.01
      %v2145 = vmul.f32 %v2129, 0.01
      %v2146 = vsel %vm2130, %v2122, %v2138
      %v2147 = vsel %vm2131, %v2123, %v2139
      %v2148 = vsel %vm2132, %v2124, %v2140
      %v2149 = vsel %vm2133, %v2125, %v2141
      %v2150 = vsel %vm2134, %v2126, %v2142
      %v2151 = vsel %vm2135, %v2127, %v2143
      %v2152 = vsel %vm2136, %v2128, %v2144
      %v2153 = vsel %vm2137, %v2129, %v2145
      %2154 = vst [vmem:[%s197] sm:$0xf] 0
      %2155 = vst [vmem:[%s197 + $0x4] sm:$0x1] 0
      %2156 = vst [vmem:[%s197 + $0x8] sm:$0xf] 0
      %2157 = vst [vmem:[%s197 + $0xc] sm:$0x1] 0
      %2158 = vst [vmem:[%s197 + $0x10] sm:$0xf] 0
      %2159 = vst [vmem:[%s197 + $0x14] sm:$0x1] 0
      %2160 = vst [vmem:[%s197 + $0x18] sm:$0xf] 0
      %2161 = vst [vmem:[%s197 + $0x1c] sm:$0x1] 0
      %2162 = vst [vmem:[%s197 + $0x20] sm:$0xf] 0
      %2163 = vst [vmem:[%s197 + $0x24] sm:$0x1] 0
      %2164 = vst [vmem:[%s197 + $0x28] sm:$0xf] 0
      %2165 = vst [vmem:[%s197 + $0x2c] sm:$0x1] 0
      %2166 = vst [vmem:[%s197 + $0x30] sm:$0xf] 0
      %2167 = vst [vmem:[%s197 + $0x34] sm:$0x1] 0
      %2168 = vst [vmem:[%s197 + $0x38] sm:$0xf] 0
      %2169 = vst [vmem:[%s197 + $0x3c] sm:$0x1] 0
      %2170 = vst [vmem:[%s197 + $0x40] sm:$0xf] 0
      %2171 = vst [vmem:[%s197 + $0x44] sm:$0x1] 0
      %2172 = vst [vmem:[%s197 + $0x48] sm:$0xf] 0
      %2173 = vst [vmem:[%s197 + $0x4c] sm:$0x1] 0
      %v2174 = vpack.c.bf16 %v2146, %v2146
      %v2175 = vpack.c.bf16 %v2147, %v2147
      %v2176 = vpack.c.bf16 %v2148, %v2148
      %v2177 = vpack.c.bf16 %v2149, %v2149
      %v2178 = vpack.c.bf16 %v2150, %v2150
      %v2179 = vpack.c.bf16 %v2151, %v2151
      %v2180 = vpack.c.bf16 %v2152, %v2152
      %v2181 = vpack.c.bf16 %v2153, %v2153
      %v2190 = vunpack.c.l.b16 %v2174
      %v2191 = vunpack.c.l.b16 %v2175
      %v2192 = vunpack.c.l.b16 %v2176
      %v2193 = vunpack.c.l.b16 %v2177
      %v2194 = vunpack.c.l.b16 %v2178
      %v2195 = vunpack.c.l.b16 %v2179
      %v2196 = vunpack.c.l.b16 %v2180
      %v2197 = vunpack.c.l.b16 %v2181
      %v2198 = vpack.c.b16 %v2190, %v2190
      %v2199 = vpack.c.b16 %v2191, %v2191
      %v2200 = vpack.c.b16 %v2192, %v2192
      %v2201 = vpack.c.b16 %v2193, %v2193
      %v2202 = vpack.c.b16 %v2194, %v2194
      %v2203 = vpack.c.b16 %v2195, %v2195
      %v2204 = vpack.c.b16 %v2196, %v2196
      %v2205 = vpack.c.b16 %v2197, %v2197
      %v2207 = vshrl.u32 %v2198, 16
      %v2209 = vrot.slane %v2207, 7
      %v2210 = vshll.u32 %v2198, 16
      %v2212 = vor.u32 %v2209, %v2210
      %v2213 = vrot.slane %v2209, 4
      %v2215 = vshrl.u32 %v2199, 16
      %v2217 = vrot.slane %v2215, 7
      %v2218 = vshll.u32 %v2199, 16
      %v2220 = vor.u32 %v2217, %v2218
      %v2221 = vrot.slane %v2217, 4
      %v2223 = vshrl.u32 %v2200, 16
      %v2225 = vrot.slane %v2223, 7
      %v2226 = vshll.u32 %v2200, 16
      %v2228 = vor.u32 %v2225, %v2226
      %v2229 = vrot.slane %v2225, 4
      %v2231 = vshrl.u32 %v2201, 16
      %v2233 = vrot.slane %v2231, 7
      %v2234 = vshll.u32 %v2201, 16
      %v2236 = vor.u32 %v2233, %v2234
      %v2237 = vrot.slane %v2233, 4
      %v2239 = vshrl.u32 %v2202, 16
      %v2241 = vrot.slane %v2239, 7
      %v2242 = vshll.u32 %v2202, 16
      %v2244 = vor.u32 %v2241, %v2242
      %v2245 = vrot.slane %v2241, 4
      %v2247 = vshrl.u32 %v2203, 16
      %v2249 = vrot.slane %v2247, 7
      %v2250 = vshll.u32 %v2203, 16
      %v2252 = vor.u32 %v2249, %v2250
      %v2253 = vrot.slane %v2249, 4
      %v2255 = vshrl.u32 %v2204, 16
      %v2257 = vrot.slane %v2255, 7
      %v2258 = vshll.u32 %v2204, 16
      %v2260 = vor.u32 %v2257, %v2258
      %v2261 = vrot.slane %v2257, 4
      %v2263 = vshrl.u32 %v2205, 16
      %v2265 = vrot.slane %v2263, 7
      %v2266 = vshll.u32 %v2205, 16
      %v2268 = vor.u32 %v2265, %v2266
      %v2269 = vrot.slane %v2265, 4
      %s2286 = scalar_lea.vmem %s197, 8
      %vm2287 = vcmask 1043456
      %vm2288 = vsmask.f32 7938
      %vm2289 = vmand %vm2287, %vm2288
      %v2290 = vld [vmem:[%s2286] sm:$0xf]
      %v2291 = vsel %vm2289, %v2212, %v2290
      %2292 = vst [vmem:[%s2286] sm:$0xf] %v2291
      %vm2293 = vcmask 1040384
      %vm2294 = vsmask.f32 256
      %vm2295 = vmand %vm2293, %vm2294
      %v2296 = vld [vmem:[%s2286 + $0x4] sm:$0x1]
      %v2297 = vsel %vm2295, %v2213, %v2296
      %2298 = vst [vmem:[%s2286 + $0x4] sm:$0x1] %v2297
      %v2299 = vld [vmem:[%s2286 + $0x8] sm:$0xf]
      %v2300 = vsel %vm2289, %v2220, %v2299
      %2301 = vst [vmem:[%s2286 + $0x8] sm:$0xf] %v2300
      %v2302 = vld [vmem:[%s2286 + $0xc] sm:$0x1]
      %v2303 = vsel %vm2295, %v2221, %v2302
      %2304 = vst [vmem:[%s2286 + $0xc] sm:$0x1] %v2303
      %v2305 = vld [vmem:[%s2286 + $0x10] sm:$0xf]
      %v2306 = vsel %vm2289, %v2228, %v2305
      %2307 = vst [vmem:[%s2286 + $0x10] sm:$0xf] %v2306
      %v2308 = vld [vmem:[%s2286 + $0x14] sm:$0x1]
      %v2309 = vsel %vm2295, %v2229, %v2308
      %2310 = vst [vmem:[%s2286 + $0x14] sm:$0x1] %v2309
      %v2311 = vld [vmem:[%s2286 + $0x18] sm:$0xf]
      %v2312 = vsel %vm2289, %v2236, %v2311
      %2313 = vst [vmem:[%s2286 + $0x18] sm:$0xf] %v2312
      %v2314 = vld [vmem:[%s2286 + $0x1c] sm:$0x1]
      %v2315 = vsel %vm2295, %v2237, %v2314
      %2316 = vst [vmem:[%s2286 + $0x1c] sm:$0x1] %v2315
      %v2317 = vld [vmem:[%s2286 + $0x20] sm:$0xf]
      %v2318 = vsel %vm2289, %v2244, %v2317
      %2319 = vst [vmem:[%s2286 + $0x20] sm:$0xf] %v2318
      %v2320 = vld [vmem:[%s2286 + $0x24] sm:$0x1]
      %v2321 = vsel %vm2295, %v2245, %v2320
      %2322 = vst [vmem:[%s2286 + $0x24] sm:$0x1] %v2321
      %v2323 = vld [vmem:[%s2286 + $0x28] sm:$0xf]
      %v2324 = vsel %vm2289, %v2252, %v2323
      %2325 = vst [vmem:[%s2286 + $0x28] sm:$0xf] %v2324
      %v2326 = vld [vmem:[%s2286 + $0x2c] sm:$0x1]
      %v2327 = vsel %vm2295, %v2253, %v2326
      %2328 = vst [vmem:[%s2286 + $0x2c] sm:$0x1] %v2327
      %v2329 = vld [vmem:[%s2286 + $0x30] sm:$0xf]
      %v2330 = vsel %vm2289, %v2260, %v2329
      %2331 = vst [vmem:[%s2286 + $0x30] sm:$0xf] %v2330
      %v2332 = vld [vmem:[%s2286 + $0x34] sm:$0x1]
      %v2333 = vsel %vm2295, %v2261, %v2332
      %2334 = vst [vmem:[%s2286 + $0x34] sm:$0x1] %v2333
      %v2335 = vld [vmem:[%s2286 + $0x38] sm:$0xf]
      %v2336 = vsel %vm2289, %v2268, %v2335
      %2337 = vst [vmem:[%s2286 + $0x38] sm:$0xf] %v2336
      %v2338 = vld [vmem:[%s2286 + $0x3c] sm:$0x1]
      %v2339 = vsel %vm2295, %v2269, %v2338
      %2340 = vst [vmem:[%s2286 + $0x3c] sm:$0x1] %v2339
      %p2341 = scmp.lt.s32.totalorder %s15, 1
      %s2342 = scalar_select %p2341, %s15, 1
      %s2343 = smul.addr %s2342, 20
      %s2344 = smul.addr %s2343, 4
      %s2345 = scalar_lea.vmem %s4, %s2344
      // Predicated region
      $region37: #{conv_res_block_forward.2} parent=35 // pred_check
        %p2346 = pneg %p122
      $region38: #{conv_res_block_forward.2} parent=35 // pred_check_branch
        %2348 = sbr.rel (%p2346) target = $region40
      $region39: #{conv_res_block_forward.2} parent=35 // pred_region
        _
      $region40: #{conv_res_block_forward.2} parent=35 // pred_fallthru
        _
    $region36: #{conv_res_block_forward.2} parent=5 // pred_fallthru
      _
    %p2349 = scmp.le.s32.totalorder 2, %s10
    // Predicated region
    $region41: #{conv_res_block_forward.2} parent=5 // pred_check
      %p2350 = pneg %p2349
    $region42: #{conv_res_block_forward.2} parent=5 // pred_check_branch
      %2352 = sbr.rel (%p2350) target = $region44
    $region43: #{conv_res_block_forward.2} parent=5 // pred_region
      %s2353 = ssub.s32 %s10, 2
      // Predicated region
      $region45: #{conv_res_block_forward.2} parent=43 // pred_check
        %p2354 = pneg %p128
      $region46: #{conv_res_block_forward.2} parent=43 // pred_check_branch
        %2356 = sbr.rel (%p2354) target = $region48
      $region47: #{conv_res_block_forward.2} parent=43 // pred_region
        %p2357 = scmp.lt.s32.totalorder %s16, 1
        %s2358 = scalar_select %p2357, %s16, 1
        %s2359 = smul.addr %s2358, 20
        %s2360 = smul.addr %s2359, 4
        %s2361 = scalar_lea.vmem %s4, %s2360
      $region48: #{conv_res_block_forward.2} parent=43 // pred_fallthru
        _
    $region44: #{conv_res_block_forward.2} parent=5 // pred_fallthru
      _
  $region6: #{conv_res_block_forward.2} parent=0 // loop_footer
    %s14 = sadd.s32 1, %s10
  $region7: #{conv_res_block_forward.2} parent=0 // loop_footer_branch
    %9 = sbr.rel target = $region3
  $region8: #{conv_res_block_forward.2} parent=0 // loop_exit
    _

// kernel: conv_res_block_forward.3
$region0: #{conv_res_block_forward.3}
  #allocation0 [shape = 'u32[]', space=smem, size = 0x4, offset = 0x4, fixed_abs, tag = 'smem constant byte address 0x4 - core index']
  #allocation1 [shape = 'u32[144,128]{1,0:T(1,128)}', space=vmem, size = 0x12000, scoped, tag = 'internal scratch']
  #allocation2 [shape = 'bf16[1,10,10,128]{3,2,1,0:T(8,128)(2,1)}', space=vmem, size = 0xa000, scoped, tag = 'scratch operand']
  %s0 = inlined_call_operand.vmem [shape: bf16[2,10,10,128], index: 0, kind: input, shape index: {}]
  %s1 = inlined_call_operand.vmem [shape: bf16[9,128,128], index: 1, kind: input, shape index: {}]
  %s2 = inlined_call_operand.vmem [shape: f32[1,128], index: 2, kind: input, shape index: {}]
  %s3 = inlined_call_operand.vmem [shape: f32[1,128], index: 3, kind: input, shape index: {}]
  %s4 = inlined_call_operand.vmem [shape: bf16[9,128,128], index: 4, kind: input, shape index: {}]
  %s5 = inlined_call_operand.vmem [shape: f32[1,128], index: 5, kind: input, shape index: {}]
  %s6 = inlined_call_operand.vmem [shape: f32[1,128], index: 6, kind: input, shape index: {}]
  %s7 = inlined_call_operand.vmem [shape: f32[2,8,8,128], index: 7, kind: output, shape index: {}]
  %s8 = sld [smem:[#allocation0]]
  $region61: #{conv_res_block_forward.3} parent=0
    _
  %s10 = ssub.s32 1, %s8
  %s11 = scalar_select 0, %s10, %s8
  loop: start=0, step=1, limit=4
  $region2: #{conv_res_block_forward.3} parent=0 // loop_pre_header
    _
  $region3: #{conv_res_block_forward.3} parent=0 // loop_header
    %s13 = sphi 0, %s17
    %p14 = scmp.ge.s32.totalorder %s13, 4
    %s23 = sphi 0, %s25
    %s26 = sphi 0, %s23
    %s27 = sphi 0, %s26
    %s43 = sphi 0, %s27
    %s47 = sphi 0, %s47
    %s49 = sphi 0, %s47
    %s50 = sphi 0, %s49
    %s64 = sphi 0, %s50
    %s68 = sphi 0, %s68
    %s70 = sphi 0, %s68
    %s71 = sphi 0, %s70
    %s85 = sphi 0, %s71
    %s89 = sphi 0, %s89
    %s91 = sphi 0, %s89
    %s92 = sphi 0, %s91
    %s106 = sphi 0, %s92
    %s110 = sphi 0, %s110
    %s112 = sphi 0, %s110
    %s113 = sphi 0, %s112
    %s127 = sphi 0, %s113
    %s131 = sphi 0, %s131
    %s133 = sphi 0, %s131
    %s134 = sphi 0, %s133
    %s148 = sphi 0, %s134
    %s152 = sphi 0, %s152
    %s154 = sphi 0, %s152
    %s155 = sphi 0, %s154
    %s169 = sphi 0, %s155
    %s175 = sphi 0, %s177
    %s178 = sphi 0, %s175
    %s179 = sphi 0, %s178
    %s195 = sphi 0, %s179
  $region4: #{conv_res_block_forward.3} parent=0 // loop_header_branch
    %16 = sbr.rel (%p14) target = $region8
  $region5: #{conv_res_block_forward.3} parent=0 // loop_body
    %s18 = ssub.s32 %s13, 1
    %s19 = ssub.s32 %s13, 2
    %s20 = sadd.s32 %s13, 1
    %s21 = ssub.s32 %s13, %s20
    %p22 = scmp.eq.s32.totalorder %s21, 0
    %s24 = sadd.s32 %s23, 1
    %s25 = scalar_select %p22, %s23, %s24
    %p28 = pneg %p22
    %p29 = scmp.eq.s32.totalorder %s13, 1
    %p30 = por %p28, %p29
    %p31 = scmp.ne.s32.totalorder %s23, %s26
    %p32 = scmp.eq.s32.totalorder %s13, 0
    %p33 = por %p31, %p32
    %p34 = scmp.ne.s32.totalorder %s23, %s26
    %p35 = scmp.eq.s32.totalorder %s18, 1
    %p36 = por %p34, %p35
    %p37 = scmp.ne.s32.totalorder %s26, %s27
    %p38 = scmp.eq.s32.totalorder %s18, 0
    %p39 = por %p37, %p38
    %p40 = scmp.ne.s32.totalorder %s26, %s27
    %p41 = scmp.eq.s32.totalorder %s19, 1
    %p42 = por %p40, %p41
    %p44 = scmp.ne.s32.totalorder %s27, %s43
    %p45 = scmp.eq.s32.totalorder %s19, 0
    %p46 = por %p44, %p45
    %s48 = sadd.s32 %s47, 1
    %p51 = scmp.eq.s32.totalorder %s13, 1
    %p52 = scmp.ne.s32.totalorder %s47, %s49
    %p53 = scmp.eq.s32.totalorder %s13, 0
    %p54 = por %p52, %p53
    %p55 = scmp.ne.s32.totalorder %s47, %s49
    %p56 = scmp.eq.s32.totalorder %s18, 1
    %p57 = por %p55, %p56
    %p58 = scmp.ne.s32.totalorder %s49, %s50
    %p59 = scmp.eq.s32.totalorder %s18, 0
    %p60 = por %p58, %p59
    %p61 = scmp.ne.s32.totalorder %s49, %s50
    %p62 = scmp.eq.s32.totalorder %s19, 1
    %p63 = por %p61, %p62
    %p65 = scmp.ne.s32.totalorder %s50, %s64
    %p66 = scmp.eq.s32.totalorder %s19, 0
    %p67 = por %p65, %p66
    %s69 = sadd.s32 %s68, 1
    %p72 = scmp.eq.s32.totalorder %s13, 1
    %p73 = scmp.ne.s32.totalorder %s68, %s70
    %p74 = scmp.eq.s32.totalorder %s13, 0
    %p75 = por %p73, %p74
    %p76 = scmp.ne.s32.totalorder %s68, %s70
    %p77 = scmp.eq.s32.totalorder %s18, 1
    %p78 = por %p76, %p77
    %p79 = scmp.ne.s32.totalorder %s70, %s71
    %p80 = scmp.eq.s32.totalorder %s18, 0
    %p81 = por %p79, %p80
    %p82 = scmp.ne.s32.totalorder %s70, %s71
    %p83 = scmp.eq.s32.totalorder %s19, 1
    %p84 = por %p82, %p83
    %p86 = scmp.ne.s32.totalorder %s71, %s85
    %p87 = scmp.eq.s32.totalorder %s19, 0
    %p88 = por %p86, %p87
    %s90 = sadd.s32 %s89, 1
    %p93 = scmp.eq.s32.totalorder %s13, 1
    %p94 = scmp.ne.s32.totalorder %s89, %s91
    %p95 = scmp.eq.s32.totalorder %s13, 0
    %p96 = por %p94, %p95
    %p97 = scmp.ne.s32.totalorder %s89, %s91
    %p98 = scmp.eq.s32.totalorder %s18, 1
    %p99 = por %p97, %p98
    %p100 = scmp.ne.s32.totalorder %s91, %s92
    %p101 = scmp.eq.s32.totalorder %s18, 0
    %p102 = por %p100, %p101
    %p103 = scmp.ne.s32.totalorder %s91, %s92
    %p104 = scmp.eq.s32.totalorder %s19, 1
    %p105 = por %p103, %p104
    %p107 = scmp.ne.s32.totalorder %s92, %s106
    %p108 = scmp.eq.s32.totalorder %s19, 0
    %p109 = por %p107, %p108
    %s111 = sadd.s32 %s110, 1
    %p114 = scmp.eq.s32.totalorder %s13, 1
    %p115 = scmp.ne.s32.totalorder %s110, %s112
    %p116 = scmp.eq.s32.totalorder %s13, 0
    %p117 = por %p115, %p116
    %p118 = scmp.ne.s32.totalorder %s110, %s112
    %p119 = scmp.eq.s32.totalorder %s18, 1
    %p120 = por %p118, %p119
    %p121 = scmp.ne.s32.totalorder %s112, %s113
    %p122 = scmp.eq.s32.totalorder %s18, 0
    %p123 = por %p121, %p122
    %p124 = scmp.ne.s32.totalorder %s112, %s113
    %p125 = scmp.eq.s32.totalorder %s19, 1
    %p126 = por %p124, %p125
    %p128 = scmp.ne.s32.totalorder %s113, %s127
    %p129 = scmp.eq.s32.totalorder %s19, 0
    %p130 = por %p128, %p129
    %s132 = sadd.s32 %s131, 1
    %p135 = scmp.eq.s32.totalorder %s13, 1
    %p136 = scmp.ne.s32.totalorder %s131, %s133
    %p137 = scmp.eq.s32.totalorder %s13, 0
    %p138 = por %p136, %p137
    %p139 = scmp.ne.s32.totalorder %s131, %s133
    %p140 = scmp.eq.s32.totalorder %s18, 1
    %p141 = por %p139, %p140
    %p142 = scmp.ne.s32.totalorder %s133, %s134
    %p143 = scmp.eq.s32.totalorder %s18, 0
    %p144 = por %p142, %p143
    %p145 = scmp.ne.s32.totalorder %s133, %s134
    %p146 = scmp.eq.s32.totalorder %s19, 1
    %p147 = por %p145, %p146
    %p149 = scmp.ne.s32.totalorder %s134, %s148
    %p150 = scmp.eq.s32.totalorder %s19, 0
    %p151 = por %p149, %p150
    %s153 = sadd.s32 %s152, 1
    %p156 = scmp.eq.s32.totalorder %s13, 1
    %p157 = scmp.ne.s32.totalorder %s152, %s154
    %p158 = scmp.eq.s32.totalorder %s13, 0
    %p159 = por %p157, %p158
    %p160 = scmp.ne.s32.totalorder %s152, %s154
    %p161 = scmp.eq.s32.totalorder %s18, 1
    %p162 = por %p160, %p161
    %p163 = scmp.ne.s32.totalorder %s154, %s155
    %p164 = scmp.eq.s32.totalorder %s18, 0
    %p165 = por %p163, %p164
    %p166 = scmp.ne.s32.totalorder %s154, %s155
    %p167 = scmp.eq.s32.totalorder %s19, 1
    %p168 = por %p166, %p167
    %p170 = scmp.ne.s32.totalorder %s155, %s169
    %p171 = scmp.eq.s32.totalorder %s19, 0
    %p172 = por %p170, %p171
    %s173 = ssub.s32 %s13, %s20
    %p174 = scmp.eq.s32.totalorder %s173, 0
    %s176 = sadd.s32 %s175, 1
    %s177 = scalar_select %p174, %s175, %s176
    %p180 = pneg %p174
    %p181 = scmp.eq.s32.totalorder %s13, 1
    %p182 = por %p180, %p181
    %p183 = scmp.ne.s32.totalorder %s175, %s178
    %p184 = scmp.eq.s32.totalorder %s13, 0
    %p185 = por %p183, %p184
    %p186 = scmp.ne.s32.totalorder %s175, %s178
    %p187 = scmp.eq.s32.totalorder %s18, 1
    %p188 = por %p186, %p187
    %p189 = scmp.ne.s32.totalorder %s178, %s179
    %p190 = scmp.eq.s32.totalorder %s18, 0
    %p191 = por %p189, %p190
    %p192 = scmp.ne.s32.totalorder %s178, %s179
    %p193 = scmp.eq.s32.totalorder %s19, 1
    %p194 = por %p192, %p193
    %p196 = scmp.ne.s32.totalorder %s179, %s195
    %p197 = scmp.eq.s32.totalorder %s19, 0
    %p198 = por %p196, %p197
    %p199 = scmp.le.s32.totalorder 1, %s13
    %p200 = scmp.lt.s32.totalorder %s13, 3
    %p201 = pnand %p199, %p200
    %p202 = pneg %p201
    // Predicated region
    $region9: #{conv_res_block_forward.3} parent=5 // pred_check
      _
    $region10: #{conv_res_block_forward.3} parent=5 // pred_check_branch
      %204 = sbr.rel (%p201) target = $region12
    $region11: #{conv_res_block_forward.3} parent=5 // pred_region
      %s205 = ssub.s32 %s13, 1
      // Predicated region
      $region13: #{conv_res_block_forward.3} parent=11 // pred_check
        %p206 = pneg %p60
      $region14: #{conv_res_block_forward.3} parent=11 // pred_check_branch
        %208 = sbr.rel (%p206) target = $region16
      $region15: #{conv_res_block_forward.3} parent=11 // pred_region
        _
      $region16: #{conv_res_block_forward.3} parent=11 // pred_fallthru
        _
      // Predicated region
      $region17: #{conv_res_block_forward.3} parent=11 // pred_check
        %p209 = pneg %p81
      $region18: #{conv_res_block_forward.3} parent=11 // pred_check_branch
        %211 = sbr.rel (%p209) target = $region20
      $region19: #{conv_res_block_forward.3} parent=11 // pred_region
        _
      $region20: #{conv_res_block_forward.3} parent=11 // pred_fallthru
        _
      // Predicated region
      $region21: #{conv_res_block_forward.3} parent=11 // pred_check
        %p212 = pneg %p102
      $region22: #{conv_res_block_forward.3} parent=11 // pred_check_branch
        %214 = sbr.rel (%p212) target = $region24
      $region23: #{conv_res_block_forward.3} parent=11 // pred_region
        _
      $region24: #{conv_res_block_forward.3} parent=11 // pred_fallthru
        _
      // Predicated region
      $region25: #{conv_res_block_forward.3} parent=11 // pred_check
        %p215 = pneg %p123
      $region26: #{conv_res_block_forward.3} parent=11 // pred_check_branch
        %217 = sbr.rel (%p215) target = $region28
      $region27: #{conv_res_block_forward.3} parent=11 // pred_region
        _
      $region28: #{conv_res_block_forward.3} parent=11 // pred_fallthru
        _
      // Predicated region
      $region29: #{conv_res_block_forward.3} parent=11 // pred_check
        %p218 = pneg %p144
      $region30: #{conv_res_block_forward.3} parent=11 // pred_check_branch
        %220 = sbr.rel (%p218) target = $region32
      $region31: #{conv_res_block_forward.3} parent=11 // pred_region
        _
      $region32: #{conv_res_block_forward.3} parent=11 // pred_fallthru
        _
      // Predicated region
      $region33: #{conv_res_block_forward.3} parent=11 // pred_check
        %p221 = pneg %p165
      $region34: #{conv_res_block_forward.3} parent=11 // pred_check_branch
        %223 = sbr.rel (%p221) target = $region36
      $region35: #{conv_res_block_forward.3} parent=11 // pred_region
        _
      $region36: #{conv_res_block_forward.3} parent=11 // pred_fallthru
        _
    $region12: #{conv_res_block_forward.3} parent=5 // pred_fallthru
      _
    %p224 = scmp.lt.s32.totalorder %s13, 2
    // Predicated region
    $region37: #{conv_res_block_forward.3} parent=5 // pred_check
      %p225 = pneg %p224
    $region38: #{conv_res_block_forward.3} parent=5 // pred_check_branch
      %227 = sbr.rel (%p225) target = $region40
    $region39: #{conv_res_block_forward.3} parent=5 // pred_region
      // Predicated region
      $region41: #{conv_res_block_forward.3} parent=39 // pred_check
        %p228 = pneg %p33
      $region42: #{conv_res_block_forward.3} parent=39 // pred_check_branch
        %230 = sbr.rel (%p228) target = $region44
      $region43: #{conv_res_block_forward.3} parent=39 // pred_region
        %p231 = scmp.lt.s32.totalorder %s13, 1
        %s232 = scalar_select %p231, %s13, 1
        %s233 = smul.addr %s232, 20
        %s234 = smul.addr %s233, 4
        %s235 = scalar_lea.vmem %s0, %s234
      $region44: #{conv_res_block_forward.3} parent=39 // pred_fallthru
        _
    $region40: #{conv_res_block_forward.3} parent=5 // pred_fallthru
      _
    %p236 = scmp.le.s32.totalorder 1, %s13
    %p237 = scmp.lt.s32.totalorder %s13, 3
    %p238 = pnand %p236, %p237
    %p239 = pneg %p238
    // Predicated region
    $region45: #{conv_res_block_forward.3} parent=5 // pred_check
      _
    $region46: #{conv_res_block_forward.3} parent=5 // pred_check_branch
      %241 = sbr.rel (%p238) target = $region48
    $region47: #{conv_res_block_forward.3} parent=5 // pred_region
      %s242 = ssub.s32 %s13, 1
      %p243 = scmp.lt.s32.totalorder %s18, 1
      %s244 = scalar_select %p243, %s18, 1
      %s245 = smul.addr %s244, 20
      %s246 = smul.addr %s245, 4
      %s247 = scalar_lea.vmem %s0, %s246
      %p248 = pneg %p39
      %p249 = pneg %p36
      %p250 = pneg %p60
      %p251 = pneg %p57
      %p252 = pneg %p81
      %p253 = pneg %p78
      %p254 = pneg %p102
      %p255 = pneg %p99
      %p256 = pneg %p123
      %p257 = pneg %p120
      %p258 = pneg %p144
      %p259 = pneg %p141
      %p260 = pneg %p165
      %p261 = pneg %p162
      %p262 = pneg %p191
      %p263 = pneg %p188
      %p264 = scmp.lt.s32.totalorder %s18, 1
      %s265 = scalar_select %p264, %s18, 1
      %s266 = smul.addr %s265, 8
      %s267 = smul.addr %s266, 8
      %s268 = scalar_lea.vmem %s7, %s267
      %p269 = scmp.lt.s32.totalorder %s18, 1
      %s270 = scalar_select %p269, %s18, 1
      %s271 = smul.addr %s270, 20
      %s272 = smul.addr %s271, 4
      %s273 = scalar_lea.vmem %s0, %s272
      %p274 = scmp.lt.s32.totalorder %s18, 1
      %s275 = scalar_select %p274, %s18, 1
      %s276 = smul.addr %s275, 8
      %s277 = smul.addr %s276, 8
      %s278 = scalar_lea.vmem %s7, %s277
      %v280 = vld [vmem:[%s273] sm:$0xf]
      %v281 = vld [vmem:[%s273 + $0x8] sm:$0xf]
      %v282 = vld [vmem:[%s273 + $0x10] sm:$0xf]
      %v283 = vld [vmem:[%s273 + $0x18] sm:$0xf]
      %v284 = vld [vmem:[%s273 + $0x20] sm:$0xf]
      %v285 = vld [vmem:[%s273 + $0x28] sm:$0xf]
      %v286 = vld [vmem:[%s273 + $0x30] sm:$0xf]
      %v287 = vld [vmem:[%s273 + $0x38] sm:$0xf]
      %v288 = vld [vmem:[%s1] sm:$0xf]
      %v289 = vld [vmem:[%s1 + $0x4] sm:$0xf]
      %v290 = vld [vmem:[%s1 + $0x8] sm:$0xf]
      %v291 = vld [vmem:[%s1 + $0xc] sm:$0xf]
      %v292 = vld [vmem:[%s1 + $0x10] sm:$0xf]
      %v293 = vld [vmem:[%s1 + $0x14] sm:$0xf]
      %v294 = vld [vmem:[%s1 + $0x18] sm:$0xf]
      %v295 = vld [vmem:[%s1 + $0x1c] sm:$0xf]
      %v296 = vld [vmem:[%s1 + $0x20] sm:$0xf]
      %v297 = vld [vmem:[%s1 + $0x24] sm:$0xf]
      %v298 = vld [vmem:[%s1 + $0x28] sm:$0xf]
      %v299 = vld [vmem:[%s1 + $0x2c] sm:$0xf]
      %v300 = vld [vmem:[%s1 + $0x30] sm:$0xf]
      %v301 = vld [vmem:[%s1 + $0x34] sm:$0xf]
      %v302 = vld [vmem:[%s1 + $0x38] sm:$0xf]
      %v303 = vld [vmem:[%s1 + $0x3c] sm:$0xf]
      %v304 = vld [vmem:[%s273 + $0x4] sm:$0x1]
      %v305 = vld [vmem:[%s273 + $0xc] sm:$0x1]
      %v306 = vld [vmem:[%s273 + $0x14] sm:$0x1]
      %v307 = vld [vmem:[%s273 + $0x1c] sm:$0x1]
      %v308 = vld [vmem:[%s273 + $0x24] sm:$0x1]
      %v309 = vld [vmem:[%s273 + $0x2c] sm:$0x1]
      %v310 = vld [vmem:[%s273 + $0x34] sm:$0x1]
      %v311 = vld [vmem:[%s273 + $0x3c] sm:$0x1]
      %vm312 = vsmask.f32 3328
      %vm313 = vsmask.f32 7440
      %vm314 = vmor %vm312, %vm313
      %v316 = vshrl.u32 %v280, 16
      %v318 = vrot.slane %v316, 4
      %v319 = vshll.u32 %v280, 16
      %v321 = vrot.slane %v319, 5
      %v322 = vor.u32 %v318, %v321
      %v323 = vrot.slane %v322, 4
      %v325 = vshll.u32 %v304, 16
      %v327 = vrot.slane %v325, 5
      %v328 = vsel %vm314, %v323, %v327
      %v330 = vshrl.u32 %v281, 16
      %v332 = vrot.slane %v330, 4
      %v333 = vshll.u32 %v281, 16
      %v335 = vrot.slane %v333, 5
      %v336 = vor.u32 %v332, %v335
      %v337 = vrot.slane %v336, 4
      %v339 = vshll.u32 %v305, 16
      %v341 = vrot.slane %v339, 5
      %v342 = vsel %vm314, %v337, %v341
      %v344 = vshrl.u32 %v282, 16
      %v346 = vrot.slane %v344, 4
      %v347 = vshll.u32 %v282, 16
      %v349 = vrot.slane %v347, 5
      %v350 = vor.u32 %v346, %v349
      %v351 = vrot.slane %v350, 4
      %v353 = vshll.u32 %v306, 16
      %v355 = vrot.slane %v353, 5
      %v356 = vsel %vm314, %v351, %v355
      %v358 = vshrl.u32 %v283, 16
      %v360 = vrot.slane %v358, 4
      %v361 = vshll.u32 %v283, 16
      %v363 = vrot.slane %v361, 5
      %v364 = vor.u32 %v360, %v363
      %v365 = vrot.slane %v364, 4
      %v367 = vshll.u32 %v307, 16
      %v369 = vrot.slane %v367, 5
      %v370 = vsel %vm314, %v365, %v369
      %v372 = vshrl.u32 %v284, 16
      %v374 = vrot.slane %v372, 4
      %v375 = vshll.u32 %v284, 16
      %v377 = vrot.slane %v375, 5
      %v378 = vor.u32 %v374, %v377
      %v379 = vrot.slane %v378, 4
      %v381 = vshll.u32 %v308, 16
      %v383 = vrot.slane %v381, 5
      %v384 = vsel %vm314, %v379, %v383
      %v386 = vshrl.u32 %v285, 16
      %v388 = vrot.slane %v386, 4
      %v389 = vshll.u32 %v285, 16
      %v391 = vrot.slane %v389, 5
      %v392 = vor.u32 %v388, %v391
      %v393 = vrot.slane %v392, 4
      %v395 = vshll.u32 %v309, 16
      %v397 = vrot.slane %v395, 5
      %v398 = vsel %vm314, %v393, %v397
      %v400 = vshrl.u32 %v286, 16
      %v402 = vrot.slane %v400, 4
      %v403 = vshll.u32 %v286, 16
      %v405 = vrot.slane %v403, 5
      %v406 = vor.u32 %v402, %v405
      %v407 = vrot.slane %v406, 4
      %v409 = vshll.u32 %v310, 16
      %v411 = vrot.slane %v409, 5
      %v412 = vsel %vm314, %v407, %v411
      %v414 = vshrl.u32 %v287, 16
      %v416 = vrot.slane %v414, 4
      %v417 = vshll.u32 %v287, 16
      %v419 = vrot.slane %v417, 5
      %v420 = vor.u32 %v416, %v419
      %v421 = vrot.slane %v420, 4
      %v423 = vshll.u32 %v311, 16
      %v425 = vrot.slane %v423, 5
      %v426 = vsel %vm314, %v421, %v425
      %s427 = scalar_lea.vmem %s1, 64
      %v428 = vld [vmem:[%s427] sm:$0xf]
      %v429 = vld [vmem:[%s427 + $0x4] sm:$0xf]
      %v430 = vld [vmem:[%s427 + $0x8] sm:$0xf]
      %v431 = vld [vmem:[%s427 + $0xc] sm:$0xf]
      %v432 = vld [vmem:[%s427 + $0x10] sm:$0xf]
      %v433 = vld [vmem:[%s427 + $0x14] sm:$0xf]
      %v434 = vld [vmem:[%s427 + $0x18] sm:$0xf]
      %v435 = vld [vmem:[%s427 + $0x1c] sm:$0xf]
      %v436 = vld [vmem:[%s427 + $0x20] sm:$0xf]
      %v437 = vld [vmem:[%s427 + $0x24] sm:$0xf]
      %v438 = vld [vmem:[%s427 + $0x28] sm:$0xf]
      %v439 = vld [vmem:[%s427 + $0x2c] sm:$0xf]
      %v440 = vld [vmem:[%s427 + $0x30] sm:$0xf]
      %v441 = vld [vmem:[%s427 + $0x34] sm:$0xf]
      %v442 = vld [vmem:[%s427 + $0x38] sm:$0xf]
      %v443 = vld [vmem:[%s427 + $0x3c] sm:$0xf]
      %v444 = vunpack.c.l.b16 %v328
      %v445 = vunpack.c.l.b16 %v342
      %v446 = vunpack.c.l.b16 %v356
      %v447 = vunpack.c.l.b16 %v370
      %v448 = vunpack.c.l.b16 %v384
      %v449 = vunpack.c.l.b16 %v398
      %v450 = vunpack.c.l.b16 %v412
      %v451 = vunpack.c.l.b16 %v426
      %v452 = vpack.c.b16 %v445, %v444
      %v453 = vpack.c.b16 %v447, %v446
      %v454 = vpack.c.b16 %v449, %v448
      %v455 = vpack.c.b16 %v451, %v450
      %v476 = vunpack.c.l.b16 %v428
      %v477 = vunpack.c.l.b16 %v429
      %v478 = vunpack.c.l.b16 %v430
      %v479 = vunpack.c.l.b16 %v431
      %v480 = vunpack.c.l.b16 %v432
      %v481 = vunpack.c.l.b16 %v433
      %v482 = vunpack.c.l.b16 %v434
      %v483 = vunpack.c.l.b16 %v435
      %v484 = vunpack.c.l.b16 %v436
      %v485 = vunpack.c.l.b16 %v437
      %v486 = vunpack.c.l.b16 %v438
      %v487 = vunpack.c.l.b16 %v439
      %v488 = vunpack.c.l.b16 %v440
      %v489 = vunpack.c.l.b16 %v441
      %v490 = vunpack.c.l.b16 %v442
      %v491 = vunpack.c.l.b16 %v443
      %v492 = vpack.c.b16 %v477, %v476
      %v493 = vpack.c.b16 %v479, %v478
      %v494 = vpack.c.b16 %v481, %v480
      %v495 = vpack.c.b16 %v483, %v482
      %v496 = vpack.c.b16 %v485, %v484
      %v497 = vpack.c.b16 %v487, %v486
      %v498 = vpack.c.b16 %v489, %v488
      %v499 = vpack.c.b16 %v491, %v490
      %508 = vmatprep.subr.bf16.mxu0 0
      %509 = vmatpush1.bf16.msra.mxu0 %v499
      %510 = vmatprep.subr.bf16.mxu0 0
      %511 = vmatpush1.bf16.msra.mxu0 %v498
      %512 = vmatprep.subr.bf16.mxu0 0
      %513 = vmatpush1.bf16.msra.mxu0 %v497
      %514 = vmatprep.subr.bf16.mxu0 0
      %515 = vmatpush1.bf16.msra.mxu0 %v496
      %516 = vmatprep.subr.bf16.mxu0 0
      %517 = vmatpush1.bf16.msra.mxu0 %v495
      %518 = vmatprep.subr.bf16.mxu0 0
      %519 = vmatpush1.bf16.msra.mxu0 %v494
      %520 = vmatprep.subr.bf16.mxu0 0
      %521 = vmatpush1.bf16.msra.mxu0 %v493
      %522 = vmatprep.subr.bf16.mxu0 0
      %523 = vmatpush1.bf16.msra.mxu0 %v492
      %524 = vmatprep.subr.bf16.mxu0 0
      %525 = vmatpush2.bf16.msra.mxu0 0
      %526 = vmatprep.subr.bf16.mxu0 0
      %527 = vmatpush2.bf16.msra.mxu0 0
      %528 = vmatprep.subr.bf16.mxu0 0
      %529 = vmatpush2.bf16.msra.mxu0 0
      %530 = vmatprep.subr.bf16.mxu0 0
      %531 = vmatpush2.bf16.msra.mxu0 0
      %532 = vmatprep.subr.bf16.mxu0 0
      %533 = vmatpush2.bf16.msra.mxu0 0
      %534 = vmatprep.subr.bf16.mxu0 0
      %535 = vmatpush2.bf16.msra.mxu0 0
      %536 = vmatprep.subr.bf16.mxu0 0
      %537 = vmatpush2.bf16.msra.mxu0 0
      %538 = vmatprep.subr.bf16.mxu0 0
      %539 = vmatpush2.bf16.msra.mxu0 0
      %540 = vmatprep.mubr.bf16.mxu0 0
      %541 = vmatmul.mubr.bf16.gmra.mxu0 %v452
      %v542 = vpop.f32.mrf.mxu0
      %v543 = vadd.f32 0.0, %v542
      %v544 = vpop.f32.mrf.mxu0
      %v545 = vpop.f32.mrf.mxu0
      %v546 = vadd.f32 0.0, %v545
      %v547 = vpop.f32.mrf.mxu0
      %548 = vmatprep.mubr.bf16.mxu0 0
      %549 = vmatmul.mubr.bf16.gmra.mxu0 %v453
      %v550 = vpop.f32.mrf.mxu0
      %v551 = vadd.f32 0.0, %v550
      %v552 = vpop.f32.mrf.mxu0
      %v553 = vpop.f32.mrf.mxu0
      %v554 = vadd.f32 0.0, %v553
      %v555 = vpop.f32.mrf.mxu0
      %556 = vmatprep.mubr.bf16.mxu0 0
      %557 = vmatmul.mubr.bf16.gmra.mxu0 %v454
      %v558 = vpop.f32.mrf.mxu0
      %v559 = vadd.f32 0.0, %v558
      %v560 = vpop.f32.mrf.mxu0
      %v561 = vpop.f32.mrf.mxu0
      %v562 = vadd.f32 0.0, %v561
      %v563 = vpop.f32.mrf.mxu0
      %564 = vmatprep.mubr.bf16.mxu0 0
      %565 = vmatmul.mubr.bf16.gmra.mxu0 %v455
      %v566 = vpop.f32.mrf.mxu0
      %v567 = vadd.f32 0.0, %v566
      %v568 = vpop.f32.mrf.mxu0
      %v569 = vpop.f32.mrf.mxu0
      %v570 = vadd.f32 0.0, %v569
      %v571 = vpop.f32.mrf.mxu0
      %572 = vdwg.mxu0
      %v581 = vunpack.c.l.b16 %v280
      %v582 = vunpack.c.l.b16 %v281
      %v583 = vunpack.c.l.b16 %v282
      %v584 = vunpack.c.l.b16 %v283
      %v585 = vunpack.c.l.b16 %v284
      %v586 = vunpack.c.l.b16 %v285
      %v587 = vunpack.c.l.b16 %v286
      %v588 = vunpack.c.l.b16 %v287
      %v589 = vpack.c.b16 %v582, %v581
      %v590 = vpack.c.b16 %v584, %v583
      %v591 = vpack.c.b16 %v586, %v585
      %v592 = vpack.c.b16 %v588, %v587
      %v613 = vunpack.c.l.b16 %v288
      %v614 = vunpack.c.l.b16 %v289
      %v615 = vunpack.c.l.b16 %v290
      %v616 = vunpack.c.l.b16 %v291
      %v617 = vunpack.c.l.b16 %v292
      %v618 = vunpack.c.l.b16 %v293
      %v619 = vunpack.c.l.b16 %v294
      %v620 = vunpack.c.l.b16 %v295
      %v621 = vunpack.c.l.b16 %v296
      %v622 = vunpack.c.l.b16 %v297
      %v623 = vunpack.c.l.b16 %v298
      %v624 = vunpack.c.l.b16 %v299
      %v625 = vunpack.c.l.b16 %v300
      %v626 = vunpack.c.l.b16 %v301
      %v627 = vunpack.c.l.b16 %v302
      %v628 = vunpack.c.l.b16 %v303
      %v629 = vpack.c.b16 %v614, %v613
      %v630 = vpack.c.b16 %v616, %v615
      %v631 = vpack.c.b16 %v618, %v617
      %v632 = vpack.c.b16 %v620, %v619
      %v633 = vpack.c.b16 %v622, %v621
      %v634 = vpack.c.b16 %v624, %v623
      %v635 = vpack.c.b16 %v626, %v625
      %v636 = vpack.c.b16 %v628, %v627
      %645 = vmatprep.subr.bf16.mxu0 0
      %646 = vmatpush1.bf16.msra.mxu0 %v636
      %647 = vmatprep.subr.bf16.mxu0 0
      %648 = vmatpush1.bf16.msra.mxu0 %v635
      %649 = vmatprep.subr.bf16.mxu0 0
      %650 = vmatpush1.bf16.msra.mxu0 %v634
      %651 = vmatprep.subr.bf16.mxu0 0
      %652 = vmatpush1.bf16.msra.mxu0 %v633
      %653 = vmatprep.subr.bf16.mxu0 0
      %654 = vmatpush1.bf16.msra.mxu0 %v632
      %655 = vmatprep.subr.bf16.mxu0 0
      %656 = vmatpush1.bf16.msra.mxu0 %v631
      %657 = vmatprep.subr.bf16.mxu0 0
      %658 = vmatpush1.bf16.msra.mxu0 %v630
      %659 = vmatprep.subr.bf16.mxu0 0
      %660 = vmatpush1.bf16.msra.mxu0 %v629
      %661 = vmatprep.subr.bf16.mxu0 0
      %662 = vmatpush2.bf16.msra.mxu0 0
      %663 = vmatprep.subr.bf16.mxu0 0
      %664 = vmatpush2.bf16.msra.mxu0 0
      %665 = vmatprep.subr.bf16.mxu0 0
      %666 = vmatpush2.bf16.msra.mxu0 0
      %667 = vmatprep.subr.bf16.mxu0 0
      %668 = vmatpush2.bf16.msra.mxu0 0
      %669 = vmatprep.subr.bf16.mxu0 0
      %670 = vmatpush2.bf16.msra.mxu0 0
      %671 = vmatprep.subr.bf16.mxu0 0
      %672 = vmatpush2.bf16.msra.mxu0 0
      %673 = vmatprep.subr.bf16.mxu0 0
      %674 = vmatpush2.bf16.msra.mxu0 0
      %675 = vmatprep.subr.bf16.mxu0 0
      %676 = vmatpush2.bf16.msra.mxu0 0
      %677 = vmatprep.mubr.bf16.mxu0 0
      %678 = vmatmul.mubr.bf16.gmra.mxu0 %v589
      %v679 = vpop.f32.mrf.mxu0
      %v680 = vadd.f32 %v543, %v679
      %v681 = vpop.f32.mrf.mxu0
      %v682 = vpop.f32.mrf.mxu0
      %v683 = vadd.f32 %v546, %v682
      %v684 = vpop.f32.mrf.mxu0
      %685 = vmatprep.mubr.bf16.mxu0 0
      %686 = vmatmul.mubr.bf16.gmra.mxu0 %v590
      %v687 = vpop.f32.mrf.mxu0
      %v688 = vadd.f32 %v551, %v687
      %v689 = vpop.f32.mrf.mxu0
      %v690 = vpop.f32.mrf.mxu0
      %v691 = vadd.f32 %v554, %v690
      %v692 = vpop.f32.mrf.mxu0
      %693 = vmatprep.mubr.bf16.mxu0 0
      %694 = vmatmul.mubr.bf16.gmra.mxu0 %v591
      %v695 = vpop.f32.mrf.mxu0
      %v696 = vadd.f32 %v559, %v695
      %v697 = vpop.f32.mrf.mxu0
      %v698 = vpop.f32.mrf.mxu0
      %v699 = vadd.f32 %v562, %v698
      %v700 = vpop.f32.mrf.mxu0
      %701 = vmatprep.mubr.bf16.mxu0 0
      %702 = vmatmul.mubr.bf16.gmra.mxu0 %v592
      %v703 = vpop.f32.mrf.mxu0
      %v704 = vadd.f32 %v567, %v703
      %v705 = vpop.f32.mrf.mxu0
      %v706 = vpop.f32.mrf.mxu0
      %v707 = vadd.f32 %v570, %v706
      %v708 = vpop.f32.mrf.mxu0
      %709 = vdwg.mxu0
      %v710 = vld [vmem:[%s273] sm:$0xe]
      %v711 = vld [vmem:[%s273 + $0x8] sm:$0xe]
      %v712 = vld [vmem:[%s273 + $0x10] sm:$0xe]
      %v713 = vld [vmem:[%s273 + $0x18] sm:$0xe]
      %v714 = vld [vmem:[%s273 + $0x20] sm:$0xe]
      %v715 = vld [vmem:[%s273 + $0x28] sm:$0xe]
      %v716 = vld [vmem:[%s273 + $0x30] sm:$0xe]
      %v717 = vld [vmem:[%s273 + $0x38] sm:$0xe]
      %vm734 = vcmask 1042432
      %vm735 = vcmask 1046532
      %vm736 = vmor %vm734, %vm735
      %v737 = vrot.slane %v710, 5
      %v738 = vrot.slane %v737, 4
      %v739 = vrot.slane %v304, 5
      %v740 = vsel %vm736, %v738, %v739
      %v741 = vrot.slane %v711, 5
      %v742 = vrot.slane %v741, 4
      %v743 = vrot.slane %v305, 5
      %v744 = vsel %vm736, %v742, %v743
      %v745 = vrot.slane %v712, 5
      %v746 = vrot.slane %v745, 4
      %v747 = vrot.slane %v306, 5
      %v748 = vsel %vm736, %v746, %v747
      %v749 = vrot.slane %v713, 5
      %v750 = vrot.slane %v749, 4
      %v751 = vrot.slane %v307, 5
      %v752 = vsel %vm736, %v750, %v751
      %v753 = vrot.slane %v714, 5
      %v754 = vrot.slane %v753, 4
      %v755 = vrot.slane %v308, 5
      %v756 = vsel %vm736, %v754, %v755
      %v757 = vrot.slane %v715, 5
      %v758 = vrot.slane %v757, 4
      %v759 = vrot.slane %v309, 5
      %v760 = vsel %vm736, %v758, %v759
      %v761 = vrot.slane %v716, 5
      %v762 = vrot.slane %v761, 4
      %v763 = vrot.slane %v310, 5
      %v764 = vsel %vm736, %v762, %v763
      %v765 = vrot.slane %v717, 5
      %v766 = vrot.slane %v765, 4
      %v767 = vrot.slane %v311, 5
      %v768 = vsel %vm736, %v766, %v767
      %s769 = scalar_lea.vmem %s1, 128
      %v770 = vld [vmem:[%s769] sm:$0xf]
      %v771 = vld [vmem:[%s769 + $0x4] sm:$0xf]
      %v772 = vld [vmem:[%s769 + $0x8] sm:$0xf]
      %v773 = vld [vmem:[%s769 + $0xc] sm:$0xf]
      %v774 = vld [vmem:[%s769 + $0x10] sm:$0xf]
      %v775 = vld [vmem:[%s769 + $0x14] sm:$0xf]
      %v776 = vld [vmem:[%s769 + $0x18] sm:$0xf]
      %v777 = vld [vmem:[%s769 + $0x1c] sm:$0xf]
      %v778 = vld [vmem:[%s769 + $0x20] sm:$0xf]
      %v779 = vld [vmem:[%s769 + $0x24] sm:$0xf]
      %v780 = vld [vmem:[%s769 + $0x28] sm:$0xf]
      %v781 = vld [vmem:[%s769 + $0x2c] sm:$0xf]
      %v782 = vld [vmem:[%s769 + $0x30] sm:$0xf]
      %v783 = vld [vmem:[%s769 + $0x34] sm:$0xf]
      %v784 = vld [vmem:[%s769 + $0x38] sm:$0xf]
      %v785 = vld [vmem:[%s769 + $0x3c] sm:$0xf]
      %v786 = vunpack.c.l.b16 %v740
      %v787 = vunpack.c.l.b16 %v744
      %v788 = vunpack.c.l.b16 %v748
      %v789 = vunpack.c.l.b16 %v752
      %v790 = vunpack.c.l.b16 %v756
      %v791 = vunpack.c.l.b16 %v760
      %v792 = vunpack.c.l.b16 %v764
      %v793 = vunpack.c.l.b16 %v768
      %v794 = vpack.c.b16 %v787, %v786
      %v795 = vpack.c.b16 %v789, %v788
      %v796 = vpack.c.b16 %v791, %v790
      %v797 = vpack.c.b16 %v793, %v792
      %v818 = vunpack.c.l.b16 %v770
      %v819 = vunpack.c.l.b16 %v771
      %v820 = vunpack.c.l.b16 %v772
      %v821 = vunpack.c.l.b16 %v773
      %v822 = vunpack.c.l.b16 %v774
      %v823 = vunpack.c.l.b16 %v775
      %v824 = vunpack.c.l.b16 %v776
      %v825 = vunpack.c.l.b16 %v777
      %v826 = vunpack.c.l.b16 %v778
      %v827 = vunpack.c.l.b16 %v779
      %v828 = vunpack.c.l.b16 %v780
      %v829 = vunpack.c.l.b16 %v781
      %v830 = vunpack.c.l.b16 %v782
      %v831 = vunpack.c.l.b16 %v783
      %v832 = vunpack.c.l.b16 %v784
      %v833 = vunpack.c.l.b16 %v785
      %v834 = vpack.c.b16 %v819, %v818
      %v835 = vpack.c.b16 %v821, %v820
      %v836 = vpack.c.b16 %v823, %v822
      %v837 = vpack.c.b16 %v825, %v824
      %v838 = vpack.c.b16 %v827, %v826
      %v839 = vpack.c.b16 %v829, %v828
      %v840 = vpack.c.b16 %v831, %v830
      %v841 = vpack.c.b16 %v833, %v832
      %850 = vmatprep.subr.bf16.mxu0 0
      %851 = vmatpush1.bf16.msra.mxu0 %v841
      %852 = vmatprep.subr.bf16.mxu0 0
      %853 = vmatpush1.bf16.msra.mxu0 %v840
      %854 = vmatprep.subr.bf16.mxu0 0
      %855 = vmatpush1.bf16.msra.mxu0 %v839
      %856 = vmatprep.subr.bf16.mxu0 0
      %857 = vmatpush1.bf16.msra.mxu0 %v838
      %858 = vmatprep.subr.bf16.mxu0 0
      %859 = vmatpush1.bf16.msra.mxu0 %v837
      %860 = vmatprep.subr.bf16.mxu0 0
      %861 = vmatpush1.bf16.msra.mxu0 %v836
      %862 = vmatprep.subr.bf16.mxu0 0
      %863 = vmatpush1.bf16.msra.mxu0 %v835
      %864 = vmatprep.subr.bf16.mxu0 0
      %865 = vmatpush1.bf16.msra.mxu0 %v834
      %866 = vmatprep.subr.bf16.mxu0 0
      %867 = vmatpush2.bf16.msra.mxu0 0
      %868 = vmatprep.subr.bf16.mxu0 0
      %869 = vmatpush2.bf16.msra.mxu0 0
      %870 = vmatprep.subr.bf16.mxu0 0
      %871 = vmatpush2.bf16.msra.mxu0 0
      %872 = vmatprep.subr.bf16.mxu0 0
      %873 = vmatpush2.bf16.msra.mxu0 0
      %874 = vmatprep.subr.bf16.mxu0 0
      %875 = vmatpush2.bf16.msra.mxu0 0
      %876 = vmatprep.subr.bf16.mxu0 0
      %877 = vmatpush2.bf16.msra.mxu0 0
      %878 = vmatprep.subr.bf16.mxu0 0
      %879 = vmatpush2.bf16.msra.mxu0 0
      %880 = vmatprep.subr.bf16.mxu0 0
      %881 = vmatpush2.bf16.msra.mxu0 0
      %882 = vmatprep.mubr.bf16.mxu0 0
      %883 = vmatmul.mubr.bf16.gmra.mxu0 %v794
      %v884 = vpop.f32.mrf.mxu0
      %v885 = vadd.f32 0.0, %v884
      %v886 = vpop.f32.mrf.mxu0
      %v887 = vpop.f32.mrf.mxu0
      %v888 = vadd.f32 0.0, %v887
      %v889 = vpop.f32.mrf.mxu0
      %890 = vmatprep.mubr.bf16.mxu0 0
      %891 = vmatmul.mubr.bf16.gmra.mxu0 %v795
      %v892 = vpop.f32.mrf.mxu0
      %v893 = vadd.f32 0.0, %v892
      %v894 = vpop.f32.mrf.mxu0
      %v895 = vpop.f32.mrf.mxu0
      %v896 = vadd.f32 0.0, %v895
      %v897 = vpop.f32.mrf.mxu0
      %898 = vmatprep.mubr.bf16.mxu0 0
      %899 = vmatmul.mubr.bf16.gmra.mxu0 %v796
      %v900 = vpop.f32.mrf.mxu0
      %v901 = vadd.f32 0.0, %v900
      %v902 = vpop.f32.mrf.mxu0
      %v903 = vpop.f32.mrf.mxu0
      %v904 = vadd.f32 0.0, %v903
      %v905 = vpop.f32.mrf.mxu0
      %906 = vmatprep.mubr.bf16.mxu0 0
      %907 = vmatmul.mubr.bf16.gmra.mxu0 %v797
      %v908 = vpop.f32.mrf.mxu0
      %v909 = vadd.f32 0.0, %v908
      %v910 = vpop.f32.mrf.mxu0
      %v911 = vpop.f32.mrf.mxu0
      %v912 = vadd.f32 0.0, %v911
      %v913 = vpop.f32.mrf.mxu0
      %914 = vdwg.mxu0
      %v915 = vadd.f32 %v680, %v885
      %v916 = vadd.f32 %v683, %v888
      %v917 = vadd.f32 %v688, %v893
      %v918 = vadd.f32 %v691, %v896
      %v919 = vadd.f32 %v696, %v901
      %v920 = vadd.f32 %v699, %v904
      %v921 = vadd.f32 %v704, %v909
      %v922 = vadd.f32 %v707, %v912
      %s923 = scalar_lea.vmem %s273, 8
      %v924 = vld [vmem:[%s923] sm:$0xf]
      %v925 = vld [vmem:[%s923 + $0x8] sm:$0xf]
      %v926 = vld [vmem:[%s923 + $0x10] sm:$0xf]
      %v927 = vld [vmem:[%s923 + $0x18] sm:$0xf]
      %v928 = vld [vmem:[%s923 + $0x20] sm:$0xf]
      %v929 = vld [vmem:[%s923 + $0x28] sm:$0xf]
      %v930 = vld [vmem:[%s923 + $0x30] sm:$0xf]
      %v931 = vld [vmem:[%s923 + $0x38] sm:$0xf]
      %s932 = scalar_lea.vmem %s1, 192
      %v933 = vld [vmem:[%s932] sm:$0xf]
      %v934 = vld [vmem:[%s932 + $0x4] sm:$0xf]
      %v935 = vld [vmem:[%s932 + $0x8] sm:$0xf]
      %v936 = vld [vmem:[%s932 + $0xc] sm:$0xf]
      %v937 = vld [vmem:[%s932 + $0x10] sm:$0xf]
      %v938 = vld [vmem:[%s932 + $0x14] sm:$0xf]
      %v939 = vld [vmem:[%s932 + $0x18] sm:$0xf]
      %v940 = vld [vmem:[%s932 + $0x1c] sm:$0xf]
      %v941 = vld [vmem:[%s932 + $0x20] sm:$0xf]
      %v942 = vld [vmem:[%s932 + $0x24] sm:$0xf]
      %v943 = vld [vmem:[%s932 + $0x28] sm:$0xf]
      %v944 = vld [vmem:[%s932 + $0x2c] sm:$0xf]
      %v945 = vld [vmem:[%s932 + $0x30] sm:$0xf]
      %v946 = vld [vmem:[%s932 + $0x34] sm:$0xf]
      %v947 = vld [vmem:[%s932 + $0x38] sm:$0xf]
      %v948 = vld [vmem:[%s932 + $0x3c] sm:$0xf]
      %v957 = vunpack.c.l.b16 %v924
      %v958 = vunpack.c.l.b16 %v925
      %v959 = vunpack.c.l.b16 %v926
      %v960 = vunpack.c.l.b16 %v927
      %v961 = vunpack.c.l.b16 %v928
      %v962 = vunpack.c.l.b16 %v929
      %v963 = vunpack.c.l.b16 %v930
      %v964 = vunpack.c.l.b16 %v931
      %v965 = vpack.c.b16 %v958, %v957
      %v966 = vpack.c.b16 %v960, %v959
      %v967 = vpack.c.b16 %v962, %v961
      %v968 = vpack.c.b16 %v964, %v963
      %v989 = vunpack.c.l.b16 %v933
      %v990 = vunpack.c.l.b16 %v934
      %v991 = vunpack.c.l.b16 %v935
      %v992 = vunpack.c.l.b16 %v936
      %v993 = vunpack.c.l.b16 %v937
      %v994 = vunpack.c.l.b16 %v938
      %v995 = vunpack.c.l.b16 %v939
      %v996 = vunpack.c.l.b16 %v940
      %v997 = vunpack.c.l.b16 %v941
      %v998 = vunpack.c.l.b16 %v942
      %v999 = vunpack.c.l.b16 %v943
      %v1000 = vunpack.c.l.b16 %v944
      %v1001 = vunpack.c.l.b16 %v945
      %v1002 = vunpack.c.l.b16 %v946
      %v1003 = vunpack.c.l.b16 %v947
      %v1004 = vunpack.c.l.b16 %v948
      %v1005 = vpack.c.b16 %v990, %v989
      %v1006 = vpack.c.b16 %v992, %v991
      %v1007 = vpack.c.b16 %v994, %v993
      %v1008 = vpack.c.b16 %v996, %v995
      %v1009 = vpack.c.b16 %v998, %v997
      %v1010 = vpack.c.b16 %v1000, %v999
      %v1011 = vpack.c.b16 %v1002, %v1001
      %v1012 = vpack.c.b16 %v1004, %v1003
      %1021 = vmatprep.subr.bf16.mxu0 0
      %1022 = vmatpush1.bf16.msra.mxu0 %v1012
      %1023 = vmatprep.subr.bf16.mxu0 0
      %1024 = vmatpush1.bf16.msra.mxu0 %v1011
      %1025 = vmatprep.subr.bf16.mxu0 0
      %1026 = vmatpush1.bf16.msra.mxu0 %v1010
      %1027 = vmatprep.subr.bf16.mxu0 0
      %1028 = vmatpush1.bf16.msra.mxu0 %v1009
      %1029 = vmatprep.subr.bf16.mxu0 0
      %1030 = vmatpush1.bf16.msra.mxu0 %v1008
      %1031 = vmatprep.subr.bf16.mxu0 0
      %1032 = vmatpush1.bf16.msra.mxu0 %v1007
      %1033 = vmatprep.subr.bf16.mxu0 0
      %1034 = vmatpush1.bf16.msra.mxu0 %v1006
      %1035 = vmatprep.subr.bf16.mxu0 0
      %1036 = vmatpush1.bf16.msra.mxu0 %v1005
      %1037 = vmatprep.subr.bf16.mxu0 0
      %1038 = vmatpush2.bf16.msra.mxu0 0
      %1039 = vmatprep.subr.bf16.mxu0 0
      %1040 = vmatpush2.bf16.msra.mxu0 0
      %1041 = vmatprep.subr.bf16.mxu0 0
      %1042 = vmatpush2.bf16.msra.mxu0 0
      %1043 = vmatprep.subr.bf16.mxu0 0
      %1044 = vmatpush2.bf16.msra.mxu0 0
      %1045 = vmatprep.subr.bf16.mxu0 0
      %1046 = vmatpush2.bf16.msra.mxu0 0
      %1047 = vmatprep.subr.bf16.mxu0 0
      %1048 = vmatpush2.bf16.msra.mxu0 0
      %1049 = vmatprep.subr.bf16.mxu0 0
      %1050 = vmatpush2.bf16.msra.mxu0 0
      %1051 = vmatprep.subr.bf16.mxu0 0
      %1052 = vmatpush2.bf16.msra.mxu0 0
      %1053 = vmatprep.mubr.bf16.mxu0 0
      %1054 = vmatmul.mubr.bf16.gmra.mxu0 %v965
      %v1055 = vpop.f32.mrf.mxu0
      %v1056 = vadd.f32 0.0, %v1055
      %v1057 = vpop.f32.mrf.mxu0
      %v1058 = vpop.f32.mrf.mxu0
      %v1059 = vadd.f32 0.0, %v1058
      %v1060 = vpop.f32.mrf.mxu0
      %1061 = vmatprep.mubr.bf16.mxu0 0
      %1062 = vmatmul.mubr.bf16.gmra.mxu0 %v966
      %v1063 = vpop.f32.mrf.mxu0
      %v1064 = vadd.f32 0.0, %v1063
      %v1065 = vpop.f32.mrf.mxu0
      %v1066 = vpop.f32.mrf.mxu0
      %v1067 = vadd.f32 0.0, %v1066
      %v1068 = vpop.f32.mrf.mxu0
      %1069 = vmatprep.mubr.bf16.mxu0 0
      %1070 = vmatmul.mubr.bf16.gmra.mxu0 %v967
      %v1071 = vpop.f32.mrf.mxu0
      %v1072 = vadd.f32 0.0, %v1071
      %v1073 = vpop.f32.mrf.mxu0
      %v1074 = vpop.f32.mrf.mxu0
      %v1075 = vadd.f32 0.0, %v1074
      %v1076 = vpop.f32.mrf.mxu0
      %1077 = vmatprep.mubr.bf16.mxu0 0
      %1078 = vmatmul.mubr.bf16.gmra.mxu0 %v968
      %v1079 = vpop.f32.mrf.mxu0
      %v1080 = vadd.f32 0.0, %v1079
      %v1081 = vpop.f32.mrf.mxu0
      %v1082 = vpop.f32.mrf.mxu0
      %v1083 = vadd.f32 0.0, %v1082
      %v1084 = vpop.f32.mrf.mxu0
      %1085 = vdwg.mxu0
      %v1086 = vadd.f32 %v915, %v1056
      %v1087 = vadd.f32 %v916, %v1059
      %v1088 = vadd.f32 %v917, %v1064
      %v1089 = vadd.f32 %v918, %v1067
      %v1090 = vadd.f32 %v919, %v1072
      %v1091 = vadd.f32 %v920, %v1075
      %v1092 = vadd.f32 %v921, %v1080
      %v1093 = vadd.f32 %v922, %v1083
      %v1094 = vld [vmem:[%s923] sm:$0xf]
      %v1095 = vld [vmem:[%s923 + $0x4] sm:$0x1]
      %v1096 = vld [vmem:[%s923 + $0x8] sm:$0xf]
      %v1097 = vld [vmem:[%s923 + $0xc] sm:$0x1]
      %v1098 = vld [vmem:[%s923 + $0x10] sm:$0xf]
      %v1099 = vld [vmem:[%s923 + $0x14] sm:$0x1]
      %v1100 = vld [vmem:[%s923 + $0x18] sm:$0xf]
      %v1101 = vld [vmem:[%s923 + $0x1c] sm:$0x1]
      %v1102 = vld [vmem:[%s923 + $0x20] sm:$0xf]
      %v1103 = vld [vmem:[%s923 + $0x24] sm:$0x1]
      %v1104 = vld [vmem:[%s923 + $0x28] sm:$0xf]
      %v1105 = vld [vmem:[%s923 + $0x2c] sm:$0x1]
      %v1106 = vld [vmem:[%s923 + $0x30] sm:$0xf]
      %v1107 = vld [vmem:[%s923 + $0x34] sm:$0x1]
      %v1108 = vld [vmem:[%s923 + $0x38] sm:$0xf]
      %v1109 = vld [vmem:[%s923 + $0x3c] sm:$0x1]
      %v1111 = vshrl.u32 %v1094, 16
      %v1113 = vrot.slane %v1111, 4
      %v1114 = vshll.u32 %v1094, 16
      %v1116 = vrot.slane %v1114, 5
      %v1117 = vor.u32 %v1113, %v1116
      %v1118 = vrot.slane %v1117, 4
      %v1120 = vshll.u32 %v1095, 16
      %v1122 = vrot.slane %v1120, 5
      %v1123 = vsel %vm314, %v1118, %v1122
      %v1125 = vshrl.u32 %v1096, 16
      %v1127 = vrot.slane %v1125, 4
      %v1128 = vshll.u32 %v1096, 16
      %v1130 = vrot.slane %v1128, 5
      %v1131 = vor.u32 %v1127, %v1130
      %v1132 = vrot.slane %v1131, 4
      %v1134 = vshll.u32 %v1097, 16
      %v1136 = vrot.slane %v1134, 5
      %v1137 = vsel %vm314, %v1132, %v1136
      %v1139 = vshrl.u32 %v1098, 16
      %v1141 = vrot.slane %v1139, 4
      %v1142 = vshll.u32 %v1098, 16
      %v1144 = vrot.slane %v1142, 5
      %v1145 = vor.u32 %v1141, %v1144
      %v1146 = vrot.slane %v1145, 4
      %v1148 = vshll.u32 %v1099, 16
      %v1150 = vrot.slane %v1148, 5
      %v1151 = vsel %vm314, %v1146, %v1150
      %v1153 = vshrl.u32 %v1100, 16
      %v1155 = vrot.slane %v1153, 4
      %v1156 = vshll.u32 %v1100, 16
      %v1158 = vrot.slane %v1156, 5
      %v1159 = vor.u32 %v1155, %v1158
      %v1160 = vrot.slane %v1159, 4
      %v1162 = vshll.u32 %v1101, 16
      %v1164 = vrot.slane %v1162, 5
      %v1165 = vsel %vm314, %v1160, %v1164
      %v1167 = vshrl.u32 %v1102, 16
      %v1169 = vrot.slane %v1167, 4
      %v1170 = vshll.u32 %v1102, 16
      %v1172 = vrot.slane %v1170, 5
      %v1173 = vor.u32 %v1169, %v1172
      %v1174 = vrot.slane %v1173, 4
      %v1176 = vshll.u32 %v1103, 16
      %v1178 = vrot.slane %v1176, 5
      %v1179 = vsel %vm314, %v1174, %v1178
      %v1181 = vshrl.u32 %v1104, 16
      %v1183 = vrot.slane %v1181, 4
      %v1184 = vshll.u32 %v1104, 16
      %v1186 = vrot.slane %v1184, 5
      %v1187 = vor.u32 %v1183, %v1186
      %v1188 = vrot.slane %v1187, 4
      %v1190 = vshll.u32 %v1105, 16
      %v1192 = vrot.slane %v1190, 5
      %v1193 = vsel %vm314, %v1188, %v1192
      %v1195 = vshrl.u32 %v1106, 16
      %v1197 = vrot.slane %v1195, 4
      %v1198 = vshll.u32 %v1106, 16
      %v1200 = vrot.slane %v1198, 5
      %v1201 = vor.u32 %v1197, %v1200
      %v1202 = vrot.slane %v1201, 4
      %v1204 = vshll.u32 %v1107, 16
      %v1206 = vrot.slane %v1204, 5
      %v1207 = vsel %vm314, %v1202, %v1206
      %v1209 = vshrl.u32 %v1108, 16
      %v1211 = vrot.slane %v1209, 4
      %v1212 = vshll.u32 %v1108, 16
      %v1214 = vrot.slane %v1212, 5
      %v1215 = vor.u32 %v1211, %v1214
      %v1216 = vrot.slane %v1215, 4
      %v1218 = vshll.u32 %v1109, 16
      %v1220 = vrot.slane %v1218, 5
      %v1221 = vsel %vm314, %v1216, %v1220
      %s1222 = scalar_lea.vmem %s1, 256
      %v1223 = vld [vmem:[%s1222] sm:$0xf]
      %v1224 = vld [vmem:[%s1222 + $0x4] sm:$0xf]
      %v1225 = vld [vmem:[%s1222 + $0x8] sm:$0xf]
      %v1226 = vld [vmem:[%s1222 + $0xc] sm:$0xf]
      %v1227 = vld [vmem:[%s1222 + $0x10] sm:$0xf]
      %v1228 = vld [vmem:[%s1222 + $0x14] sm:$0xf]
      %v1229 = vld [vmem:[%s1222 + $0x18] sm:$0xf]
      %v1230 = vld [vmem:[%s1222 + $0x1c] sm:$0xf]
      %v1231 = vld [vmem:[%s1222 + $0x20] sm:$0xf]
      %v1232 = vld [vmem:[%s1222 + $0x24] sm:$0xf]
      %v1233 = vld [vmem:[%s1222 + $0x28] sm:$0xf]
      %v1234 = vld [vmem:[%s1222 + $0x2c] sm:$0xf]
      %v1235 = vld [vmem:[%s1222 + $0x30] sm:$0xf]
      %v1236 = vld [vmem:[%s1222 + $0x34] sm:$0xf]
      %v1237 = vld [vmem:[%s1222 + $0x38] sm:$0xf]
      %v1238 = vld [vmem:[%s1222 + $0x3c] sm:$0xf]
      %v1239 = vunpack.c.l.b16 %v1123
      %v1240 = vunpack.c.l.b16 %v1137
      %v1241 = vunpack.c.l.b16 %v1151
      %v1242 = vunpack.c.l.b16 %v1165
      %v1243 = vunpack.c.l.b16 %v1179
      %v1244 = vunpack.c.l.b16 %v1193
      %v1245 = vunpack.c.l.b16 %v1207
      %v1246 = vunpack.c.l.b16 %v1221
      %v1247 = vpack.c.b16 %v1240, %v1239
      %v1248 = vpack.c.b16 %v1242, %v1241
      %v1249 = vpack.c.b16 %v1244, %v1243
      %v1250 = vpack.c.b16 %v1246, %v1245
      %v1271 = vunpack.c.l.b16 %v1223
      %v1272 = vunpack.c.l.b16 %v1224
      %v1273 = vunpack.c.l.b16 %v1225
      %v1274 = vunpack.c.l.b16 %v1226
      %v1275 = vunpack.c.l.b16 %v1227
      %v1276 = vunpack.c.l.b16 %v1228
      %v1277 = vunpack.c.l.b16 %v1229
      %v1278 = vunpack.c.l.b16 %v1230
      %v1279 = vunpack.c.l.b16 %v1231
      %v1280 = vunpack.c.l.b16 %v1232
      %v1281 = vunpack.c.l.b16 %v1233
      %v1282 = vunpack.c.l.b16 %v1234
      %v1283 = vunpack.c.l.b16 %v1235
      %v1284 = vunpack.c.l.b16 %v1236
      %v1285 = vunpack.c.l.b16 %v1237
      %v1286 = vunpack.c.l.b16 %v1238
      %v1287 = vpack.c.b16 %v1272, %v1271
      %v1288 = vpack.c.b16 %v1274, %v1273
      %v1289 = vpack.c.b16 %v1276, %v1275
      %v1290 = vpack.c.b16 %v1278, %v1277
      %v1291 = vpack.c.b16 %v1280, %v1279
      %v1292 = vpack.c.b16 %v1282, %v1281
      %v1293 = vpack.c.b16 %v1284, %v1283
      %v1294 = vpack.c.b16 %v1286, %v1285
      %1303 = vmatprep.subr.bf16.mxu0 0
      %1304 = vmatpush1.bf16.msra.mxu0 %v1294
      %1305 = vmatprep.subr.bf16.mxu0 0
      %1306 = vmatpush1.bf16.msra.mxu0 %v1293
      %1307 = vmatprep.subr.bf16.mxu0 0
      %1308 = vmatpush1.bf16.msra.mxu0 %v1292
      %1309 = vmatprep.subr.bf16.mxu0 0
      %1310 = vmatpush1.bf16.msra.mxu0 %v1291
      %1311 = vmatprep.subr.bf16.mxu0 0
      %1312 = vmatpush1.bf16.msra.mxu0 %v1290
      %1313 = vmatprep.subr.bf16.mxu0 0
      %1314 = vmatpush1.bf16.msra.mxu0 %v1289
      %1315 = vmatprep.subr.bf16.mxu0 0
      %1316 = vmatpush1.bf16.msra.mxu0 %v1288
      %1317 = vmatprep.subr.bf16.mxu0 0
      %1318 = vmatpush1.bf16.msra.mxu0 %v1287
      %1319 = vmatprep.subr.bf16.mxu0 0
      %1320 = vmatpush2.bf16.msra.mxu0 0
      %1321 = vmatprep.subr.bf16.mxu0 0
      %1322 = vmatpush2.bf16.msra.mxu0 0
      %1323 = vmatprep.subr.bf16.mxu0 0
      %1324 = vmatpush2.bf16.msra.mxu0 0
      %1325 = vmatprep.subr.bf16.mxu0 0
      %1326 = vmatpush2.bf16.msra.mxu0 0
      %1327 = vmatprep.subr.bf16.mxu0 0
      %1328 = vmatpush2.bf16.msra.mxu0 0
      %1329 = vmatprep.subr.bf16.mxu0 0
      %1330 = vmatpush2.bf16.msra.mxu0 0
      %1331 = vmatprep.subr.bf16.mxu0 0
      %1332 = vmatpush2.bf16.msra.mxu0 0
      %1333 = vmatprep.subr.bf16.mxu0 0
      %1334 = vmatpush2.bf16.msra.mxu0 0
      %1335 = vmatprep.mubr.bf16.mxu0 0
      %1336 = vmatmul.mubr.bf16.gmra.mxu0 %v1247
      %v1337 = vpop.f32.mrf.mxu0
      %v1338 = vadd.f32 0.0, %v1337
      %v1339 = vpop.f32.mrf.mxu0
      %v1340 = vpop.f32.mrf.mxu0
      %v1341 = vadd.f32 0.0, %v1340
      %v1342 = vpop.f32.mrf.mxu0
      %1343 = vmatprep.mubr.bf16.mxu0 0
      %1344 = vmatmul.mubr.bf16.gmra.mxu0 %v1248
      %v1345 = vpop.f32.mrf.mxu0
      %v1346 = vadd.f32 0.0, %v1345
      %v1347 = vpop.f32.mrf.mxu0
      %v1348 = vpop.f32.mrf.mxu0
      %v1349 = vadd.f32 0.0, %v1348
      %v1350 = vpop.f32.mrf.mxu0
      %1351 = vmatprep.mubr.bf16.mxu0 0
      %1352 = vmatmul.mubr.bf16.gmra.mxu0 %v1249
      %v1353 = vpop.f32.mrf.mxu0
      %v1354 = vadd.f32 0.0, %v1353
      %v1355 = vpop.f32.mrf.mxu0
      %v1356 = vpop.f32.mrf.mxu0
      %v1357 = vadd.f32 0.0, %v1356
      %v1358 = vpop.f32.mrf.mxu0
      %1359 = vmatprep.mubr.bf16.mxu0 0
      %1360 = vmatmul.mubr.bf16.gmra.mxu0 %v1250
      %v1361 = vpop.f32.mrf.mxu0
      %v1362 = vadd.f32 0.0, %v1361
      %v1363 = vpop.f32.mrf.mxu0
      %v1364 = vpop.f32.mrf.mxu0
      %v1365 = vadd.f32 0.0, %v1364
      %v1366 = vpop.f32.mrf.mxu0
      %1367 = vdwg.mxu0
      %v1368 = vadd.f32 %v1086, %v1338
      %v1369 = vadd.f32 %v1087, %v1341
      %v1370 = vadd.f32 %v1088, %v1346
      %v1371 = vadd.f32 %v1089, %v1349
      %v1372 = vadd.f32 %v1090, %v1354
      %v1373 = vadd.f32 %v1091, %v1357
      %v1374 = vadd.f32 %v1092, %v1362
      %v1375 = vadd.f32 %v1093, %v1365
      %v1376 = vld [vmem:[%s923] sm:$0xe]
      %v1377 = vld [vmem:[%s923 + $0x8] sm:$0xe]
      %v1378 = vld [vmem:[%s923 + $0x10] sm:$0xe]
      %v1379 = vld [vmem:[%s923 + $0x18] sm:$0xe]
      %v1380 = vld [vmem:[%s923 + $0x20] sm:$0xe]
      %v1381 = vld [vmem:[%s923 + $0x28] sm:$0xe]
      %v1382 = vld [vmem:[%s923 + $0x30] sm:$0xe]
      %v1383 = vld [vmem:[%s923 + $0x38] sm:$0xe]
      %v1400 = vrot.slane %v1376, 5
      %v1401 = vrot.slane %v1400, 4
      %v1402 = vrot.slane %v1095, 5
      %v1403 = vsel %vm736, %v1401, %v1402
      %v1404 = vrot.slane %v1377, 5
      %v1405 = vrot.slane %v1404, 4
      %v1406 = vrot.slane %v1097, 5
      %v1407 = vsel %vm736, %v1405, %v1406
      %v1408 = vrot.slane %v1378, 5
      %v1409 = vrot.slane %v1408, 4
      %v1410 = vrot.slane %v1099, 5
      %v1411 = vsel %vm736, %v1409, %v1410
      %v1412 = vrot.slane %v1379, 5
      %v1413 = vrot.slane %v1412, 4
      %v1414 = vrot.slane %v1101, 5
      %v1415 = vsel %vm736, %v1413, %v1414
      %v1416 = vrot.slane %v1380, 5
      %v1417 = vrot.slane %v1416, 4
      %v1418 = vrot.slane %v1103, 5
      %v1419 = vsel %vm736, %v1417, %v1418
      %v1420 = vrot.slane %v1381, 5
      %v1421 = vrot.slane %v1420, 4
      %v1422 = vrot.slane %v1105, 5
      %v1423 = vsel %vm736, %v1421, %v1422
      %v1424 = vrot.slane %v1382, 5
      %v1425 = vrot.slane %v1424, 4
      %v1426 = vrot.slane %v1107, 5
      %v1427 = vsel %vm736, %v1425, %v1426
      %v1428 = vrot.slane %v1383, 5
      %v1429 = vrot.slane %v1428, 4
      %v1430 = vrot.slane %v1109, 5
      %v1431 = vsel %vm736, %v1429, %v1430
      %s1432 = scalar_lea.vmem %s1, 320
      %v1433 = vld [vmem:[%s1432] sm:$0xf]
      %v1434 = vld [vmem:[%s1432 + $0x4] sm:$0xf]
      %v1435 = vld [vmem:[%s1432 + $0x8] sm:$0xf]
      %v1436 = vld [vmem:[%s1432 + $0xc] sm:$0xf]
      %v1437 = vld [vmem:[%s1432 + $0x10] sm:$0xf]
      %v1438 = vld [vmem:[%s1432 + $0x14] sm:$0xf]
      %v1439 = vld [vmem:[%s1432 + $0x18] sm:$0xf]
      %v1440 = vld [vmem:[%s1432 + $0x1c] sm:$0xf]
      %v1441 = vld [vmem:[%s1432 + $0x20] sm:$0xf]
      %v1442 = vld [vmem:[%s1432 + $0x24] sm:$0xf]
      %v1443 = vld [vmem:[%s1432 + $0x28] sm:$0xf]
      %v1444 = vld [vmem:[%s1432 + $0x2c] sm:$0xf]
      %v1445 = vld [vmem:[%s1432 + $0x30] sm:$0xf]
      %v1446 = vld [vmem:[%s1432 + $0x34] sm:$0xf]
      %v1447 = vld [vmem:[%s1432 + $0x38] sm:$0xf]
      %v1448 = vld [vmem:[%s1432 + $0x3c] sm:$0xf]
      %v1449 = vunpack.c.l.b16 %v1403
      %v1450 = vunpack.c.l.b16 %v1407
      %v1451 = vunpack.c.l.b16 %v1411
      %v1452 = vunpack.c.l.b16 %v1415
      %v1453 = vunpack.c.l.b16 %v1419
      %v1454 = vunpack.c.l.b16 %v1423
      %v1455 = vunpack.c.l.b16 %v1427
      %v1456 = vunpack.c.l.b16 %v1431
      %v1457 = vpack.c.b16 %v1450, %v1449
      %v1458 = vpack.c.b16 %v1452, %v1451
      %v1459 = vpack.c.b16 %v1454, %v1453
      %v1460 = vpack.c.b16 %v1456, %v1455
      %v1481 = vunpack.c.l.b16 %v1433
      %v1482 = vunpack.c.l.b16 %v1434
      %v1483 = vunpack.c.l.b16 %v1435
      %v1484 = vunpack.c.l.b16 %v1436
      %v1485 = vunpack.c.l.b16 %v1437
      %v1486 = vunpack.c.l.b16 %v1438
      %v1487 = vunpack.c.l.b16 %v1439
      %v1488 = vunpack.c.l.b16 %v1440
      %v1489 = vunpack.c.l.b16 %v1441
      %v1490 = vunpack.c.l.b16 %v1442
      %v1491 = vunpack.c.l.b16 %v1443
      %v1492 = vunpack.c.l.b16 %v1444
      %v1493 = vunpack.c.l.b16 %v1445
      %v1494 = vunpack.c.l.b16 %v1446
      %v1495 = vunpack.c.l.b16 %v1447
      %v1496 = vunpack.c.l.b16 %v1448
      %v1497 = vpack.c.b16 %v1482, %v1481
      %v1498 = vpack.c.b16 %v1484, %v1483
      %v1499 = vpack.c.b16 %v1486, %v1485
      %v1500 = vpack.c.b16 %v1488, %v1487
      %v1501 = vpack.c.b16 %v1490, %v1489
      %v1502 = vpack.c.b16 %v1492, %v1491
      %v1503 = vpack.c.b16 %v1494, %v1493
      %v1504 = vpack.c.b16 %v1496, %v1495
      %1513 = vmatprep.subr.bf16.mxu0 0
      %1514 = vmatpush1.bf16.msra.mxu0 %v1504
      %1515 = vmatprep.subr.bf16.mxu0 0
      %1516 = vmatpush1.bf16.msra.mxu0 %v1503
      %1517 = vmatprep.subr.bf16.mxu0 0
      %1518 = vmatpush1.bf16.msra.mxu0 %v1502
      %1519 = vmatprep.subr.bf16.mxu0 0
      %1520 = vmatpush1.bf16.msra.mxu0 %v1501
      %1521 = vmatprep.subr.bf16.mxu0 0
      %1522 = vmatpush1.bf16.msra.mxu0 %v1500
      %1523 = vmatprep.subr.bf16.mxu0 0
      %1524 = vmatpush1.bf16.msra.mxu0 %v1499
      %1525 = vmatprep.subr.bf16.mxu0 0
      %1526 = vmatpush1.bf16.msra.mxu0 %v1498
      %1527 = vmatprep.subr.bf16.mxu0 0
      %1528 = vmatpush1.bf16.msra.mxu0 %v1497
      %1529 = vmatprep.subr.bf16.mxu0 0
      %1530 = vmatpush2.bf16.msra.mxu0 0
      %1531 = vmatprep.subr.bf16.mxu0 0
      %1532 = vmatpush2.bf16.msra.mxu0 0
      %1533 = vmatprep.subr.bf16.mxu0 0
      %1534 = vmatpush2.bf16.msra.mxu0 0
      %1535 = vmatprep.subr.bf16.mxu0 0
      %1536 = vmatpush2.bf16.msra.mxu0 0
      %1537 = vmatprep.subr.bf16.mxu0 0
      %1538 = vmatpush2.bf16.msra.mxu0 0
      %1539 = vmatprep.subr.bf16.mxu0 0
      %1540 = vmatpush2.bf16.msra.mxu0 0
      %1541 = vmatprep.subr.bf16.mxu0 0
      %1542 = vmatpush2.bf16.msra.mxu0 0
      %1543 = vmatprep.subr.bf16.mxu0 0
      %1544 = vmatpush2.bf16.msra.mxu0 0
      %1545 = vmatprep.mubr.bf16.mxu0 0
      %1546 = vmatmul.mubr.bf16.gmra.mxu0 %v1457
      %v1547 = vpop.f32.mrf.mxu0
      %v1548 = vadd.f32 0.0, %v1547
      %v1549 = vpop.f32.mrf.mxu0
      %v1550 = vpop.f32.mrf.mxu0
      %v1551 = vadd.f32 0.0, %v1550
      %v1552 = vpop.f32.mrf.mxu0
      %1553 = vmatprep.mubr.bf16.mxu0 0
      %1554 = vmatmul.mubr.bf16.gmra.mxu0 %v1458
      %v1555 = vpop.f32.mrf.mxu0
      %v1556 = vadd.f32 0.0, %v1555
      %v1557 = vpop.f32.mrf.mxu0
      %v1558 = vpop.f32.mrf.mxu0
      %v1559 = vadd.f32 0.0, %v1558
      %v1560 = vpop.f32.mrf.mxu0
      %1561 = vmatprep.mubr.bf16.mxu0 0
      %1562 = vmatmul.mubr.bf16.gmra.mxu0 %v1459
      %v1563 = vpop.f32.mrf.mxu0
      %v1564 = vadd.f32 0.0, %v1563
      %v1565 = vpop.f32.mrf.mxu0
      %v1566 = vpop.f32.mrf.mxu0
      %v1567 = vadd.f32 0.0, %v1566
      %v1568 = vpop.f32.mrf.mxu0
      %1569 = vmatprep.mubr.bf16.mxu0 0
      %1570 = vmatmul.mubr.bf16.gmra.mxu0 %v1460
      %v1571 = vpop.f32.mrf.mxu0
      %v1572 = vadd.f32 0.0, %v1571
      %v1573 = vpop.f32.mrf.mxu0
      %v1574 = vpop.f32.mrf.mxu0
      %v1575 = vadd.f32 0.0, %v1574
      %v1576 = vpop.f32.mrf.mxu0
      %1577 = vdwg.mxu0
      %v1578 = vadd.f32 %v1368, %v1548
      %v1579 = vadd.f32 %v1369, %v1551
      %v1580 = vadd.f32 %v1370, %v1556
      %v1581 = vadd.f32 %v1371, %v1559
      %v1582 = vadd.f32 %v1372, %v1564
      %v1583 = vadd.f32 %v1373, %v1567
      %v1584 = vadd.f32 %v1374, %v1572
      %v1585 = vadd.f32 %v1375, %v1575
      %s1586 = scalar_lea.vmem %s273, 16
      %v1587 = vld [vmem:[%s1586] sm:$0xf]
      %v1588 = vld [vmem:[%s1586 + $0x8] sm:$0xf]
      %v1589 = vld [vmem:[%s1586 + $0x10] sm:$0xf]
      %v1590 = vld [vmem:[%s1586 + $0x18] sm:$0xf]
      %v1591 = vld [vmem:[%s1586 + $0x20] sm:$0xf]
      %v1592 = vld [vmem:[%s1586 + $0x28] sm:$0xf]
      %v1593 = vld [vmem:[%s1586 + $0x30] sm:$0xf]
      %v1594 = vld [vmem:[%s1586 + $0x38] sm:$0xf]
      %s1595 = scalar_lea.vmem %s1, 384
      %v1596 = vld [vmem:[%s1595] sm:$0xf]
      %v1597 = vld [vmem:[%s1595 + $0x4] sm:$0xf]
      %v1598 = vld [vmem:[%s1595 + $0x8] sm:$0xf]
      %v1599 = vld [vmem:[%s1595 + $0xc] sm:$0xf]
      %v1600 = vld [vmem:[%s1595 + $0x10] sm:$0xf]
      %v1601 = vld [vmem:[%s1595 + $0x14] sm:$0xf]
      %v1602 = vld [vmem:[%s1595 + $0x18] sm:$0xf]
      %v1603 = vld [vmem:[%s1595 + $0x1c] sm:$0xf]
      %v1604 = vld [vmem:[%s1595 + $0x20] sm:$0xf]
      %v1605 = vld [vmem:[%s1595 + $0x24] sm:$0xf]
      %v1606 = vld [vmem:[%s1595 + $0x28] sm:$0xf]
      %v1607 = vld [vmem:[%s1595 + $0x2c] sm:$0xf]
      %v1608 = vld [vmem:[%s1595 + $0x30] sm:$0xf]
      %v1609 = vld [vmem:[%s1595 + $0x34] sm:$0xf]
      %v1610 = vld [vmem:[%s1595 + $0x38] sm:$0xf]
      %v1611 = vld [vmem:[%s1595 + $0x3c] sm:$0xf]
      %v1620 = vunpack.c.l.b16 %v1587
      %v1621 = vunpack.c.l.b16 %v1588
      %v1622 = vunpack.c.l.b16 %v1589
      %v1623 = vunpack.c.l.b16 %v1590
      %v1624 = vunpack.c.l.b16 %v1591
      %v1625 = vunpack.c.l.b16 %v1592
      %v1626 = vunpack.c.l.b16 %v1593
      %v1627 = vunpack.c.l.b16 %v1594
      %v1628 = vpack.c.b16 %v1621, %v1620
      %v1629 = vpack.c.b16 %v1623, %v1622
      %v1630 = vpack.c.b16 %v1625, %v1624
      %v1631 = vpack.c.b16 %v1627, %v1626
      %v1652 = vunpack.c.l.b16 %v1596
      %v1653 = vunpack.c.l.b16 %v1597
      %v1654 = vunpack.c.l.b16 %v1598
      %v1655 = vunpack.c.l.b16 %v1599
      %v1656 = vunpack.c.l.b16 %v1600
      %v1657 = vunpack.c.l.b16 %v1601
      %v1658 = vunpack.c.l.b16 %v1602
      %v1659 = vunpack.c.l.b16 %v1603
      %v1660 = vunpack.c.l.b16 %v1604
      %v1661 = vunpack.c.l.b16 %v1605
      %v1662 = vunpack.c.l.b16 %v1606
      %v1663 = vunpack.c.l.b16 %v1607
      %v1664 = vunpack.c.l.b16 %v1608
      %v1665 = vunpack.c.l.b16 %v1609
      %v1666 = vunpack.c.l.b16 %v1610
      %v1667 = vunpack.c.l.b16 %v1611
      %v1668 = vpack.c.b16 %v1653, %v1652
      %v1669 = vpack.c.b16 %v1655, %v1654
      %v1670 = vpack.c.b16 %v1657, %v1656
      %v1671 = vpack.c.b16 %v1659, %v1658
      %v1672 = vpack.c.b16 %v1661, %v1660
      %v1673 = vpack.c.b16 %v1663, %v1662
      %v1674 = vpack.c.b16 %v1665, %v1664
      %v1675 = vpack.c.b16 %v1667, %v1666
      %1684 = vmatprep.subr.bf16.mxu0 0
      %1685 = vmatpush1.bf16.msra.mxu0 %v1675
      %1686 = vmatprep.subr.bf16.mxu0 0
      %1687 = vmatpush1.bf16.msra.mxu0 %v1674
      %1688 = vmatprep.subr.bf16.mxu0 0
      %1689 = vmatpush1.bf16.msra.mxu0 %v1673
      %1690 = vmatprep.subr.bf16.mxu0 0
      %1691 = vmatpush1.bf16.msra.mxu0 %v1672
      %1692 = vmatprep.subr.bf16.mxu0 0
      %1693 = vmatpush1.bf16.msra.mxu0 %v1671
      %1694 = vmatprep.subr.bf16.mxu0 0
      %1695 = vmatpush1.bf16.msra.mxu0 %v1670
      %1696 = vmatprep.subr.bf16.mxu0 0
      %1697 = vmatpush1.bf16.msra.mxu0 %v1669
      %1698 = vmatprep.subr.bf16.mxu0 0
      %1699 = vmatpush1.bf16.msra.mxu0 %v1668
      %1700 = vmatprep.subr.bf16.mxu0 0
      %1701 = vmatpush2.bf16.msra.mxu0 0
      %1702 = vmatprep.subr.bf16.mxu0 0
      %1703 = vmatpush2.bf16.msra.mxu0 0
      %1704 = vmatprep.subr.bf16.mxu0 0
      %1705 = vmatpush2.bf16.msra.mxu0 0
      %1706 = vmatprep.subr.bf16.mxu0 0
      %1707 = vmatpush2.bf16.msra.mxu0 0
      %1708 = vmatprep.subr.bf16.mxu0 0
      %1709 = vmatpush2.bf16.msra.mxu0 0
      %1710 = vmatprep.subr.bf16.mxu0 0
      %1711 = vmatpush2.bf16.msra.mxu0 0
      %1712 = vmatprep.subr.bf16.mxu0 0
      %1713 = vmatpush2.bf16.msra.mxu0 0
      %1714 = vmatprep.subr.bf16.mxu0 0
      %1715 = vmatpush2.bf16.msra.mxu0 0
      %1716 = vmatprep.mubr.bf16.mxu0 0
      %1717 = vmatmul.mubr.bf16.gmra.mxu0 %v1628
      %v1718 = vpop.f32.mrf.mxu0
      %v1719 = vadd.f32 0.0, %v1718
      %v1720 = vpop.f32.mrf.mxu0
      %v1721 = vpop.f32.mrf.mxu0
      %v1722 = vadd.f32 0.0, %v1721
      %v1723 = vpop.f32.mrf.mxu0
      %1724 = vmatprep.mubr.bf16.mxu0 0
      %1725 = vmatmul.mubr.bf16.gmra.mxu0 %v1629
      %v1726 = vpop.f32.mrf.mxu0
      %v1727 = vadd.f32 0.0, %v1726
      %v1728 = vpop.f32.mrf.mxu0
      %v1729 = vpop.f32.mrf.mxu0
      %v1730 = vadd.f32 0.0, %v1729
      %v1731 = vpop.f32.mrf.mxu0
      %1732 = vmatprep.mubr.bf16.mxu0 0
      %1733 = vmatmul.mubr.bf16.gmra.mxu0 %v1630
      %v1734 = vpop.f32.mrf.mxu0
      %v1735 = vadd.f32 0.0, %v1734
      %v1736 = vpop.f32.mrf.mxu0
      %v1737 = vpop.f32.mrf.mxu0
      %v1738 = vadd.f32 0.0, %v1737
      %v1739 = vpop.f32.mrf.mxu0
      %1740 = vmatprep.mubr.bf16.mxu0 0
      %1741 = vmatmul.mubr.bf16.gmra.mxu0 %v1631
      %v1742 = vpop.f32.mrf.mxu0
      %v1743 = vadd.f32 0.0, %v1742
      %v1744 = vpop.f32.mrf.mxu0
      %v1745 = vpop.f32.mrf.mxu0
      %v1746 = vadd.f32 0.0, %v1745
      %v1747 = vpop.f32.mrf.mxu0
      %1748 = vdwg.mxu0
      %v1749 = vadd.f32 %v1578, %v1719
      %v1750 = vadd.f32 %v1579, %v1722
      %v1751 = vadd.f32 %v1580, %v1727
      %v1752 = vadd.f32 %v1581, %v1730
      %v1753 = vadd.f32 %v1582, %v1735
      %v1754 = vadd.f32 %v1583, %v1738
      %v1755 = vadd.f32 %v1584, %v1743
      %v1756 = vadd.f32 %v1585, %v1746
      %v1757 = vld [vmem:[%s1586] sm:$0xf]
      %v1758 = vld [vmem:[%s1586 + $0x4] sm:$0x1]
      %v1759 = vld [vmem:[%s1586 + $0x8] sm:$0xf]
      %v1760 = vld [vmem:[%s1586 + $0xc] sm:$0x1]
      %v1761 = vld [vmem:[%s1586 + $0x10] sm:$0xf]
      %v1762 = vld [vmem:[%s1586 + $0x14] sm:$0x1]
      %v1763 = vld [vmem:[%s1586 + $0x18] sm:$0xf]
      %v1764 = vld [vmem:[%s1586 + $0x1c] sm:$0x1]
      %v1765 = vld [vmem:[%s1586 + $0x20] sm:$0xf]
      %v1766 = vld [vmem:[%s1586 + $0x24] sm:$0x1]
      %v1767 = vld [vmem:[%s1586 + $0x28] sm:$0xf]
      %v1768 = vld [vmem:[%s1586 + $0x2c] sm:$0x1]
      %v1769 = vld [vmem:[%s1586 + $0x30] sm:$0xf]
      %v1770 = vld [vmem:[%s1586 + $0x34] sm:$0x1]
      %v1771 = vld [vmem:[%s1586 + $0x38] sm:$0xf]
      %v1772 = vld [vmem:[%s1586 + $0x3c] sm:$0x1]
      %v1774 = vshrl.u32 %v1757, 16
      %v1776 = vrot.slane %v1774, 4
      %v1777 = vshll.u32 %v1757, 16
      %v1779 = vrot.slane %v1777, 5
      %v1780 = vor.u32 %v1776, %v1779
      %v1781 = vrot.slane %v1780, 4
      %v1783 = vshll.u32 %v1758, 16
      %v1785 = vrot.slane %v1783, 5
      %v1786 = vsel %vm314, %v1781, %v1785
      %v1788 = vshrl.u32 %v1759, 16
      %v1790 = vrot.slane %v1788, 4
      %v1791 = vshll.u32 %v1759, 16
      %v1793 = vrot.slane %v1791, 5
      %v1794 = vor.u32 %v1790, %v1793
      %v1795 = vrot.slane %v1794, 4
      %v1797 = vshll.u32 %v1760, 16
      %v1799 = vrot.slane %v1797, 5
      %v1800 = vsel %vm314, %v1795, %v1799
      %v1802 = vshrl.u32 %v1761, 16
      %v1804 = vrot.slane %v1802, 4
      %v1805 = vshll.u32 %v1761, 16
      %v1807 = vrot.slane %v1805, 5
      %v1808 = vor.u32 %v1804, %v1807
      %v1809 = vrot.slane %v1808, 4
      %v1811 = vshll.u32 %v1762, 16
      %v1813 = vrot.slane %v1811, 5
      %v1814 = vsel %vm314, %v1809, %v1813
      %v1816 = vshrl.u32 %v1763, 16
      %v1818 = vrot.slane %v1816, 4
      %v1819 = vshll.u32 %v1763, 16
      %v1821 = vrot.slane %v1819, 5
      %v1822 = vor.u32 %v1818, %v1821
      %v1823 = vrot.slane %v1822, 4
      %v1825 = vshll.u32 %v1764, 16
      %v1827 = vrot.slane %v1825, 5
      %v1828 = vsel %vm314, %v1823, %v1827
      %v1830 = vshrl.u32 %v1765, 16
      %v1832 = vrot.slane %v1830, 4
      %v1833 = vshll.u32 %v1765, 16
      %v1835 = vrot.slane %v1833, 5
      %v1836 = vor.u32 %v1832, %v1835
      %v1837 = vrot.slane %v1836, 4
      %v1839 = vshll.u32 %v1766, 16
      %v1841 = vrot.slane %v1839, 5
      %v1842 = vsel %vm314, %v1837, %v1841
      %v1844 = vshrl.u32 %v1767, 16
      %v1846 = vrot.slane %v1844, 4
      %v1847 = vshll.u32 %v1767, 16
      %v1849 = vrot.slane %v1847, 5
      %v1850 = vor.u32 %v1846, %v1849
      %v1851 = vrot.slane %v1850, 4
      %v1853 = vshll.u32 %v1768, 16
      %v1855 = vrot.slane %v1853, 5
      %v1856 = vsel %vm314, %v1851, %v1855
      %v1858 = vshrl.u32 %v1769, 16
      %v1860 = vrot.slane %v1858, 4
      %v1861 = vshll.u32 %v1769, 16
      %v1863 = vrot.slane %v1861, 5
      %v1864 = vor.u32 %v1860, %v1863
      %v1865 = vrot.slane %v1864, 4
      %v1867 = vshll.u32 %v1770, 16
      %v1869 = vrot.slane %v1867, 5
      %v1870 = vsel %vm314, %v1865, %v1869
      %v1872 = vshrl.u32 %v1771, 16
      %v1874 = vrot.slane %v1872, 4
      %v1875 = vshll.u32 %v1771, 16
      %v1877 = vrot.slane %v1875, 5
      %v1878 = vor.u32 %v1874, %v1877
      %v1879 = vrot.slane %v1878, 4
      %v1881 = vshll.u32 %v1772, 16
      %v1883 = vrot.slane %v1881, 5
      %v1884 = vsel %vm314, %v1879, %v1883
      %s1885 = scalar_lea.vmem %s1, 448
      %v1886 = vld [vmem:[%s1885] sm:$0xf]
      %v1887 = vld [vmem:[%s1885 + $0x4] sm:$0xf]
      %v1888 = vld [vmem:[%s1885 + $0x8] sm:$0xf]
      %v1889 = vld [vmem:[%s1885 + $0xc] sm:$0xf]
      %v1890 = vld [vmem:[%s1885 + $0x10] sm:$0xf]
      %v1891 = vld [vmem:[%s1885 + $0x14] sm:$0xf]
      %v1892 = vld [vmem:[%s1885 + $0x18] sm:$0xf]
      %v1893 = vld [vmem:[%s1885 + $0x1c] sm:$0xf]
      %v1894 = vld [vmem:[%s1885 + $0x20] sm:$0xf]
      %v1895 = vld [vmem:[%s1885 + $0x24] sm:$0xf]
      %v1896 = vld [vmem:[%s1885 + $0x28] sm:$0xf]
      %v1897 = vld [vmem:[%s1885 + $0x2c] sm:$0xf]
      %v1898 = vld [vmem:[%s1885 + $0x30] sm:$0xf]
      %v1899 = vld [vmem:[%s1885 + $0x34] sm:$0xf]
      %v1900 = vld [vmem:[%s1885 + $0x38] sm:$0xf]
      %v1901 = vld [vmem:[%s1885 + $0x3c] sm:$0xf]
      %v1902 = vunpack.c.l.b16 %v1786
      %v1903 = vunpack.c.l.b16 %v1800
      %v1904 = vunpack.c.l.b16 %v1814
      %v1905 = vunpack.c.l.b16 %v1828
      %v1906 = vunpack.c.l.b16 %v1842
      %v1907 = vunpack.c.l.b16 %v1856
      %v1908 = vunpack.c.l.b16 %v1870
      %v1909 = vunpack.c.l.b16 %v1884
      %v1910 = vpack.c.b16 %v1903, %v1902
      %v1911 = vpack.c.b16 %v1905, %v1904
      %v1912 = vpack.c.b16 %v1907, %v1906
      %v1913 = vpack.c.b16 %v1909, %v1908
      %v1934 = vunpack.c.l.b16 %v1886
      %v1935 = vunpack.c.l.b16 %v1887
      %v1936 = vunpack.c.l.b16 %v1888
      %v1937 = vunpack.c.l.b16 %v1889
      %v1938 = vunpack.c.l.b16 %v1890
      %v1939 = vunpack.c.l.b16 %v1891
      %v1940 = vunpack.c.l.b16 %v1892
      %v1941 = vunpack.c.l.b16 %v1893
      %v1942 = vunpack.c.l.b16 %v1894
      %v1943 = vunpack.c.l.b16 %v1895
      %v1944 = vunpack.c.l.b16 %v1896
      %v1945 = vunpack.c.l.b16 %v1897
      %v1946 = vunpack.c.l.b16 %v1898
      %v1947 = vunpack.c.l.b16 %v1899
      %v1948 = vunpack.c.l.b16 %v1900
      %v1949 = vunpack.c.l.b16 %v1901
      %v1950 = vpack.c.b16 %v1935, %v1934
      %v1951 = vpack.c.b16 %v1937, %v1936
      %v1952 = vpack.c.b16 %v1939, %v1938
      %v1953 = vpack.c.b16 %v1941, %v1940
      %v1954 = vpack.c.b16 %v1943, %v1942
      %v1955 = vpack.c.b16 %v1945, %v1944
      %v1956 = vpack.c.b16 %v1947, %v1946
      %v1957 = vpack.c.b16 %v1949, %v1948
      %1966 = vmatprep.subr.bf16.mxu0 0
      %1967 = vmatpush1.bf16.msra.mxu0 %v1957
      %1968 = vmatprep.subr.bf16.mxu0 0
      %1969 = vmatpush1.bf16.msra.mxu0 %v1956
      %1970 = vmatprep.subr.bf16.mxu0 0
      %1971 = vmatpush1.bf16.msra.mxu0 %v1955
      %1972 = vmatprep.subr.bf16.mxu0 0
      %1973 = vmatpush1.bf16.msra.mxu0 %v1954
      %1974 = vmatprep.subr.bf16.mxu0 0
      %1975 = vmatpush1.bf16.msra.mxu0 %v1953
      %1976 = vmatprep.subr.bf16.mxu0 0
      %1977 = vmatpush1.bf16.msra.mxu0 %v1952
      %1978 = vmatprep.subr.bf16.mxu0 0
      %1979 = vmatpush1.bf16.msra.mxu0 %v1951
      %1980 = vmatprep.subr.bf16.mxu0 0
      %1981 = vmatpush1.bf16.msra.mxu0 %v1950
      %1982 = vmatprep.subr.bf16.mxu0 0
      %1983 = vmatpush2.bf16.msra.mxu0 0
      %1984 = vmatprep.subr.bf16.mxu0 0
      %1985 = vmatpush2.bf16.msra.mxu0 0
      %1986 = vmatprep.subr.bf16.mxu0 0
      %1987 = vmatpush2.bf16.msra.mxu0 0
      %1988 = vmatprep.subr.bf16.mxu0 0
      %1989 = vmatpush2.bf16.msra.mxu0 0
      %1990 = vmatprep.subr.bf16.mxu0 0
      %1991 = vmatpush2.bf16.msra.mxu0 0
      %1992 = vmatprep.subr.bf16.mxu0 0
      %1993 = vmatpush2.bf16.msra.mxu0 0
      %1994 = vmatprep.subr.bf16.mxu0 0
      %1995 = vmatpush2.bf16.msra.mxu0 0
      %1996 = vmatprep.subr.bf16.mxu0 0
      %1997 = vmatpush2.bf16.msra.mxu0 0
      %1998 = vmatprep.mubr.bf16.mxu0 0
      %1999 = vmatmul.mubr.bf16.gmra.mxu0 %v1910
      %v2000 = vpop.f32.mrf.mxu0
      %v2001 = vadd.f32 0.0, %v2000
      %v2002 = vpop.f32.mrf.mxu0
      %v2003 = vpop.f32.mrf.mxu0
      %v2004 = vadd.f32 0.0, %v2003
      %v2005 = vpop.f32.mrf.mxu0
      %2006 = vmatprep.mubr.bf16.mxu0 0
      %2007 = vmatmul.mubr.bf16.gmra.mxu0 %v1911
      %v2008 = vpop.f32.mrf.mxu0
      %v2009 = vadd.f32 0.0, %v2008
      %v2010 = vpop.f32.mrf.mxu0
      %v2011 = vpop.f32.mrf.mxu0
      %v2012 = vadd.f32 0.0, %v2011
      %v2013 = vpop.f32.mrf.mxu0
      %2014 = vmatprep.mubr.bf16.mxu0 0
      %2015 = vmatmul.mubr.bf16.gmra.mxu0 %v1912
      %v2016 = vpop.f32.mrf.mxu0
      %v2017 = vadd.f32 0.0, %v2016
      %v2018 = vpop.f32.mrf.mxu0
      %v2019 = vpop.f32.mrf.mxu0
      %v2020 = vadd.f32 0.0, %v2019
      %v2021 = vpop.f32.mrf.mxu0
      %2022 = vmatprep.mubr.bf16.mxu0 0
      %2023 = vmatmul.mubr.bf16.gmra.mxu0 %v1913
      %v2024 = vpop.f32.mrf.mxu0
      %v2025 = vadd.f32 0.0, %v2024
      %v2026 = vpop.f32.mrf.mxu0
      %v2027 = vpop.f32.mrf.mxu0
      %v2028 = vadd.f32 0.0, %v2027
      %v2029 = vpop.f32.mrf.mxu0
      %2030 = vdwg.mxu0
      %v2031 = vadd.f32 %v1749, %v2001
      %v2032 = vadd.f32 %v1750, %v2004
      %v2033 = vadd.f32 %v1751, %v2009
      %v2034 = vadd.f32 %v1752, %v2012
      %v2035 = vadd.f32 %v1753, %v2017
      %v2036 = vadd.f32 %v1754, %v2020
      %v2037 = vadd.f32 %v1755, %v2025
      %v2038 = vadd.f32 %v1756, %v2028
      %v2039 = vld [vmem:[%s1586] sm:$0xe]
      %v2040 = vld [vmem:[%s1586 + $0x8] sm:$0xe]
      %v2041 = vld [vmem:[%s1586 + $0x10] sm:$0xe]
      %v2042 = vld [vmem:[%s1586 + $0x18] sm:$0xe]
      %v2043 = vld [vmem:[%s1586 + $0x20] sm:$0xe]
      %v2044 = vld [vmem:[%s1586 + $0x28] sm:$0xe]
      %v2045 = vld [vmem:[%s1586 + $0x30] sm:$0xe]
      %v2046 = vld [vmem:[%s1586 + $0x38] sm:$0xe]
      %v2063 = vrot.slane %v2039, 5
      %v2064 = vrot.slane %v2063, 4
      %v2065 = vrot.slane %v1758, 5
      %v2066 = vsel %vm736, %v2064, %v2065
      %v2067 = vrot.slane %v2040, 5
      %v2068 = vrot.slane %v2067, 4
      %v2069 = vrot.slane %v1760, 5
      %v2070 = vsel %vm736, %v2068, %v2069
      %v2071 = vrot.slane %v2041, 5
      %v2072 = vrot.slane %v2071, 4
      %v2073 = vrot.slane %v1762, 5
      %v2074 = vsel %vm736, %v2072, %v2073
      %v2075 = vrot.slane %v2042, 5
      %v2076 = vrot.slane %v2075, 4
      %v2077 = vrot.slane %v1764, 5
      %v2078 = vsel %vm736, %v2076, %v2077
      %v2079 = vrot.slane %v2043, 5
      %v2080 = vrot.slane %v2079, 4
      %v2081 = vrot.slane %v1766, 5
      %v2082 = vsel %vm736, %v2080, %v2081
      %v2083 = vrot.slane %v2044, 5
      %v2084 = vrot.slane %v2083, 4
      %v2085 = vrot.slane %v1768, 5
      %v2086 = vsel %vm736, %v2084, %v2085
      %v2087 = vrot.slane %v2045, 5
      %v2088 = vrot.slane %v2087, 4
      %v2089 = vrot.slane %v1770, 5
      %v2090 = vsel %vm736, %v2088, %v2089
      %v2091 = vrot.slane %v2046, 5
      %v2092 = vrot.slane %v2091, 4
      %v2093 = vrot.slane %v1772, 5
      %v2094 = vsel %vm736, %v2092, %v2093
      %s2095 = scalar_lea.vmem %s1, 512
      %v2096 = vld [vmem:[%s2095] sm:$0xf]
      %v2097 = vld [vmem:[%s2095 + $0x4] sm:$0xf]
      %v2098 = vld [vmem:[%s2095 + $0x8] sm:$0xf]
      %v2099 = vld [vmem:[%s2095 + $0xc] sm:$0xf]
      %v2100 = vld [vmem:[%s2095 + $0x10] sm:$0xf]
      %v2101 = vld [vmem:[%s2095 + $0x14] sm:$0xf]
      %v2102 = vld [vmem:[%s2095 + $0x18] sm:$0xf]
      %v2103 = vld [vmem:[%s2095 + $0x1c] sm:$0xf]
      %v2104 = vld [vmem:[%s2095 + $0x20] sm:$0xf]
      %v2105 = vld [vmem:[%s2095 + $0x24] sm:$0xf]
      %v2106 = vld [vmem:[%s2095 + $0x28] sm:$0xf]
      %v2107 = vld [vmem:[%s2095 + $0x2c] sm:$0xf]
      %v2108 = vld [vmem:[%s2095 + $0x30] sm:$0xf]
      %v2109 = vld [vmem:[%s2095 + $0x34] sm:$0xf]
      %v2110 = vld [vmem:[%s2095 + $0x38] sm:$0xf]
      %v2111 = vld [vmem:[%s2095 + $0x3c] sm:$0xf]
      %v2112 = vunpack.c.l.b16 %v2066
      %v2113 = vunpack.c.l.b16 %v2070
      %v2114 = vunpack.c.l.b16 %v2074
      %v2115 = vunpack.c.l.b16 %v2078
      %v2116 = vunpack.c.l.b16 %v2082
      %v2117 = vunpack.c.l.b16 %v2086
      %v2118 = vunpack.c.l.b16 %v2090
      %v2119 = vunpack.c.l.b16 %v2094
      %v2120 = vpack.c.b16 %v2113, %v2112
      %v2121 = vpack.c.b16 %v2115, %v2114
      %v2122 = vpack.c.b16 %v2117, %v2116
      %v2123 = vpack.c.b16 %v2119, %v2118
      %v2144 = vunpack.c.l.b16 %v2096
      %v2145 = vunpack.c.l.b16 %v2097
      %v2146 = vunpack.c.l.b16 %v2098
      %v2147 = vunpack.c.l.b16 %v2099
      %v2148 = vunpack.c.l.b16 %v2100
      %v2149 = vunpack.c.l.b16 %v2101
      %v2150 = vunpack.c.l.b16 %v2102
      %v2151 = vunpack.c.l.b16 %v2103
      %v2152 = vunpack.c.l.b16 %v2104
      %v2153 = vunpack.c.l.b16 %v2105
      %v2154 = vunpack.c.l.b16 %v2106
      %v2155 = vunpack.c.l.b16 %v2107
      %v2156 = vunpack.c.l.b16 %v2108
      %v2157 = vunpack.c.l.b16 %v2109
      %v2158 = vunpack.c.l.b16 %v2110
      %v2159 = vunpack.c.l.b16 %v2111
      %v2160 = vpack.c.b16 %v2145, %v2144
      %v2161 = vpack.c.b16 %v2147, %v2146
      %v2162 = vpack.c.b16 %v2149, %v2148
      %v2163 = vpack.c.b16 %v2151, %v2150
      %v2164 = vpack.c.b16 %v2153, %v2152
      %v2165 = vpack.c.b16 %v2155, %v2154
      %v2166 = vpack.c.b16 %v2157, %v2156
      %v2167 = vpack.c.b16 %v2159, %v2158
      %2176 = vmatprep.subr.bf16.mxu0 0
      %2177 = vmatpush1.bf16.msra.mxu0 %v2167
      %2178 = vmatprep.subr.bf16.mxu0 0
      %2179 = vmatpush1.bf16.msra.mxu0 %v2166
      %2180 = vmatprep.subr.bf16.mxu0 0
      %2181 = vmatpush1.bf16.msra.mxu0 %v2165
      %2182 = vmatprep.subr.bf16.mxu0 0
      %2183 = vmatpush1.bf16.msra.mxu0 %v2164
      %2184 = vmatprep.subr.bf16.mxu0 0
      %2185 = vmatpush1.bf16.msra.mxu0 %v2163
      %2186 = vmatprep.subr.bf16.mxu0 0
      %2187 = vmatpush1.bf16.msra.mxu0 %v2162
      %2188 = vmatprep.subr.bf16.mxu0 0
      %2189 = vmatpush1.bf16.msra.mxu0 %v2161
      %2190 = vmatprep.subr.bf16.mxu0 0
      %2191 = vmatpush1.bf16.msra.mxu0 %v2160
      %2192 = vmatprep.subr.bf16.mxu0 0
      %2193 = vmatpush2.bf16.msra.mxu0 0
      %2194 = vmatprep.subr.bf16.mxu0 0
      %2195 = vmatpush2.bf16.msra.mxu0 0
      %2196 = vmatprep.subr.bf16.mxu0 0
      %2197 = vmatpush2.bf16.msra.mxu0 0
      %2198 = vmatprep.subr.bf16.mxu0 0
      %2199 = vmatpush2.bf16.msra.mxu0 0
      %2200 = vmatprep.subr.bf16.mxu0 0
      %2201 = vmatpush2.bf16.msra.mxu0 0
      %2202 = vmatprep.subr.bf16.mxu0 0
      %2203 = vmatpush2.bf16.msra.mxu0 0
      %2204 = vmatprep.subr.bf16.mxu0 0
      %2205 = vmatpush2.bf16.msra.mxu0 0
      %2206 = vmatprep.subr.bf16.mxu0 0
      %2207 = vmatpush2.bf16.msra.mxu0 0
      %2208 = vmatprep.mubr.bf16.mxu0 0
      %2209 = vmatmul.mubr.bf16.gmra.mxu0 %v2120
      %v2210 = vpop.f32.mrf.mxu0
      %v2211 = vadd.f32 0.0, %v2210
      %v2212 = vpop.f32.mrf.mxu0
      %v2213 = vpop.f32.mrf.mxu0
      %v2214 = vadd.f32 0.0, %v2213
      %v2215 = vpop.f32.mrf.mxu0
      %2216 = vmatprep.mubr.bf16.mxu0 0
      %2217 = vmatmul.mubr.bf16.gmra.mxu0 %v2121
      %v2218 = vpop.f32.mrf.mxu0
      %v2219 = vadd.f32 0.0, %v2218
      %v2220 = vpop.f32.mrf.mxu0
      %v2221 = vpop.f32.mrf.mxu0
      %v2222 = vadd.f32 0.0, %v2221
      %v2223 = vpop.f32.mrf.mxu0
      %2224 = vmatprep.mubr.bf16.mxu0 0
      %2225 = vmatmul.mubr.bf16.gmra.mxu0 %v2122
      %v2226 = vpop.f32.mrf.mxu0
      %v2227 = vadd.f32 0.0, %v2226
      %v2228 = vpop.f32.mrf.mxu0
      %v2229 = vpop.f32.mrf.mxu0
      %v2230 = vadd.f32 0.0, %v2229
      %v2231 = vpop.f32.mrf.mxu0
      %2232 = vmatprep.mubr.bf16.mxu0 0
      %2233 = vmatmul.mubr.bf16.gmra.mxu0 %v2123
      %v2234 = vpop.f32.mrf.mxu0
      %v2235 = vadd.f32 0.0, %v2234
      %v2236 = vpop.f32.mrf.mxu0
      %v2237 = vpop.f32.mrf.mxu0
      %v2238 = vadd.f32 0.0, %v2237
      %v2239 = vpop.f32.mrf.mxu0
      %2240 = vdwg.mxu0
      %v2241 = vadd.f32 %v2031, %v2211
      %v2242 = vadd.f32 %v2032, %v2214
      %v2243 = vadd.f32 %v2033, %v2219
      %v2244 = vadd.f32 %v2034, %v2222
      %v2245 = vadd.f32 %v2035, %v2227
      %v2246 = vadd.f32 %v2036, %v2230
      %v2247 = vadd.f32 %v2037, %v2235
      %v2248 = vadd.f32 %v2038, %v2238
      %v2249 = vadd.f32 %v2241, %v2242
      %v2250 = vadd.f32 %v2249, %v2243
      %v2251 = vadd.f32 %v2250, %v2244
      %v2252 = vadd.f32 %v2251, %v2245
      %v2253 = vadd.f32 %v2252, %v2246
      %v2254 = vadd.f32 %v2253, %v2247
      %v2255 = vadd.f32 %v2254, %v2248
      %v2256 = vrot.slane %v2255, 4
      %v2257 = vadd.f32 %v2255, %v2256
      %v2258 = vrot.slane %v2257, 2
      %v2259 = vadd.f32 %v2257, %v2258
      %v2260 = vrot.slane %v2259, 1
      %v2261 = vadd.f32 %v2259, %v2260
      %v2262 = vmul.f32 %v2241, %v2241
      %v2263 = vmul.f32 %v2242, %v2242
      %v2264 = vmul.f32 %v2243, %v2243
      %v2265 = vmul.f32 %v2244, %v2244
      %v2266 = vmul.f32 %v2245, %v2245
      %v2267 = vmul.f32 %v2246, %v2246
      %v2268 = vmul.f32 %v2247, %v2247
      %v2269 = vmul.f32 %v2248, %v2248
      %v2270 = vadd.f32 %v2262, %v2263
      %v2271 = vadd.f32 %v2270, %v2264
      %v2272 = vadd.f32 %v2271, %v2265
      %v2273 = vadd.f32 %v2272, %v2266
      %v2274 = vadd.f32 %v2273, %v2267
      %v2275 = vadd.f32 %v2274, %v2268
      %v2276 = vadd.f32 %v2275, %v2269
      %v2277 = vrot.slane %v2276, 4
      %v2278 = vadd.f32 %v2276, %v2277
      %v2279 = vrot.slane %v2278, 2
      %v2280 = vadd.f32 %v2278, %v2279
      %v2281 = vrot.slane %v2280, 1
      %v2282 = vadd.f32 %v2280, %v2281
      %v2283 = vmul.f32 %v2261, 0.015625
      %v2284 = vmul.f32 %v2282, 0.015625
      %v2285 = vmul.f32 %v2283, %v2283
      %v2286 = vsub.f32 %v2284, %v2285
      %v2287 = vmax.f32 %v2286, 0.0
      %v2288 = vld [vmem:[%s2] sm:$0x1]
      %v2289 = vadd.f32 %v2287, 1e-05
      %v2290 = vrsqrt.pop %v2289
      %v2291 = vmul.f32 %v2288, %v2290
      %v2292 = vld [vmem:[%s3] sm:$0x1]
      %v2293 = vmul.f32 %v2283, %v2291
      %v2294 = vsub.f32 %v2292, %v2293
      %v2296 = vlaneseq
      %v2297 = vshrl.u32 %v2296, 7
      %v2298 = vsub.s32 0, %v2297
      %v2299 = vrot.slane %v2291, %v2298
      %v2301 = vmul.f32 %v2241, %v2299
      %v2302 = vmul.f32 %v2242, %v2299
      %v2303 = vmul.f32 %v2243, %v2299
      %v2304 = vmul.f32 %v2244, %v2299
      %v2305 = vmul.f32 %v2245, %v2299
      %v2306 = vmul.f32 %v2246, %v2299
      %v2307 = vmul.f32 %v2247, %v2299
      %v2308 = vmul.f32 %v2248, %v2299
      %v2310 = vlaneseq
      %v2311 = vshrl.u32 %v2310, 7
      %v2312 = vsub.s32 0, %v2311
      %v2313 = vrot.slane %v2294, %v2312
      %v2315 = vadd.f32 %v2301, %v2313
      %v2316 = vadd.f32 %v2302, %v2313
      %v2317 = vadd.f32 %v2303, %v2313
      %v2318 = vadd.f32 %v2304, %v2313
      %v2319 = vadd.f32 %v2305, %v2313
      %v2320 = vadd.f32 %v2306, %v2313
      %v2321 = vadd.f32 %v2307, %v2313
      %v2322 = vadd.f32 %v2308, %v2313
      %vm2323 = vcmp.ge.f32.partialorder %v2315, 0.0
      %vm2324 = vcmp.ge.f32.partialorder %v2316, 0.0
      %vm2325 = vcmp.ge.f32.partialorder %v2317, 0.0
      %vm2326 = vcmp.ge.f32.partialorder %v2318, 0.0
      %vm2327 = vcmp.ge.f32.partialorder %v2319, 0.0
      %vm2328 = vcmp.ge.f32.partialorder %v2320, 0.0
      %vm2329 = vcmp.ge.f32.partialorder %v2321, 0.0
      %vm2330 = vcmp.ge.f32.partialorder %v2322, 0.0
      %v2331 = vmul.f32 %v2315, 0.01
      %v2332 = vmul.f32 %v2316, 0.01
      %v2333 = vmul.f32 %v2317, 0.01
      %v2334 = vmul.f32 %v2318, 0.01
      %v2335 = vmul.f32 %v2319, 0.01
      %v2336 = vmul.f32 %v2320, 0.01
      %v2337 = vmul.f32 %v2321, 0.01
      %v2338 = vmul.f32 %v2322, 0.01
      %v2339 = vsel %vm2323, %v2315, %v2331
      %v2340 = vsel %vm2324, %v2316, %v2332
      %v2341 = vsel %vm2325, %v2317, %v2333
      %v2342 = vsel %vm2326, %v2318, %v2334
      %v2343 = vsel %vm2327, %v2319, %v2335
      %v2344 = vsel %vm2328, %v2320, %v2336
      %v2345 = vsel %vm2329, %v2321, %v2337
      %v2346 = vsel %vm2330, %v2322, %v2338
      %2347 = vst [vmem:[#allocation2] sm:$0xf] 0
      %2348 = vst [vmem:[#allocation2 + $0x4] sm:$0x1] 0
      %2349 = vst [vmem:[#allocation2 + $0x8] sm:$0xf] 0
      %2350 = vst [vmem:[#allocation2 + $0xc] sm:$0x1] 0
      %2351 = vst [vmem:[#allocation2 + $0x10] sm:$0xf] 0
      %2352 = vst [vmem:[#allocation2 + $0x14] sm:$0x1] 0
      %2353 = vst [vmem:[#allocation2 + $0x18] sm:$0xf] 0
      %2354 = vst [vmem:[#allocation2 + $0x1c] sm:$0x1] 0
      %2355 = vst [vmem:[#allocation2 + $0x20] sm:$0xf] 0
      %2356 = vst [vmem:[#allocation2 + $0x24] sm:$0x1] 0
      %2357 = vst [vmem:[#allocation2 + $0x28] sm:$0xf] 0
      %2358 = vst [vmem:[#allocation2 + $0x2c] sm:$0x1] 0
      %2359 = vst [vmem:[#allocation2 + $0x30] sm:$0xf] 0
      %2360 = vst [vmem:[#allocation2 + $0x34] sm:$0x1] 0
      %2361 = vst [vmem:[#allocation2 + $0x38] sm:$0xf] 0
      %2362 = vst [vmem:[#allocation2 + $0x3c] sm:$0x1] 0
      %2363 = vst [vmem:[#allocation2 + $0x40] sm:$0xf] 0
      %2364 = vst [vmem:[#allocation2 + $0x44] sm:$0x1] 0
      %2365 = vst [vmem:[#allocation2 + $0x48] sm:$0xf] 0
      %2366 = vst [vmem:[#allocation2 + $0x4c] sm:$0x1] 0
      %v2367 = vpack.c.bf16 %v2339, %v2339
      %v2368 = vpack.c.bf16 %v2340, %v2340
      %v2369 = vpack.c.bf16 %v2341, %v2341
      %v2370 = vpack.c.bf16 %v2342, %v2342
      %v2371 = vpack.c.bf16 %v2343, %v2343
      %v2372 = vpack.c.bf16 %v2344, %v2344
      %v2373 = vpack.c.bf16 %v2345, %v2345
      %v2374 = vpack.c.bf16 %v2346, %v2346
      %v2383 = vunpack.c.l.b16 %v2367
      %v2384 = vunpack.c.l.b16 %v2368
      %v2385 = vunpack.c.l.b16 %v2369
      %v2386 = vunpack.c.l.b16 %v2370
      %v2387 = vunpack.c.l.b16 %v2371
      %v2388 = vunpack.c.l.b16 %v2372
      %v2389 = vunpack.c.l.b16 %v2373
      %v2390 = vunpack.c.l.b16 %v2374
      %v2391 = vpack.c.b16 %v2383, %v2383
      %v2392 = vpack.c.b16 %v2384, %v2384
      %v2393 = vpack.c.b16 %v2385, %v2385
      %v2394 = vpack.c.b16 %v2386, %v2386
      %v2395 = vpack.c.b16 %v2387, %v2387
      %v2396 = vpack.c.b16 %v2388, %v2388
      %v2397 = vpack.c.b16 %v2389, %v2389
      %v2398 = vpack.c.b16 %v2390, %v2390
      %v2400 = vshrl.u32 %v2391, 16
      %v2402 = vrot.slane %v2400, 7
      %v2403 = vshll.u32 %v2391, 16
      %v2405 = vor.u32 %v2402, %v2403
      %v2406 = vrot.slane %v2402, 4
      %v2408 = vshrl.u32 %v2392, 16
      %v2410 = vrot.slane %v2408, 7
      %v2411 = vshll.u32 %v2392, 16
      %v2413 = vor.u32 %v2410, %v2411
      %v2414 = vrot.slane %v2410, 4
      %v2416 = vshrl.u32 %v2393, 16
      %v2418 = vrot.slane %v2416, 7
      %v2419 = vshll.u32 %v2393, 16
      %v2421 = vor.u32 %v2418, %v2419
      %v2422 = vrot.slane %v2418, 4
      %v2424 = vshrl.u32 %v2394, 16
      %v2426 = vrot.slane %v2424, 7
      %v2427 = vshll.u32 %v2394, 16
      %v2429 = vor.u32 %v2426, %v2427
      %v2430 = vrot.slane %v2426, 4
      %v2432 = vshrl.u32 %v2395, 16
      %v2434 = vrot.slane %v2432, 7
      %v2435 = vshll.u32 %v2395, 16
      %v2437 = vor.u32 %v2434, %v2435
      %v2438 = vrot.slane %v2434, 4
      %v2440 = vshrl.u32 %v2396, 16
      %v2442 = vrot.slane %v2440, 7
      %v2443 = vshll.u32 %v2396, 16
      %v2445 = vor.u32 %v2442, %v2443
      %v2446 = vrot.slane %v2442, 4
      %v2448 = vshrl.u32 %v2397, 16
      %v2450 = vrot.slane %v2448, 7
      %v2451 = vshll.u32 %v2397, 16
      %v2453 = vor.u32 %v2450, %v2451
      %v2454 = vrot.slane %v2450, 4
      %v2456 = vshrl.u32 %v2398, 16
      %v2458 = vrot.slane %v2456, 7
      %v2459 = vshll.u32 %v2398, 16
      %v2461 = vor.u32 %v2458, %v2459
      %v2462 = vrot.slane %v2458, 4
      %s2479 = scalar_lea.vmem [#allocation2], 8
      %vm2480 = vcmask 1043456
      %vm2481 = vsmask.f32 7938
      %vm2482 = vmand %vm2480, %vm2481
      %v2483 = vld [vmem:[%s2479] sm:$0xf]
      %v2484 = vsel %vm2482, %v2405, %v2483
      %2485 = vst [vmem:[%s2479] sm:$0xf] %v2484
      %vm2486 = vcmask 1040384
      %vm2487 = vsmask.f32 256
      %vm2488 = vmand %vm2486, %vm2487
      %v2489 = vld [vmem:[%s2479 + $0x4] sm:$0x1]
      %v2490 = vsel %vm2488, %v2406, %v2489
      %2491 = vst [vmem:[%s2479 + $0x4] sm:$0x1] %v2490
      %v2492 = vld [vmem:[%s2479 + $0x8] sm:$0xf]
      %v2493 = vsel %vm2482, %v2413, %v2492
      %2494 = vst [vmem:[%s2479 + $0x8] sm:$0xf] %v2493
      %v2495 = vld [vmem:[%s2479 + $0xc] sm:$0x1]
      %v2496 = vsel %vm2488, %v2414, %v2495
      %2497 = vst [vmem:[%s2479 + $0xc] sm:$0x1] %v2496
      %v2498 = vld [vmem:[%s2479 + $0x10] sm:$0xf]
      %v2499 = vsel %vm2482, %v2421, %v2498
      %2500 = vst [vmem:[%s2479 + $0x10] sm:$0xf] %v2499
      %v2501 = vld [vmem:[%s2479 + $0x14] sm:$0x1]
      %v2502 = vsel %vm2488, %v2422, %v2501
      %2503 = vst [vmem:[%s2479 + $0x14] sm:$0x1] %v2502
      %v2504 = vld [vmem:[%s2479 + $0x18] sm:$0xf]
      %v2505 = vsel %vm2482, %v2429, %v2504
      %2506 = vst [vmem:[%s2479 + $0x18] sm:$0xf] %v2505
      %v2507 = vld [vmem:[%s2479 + $0x1c] sm:$0x1]
      %v2508 = vsel %vm2488, %v2430, %v2507
      %2509 = vst [vmem:[%s2479 + $0x1c] sm:$0x1] %v2508
      %v2510 = vld [vmem:[%s2479 + $0x20] sm:$0xf]
      %v2511 = vsel %vm2482, %v2437, %v2510
      %2512 = vst [vmem:[%s2479 + $0x20] sm:$0xf] %v2511
      %v2513 = vld [vmem:[%s2479 + $0x24] sm:$0x1]
      %v2514 = vsel %vm2488, %v2438, %v2513
      %2515 = vst [vmem:[%s2479 + $0x24] sm:$0x1] %v2514
      %v2516 = vld [vmem:[%s2479 + $0x28] sm:$0xf]
      %v2517 = vsel %vm2482, %v2445, %v2516
      %2518 = vst [vmem:[%s2479 + $0x28] sm:$0xf] %v2517
      %v2519 = vld [vmem:[%s2479 + $0x2c] sm:$0x1]
      %v2520 = vsel %vm2488, %v2446, %v2519
      %2521 = vst [vmem:[%s2479 + $0x2c] sm:$0x1] %v2520
      %v2522 = vld [vmem:[%s2479 + $0x30] sm:$0xf]
      %v2523 = vsel %vm2482, %v2453, %v2522
      %2524 = vst [vmem:[%s2479 + $0x30] sm:$0xf] %v2523
      %v2525 = vld [vmem:[%s2479 + $0x34] sm:$0x1]
      %v2526 = vsel %vm2488, %v2454, %v2525
      %2527 = vst [vmem:[%s2479 + $0x34] sm:$0x1] %v2526
      %v2528 = vld [vmem:[%s2479 + $0x38] sm:$0xf]
      %v2529 = vsel %vm2482, %v2461, %v2528
      %2530 = vst [vmem:[%s2479 + $0x38] sm:$0xf] %v2529
      %v2531 = vld [vmem:[%s2479 + $0x3c] sm:$0x1]
      %v2532 = vsel %vm2488, %v2462, %v2531
      %2533 = vst [vmem:[%s2479 + $0x3c] sm:$0x1] %v2532
      %v2534 = vld [vmem:[#allocation2] sm:$0xf]
      %v2535 = vld [vmem:[#allocation2 + $0x8] sm:$0xf]
      %v2536 = vld [vmem:[#allocation2 + $0x10] sm:$0xf]
      %v2537 = vld [vmem:[#allocation2 + $0x18] sm:$0xf]
      %v2538 = vld [vmem:[#allocation2 + $0x20] sm:$0xf]
      %v2539 = vld [vmem:[#allocation2 + $0x28] sm:$0xf]
      %v2540 = vld [vmem:[#allocation2 + $0x30] sm:$0xf]
      %v2541 = vld [vmem:[#allocation2 + $0x38] sm:$0xf]
      %v2542 = vld [vmem:[%s4] sm:$0xf]
      %v2543 = vld [vmem:[%s4 + $0x4] sm:$0xf]
      %v2544 = vld [vmem:[%s4 + $0x8] sm:$0xf]
      %v2545 = vld [vmem:[%s4 + $0xc] sm:$0xf]
      %v2546 = vld [vmem:[%s4 + $0x10] sm:$0xf]
      %v2547 = vld [vmem:[%s4 + $0x14] sm:$0xf]
      %v2548 = vld [vmem:[%s4 + $0x18] sm:$0xf]
      %v2549 = vld [vmem:[%s4 + $0x1c] sm:$0xf]
      %v2550 = vld [vmem:[%s4 + $0x20] sm:$0xf]
      %v2551 = vld [vmem:[%s4 + $0x24] sm:$0xf]
      %v2552 = vld [vmem:[%s4 + $0x28] sm:$0xf]
      %v2553 = vld [vmem:[%s4 + $0x2c] sm:$0xf]
      %v2554 = vld [vmem:[%s4 + $0x30] sm:$0xf]
      %v2555 = vld [vmem:[%s4 + $0x34] sm:$0xf]
      %v2556 = vld [vmem:[%s4 + $0x38] sm:$0xf]
      %v2557 = vld [vmem:[%s4 + $0x3c] sm:$0xf]
      %v2558 = vld [vmem:[#allocation2 + $0x4] sm:$0x1]
      %v2559 = vld [vmem:[#allocation2 + $0xc] sm:$0x1]
      %v2560 = vld [vmem:[#allocation2 + $0x14] sm:$0x1]
      %v2561 = vld [vmem:[#allocation2 + $0x1c] sm:$0x1]
      %v2562 = vld [vmem:[#allocation2 + $0x24] sm:$0x1]
      %v2563 = vld [vmem:[#allocation2 + $0x2c] sm:$0x1]
      %v2564 = vld [vmem:[#allocation2 + $0x34] sm:$0x1]
      %v2565 = vld [vmem:[#allocation2 + $0x3c] sm:$0x1]
      %v2567 = vshrl.u32 %v2534, 16
      %v2569 = vrot.slane %v2567, 4
      %v2570 = vshll.u32 %v2534, 16
      %v2572 = vrot.slane %v2570, 5
      %v2573 = vor.u32 %v2569, %v2572
      %v2574 = vrot.slane %v2573, 4
      %v2576 = vshll.u32 %v2558, 16
      %v2578 = vrot.slane %v2576, 5
      %v2579 = vsel %vm314, %v2574, %v2578
      %v2581 = vshrl.u32 %v2535, 16
      %v2583 = vrot.slane %v2581, 4
      %v2584 = vshll.u32 %v2535, 16
      %v2586 = vrot.slane %v2584, 5
      %v2587 = vor.u32 %v2583, %v2586
      %v2588 = vrot.slane %v2587, 4
      %v2590 = vshll.u32 %v2559, 16
      %v2592 = vrot.slane %v2590, 5
      %v2593 = vsel %vm314, %v2588, %v2592
      %v2595 = vshrl.u32 %v2536, 16
      %v2597 = vrot.slane %v2595, 4
      %v2598 = vshll.u32 %v2536, 16
      %v2600 = vrot.slane %v2598, 5
      %v2601 = vor.u32 %v2597, %v2600
      %v2602 = vrot.slane %v2601, 4
      %v2604 = vshll.u32 %v2560, 16
      %v2606 = vrot.slane %v2604, 5
      %v2607 = vsel %vm314, %v2602, %v2606
      %v2609 = vshrl.u32 %v2537, 16
      %v2611 = vrot.slane %v2609, 4
      %v2612 = vshll.u32 %v2537, 16
      %v2614 = vrot.slane %v2612, 5
      %v2615 = vor.u32 %v2611, %v2614
      %v2616 = vrot.slane %v2615, 4
      %v2618 = vshll.u32 %v2561, 16
      %v2620 = vrot.slane %v2618, 5
      %v2621 = vsel %vm314, %v2616, %v2620
      %v2623 = vshrl.u32 %v2538, 16
      %v2625 = vrot.slane %v2623, 4
      %v2626 = vshll.u32 %v2538, 16
      %v2628 = vrot.slane %v2626, 5
      %v2629 = vor.u32 %v2625, %v2628
      %v2630 = vrot.slane %v2629, 4
      %v2632 = vshll.u32 %v2562, 16
      %v2634 = vrot.slane %v2632, 5
      %v2635 = vsel %vm314, %v2630, %v2634
      %v2637 = vshrl.u32 %v2539, 16
      %v2639 = vrot.slane %v2637, 4
      %v2640 = vshll.u32 %v2539, 16
      %v2642 = vrot.slane %v2640, 5
      %v2643 = vor.u32 %v2639, %v2642
      %v2644 = vrot.slane %v2643, 4
      %v2646 = vshll.u32 %v2563, 16
      %v2648 = vrot.slane %v2646, 5
      %v2649 = vsel %vm314, %v2644, %v2648
      %v2651 = vshrl.u32 %v2540, 16
      %v2653 = vrot.slane %v2651, 4
      %v2654 = vshll.u32 %v2540, 16
      %v2656 = vrot.slane %v2654, 5
      %v2657 = vor.u32 %v2653, %v2656
      %v2658 = vrot.slane %v2657, 4
      %v2660 = vshll.u32 %v2564, 16
      %v2662 = vrot.slane %v2660, 5
      %v2663 = vsel %vm314, %v2658, %v2662
      %v2665 = vshrl.u32 %v2541, 16
      %v2667 = vrot.slane %v2665, 4
      %v2668 = vshll.u32 %v2541, 16
      %v2670 = vrot.slane %v2668, 5
      %v2671 = vor.u32 %v2667, %v2670
      %v2672 = vrot.slane %v2671, 4
      %v2674 = vshll.u32 %v2565, 16
      %v2676 = vrot.slane %v2674, 5
      %v2677 = vsel %vm314, %v2672, %v2676
      %s2678 = scalar_lea.vmem %s4, 64
      %v2679 = vld [vmem:[%s2678] sm:$0xf]
      %v2680 = vld [vmem:[%s2678 + $0x4] sm:$0xf]
      %v2681 = vld [vmem:[%s2678 + $0x8] sm:$0xf]
      %v2682 = vld [vmem:[%s2678 + $0xc] sm:$0xf]
      %v2683 = vld [vmem:[%s2678 + $0x10] sm:$0xf]
      %v2684 = vld [vmem:[%s2678 + $0x14] sm:$0xf]
      %v2685 = vld [vmem:[%s2678 + $0x18] sm:$0xf]
      %v2686 = vld [vmem:[%s2678 + $0x1c] sm:$0xf]
      %v2687 = vld [vmem:[%s2678 + $0x20] sm:$0xf]
      %v2688 = vld [vmem:[%s2678 + $0x24] sm:$0xf]
      %v2689 = vld [vmem:[%s2678 + $0x28] sm:$0xf]
      %v2690 = vld [vmem:[%s2678 + $0x2c] sm:$0xf]
      %v2691 = vld [vmem:[%s2678 + $0x30] sm:$0xf]
      %v2692 = vld [vmem:[%s2678 + $0x34] sm:$0xf]
      %v2693 = vld [vmem:[%s2678 + $0x38] sm:$0xf]
      %v2694 = vld [vmem:[%s2678 + $0x3c] sm:$0xf]
      %v2695 = vunpack.c.l.b16 %v2579
      %v2696 = vunpack.c.l.b16 %v2593
      %v2697 = vunpack.c.l.b16 %v2607
      %v2698 = vunpack.c.l.b16 %v2621
      %v2699 = vunpack.c.l.b16 %v2635
      %v2700 = vunpack.c.l.b16 %v2649
      %v2701 = vunpack.c.l.b16 %v2663
      %v2702 = vunpack.c.l.b16 %v2677
      %v2703 = vpack.c.b16 %v2696, %v2695
      %v2704 = vpack.c.b16 %v2698, %v2697
      %v2705 = vpack.c.b16 %v2700, %v2699
      %v2706 = vpack.c.b16 %v2702, %v2701
      %v2727 = vunpack.c.l.b16 %v2679
      %v2728 = vunpack.c.l.b16 %v2680
      %v2729 = vunpack.c.l.b16 %v2681
      %v2730 = vunpack.c.l.b16 %v2682
      %v2731 = vunpack.c.l.b16 %v2683
      %v2732 = vunpack.c.l.b16 %v2684
      %v2733 = vunpack.c.l.b16 %v2685
      %v2734 = vunpack.c.l.b16 %v2686
      %v2735 = vunpack.c.l.b16 %v2687
      %v2736 = vunpack.c.l.b16 %v2688
      %v2737 = vunpack.c.l.b16 %v2689
      %v2738 = vunpack.c.l.b16 %v2690
      %v2739 = vunpack.c.l.b16 %v2691
      %v2740 = vunpack.c.l.b16 %v2692
      %v2741 = vunpack.c.l.b16 %v2693
      %v2742 = vunpack.c.l.b16 %v2694
      %v2743 = vpack.c.b16 %v2728, %v2727
      %v2744 = vpack.c.b16 %v2730, %v2729
      %v2745 = vpack.c.b16 %v2732, %v2731
      %v2746 = vpack.c.b16 %v2734, %v2733
      %v2747 = vpack.c.b16 %v2736, %v2735
      %v2748 = vpack.c.b16 %v2738, %v2737
      %v2749 = vpack.c.b16 %v2740, %v2739
      %v2750 = vpack.c.b16 %v2742, %v2741
      %2759 = vmatprep.subr.bf16.mxu0 0
      %2760 = vmatpush1.bf16.msra.mxu0 %v2750
      %2761 = vmatprep.subr.bf16.mxu0 0
      %2762 = vmatpush1.bf16.msra.mxu0 %v2749
      %2763 = vmatprep.subr.bf16.mxu0 0
      %2764 = vmatpush1.bf16.msra.mxu0 %v2748
      %2765 = vmatprep.subr.bf16.mxu0 0
      %2766 = vmatpush1.bf16.msra.mxu0 %v2747
      %2767 = vmatprep.subr.bf16.mxu0 0
      %2768 = vmatpush1.bf16.msra.mxu0 %v2746
      %2769 = vmatprep.subr.bf16.mxu0 0
      %2770 = vmatpush1.bf16.msra.mxu0 %v2745
      %2771 = vmatprep.subr.bf16.mxu0 0
      %2772 = vmatpush1.bf16.msra.mxu0 %v2744
      %2773 = vmatprep.subr.bf16.mxu0 0
      %2774 = vmatpush1.bf16.msra.mxu0 %v2743
      %2775 = vmatprep.subr.bf16.mxu0 0
      %2776 = vmatpush2.bf16.msra.mxu0 0
      %2777 = vmatprep.subr.bf16.mxu0 0
      %2778 = vmatpush2.bf16.msra.mxu0 0
      %2779 = vmatprep.subr.bf16.mxu0 0
      %2780 = vmatpush2.bf16.msra.mxu0 0
      %2781 = vmatprep.subr.bf16.mxu0 0
      %2782 = vmatpush2.bf16.msra.mxu0 0
      %2783 = vmatprep.subr.bf16.mxu0 0
      %2784 = vmatpush2.bf16.msra.mxu0 0
      %2785 = vmatprep.subr.bf16.mxu0 0
      %2786 = vmatpush2.bf16.msra.mxu0 0
      %2787 = vmatprep.subr.bf16.mxu0 0
      %2788 = vmatpush2.bf16.msra.mxu0 0
      %2789 = vmatprep.subr.bf16.mxu0 0
      %2790 = vmatpush2.bf16.msra.mxu0 0
      %2791 = vmatprep.mubr.bf16.mxu0 0
      %2792 = vmatmul.mubr.bf16.gmra.mxu0 %v2703
      %v2793 = vpop.f32.mrf.mxu0
      %v2794 = vadd.f32 0.0, %v2793
      %v2795 = vpop.f32.mrf.mxu0
      %v2796 = vpop.f32.mrf.mxu0
      %v2797 = vadd.f32 0.0, %v2796
      %v2798 = vpop.f32.mrf.mxu0
      %2799 = vmatprep.mubr.bf16.mxu0 0
      %2800 = vmatmul.mubr.bf16.gmra.mxu0 %v2704
      %v2801 = vpop.f32.mrf.mxu0
      %v2802 = vadd.f32 0.0, %v2801
      %v2803 = vpop.f32.mrf.mxu0
      %v2804 = vpop.f32.mrf.mxu0
      %v2805 = vadd.f32 0.0, %v2804
      %v2806 = vpop.f32.mrf.mxu0
      %2807 = vmatprep.mubr.bf16.mxu0 0
      %2808 = vmatmul.mubr.bf16.gmra.mxu0 %v2705
      %v2809 = vpop.f32.mrf.mxu0
      %v2810 = vadd.f32 0.0, %v2809
      %v2811 = vpop.f32.mrf.mxu0
      %v2812 = vpop.f32.mrf.mxu0
      %v2813 = vadd.f32 0.0, %v2812
      %v2814 = vpop.f32.mrf.mxu0
      %2815 = vmatprep.mubr.bf16.mxu0 0
      %2816 = vmatmul.mubr.bf16.gmra.mxu0 %v2706
      %v2817 = vpop.f32.mrf.mxu0
      %v2818 = vadd.f32 0.0, %v2817
      %v2819 = vpop.f32.mrf.mxu0
      %v2820 = vpop.f32.mrf.mxu0
      %v2821 = vadd.f32 0.0, %v2820
      %v2822 = vpop.f32.mrf.mxu0
      %2823 = vdwg.mxu0
      %v2832 = vunpack.c.l.b16 %v2534
      %v2833 = vunpack.c.l.b16 %v2535
      %v2834 = vunpack.c.l.b16 %v2536
      %v2835 = vunpack.c.l.b16 %v2537
      %v2836 = vunpack.c.l.b16 %v2538
      %v2837 = vunpack.c.l.b16 %v2539
      %v2838 = vunpack.c.l.b16 %v2540
      %v2839 = vunpack.c.l.b16 %v2541
      %v2840 = vpack.c.b16 %v2833, %v2832
      %v2841 = vpack.c.b16 %v2835, %v2834
      %v2842 = vpack.c.b16 %v2837, %v2836
      %v2843 = vpack.c.b16 %v2839, %v2838
      %v2864 = vunpack.c.l.b16 %v2542
      %v2865 = vunpack.c.l.b16 %v2543
      %v2866 = vunpack.c.l.b16 %v2544
      %v2867 = vunpack.c.l.b16 %v2545
      %v2868 = vunpack.c.l.b16 %v2546
      %v2869 = vunpack.c.l.b16 %v2547
      %v2870 = vunpack.c.l.b16 %v2548
      %v2871 = vunpack.c.l.b16 %v2549
      %v2872 = vunpack.c.l.b16 %v2550
      %v2873 = vunpack.c.l.b16 %v2551
      %v2874 = vunpack.c.l.b16 %v2552
      %v2875 = vunpack.c.l.b16 %v2553
      %v2876 = vunpack.c.l.b16 %v2554
      %v2877 = vunpack.c.l.b16 %v2555
      %v2878 = vunpack.c.l.b16 %v2556
      %v2879 = vunpack.c.l.b16 %v2557
      %v2880 = vpack.c.b16 %v2865, %v2864
      %v2881 = vpack.c.b16 %v2867, %v2866
      %v2882 = vpack.c.b16 %v2869, %v2868
      %v2883 = vpack.c.b16 %v2871, %v2870
      %v2884 = vpack.c.b16 %v2873, %v2872
      %v2885 = vpack.c.b16 %v2875, %v2874
      %v2886 = vpack.c.b16 %v2877, %v2876
      %v2887 = vpack.c.b16 %v2879, %v2878
      %2896 = vmatprep.subr.bf16.mxu0 0
      %2897 = vmatpush1.bf16.msra.mxu0 %v2887
      %2898 = vmatprep.subr.bf16.mxu0 0
      %2899 = vmatpush1.bf16.msra.mxu0 %v2886
      %2900 = vmatprep.subr.bf16.mxu0 0
      %2901 = vmatpush1.bf16.msra.mxu0 %v2885
      %2902 = vmatprep.subr.bf16.mxu0 0
      %2903 = vmatpush1.bf16.msra.mxu0 %v2884
      %2904 = vmatprep.subr.bf16.mxu0 0
      %2905 = vmatpush1.bf16.msra.mxu0 %v2883
      %2906 = vmatprep.subr.bf16.mxu0 0
      %2907 = vmatpush1.bf16.msra.mxu0 %v2882
      %2908 = vmatprep.subr.bf16.mxu0 0
      %2909 = vmatpush1.bf16.msra.mxu0 %v2881
      %2910 = vmatprep.subr.bf16.mxu0 0
      %2911 = vmatpush1.bf16.msra.mxu0 %v2880
      %2912 = vmatprep.subr.bf16.mxu0 0
      %2913 = vmatpush2.bf16.msra.mxu0 0
      %2914 = vmatprep.subr.bf16.mxu0 0
      %2915 = vmatpush2.bf16.msra.mxu0 0
      %2916 = vmatprep.subr.bf16.mxu0 0
      %2917 = vmatpush2.bf16.msra.mxu0 0
      %2918 = vmatprep.subr.bf16.mxu0 0
      %2919 = vmatpush2.bf16.msra.mxu0 0
      %2920 = vmatprep.subr.bf16.mxu0 0
      %2921 = vmatpush2.bf16.msra.mxu0 0
      %2922 = vmatprep.subr.bf16.mxu0 0
      %2923 = vmatpush2.bf16.msra.mxu0 0
      %2924 = vmatprep.subr.bf16.mxu0 0
      %2925 = vmatpush2.bf16.msra.mxu0 0
      %2926 = vmatprep.subr.bf16.mxu0 0
      %2927 = vmatpush2.bf16.msra.mxu0 0
      %2928 = vmatprep.mubr.bf16.mxu0 0
      %2929 = vmatmul.mubr.bf16.gmra.mxu0 %v2840
      %v2930 = vpop.f32.mrf.mxu0
      %v2931 = vadd.f32 %v2794, %v2930
      %v2932 = vpop.f32.mrf.mxu0
      %v2933 = vpop.f32.mrf.mxu0
      %v2934 = vadd.f32 %v2797, %v2933
      %v2935 = vpop.f32.mrf.mxu0
      %2936 = vmatprep.mubr.bf16.mxu0 0
      %2937 = vmatmul.mubr.bf16.gmra.mxu0 %v2841
      %v2938 = vpop.f32.mrf.mxu0
      %v2939 = vadd.f32 %v2802, %v2938
      %v2940 = vpop.f32.mrf.mxu0
      %v2941 = vpop.f32.mrf.mxu0
      %v2942 = vadd.f32 %v2805, %v2941
      %v2943 = vpop.f32.mrf.mxu0
      %2944 = vmatprep.mubr.bf16.mxu0 0
      %2945 = vmatmul.mubr.bf16.gmra.mxu0 %v2842
      %v2946 = vpop.f32.mrf.mxu0
      %v2947 = vadd.f32 %v2810, %v2946
      %v2948 = vpop.f32.mrf.mxu0
      %v2949 = vpop.f32.mrf.mxu0
      %v2950 = vadd.f32 %v2813, %v2949
      %v2951 = vpop.f32.mrf.mxu0
      %2952 = vmatprep.mubr.bf16.mxu0 0
      %2953 = vmatmul.mubr.bf16.gmra.mxu0 %v2843
      %v2954 = vpop.f32.mrf.mxu0
      %v2955 = vadd.f32 %v2818, %v2954
      %v2956 = vpop.f32.mrf.mxu0
      %v2957 = vpop.f32.mrf.mxu0
      %v2958 = vadd.f32 %v2821, %v2957
      %v2959 = vpop.f32.mrf.mxu0
      %2960 = vdwg.mxu0
      %v2961 = vld [vmem:[#allocation2] sm:$0xe]
      %v2962 = vld [vmem:[#allocation2 + $0x8] sm:$0xe]
      %v2963 = vld [vmem:[#allocation2 + $0x10] sm:$0xe]
      %v2964 = vld [vmem:[#allocation2 + $0x18] sm:$0xe]
      %v2965 = vld [vmem:[#allocation2 + $0x20] sm:$0xe]
      %v2966 = vld [vmem:[#allocation2 + $0x28] sm:$0xe]
      %v2967 = vld [vmem:[#allocation2 + $0x30] sm:$0xe]
      %v2968 = vld [vmem:[#allocation2 + $0x38] sm:$0xe]
      %v2985 = vrot.slane %v2961, 5
      %v2986 = vrot.slane %v2985, 4
      %v2987 = vrot.slane %v2558, 5
      %v2988 = vsel %vm736, %v2986, %v2987
      %v2989 = vrot.slane %v2962, 5
      %v2990 = vrot.slane %v2989, 4
      %v2991 = vrot.slane %v2559, 5
      %v2992 = vsel %vm736, %v2990, %v2991
      %v2993 = vrot.slane %v2963, 5
      %v2994 = vrot.slane %v2993, 4
      %v2995 = vrot.slane %v2560, 5
      %v2996 = vsel %vm736, %v2994, %v2995
      %v2997 = vrot.slane %v2964, 5
      %v2998 = vrot.slane %v2997, 4
      %v2999 = vrot.slane %v2561, 5
      %v3000 = vsel %vm736, %v2998, %v2999
      %v3001 = vrot.slane %v2965, 5
      %v3002 = vrot.slane %v3001, 4
      %v3003 = vrot.slane %v2562, 5
      %v3004 = vsel %vm736, %v3002, %v3003
      %v3005 = vrot.slane %v2966, 5
      %v3006 = vrot.slane %v3005, 4
      %v3007 = vrot.slane %v2563, 5
      %v3008 = vsel %vm736, %v3006, %v3007
      %v3009 = vrot.slane %v2967, 5
      %v3010 = vrot.slane %v3009, 4
      %v3011 = vrot.slane %v2564, 5
      %v3012 = vsel %vm736, %v3010, %v3011
      %v3013 = vrot.slane %v2968, 5
      %v3014 = vrot.slane %v3013, 4
      %v3015 = vrot.slane %v2565, 5
      %v3016 = vsel %vm736, %v3014, %v3015
      %s3017 = scalar_lea.vmem %s4, 128
      %v3018 = vld [vmem:[%s3017] sm:$0xf]
      %v3019 = vld [vmem:[%s3017 + $0x4] sm:$0xf]
      %v3020 = vld [vmem:[%s3017 + $0x8] sm:$0xf]
      %v3021 = vld [vmem:[%s3017 + $0xc] sm:$0xf]
      %v3022 = vld [vmem:[%s3017 + $0x10] sm:$0xf]
      %v3023 = vld [vmem:[%s3017 + $0x14] sm:$0xf]
      %v3024 = vld [vmem:[%s3017 + $0x18] sm:$0xf]
      %v3025 = vld [vmem:[%s3017 + $0x1c] sm:$0xf]
      %v3026 = vld [vmem:[%s3017 + $0x20] sm:$0xf]
      %v3027 = vld [vmem:[%s3017 + $0x24] sm:$0xf]
      %v3028 = vld [vmem:[%s3017 + $0x28] sm:$0xf]
      %v3029 = vld [vmem:[%s3017 + $0x2c] sm:$0xf]
      %v3030 = vld [vmem:[%s3017 + $0x30] sm:$0xf]
      %v3031 = vld [vmem:[%s3017 + $0x34] sm:$0xf]
      %v3032 = vld [vmem:[%s3017 + $0x38] sm:$0xf]
      %v3033 = vld [vmem:[%s3017 + $0x3c] sm:$0xf]
      %v3034 = vunpack.c.l.b16 %v2988
      %v3035 = vunpack.c.l.b16 %v2992
      %v3036 = vunpack.c.l.b16 %v2996
      %v3037 = vunpack.c.l.b16 %v3000
      %v3038 = vunpack.c.l.b16 %v3004
      %v3039 = vunpack.c.l.b16 %v3008
      %v3040 = vunpack.c.l.b16 %v3012
      %v3041 = vunpack.c.l.b16 %v3016
      %v3042 = vpack.c.b16 %v3035, %v3034
      %v3043 = vpack.c.b16 %v3037, %v3036
      %v3044 = vpack.c.b16 %v3039, %v3038
      %v3045 = vpack.c.b16 %v3041, %v3040
      %v3066 = vunpack.c.l.b16 %v3018
      %v3067 = vunpack.c.l.b16 %v3019
      %v3068 = vunpack.c.l.b16 %v3020
      %v3069 = vunpack.c.l.b16 %v3021
      %v3070 = vunpack.c.l.b16 %v3022
      %v3071 = vunpack.c.l.b16 %v3023
      %v3072 = vunpack.c.l.b16 %v3024
      %v3073 = vunpack.c.l.b16 %v3025
      %v3074 = vunpack.c.l.b16 %v3026
      %v3075 = vunpack.c.l.b16 %v3027
      %v3076 = vunpack.c.l.b16 %v3028
      %v3077 = vunpack.c.l.b16 %v3029
      %v3078 = vunpack.c.l.b16 %v3030
      %v3079 = vunpack.c.l.b16 %v3031
      %v3080 = vunpack.c.l.b16 %v3032
      %v3081 = vunpack.c.l.b16 %v3033
      %v3082 = vpack.c.b16 %v3067, %v3066
      %v3083 = vpack.c.b16 %v3069, %v3068
      %v3084 = vpack.c.b16 %v3071, %v3070
      %v3085 = vpack.c.b16 %v3073, %v3072
      %v3086 = vpack.c.b16 %v3075, %v3074
      %v3087 = vpack.c.b16 %v3077, %v3076
      %v3088 = vpack.c.b16 %v3079, %v3078
      %v3089 = vpack.c.b16 %v3081, %v3080
      %3098 = vmatprep.subr.bf16.mxu0 0
      %3099 = vmatpush1.bf16.msra.mxu0 %v3089
      %3100 = vmatprep.subr.bf16.mxu0 0
      %3101 = vmatpush1.bf16.msra.mxu0 %v3088
      %3102 = vmatprep.subr.bf16.mxu0 0
      %3103 = vmatpush1.bf16.msra.mxu0 %v3087
      %3104 = vmatprep.subr.bf16.mxu0 0
      %3105 = vmatpush1.bf16.msra.mxu0 %v3086
      %3106 = vmatprep.subr.bf16.mxu0 0
      %3107 = vmatpush1.bf16.msra.mxu0 %v3085
      %3108 = vmatprep.subr.bf16.mxu0 0
      %3109 = vmatpush1.bf16.msra.mxu0 %v3084
      %3110 = vmatprep.subr.bf16.mxu0 0
      %3111 = vmatpush1.bf16.msra.mxu0 %v3083
      %3112 = vmatprep.subr.bf16.mxu0 0
      %3113 = vmatpush1.bf16.msra.mxu0 %v3082
      %3114 = vmatprep.subr.bf16.mxu0 0
      %3115 = vmatpush2.bf16.msra.mxu0 0
      %3116 = vmatprep.subr.bf16.mxu0 0
      %3117 = vmatpush2.bf16.msra.mxu0 0
      %3118 = vmatprep.subr.bf16.mxu0 0
      %3119 = vmatpush2.bf16.msra.mxu0 0
      %3120 = vmatprep.subr.bf16.mxu0 0
      %3121 = vmatpush2.bf16.msra.mxu0 0
      %3122 = vmatprep.subr.bf16.mxu0 0
      %3123 = vmatpush2.bf16.msra.mxu0 0
      %3124 = vmatprep.subr.bf16.mxu0 0
      %3125 = vmatpush2.bf16.msra.mxu0 0
      %3126 = vmatprep.subr.bf16.mxu0 0
      %3127 = vmatpush2.bf16.msra.mxu0 0
      %3128 = vmatprep.subr.bf16.mxu0 0
      %3129 = vmatpush2.bf16.msra.mxu0 0
      %3130 = vmatprep.mubr.bf16.mxu0 0
      %3131 = vmatmul.mubr.bf16.gmra.mxu0 %v3042
      %v3132 = vpop.f32.mrf.mxu0
      %v3133 = vadd.f32 0.0, %v3132
      %v3134 = vpop.f32.mrf.mxu0
      %v3135 = vpop.f32.mrf.mxu0
      %v3136 = vadd.f32 0.0, %v3135
      %v3137 = vpop.f32.mrf.mxu0
      %3138 = vmatprep.mubr.bf16.mxu0 0
      %3139 = vmatmul.mubr.bf16.gmra.mxu0 %v3043
      %v3140 = vpop.f32.mrf.mxu0
      %v3141 = vadd.f32 0.0, %v3140
      %v3142 = vpop.f32.mrf.mxu0
      %v3143 = vpop.f32.mrf.mxu0
      %v3144 = vadd.f32 0.0, %v3143
      %v3145 = vpop.f32.mrf.mxu0
      %3146 = vmatprep.mubr.bf16.mxu0 0
      %3147 = vmatmul.mubr.bf16.gmra.mxu0 %v3044
      %v3148 = vpop.f32.mrf.mxu0
      %v3149 = vadd.f32 0.0, %v3148
      %v3150 = vpop.f32.mrf.mxu0
      %v3151 = vpop.f32.mrf.mxu0
      %v3152 = vadd.f32 0.0, %v3151
      %v3153 = vpop.f32.mrf.mxu0
      %3154 = vmatprep.mubr.bf16.mxu0 0
      %3155 = vmatmul.mubr.bf16.gmra.mxu0 %v3045
      %v3156 = vpop.f32.mrf.mxu0
      %v3157 = vadd.f32 0.0, %v3156
      %v3158 = vpop.f32.mrf.mxu0
      %v3159 = vpop.f32.mrf.mxu0
      %v3160 = vadd.f32 0.0, %v3159
      %v3161 = vpop.f32.mrf.mxu0
      %3162 = vdwg.mxu0
      %v3163 = vadd.f32 %v2931, %v3133
      %v3164 = vadd.f32 %v2934, %v3136
      %v3165 = vadd.f32 %v2939, %v3141
      %v3166 = vadd.f32 %v2942, %v3144
      %v3167 = vadd.f32 %v2947, %v3149
      %v3168 = vadd.f32 %v2950, %v3152
      %v3169 = vadd.f32 %v2955, %v3157
      %v3170 = vadd.f32 %v2958, %v3160
      %v3171 = vld [vmem:[%s2479] sm:$0xf]
      %v3172 = vld [vmem:[%s2479 + $0x8] sm:$0xf]
      %v3173 = vld [vmem:[%s2479 + $0x10] sm:$0xf]
      %v3174 = vld [vmem:[%s2479 + $0x18] sm:$0xf]
      %v3175 = vld [vmem:[%s2479 + $0x20] sm:$0xf]
      %v3176 = vld [vmem:[%s2479 + $0x28] sm:$0xf]
      %v3177 = vld [vmem:[%s2479 + $0x30] sm:$0xf]
      %v3178 = vld [vmem:[%s2479 + $0x38] sm:$0xf]
      %s3179 = scalar_lea.vmem %s4, 192
      %v3180 = vld [vmem:[%s3179] sm:$0xf]
      %v3181 = vld [vmem:[%s3179 + $0x4] sm:$0xf]
      %v3182 = vld [vmem:[%s3179 + $0x8] sm:$0xf]
      %v3183 = vld [vmem:[%s3179 + $0xc] sm:$0xf]
      %v3184 = vld [vmem:[%s3179 + $0x10] sm:$0xf]
      %v3185 = vld [vmem:[%s3179 + $0x14] sm:$0xf]
      %v3186 = vld [vmem:[%s3179 + $0x18] sm:$0xf]
      %v3187 = vld [vmem:[%s3179 + $0x1c] sm:$0xf]
      %v3188 = vld [vmem:[%s3179 + $0x20] sm:$0xf]
      %v3189 = vld [vmem:[%s3179 + $0x24] sm:$0xf]
      %v3190 = vld [vmem:[%s3179 + $0x28] sm:$0xf]
      %v3191 = vld [vmem:[%s3179 + $0x2c] sm:$0xf]
      %v3192 = vld [vmem:[%s3179 + $0x30] sm:$0xf]
      %v3193 = vld [vmem:[%s3179 + $0x34] sm:$0xf]
      %v3194 = vld [vmem:[%s3179 + $0x38] sm:$0xf]
      %v3195 = vld [vmem:[%s3179 + $0x3c] sm:$0xf]
      %v3204 = vunpack.c.l.b16 %v3171
      %v3205 = vunpack.c.l.b16 %v3172
      %v3206 = vunpack.c.l.b16 %v3173
      %v3207 = vunpack.c.l.b16 %v3174
      %v3208 = vunpack.c.l.b16 %v3175
      %v3209 = vunpack.c.l.b16 %v3176
      %v3210 = vunpack.c.l.b16 %v3177
      %v3211 = vunpack.c.l.b16 %v3178
      %v3212 = vpack.c.b16 %v3205, %v3204
      %v3213 = vpack.c.b16 %v3207, %v3206
      %v3214 = vpack.c.b16 %v3209, %v3208
      %v3215 = vpack.c.b16 %v3211, %v3210
      %v3236 = vunpack.c.l.b16 %v3180
      %v3237 = vunpack.c.l.b16 %v3181
      %v3238 = vunpack.c.l.b16 %v3182
      %v3239 = vunpack.c.l.b16 %v3183
      %v3240 = vunpack.c.l.b16 %v3184
      %v3241 = vunpack.c.l.b16 %v3185
      %v3242 = vunpack.c.l.b16 %v3186
      %v3243 = vunpack.c.l.b16 %v3187
      %v3244 = vunpack.c.l.b16 %v3188
      %v3245 = vunpack.c.l.b16 %v3189
      %v3246 = vunpack.c.l.b16 %v3190
      %v3247 = vunpack.c.l.b16 %v3191
      %v3248 = vunpack.c.l.b16 %v3192
      %v3249 = vunpack.c.l.b16 %v3193
      %v3250 = vunpack.c.l.b16 %v3194
      %v3251 = vunpack.c.l.b16 %v3195
      %v3252 = vpack.c.b16 %v3237, %v3236
      %v3253 = vpack.c.b16 %v3239, %v3238
      %v3254 = vpack.c.b16 %v3241, %v3240
      %v3255 = vpack.c.b16 %v3243, %v3242
      %v3256 = vpack.c.b16 %v3245, %v3244
      %v3257 = vpack.c.b16 %v3247, %v3246
      %v3258 = vpack.c.b16 %v3249, %v3248
      %v3259 = vpack.c.b16 %v3251, %v3250
      %3268 = vmatprep.subr.bf16.mxu0 0
      %3269 = vmatpush1.bf16.msra.mxu0 %v3259
      %3270 = vmatprep.subr.bf16.mxu0 0
      %3271 = vmatpush1.bf16.msra.mxu0 %v3258
      %3272 = vmatprep.subr.bf16.mxu0 0
      %3273 = vmatpush1.bf16.msra.mxu0 %v3257
      %3274 = vmatprep.subr.bf16.mxu0 0
      %3275 = vmatpush1.bf16.msra.mxu0 %v3256
      %3276 = vmatprep.subr.bf16.mxu0 0
      %3277 = vmatpush1.bf16.msra.mxu0 %v3255
      %3278 = vmatprep.subr.bf16.mxu0 0
      %3279 = vmatpush1.bf16.msra.mxu0 %v3254
      %3280 = vmatprep.subr.bf16.mxu0 0
      %3281 = vmatpush1.bf16.msra.mxu0 %v3253
      %3282 = vmatprep.subr.bf16.mxu0 0
      %3283 = vmatpush1.bf16.msra.mxu0 %v3252
      %3284 = vmatprep.subr.bf16.mxu0 0
      %3285 = vmatpush2.bf16.msra.mxu0 0
      %3286 = vmatprep.subr.bf16.mxu0 0
      %3287 = vmatpush2.bf16.msra.mxu0 0
      %3288 = vmatprep.subr.bf16.mxu0 0
      %3289 = vmatpush2.bf16.msra.mxu0 0
      %3290 = vmatprep.subr.bf16.mxu0 0
      %3291 = vmatpush2.bf16.msra.mxu0 0
      %3292 = vmatprep.subr.bf16.mxu0 0
      %3293 = vmatpush2.bf16.msra.mxu0 0
      %3294 = vmatprep.subr.bf16.mxu0 0
      %3295 = vmatpush2.bf16.msra.mxu0 0
      %3296 = vmatprep.subr.bf16.mxu0 0
      %3297 = vmatpush2.bf16.msra.mxu0 0
      %3298 = vmatprep.subr.bf16.mxu0 0
      %3299 = vmatpush2.bf16.msra.mxu0 0
      %3300 = vmatprep.mubr.bf16.mxu0 0
      %3301 = vmatmul.mubr.bf16.gmra.mxu0 %v3212
      %v3302 = vpop.f32.mrf.mxu0
      %v3303 = vadd.f32 0.0, %v3302
      %v3304 = vpop.f32.mrf.mxu0
      %v3305 = vpop.f32.mrf.mxu0
      %v3306 = vadd.f32 0.0, %v3305
      %v3307 = vpop.f32.mrf.mxu0
      %3308 = vmatprep.mubr.bf16.mxu0 0
      %3309 = vmatmul.mubr.bf16.gmra.mxu0 %v3213
      %v3310 = vpop.f32.mrf.mxu0
      %v3311 = vadd.f32 0.0, %v3310
      %v3312 = vpop.f32.mrf.mxu0
      %v3313 = vpop.f32.mrf.mxu0
      %v3314 = vadd.f32 0.0, %v3313
      %v3315 = vpop.f32.mrf.mxu0
      %3316 = vmatprep.mubr.bf16.mxu0 0
      %3317 = vmatmul.mubr.bf16.gmra.mxu0 %v3214
      %v3318 = vpop.f32.mrf.mxu0
      %v3319 = vadd.f32 0.0, %v3318
      %v3320 = vpop.f32.mrf.mxu0
      %v3321 = vpop.f32.mrf.mxu0
      %v3322 = vadd.f32 0.0, %v3321
      %v3323 = vpop.f32.mrf.mxu0
      %3324 = vmatprep.mubr.bf16.mxu0 0
      %3325 = vmatmul.mubr.bf16.gmra.mxu0 %v3215
      %v3326 = vpop.f32.mrf.mxu0
      %v3327 = vadd.f32 0.0, %v3326
      %v3328 = vpop.f32.mrf.mxu0
      %v3329 = vpop.f32.mrf.mxu0
      %v3330 = vadd.f32 0.0, %v3329
      %v3331 = vpop.f32.mrf.mxu0
      %3332 = vdwg.mxu0
      %v3333 = vadd.f32 %v3163, %v3303
      %v3334 = vadd.f32 %v3164, %v3306
      %v3335 = vadd.f32 %v3165, %v3311
      %v3336 = vadd.f32 %v3166, %v3314
      %v3337 = vadd.f32 %v3167, %v3319
      %v3338 = vadd.f32 %v3168, %v3322
      %v3339 = vadd.f32 %v3169, %v3327
      %v3340 = vadd.f32 %v3170, %v3330
      %v3341 = vld [vmem:[%s2479] sm:$0xf]
      %v3342 = vld [vmem:[%s2479 + $0x4] sm:$0x1]
      %v3343 = vld [vmem:[%s2479 + $0x8] sm:$0xf]
      %v3344 = vld [vmem:[%s2479 + $0xc] sm:$0x1]
      %v3345 = vld [vmem:[%s2479 + $0x10] sm:$0xf]
      %v3346 = vld [vmem:[%s2479 + $0x14] sm:$0x1]
      %v3347 = vld [vmem:[%s2479 + $0x18] sm:$0xf]
      %v3348 = vld [vmem:[%s2479 + $0x1c] sm:$0x1]
      %v3349 = vld [vmem:[%s2479 + $0x20] sm:$0xf]
      %v3350 = vld [vmem:[%s2479 + $0x24] sm:$0x1]
      %v3351 = vld [vmem:[%s2479 + $0x28] sm:$0xf]
      %v3352 = vld [vmem:[%s2479 + $0x2c] sm:$0x1]
      %v3353 = vld [vmem:[%s2479 + $0x30] sm:$0xf]
      %v3354 = vld [vmem:[%s2479 + $0x34] sm:$0x1]
      %v3355 = vld [vmem:[%s2479 + $0x38] sm:$0xf]
      %v3356 = vld [vmem:[%s2479 + $0x3c] sm:$0x1]
      %v3358 = vshrl.u32 %v3341, 16
      %v3360 = vrot.slane %v3358, 4
      %v3361 = vshll.u32 %v3341, 16
      %v3363 = vrot.slane %v3361, 5
      %v3364 = vor.u32 %v3360, %v3363
      %v3365 = vrot.slane %v3364, 4
      %v3367 = vshll.u32 %v3342, 16
      %v3369 = vrot.slane %v3367, 5
      %v3370 = vsel %vm314, %v3365, %v3369
      %v3372 = vshrl.u32 %v3343, 16
      %v3374 = vrot.slane %v3372, 4
      %v3375 = vshll.u32 %v3343, 16
      %v3377 = vrot.slane %v3375, 5
      %v3378 = vor.u32 %v3374, %v3377
      %v3379 = vrot.slane %v3378, 4
      %v3381 = vshll.u32 %v3344, 16
      %v3383 = vrot.slane %v3381, 5
      %v3384 = vsel %vm314, %v3379, %v3383
      %v3386 = vshrl.u32 %v3345, 16
      %v3388 = vrot.slane %v3386, 4
      %v3389 = vshll.u32 %v3345, 16
      %v3391 = vrot.slane %v3389, 5
      %v3392 = vor.u32 %v3388, %v3391
      %v3393 = vrot.slane %v3392, 4
      %v3395 = vshll.u32 %v3346, 16
      %v3397 = vrot.slane %v3395, 5
      %v3398 = vsel %vm314, %v3393, %v3397
      %v3400 = vshrl.u32 %v3347, 16
      %v3402 = vrot.slane %v3400, 4
      %v3403 = vshll.u32 %v3347, 16
      %v3405 = vrot.slane %v3403, 5
      %v3406 = vor.u32 %v3402, %v3405
      %v3407 = vrot.slane %v3406, 4
      %v3409 = vshll.u32 %v3348, 16
      %v3411 = vrot.slane %v3409, 5
      %v3412 = vsel %vm314, %v3407, %v3411
      %v3414 = vshrl.u32 %v3349, 16
      %v3416 = vrot.slane %v3414, 4
      %v3417 = vshll.u32 %v3349, 16
      %v3419 = vrot.slane %v3417, 5
      %v3420 = vor.u32 %v3416, %v3419
      %v3421 = vrot.slane %v3420, 4
      %v3423 = vshll.u32 %v3350, 16
      %v3425 = vrot.slane %v3423, 5
      %v3426 = vsel %vm314, %v3421, %v3425
      %v3428 = vshrl.u32 %v3351, 16
      %v3430 = vrot.slane %v3428, 4
      %v3431 = vshll.u32 %v3351, 16
      %v3433 = vrot.slane %v3431, 5
      %v3434 = vor.u32 %v3430, %v3433
      %v3435 = vrot.slane %v3434, 4
      %v3437 = vshll.u32 %v3352, 16
      %v3439 = vrot.slane %v3437, 5
      %v3440 = vsel %vm314, %v3435, %v3439
      %v3442 = vshrl.u32 %v3353, 16
      %v3444 = vrot.slane %v3442, 4
      %v3445 = vshll.u32 %v3353, 16
      %v3447 = vrot.slane %v3445, 5
      %v3448 = vor.u32 %v3444, %v3447
      %v3449 = vrot.slane %v3448, 4
      %v3451 = vshll.u32 %v3354, 16
      %v3453 = vrot.slane %v3451, 5
      %v3454 = vsel %vm314, %v3449, %v3453
      %v3456 = vshrl.u32 %v3355, 16
      %v3458 = vrot.slane %v3456, 4
      %v3459 = vshll.u32 %v3355, 16
      %v3461 = vrot.slane %v3459, 5
      %v3462 = vor.u32 %v3458, %v3461
      %v3463 = vrot.slane %v3462, 4
      %v3465 = vshll.u32 %v3356, 16
      %v3467 = vrot.slane %v3465, 5
      %v3468 = vsel %vm314, %v3463, %v3467
      %s3469 = scalar_lea.vmem %s4, 256
      %v3470 = vld [vmem:[%s3469] sm:$0xf]
      %v3471 = vld [vmem:[%s3469 + $0x4] sm:$0xf]
      %v3472 = vld [vmem:[%s3469 + $0x8] sm:$0xf]
      %v3473 = vld [vmem:[%s3469 + $0xc] sm:$0xf]
      %v3474 = vld [vmem:[%s3469 + $0x10] sm:$0xf]
      %v3475 = vld [vmem:[%s3469 + $0x14] sm:$0xf]
      %v3476 = vld [vmem:[%s3469 + $0x18] sm:$0xf]
      %v3477 = vld [vmem:[%s3469 + $0x1c] sm:$0xf]
      %v3478 = vld [vmem:[%s3469 + $0x20] sm:$0xf]
      %v3479 = vld [vmem:[%s3469 + $0x24] sm:$0xf]
      %v3480 = vld [vmem:[%s3469 + $0x28] sm:$0xf]
      %v3481 = vld [vmem:[%s3469 + $0x2c] sm:$0xf]
      %v3482 = vld [vmem:[%s3469 + $0x30] sm:$0xf]
      %v3483 = vld [vmem:[%s3469 + $0x34] sm:$0xf]
      %v3484 = vld [vmem:[%s3469 + $0x38] sm:$0xf]
      %v3485 = vld [vmem:[%s3469 + $0x3c] sm:$0xf]
      %v3486 = vunpack.c.l.b16 %v3370
      %v3487 = vunpack.c.l.b16 %v3384
      %v3488 = vunpack.c.l.b16 %v3398
      %v3489 = vunpack.c.l.b16 %v3412
      %v3490 = vunpack.c.l.b16 %v3426
      %v3491 = vunpack.c.l.b16 %v3440
      %v3492 = vunpack.c.l.b16 %v3454
      %v3493 = vunpack.c.l.b16 %v3468
      %v3494 = vpack.c.b16 %v3487, %v3486
      %v3495 = vpack.c.b16 %v3489, %v3488
      %v3496 = vpack.c.b16 %v3491, %v3490
      %v3497 = vpack.c.b16 %v3493, %v3492
      %v3518 = vunpack.c.l.b16 %v3470
      %v3519 = vunpack.c.l.b16 %v3471
      %v3520 = vunpack.c.l.b16 %v3472
      %v3521 = vunpack.c.l.b16 %v3473
      %v3522 = vunpack.c.l.b16 %v3474
      %v3523 = vunpack.c.l.b16 %v3475
      %v3524 = vunpack.c.l.b16 %v3476
      %v3525 = vunpack.c.l.b16 %v3477
      %v3526 = vunpack.c.l.b16 %v3478
      %v3527 = vunpack.c.l.b16 %v3479
      %v3528 = vunpack.c.l.b16 %v3480
      %v3529 = vunpack.c.l.b16 %v3481
      %v3530 = vunpack.c.l.b16 %v3482
      %v3531 = vunpack.c.l.b16 %v3483
      %v3532 = vunpack.c.l.b16 %v3484
      %v3533 = vunpack.c.l.b16 %v3485
      %v3534 = vpack.c.b16 %v3519, %v3518
      %v3535 = vpack.c.b16 %v3521, %v3520
      %v3536 = vpack.c.b16 %v3523, %v3522
      %v3537 = vpack.c.b16 %v3525, %v3524
      %v3538 = vpack.c.b16 %v3527, %v3526
      %v3539 = vpack.c.b16 %v3529, %v3528
      %v3540 = vpack.c.b16 %v3531, %v3530
      %v3541 = vpack.c.b16 %v3533, %v3532
      %3550 = vmatprep.subr.bf16.mxu0 0
      %3551 = vmatpush1.bf16.msra.mxu0 %v3541
      %3552 = vmatprep.subr.bf16.mxu0 0
      %3553 = vmatpush1.bf16.msra.mxu0 %v3540
      %3554 = vmatprep.subr.bf16.mxu0 0
      %3555 = vmatpush1.bf16.msra.mxu0 %v3539
      %3556 = vmatprep.subr.bf16.mxu0 0
      %3557 = vmatpush1.bf16.msra.mxu0 %v3538
      %3558 = vmatprep.subr.bf16.mxu0 0
      %3559 = vmatpush1.bf16.msra.mxu0 %v3537
      %3560 = vmatprep.subr.bf16.mxu0 0
      %3561 = vmatpush1.bf16.msra.mxu0 %v3536
      %3562 = vmatprep.subr.bf16.mxu0 0
      %3563 = vmatpush1.bf16.msra.mxu0 %v3535
      %3564 = vmatprep.subr.bf16.mxu0 0
      %3565 = vmatpush1.bf16.msra.mxu0 %v3534
      %3566 = vmatprep.subr.bf16.mxu0 0
      %3567 = vmatpush2.bf16.msra.mxu0 0
      %3568 = vmatprep.subr.bf16.mxu0 0
      %3569 = vmatpush2.bf16.msra.mxu0 0
      %3570 = vmatprep.subr.bf16.mxu0 0
      %3571 = vmatpush2.bf16.msra.mxu0 0
      %3572 = vmatprep.subr.bf16.mxu0 0
      %3573 = vmatpush2.bf16.msra.mxu0 0
      %3574 = vmatprep.subr.bf16.mxu0 0
      %3575 = vmatpush2.bf16.msra.mxu0 0
      %3576 = vmatprep.subr.bf16.mxu0 0
      %3577 = vmatpush2.bf16.msra.mxu0 0
      %3578 = vmatprep.subr.bf16.mxu0 0
      %3579 = vmatpush2.bf16.msra.mxu0 0
      %3580 = vmatprep.subr.bf16.mxu0 0
      %3581 = vmatpush2.bf16.msra.mxu0 0
      %3582 = vmatprep.mubr.bf16.mxu0 0
      %3583 = vmatmul.mubr.bf16.gmra.mxu0 %v3494
      %v3584 = vpop.f32.mrf.mxu0
      %v3585 = vadd.f32 0.0, %v3584
      %v3586 = vpop.f32.mrf.mxu0
      %v3587 = vpop.f32.mrf.mxu0
      %v3588 = vadd.f32 0.0, %v3587
      %v3589 = vpop.f32.mrf.mxu0
      %3590 = vmatprep.mubr.bf16.mxu0 0
      %3591 = vmatmul.mubr.bf16.gmra.mxu0 %v3495
      %v3592 = vpop.f32.mrf.mxu0
      %v3593 = vadd.f32 0.0, %v3592
      %v3594 = vpop.f32.mrf.mxu0
      %v3595 = vpop.f32.mrf.mxu0
      %v3596 = vadd.f32 0.0, %v3595
      %v3597 = vpop.f32.mrf.mxu0
      %3598 = vmatprep.mubr.bf16.mxu0 0
      %3599 = vmatmul.mubr.bf16.gmra.mxu0 %v3496
      %v3600 = vpop.f32.mrf.mxu0
      %v3601 = vadd.f32 0.0, %v3600
      %v3602 = vpop.f32.mrf.mxu0
      %v3603 = vpop.f32.mrf.mxu0
      %v3604 = vadd.f32 0.0, %v3603
      %v3605 = vpop.f32.mrf.mxu0
      %3606 = vmatprep.mubr.bf16.mxu0 0
      %3607 = vmatmul.mubr.bf16.gmra.mxu0 %v3497
      %v3608 = vpop.f32.mrf.mxu0
      %v3609 = vadd.f32 0.0, %v3608
      %v3610 = vpop.f32.mrf.mxu0
      %v3611 = vpop.f32.mrf.mxu0
      %v3612 = vadd.f32 0.0, %v3611
      %v3613 = vpop.f32.mrf.mxu0
      %3614 = vdwg.mxu0
      %v3615 = vadd.f32 %v3333, %v3585
      %v3616 = vadd.f32 %v3334, %v3588
      %v3617 = vadd.f32 %v3335, %v3593
      %v3618 = vadd.f32 %v3336, %v3596
      %v3619 = vadd.f32 %v3337, %v3601
      %v3620 = vadd.f32 %v3338, %v3604
      %v3621 = vadd.f32 %v3339, %v3609
      %v3622 = vadd.f32 %v3340, %v3612
      %v3623 = vld [vmem:[%s2479] sm:$0xe]
      %v3624 = vld [vmem:[%s2479 + $0x8] sm:$0xe]
      %v3625 = vld [vmem:[%s2479 + $0x10] sm:$0xe]
      %v3626 = vld [vmem:[%s2479 + $0x18] sm:$0xe]
      %v3627 = vld [vmem:[%s2479 + $0x20] sm:$0xe]
      %v3628 = vld [vmem:[%s2479 + $0x28] sm:$0xe]
      %v3629 = vld [vmem:[%s2479 + $0x30] sm:$0xe]
      %v3630 = vld [vmem:[%s2479 + $0x38] sm:$0xe]
      %v3647 = vrot.slane %v3623, 5
      %v3648 = vrot.slane %v3647, 4
      %v3649 = vrot.slane %v3342, 5
      %v3650 = vsel %vm736, %v3648, %v3649
      %v3651 = vrot.slane %v3624, 5
      %v3652 = vrot.slane %v3651, 4
      %v3653 = vrot.slane %v3344, 5
      %v3654 = vsel %vm736, %v3652, %v3653
      %v3655 = vrot.slane %v3625, 5
      %v3656 = vrot.slane %v3655, 4
      %v3657 = vrot.slane %v3346, 5
      %v3658 = vsel %vm736, %v3656, %v3657
      %v3659 = vrot.slane %v3626, 5
      %v3660 = vrot.slane %v3659, 4
      %v3661 = vrot.slane %v3348, 5
      %v3662 = vsel %vm736, %v3660, %v3661
      %v3663 = vrot.slane %v3627, 5
      %v3664 = vrot.slane %v3663, 4
      %v3665 = vrot.slane %v3350, 5
      %v3666 = vsel %vm736, %v3664, %v3665
      %v3667 = vrot.slane %v3628, 5
      %v3668 = vrot.slane %v3667, 4
      %v3669 = vrot.slane %v3352, 5
      %v3670 = vsel %vm736, %v3668, %v3669
      %v3671 = vrot.slane %v3629, 5
      %v3672 = vrot.slane %v3671, 4
      %v3673 = vrot.slane %v3354, 5
      %v3674 = vsel %vm736, %v3672, %v3673
      %v3675 = vrot.slane %v3630, 5
      %v3676 = vrot.slane %v3675, 4
      %v3677 = vrot.slane %v3356, 5
      %v3678 = vsel %vm736, %v3676, %v3677
      %s3679 = scalar_lea.vmem %s4, 320
      %v3680 = vld [vmem:[%s3679] sm:$0xf]
      %v3681 = vld [vmem:[%s3679 + $0x4] sm:$0xf]
      %v3682 = vld [vmem:[%s3679 + $0x8] sm:$0xf]
      %v3683 = vld [vmem:[%s3679 + $0xc] sm:$0xf]
      %v3684 = vld [vmem:[%s3679 + $0x10] sm:$0xf]
      %v3685 = vld [vmem:[%s3679 + $0x14] sm:$0xf]
      %v3686 = vld [vmem:[%s3679 + $0x18] sm:$0xf]
      %v3687 = vld [vmem:[%s3679 + $0x1c] sm:$0xf]
      %v3688 = vld [vmem:[%s3679 + $0x20] sm:$0xf]
      %v3689 = vld [vmem:[%s3679 + $0x24] sm:$0xf]
      %v3690 = vld [vmem:[%s3679 + $0x28] sm:$0xf]
      %v3691 = vld [vmem:[%s3679 + $0x2c] sm:$0xf]
      %v3692 = vld [vmem:[%s3679 + $0x30] sm:$0xf]
      %v3693 = vld [vmem:[%s3679 + $0x34] sm:$0xf]
      %v3694 = vld [vmem:[%s3679 + $0x38] sm:$0xf]
      %v3695 = vld [vmem:[%s3679 + $0x3c] sm:$0xf]
      %v3696 = vunpack.c.l.b16 %v3650
      %v3697 = vunpack.c.l.b16 %v3654
      %v3698 = vunpack.c.l.b16 %v3658
      %v3699 = vunpack.c.l.b16 %v3662
      %v3700 = vunpack.c.l.b16 %v3666
      %v3701 = vunpack.c.l.b16 %v3670
      %v3702 = vunpack.c.l.b16 %v3674
      %v3703 = vunpack.c.l.b16 %v3678
      %v3704 = vpack.c.b16 %v3697, %v3696
      %v3705 = vpack.c.b16 %v3699, %v3698
      %v3706 = vpack.c.b16 %v3701, %v3700
      %v3707 = vpack.c.b16 %v3703, %v3702
      %v3728 = vunpack.c.l.b16 %v3680
      %v3729 = vunpack.c.l.b16 %v3681
      %v3730 = vunpack.c.l.b16 %v3682
      %v3731 = vunpack.c.l.b16 %v3683
      %v3732 = vunpack.c.l.b16 %v3684
      %v3733 = vunpack.c.l.b16 %v3685
      %v3734 = vunpack.c.l.b16 %v3686
      %v3735 = vunpack.c.l.b16 %v3687
      %v3736 = vunpack.c.l.b16 %v3688
      %v3737 = vunpack.c.l.b16 %v3689
      %v3738 = vunpack.c.l.b16 %v3690
      %v3739 = vunpack.c.l.b16 %v3691
      %v3740 = vunpack.c.l.b16 %v3692
      %v3741 = vunpack.c.l.b16 %v3693
      %v3742 = vunpack.c.l.b16 %v3694
      %v3743 = vunpack.c.l.b16 %v3695
      %v3744 = vpack.c.b16 %v3729, %v3728
      %v3745 = vpack.c.b16 %v3731, %v3730
      %v3746 = vpack.c.b16 %v3733, %v3732
      %v3747 = vpack.c.b16 %v3735, %v3734
      %v3748 = vpack.c.b16 %v3737, %v3736
      %v3749 = vpack.c.b16 %v3739, %v3738
      %v3750 = vpack.c.b16 %v3741, %v3740
      %v3751 = vpack.c.b16 %v3743, %v3742
      %3760 = vmatprep.subr.bf16.mxu0 0
      %3761 = vmatpush1.bf16.msra.mxu0 %v3751
      %3762 = vmatprep.subr.bf16.mxu0 0
      %3763 = vmatpush1.bf16.msra.mxu0 %v3750
      %3764 = vmatprep.subr.bf16.mxu0 0
      %3765 = vmatpush1.bf16.msra.mxu0 %v3749
      %3766 = vmatprep.subr.bf16.mxu0 0
      %3767 = vmatpush1.bf16.msra.mxu0 %v3748
      %3768 = vmatprep.subr.bf16.mxu0 0
      %3769 = vmatpush1.bf16.msra.mxu0 %v3747
      %3770 = vmatprep.subr.bf16.mxu0 0
      %3771 = vmatpush1.bf16.msra.mxu0 %v3746
      %3772 = vmatprep.subr.bf16.mxu0 0
      %3773 = vmatpush1.bf16.msra.mxu0 %v3745
      %3774 = vmatprep.subr.bf16.mxu0 0
      %3775 = vmatpush1.bf16.msra.mxu0 %v3744
      %3776 = vmatprep.subr.bf16.mxu0 0
      %3777 = vmatpush2.bf16.msra.mxu0 0
      %3778 = vmatprep.subr.bf16.mxu0 0
      %3779 = vmatpush2.bf16.msra.mxu0 0
      %3780 = vmatprep.subr.bf16.mxu0 0
      %3781 = vmatpush2.bf16.msra.mxu0 0
      %3782 = vmatprep.subr.bf16.mxu0 0
      %3783 = vmatpush2.bf16.msra.mxu0 0
      %3784 = vmatprep.subr.bf16.mxu0 0
      %3785 = vmatpush2.bf16.msra.mxu0 0
      %3786 = vmatprep.subr.bf16.mxu0 0
      %3787 = vmatpush2.bf16.msra.mxu0 0
      %3788 = vmatprep.subr.bf16.mxu0 0
      %3789 = vmatpush2.bf16.msra.mxu0 0
      %3790 = vmatprep.subr.bf16.mxu0 0
      %3791 = vmatpush2.bf16.msra.mxu0 0
      %3792 = vmatprep.mubr.bf16.mxu0 0
      %3793 = vmatmul.mubr.bf16.gmra.mxu0 %v3704
      %v3794 = vpop.f32.mrf.mxu0
      %v3795 = vadd.f32 0.0, %v3794
      %v3796 = vpop.f32.mrf.mxu0
      %v3797 = vpop.f32.mrf.mxu0
      %v3798 = vadd.f32 0.0, %v3797
      %v3799 = vpop.f32.mrf.mxu0
      %3800 = vmatprep.mubr.bf16.mxu0 0
      %3801 = vmatmul.mubr.bf16.gmra.mxu0 %v3705
      %v3802 = vpop.f32.mrf.mxu0
      %v3803 = vadd.f32 0.0, %v3802
      %v3804 = vpop.f32.mrf.mxu0
      %v3805 = vpop.f32.mrf.mxu0
      %v3806 = vadd.f32 0.0, %v3805
      %v3807 = vpop.f32.mrf.mxu0
      %3808 = vmatprep.mubr.bf16.mxu0 0
      %3809 = vmatmul.mubr.bf16.gmra.mxu0 %v3706
      %v3810 = vpop.f32.mrf.mxu0
      %v3811 = vadd.f32 0.0, %v3810
      %v3812 = vpop.f32.mrf.mxu0
      %v3813 = vpop.f32.mrf.mxu0
      %v3814 = vadd.f32 0.0, %v3813
      %v3815 = vpop.f32.mrf.mxu0
      %3816 = vmatprep.mubr.bf16.mxu0 0
      %3817 = vmatmul.mubr.bf16.gmra.mxu0 %v3707
      %v3818 = vpop.f32.mrf.mxu0
      %v3819 = vadd.f32 0.0, %v3818
      %v3820 = vpop.f32.mrf.mxu0
      %v3821 = vpop.f32.mrf.mxu0
      %v3822 = vadd.f32 0.0, %v3821
      %v3823 = vpop.f32.mrf.mxu0
      %3824 = vdwg.mxu0
      %v3825 = vadd.f32 %v3615, %v3795
      %v3826 = vadd.f32 %v3616, %v3798
      %v3827 = vadd.f32 %v3617, %v3803
      %v3828 = vadd.f32 %v3618, %v3806
      %v3829 = vadd.f32 %v3619, %v3811
      %v3830 = vadd.f32 %v3620, %v3814
      %v3831 = vadd.f32 %v3621, %v3819
      %v3832 = vadd.f32 %v3622, %v3822
      %s3833 = scalar_lea.vmem [#allocation2], 16
      %v3834 = vld [vmem:[%s3833] sm:$0xf]
      %v3835 = vld [vmem:[%s3833 + $0x8] sm:$0xf]
      %v3836 = vld [vmem:[%s3833 + $0x10] sm:$0xf]
      %v3837 = vld [vmem:[%s3833 + $0x18] sm:$0xf]
      %v3838 = vld [vmem:[%s3833 + $0x20] sm:$0xf]
      %v3839 = vld [vmem:[%s3833 + $0x28] sm:$0xf]
      %v3840 = vld [vmem:[%s3833 + $0x30] sm:$0xf]
      %v3841 = vld [vmem:[%s3833 + $0x38] sm:$0xf]
      %s3842 = scalar_lea.vmem %s4, 384
      %v3843 = vld [vmem:[%s3842] sm:$0xf]
      %v3844 = vld [vmem:[%s3842 + $0x4] sm:$0xf]
      %v3845 = vld [vmem:[%s3842 + $0x8] sm:$0xf]
      %v3846 = vld [vmem:[%s3842 + $0xc] sm:$0xf]
      %v3847 = vld [vmem:[%s3842 + $0x10] sm:$0xf]
      %v3848 = vld [vmem:[%s3842 + $0x14] sm:$0xf]
      %v3849 = vld [vmem:[%s3842 + $0x18] sm:$0xf]
      %v3850 = vld [vmem:[%s3842 + $0x1c] sm:$0xf]
      %v3851 = vld [vmem:[%s3842 + $0x20] sm:$0xf]
      %v3852 = vld [vmem:[%s3842 + $0x24] sm:$0xf]
      %v3853 = vld [vmem:[%s3842 + $0x28] sm:$0xf]
      %v3854 = vld [vmem:[%s3842 + $0x2c] sm:$0xf]
      %v3855 = vld [vmem:[%s3842 + $0x30] sm:$0xf]
      %v3856 = vld [vmem:[%s3842 + $0x34] sm:$0xf]
      %v3857 = vld [vmem:[%s3842 + $0x38] sm:$0xf]
      %v3858 = vld [vmem:[%s3842 + $0x3c] sm:$0xf]
      %v3867 = vunpack.c.l.b16 %v3834
      %v3868 = vunpack.c.l.b16 %v3835
      %v3869 = vunpack.c.l.b16 %v3836
      %v3870 = vunpack.c.l.b16 %v3837
      %v3871 = vunpack.c.l.b16 %v3838
      %v3872 = vunpack.c.l.b16 %v3839
      %v3873 = vunpack.c.l.b16 %v3840
      %v3874 = vunpack.c.l.b16 %v3841
      %v3875 = vpack.c.b16 %v3868, %v3867
      %v3876 = vpack.c.b16 %v3870, %v3869
      %v3877 = vpack.c.b16 %v3872, %v3871
      %v3878 = vpack.c.b16 %v3874, %v3873
      %v3899 = vunpack.c.l.b16 %v3843
      %v3900 = vunpack.c.l.b16 %v3844
      %v3901 = vunpack.c.l.b16 %v3845
      %v3902 = vunpack.c.l.b16 %v3846
      %v3903 = vunpack.c.l.b16 %v3847
      %v3904 = vunpack.c.l.b16 %v3848
      %v3905 = vunpack.c.l.b16 %v3849
      %v3906 = vunpack.c.l.b16 %v3850
      %v3907 = vunpack.c.l.b16 %v3851
      %v3908 = vunpack.c.l.b16 %v3852
      %v3909 = vunpack.c.l.b16 %v3853
      %v3910 = vunpack.c.l.b16 %v3854
      %v3911 = vunpack.c.l.b16 %v3855
      %v3912 = vunpack.c.l.b16 %v3856
      %v3913 = vunpack.c.l.b16 %v3857
      %v3914 = vunpack.c.l.b16 %v3858
      %v3915 = vpack.c.b16 %v3900, %v3899
      %v3916 = vpack.c.b16 %v3902, %v3901
      %v3917 = vpack.c.b16 %v3904, %v3903
      %v3918 = vpack.c.b16 %v3906, %v3905
      %v3919 = vpack.c.b16 %v3908, %v3907
      %v3920 = vpack.c.b16 %v3910, %v3909
      %v3921 = vpack.c.b16 %v3912, %v3911
      %v3922 = vpack.c.b16 %v3914, %v3913
      %3931 = vmatprep.subr.bf16.mxu0 0
      %3932 = vmatpush1.bf16.msra.mxu0 %v3922
      %3933 = vmatprep.subr.bf16.mxu0 0
      %3934 = vmatpush1.bf16.msra.mxu0 %v3921
      %3935 = vmatprep.subr.bf16.mxu0 0
      %3936 = vmatpush1.bf16.msra.mxu0 %v3920
      %3937 = vmatprep.subr.bf16.mxu0 0
      %3938 = vmatpush1.bf16.msra.mxu0 %v3919
      %3939 = vmatprep.subr.bf16.mxu0 0
      %3940 = vmatpush1.bf16.msra.mxu0 %v3918
      %3941 = vmatprep.subr.bf16.mxu0 0
      %3942 = vmatpush1.bf16.msra.mxu0 %v3917
      %3943 = vmatprep.subr.bf16.mxu0 0
      %3944 = vmatpush1.bf16.msra.mxu0 %v3916
      %3945 = vmatprep.subr.bf16.mxu0 0
      %3946 = vmatpush1.bf16.msra.mxu0 %v3915
      %3947 = vmatprep.subr.bf16.mxu0 0
      %3948 = vmatpush2.bf16.msra.mxu0 0
      %3949 = vmatprep.subr.bf16.mxu0 0
      %3950 = vmatpush2.bf16.msra.mxu0 0
      %3951 = vmatprep.subr.bf16.mxu0 0
      %3952 = vmatpush2.bf16.msra.mxu0 0
      %3953 = vmatprep.subr.bf16.mxu0 0
      %3954 = vmatpush2.bf16.msra.mxu0 0
      %3955 = vmatprep.subr.bf16.mxu0 0
      %3956 = vmatpush2.bf16.msra.mxu0 0
      %3957 = vmatprep.subr.bf16.mxu0 0
      %3958 = vmatpush2.bf16.msra.mxu0 0
      %3959 = vmatprep.subr.bf16.mxu0 0
      %3960 = vmatpush2.bf16.msra.mxu0 0
      %3961 = vmatprep.subr.bf16.mxu0 0
      %3962 = vmatpush2.bf16.msra.mxu0 0
      %3963 = vmatprep.mubr.bf16.mxu0 0
      %3964 = vmatmul.mubr.bf16.gmra.mxu0 %v3875
      %v3965 = vpop.f32.mrf.mxu0
      %v3966 = vadd.f32 0.0, %v3965
      %v3967 = vpop.f32.mrf.mxu0
      %v3968 = vpop.f32.mrf.mxu0
      %v3969 = vadd.f32 0.0, %v3968
      %v3970 = vpop.f32.mrf.mxu0
      %3971 = vmatprep.mubr.bf16.mxu0 0
      %3972 = vmatmul.mubr.bf16.gmra.mxu0 %v3876
      %v3973 = vpop.f32.mrf.mxu0
      %v3974 = vadd.f32 0.0, %v3973
      %v3975 = vpop.f32.mrf.mxu0
      %v3976 = vpop.f32.mrf.mxu0
      %v3977 = vadd.f32 0.0, %v3976
      %v3978 = vpop.f32.mrf.mxu0
      %3979 = vmatprep.mubr.bf16.mxu0 0
      %3980 = vmatmul.mubr.bf16.gmra.mxu0 %v3877
      %v3981 = vpop.f32.mrf.mxu0
      %v3982 = vadd.f32 0.0, %v3981
      %v3983 = vpop.f32.mrf.mxu0
      %v3984 = vpop.f32.mrf.mxu0
      %v3985 = vadd.f32 0.0, %v3984
      %v3986 = vpop.f32.mrf.mxu0
      %3987 = vmatprep.mubr.bf16.mxu0 0
      %3988 = vmatmul.mubr.bf16.gmra.mxu0 %v3878
      %v3989 = vpop.f32.mrf.mxu0
      %v3990 = vadd.f32 0.0, %v3989
      %v3991 = vpop.f32.mrf.mxu0
      %v3992 = vpop.f32.mrf.mxu0
      %v3993 = vadd.f32 0.0, %v3992
      %v3994 = vpop.f32.mrf.mxu0
      %3995 = vdwg.mxu0
      %v3996 = vadd.f32 %v3825, %v3966
      %v3997 = vadd.f32 %v3826, %v3969
      %v3998 = vadd.f32 %v3827, %v3974
      %v3999 = vadd.f32 %v3828, %v3977
      %v4000 = vadd.f32 %v3829, %v3982
      %v4001 = vadd.f32 %v3830, %v3985
      %v4002 = vadd.f32 %v3831, %v3990
      %v4003 = vadd.f32 %v3832, %v3993
      %v4004 = vld [vmem:[%s3833] sm:$0xf]
      %v4005 = vld [vmem:[%s3833 + $0x4] sm:$0x1]
      %v4006 = vld [vmem:[%s3833 + $0x8] sm:$0xf]
      %v4007 = vld [vmem:[%s3833 + $0xc] sm:$0x1]
      %v4008 = vld [vmem:[%s3833 + $0x10] sm:$0xf]
      %v4009 = vld [vmem:[%s3833 + $0x14] sm:$0x1]
      %v4010 = vld [vmem:[%s3833 + $0x18] sm:$0xf]
      %v4011 = vld [vmem:[%s3833 + $0x1c] sm:$0x1]
      %v4012 = vld [vmem:[%s3833 + $0x20] sm:$0xf]
      %v4013 = vld [vmem:[%s3833 + $0x24] sm:$0x1]
      %v4014 = vld [vmem:[%s3833 + $0x28] sm:$0xf]
      %v4015 = vld [vmem:[%s3833 + $0x2c] sm:$0x1]
      %v4016 = vld [vmem:[%s3833 + $0x30] sm:$0xf]
      %v4017 = vld [vmem:[%s3833 + $0x34] sm:$0x1]
      %v4018 = vld [vmem:[%s3833 + $0x38] sm:$0xf]
      %v4019 = vld [vmem:[%s3833 + $0x3c] sm:$0x1]
      %v4021 = vshrl.u32 %v4004, 16
      %v4023 = vrot.slane %v4021, 4
      %v4024 = vshll.u32 %v4004, 16
      %v4026 = vrot.slane %v4024, 5
      %v4027 = vor.u32 %v4023, %v4026
      %v4028 = vrot.slane %v4027, 4
      %v4030 = vshll.u32 %v4005, 16
      %v4032 = vrot.slane %v4030, 5
      %v4033 = vsel %vm314, %v4028, %v4032
      %v4035 = vshrl.u32 %v4006, 16
      %v4037 = vrot.slane %v4035, 4
      %v4038 = vshll.u32 %v4006, 16
      %v4040 = vrot.slane %v4038, 5
      %v4041 = vor.u32 %v4037, %v4040
      %v4042 = vrot.slane %v4041, 4
      %v4044 = vshll.u32 %v4007, 16
      %v4046 = vrot.slane %v4044, 5
      %v4047 = vsel %vm314, %v4042, %v4046
      %v4049 = vshrl.u32 %v4008, 16
      %v4051 = vrot.slane %v4049, 4
      %v4052 = vshll.u32 %v4008, 16
      %v4054 = vrot.slane %v4052, 5
      %v4055 = vor.u32 %v4051, %v4054
      %v4056 = vrot.slane %v4055, 4
      %v4058 = vshll.u32 %v4009, 16
      %v4060 = vrot.slane %v4058, 5
      %v4061 = vsel %vm314, %v4056, %v4060
      %v4063 = vshrl.u32 %v4010, 16
      %v4065 = vrot.slane %v4063, 4
      %v4066 = vshll.u32 %v4010, 16
      %v4068 = vrot.slane %v4066, 5
      %v4069 = vor.u32 %v4065, %v4068
      %v4070 = vrot.slane %v4069, 4
      %v4072 = vshll.u32 %v4011, 16
      %v4074 = vrot.slane %v4072, 5
      %v4075 = vsel %vm314, %v4070, %v4074
      %v4077 = vshrl.u32 %v4012, 16
      %v4079 = vrot.slane %v4077, 4
      %v4080 = vshll.u32 %v4012, 16
      %v4082 = vrot.slane %v4080, 5
      %v4083 = vor.u32 %v4079, %v4082
      %v4084 = vrot.slane %v4083, 4
      %v4086 = vshll.u32 %v4013, 16
      %v4088 = vrot.slane %v4086, 5
      %v4089 = vsel %vm314, %v4084, %v4088
      %v4091 = vshrl.u32 %v4014, 16
      %v4093 = vrot.slane %v4091, 4
      %v4094 = vshll.u32 %v4014, 16
      %v4096 = vrot.slane %v4094, 5
      %v4097 = vor.u32 %v4093, %v4096
      %v4098 = vrot.slane %v4097, 4
      %v4100 = vshll.u32 %v4015, 16
      %v4102 = vrot.slane %v4100, 5
      %v4103 = vsel %vm314, %v4098, %v4102
      %v4105 = vshrl.u32 %v4016, 16
      %v4107 = vrot.slane %v4105, 4
      %v4108 = vshll.u32 %v4016, 16
      %v4110 = vrot.slane %v4108, 5
      %v4111 = vor.u32 %v4107, %v4110
      %v4112 = vrot.slane %v4111, 4
      %v4114 = vshll.u32 %v4017, 16
      %v4116 = vrot.slane %v4114, 5
      %v4117 = vsel %vm314, %v4112, %v4116
      %v4119 = vshrl.u32 %v4018, 16
      %v4121 = vrot.slane %v4119, 4
      %v4122 = vshll.u32 %v4018, 16
      %v4124 = vrot.slane %v4122, 5
      %v4125 = vor.u32 %v4121, %v4124
      %v4126 = vrot.slane %v4125, 4
      %v4128 = vshll.u32 %v4019, 16
      %v4130 = vrot.slane %v4128, 5
      %v4131 = vsel %vm314, %v4126, %v4130
      %s4132 = scalar_lea.vmem %s4, 448
      %v4133 = vld [vmem:[%s4132] sm:$0xf]
      %v4134 = vld [vmem:[%s4132 + $0x4] sm:$0xf]
      %v4135 = vld [vmem:[%s4132 + $0x8] sm:$0xf]
      %v4136 = vld [vmem:[%s4132 + $0xc] sm:$0xf]
      %v4137 = vld [vmem:[%s4132 + $0x10] sm:$0xf]
      %v4138 = vld [vmem:[%s4132 + $0x14] sm:$0xf]
      %v4139 = vld [vmem:[%s4132 + $0x18] sm:$0xf]
      %v4140 = vld [vmem:[%s4132 + $0x1c] sm:$0xf]
      %v4141 = vld [vmem:[%s4132 + $0x20] sm:$0xf]
      %v4142 = vld [vmem:[%s4132 + $0x24] sm:$0xf]
      %v4143 = vld [vmem:[%s4132 + $0x28] sm:$0xf]
      %v4144 = vld [vmem:[%s4132 + $0x2c] sm:$0xf]
      %v4145 = vld [vmem:[%s4132 + $0x30] sm:$0xf]
      %v4146 = vld [vmem:[%s4132 + $0x34] sm:$0xf]
      %v4147 = vld [vmem:[%s4132 + $0x38] sm:$0xf]
      %v4148 = vld [vmem:[%s4132 + $0x3c] sm:$0xf]
      %v4149 = vunpack.c.l.b16 %v4033
      %v4150 = vunpack.c.l.b16 %v4047
      %v4151 = vunpack.c.l.b16 %v4061
      %v4152 = vunpack.c.l.b16 %v4075
      %v4153 = vunpack.c.l.b16 %v4089
      %v4154 = vunpack.c.l.b16 %v4103
      %v4155 = vunpack.c.l.b16 %v4117
      %v4156 = vunpack.c.l.b16 %v4131
      %v4157 = vpack.c.b16 %v4150, %v4149
      %v4158 = vpack.c.b16 %v4152, %v4151
      %v4159 = vpack.c.b16 %v4154, %v4153
      %v4160 = vpack.c.b16 %v4156, %v4155
      %v4181 = vunpack.c.l.b16 %v4133
      %v4182 = vunpack.c.l.b16 %v4134
      %v4183 = vunpack.c.l.b16 %v4135
      %v4184 = vunpack.c.l.b16 %v4136
      %v4185 = vunpack.c.l.b16 %v4137
      %v4186 = vunpack.c.l.b16 %v4138
      %v4187 = vunpack.c.l.b16 %v4139
      %v4188 = vunpack.c.l.b16 %v4140
      %v4189 = vunpack.c.l.b16 %v4141
      %v4190 = vunpack.c.l.b16 %v4142
      %v4191 = vunpack.c.l.b16 %v4143
      %v4192 = vunpack.c.l.b16 %v4144
      %v4193 = vunpack.c.l.b16 %v4145
      %v4194 = vunpack.c.l.b16 %v4146
      %v4195 = vunpack.c.l.b16 %v4147
      %v4196 = vunpack.c.l.b16 %v4148
      %v4197 = vpack.c.b16 %v4182, %v4181
      %v4198 = vpack.c.b16 %v4184, %v4183
      %v4199 = vpack.c.b16 %v4186, %v4185
      %v4200 = vpack.c.b16 %v4188, %v4187
      %v4201 = vpack.c.b16 %v4190, %v4189
      %v4202 = vpack.c.b16 %v4192, %v4191
      %v4203 = vpack.c.b16 %v4194, %v4193
      %v4204 = vpack.c.b16 %v4196, %v4195
      %4213 = vmatprep.subr.bf16.mxu0 0
      %4214 = vmatpush1.bf16.msra.mxu0 %v4204
      %4215 = vmatprep.subr.bf16.mxu0 0
      %4216 = vmatpush1.bf16.msra.mxu0 %v4203
      %4217 = vmatprep.subr.bf16.mxu0 0
      %4218 = vmatpush1.bf16.msra.mxu0 %v4202
      %4219 = vmatprep.subr.bf16.mxu0 0
      %4220 = vmatpush1.bf16.msra.mxu0 %v4201
      %4221 = vmatprep.subr.bf16.mxu0 0
      %4222 = vmatpush1.bf16.msra.mxu0 %v4200
      %4223 = vmatprep.subr.bf16.mxu0 0
      %4224 = vmatpush1.bf16.msra.mxu0 %v4199
      %4225 = vmatprep.subr.bf16.mxu0 0
      %4226 = vmatpush1.bf16.msra.mxu0 %v4198
      %4227 = vmatprep.subr.bf16.mxu0 0
      %4228 = vmatpush1.bf16.msra.mxu0 %v4197
      %4229 = vmatprep.subr.bf16.mxu0 0
      %4230 = vmatpush2.bf16.msra.mxu0 0
      %4231 = vmatprep.subr.bf16.mxu0 0
      %4232 = vmatpush2.bf16.msra.mxu0 0
      %4233 = vmatprep.subr.bf16.mxu0 0
      %4234 = vmatpush2.bf16.msra.mxu0 0
      %4235 = vmatprep.subr.bf16.mxu0 0
      %4236 = vmatpush2.bf16.msra.mxu0 0
      %4237 = vmatprep.subr.bf16.mxu0 0
      %4238 = vmatpush2.bf16.msra.mxu0 0
      %4239 = vmatprep.subr.bf16.mxu0 0
      %4240 = vmatpush2.bf16.msra.mxu0 0
      %4241 = vmatprep.subr.bf16.mxu0 0
      %4242 = vmatpush2.bf16.msra.mxu0 0
      %4243 = vmatprep.subr.bf16.mxu0 0
      %4244 = vmatpush2.bf16.msra.mxu0 0
      %4245 = vmatprep.mubr.bf16.mxu0 0
      %4246 = vmatmul.mubr.bf16.gmra.mxu0 %v4157
      %v4247 = vpop.f32.mrf.mxu0
      %v4248 = vadd.f32 0.0, %v4247
      %v4249 = vpop.f32.mrf.mxu0
      %v4250 = vpop.f32.mrf.mxu0
      %v4251 = vadd.f32 0.0, %v4250
      %v4252 = vpop.f32.mrf.mxu0
      %4253 = vmatprep.mubr.bf16.mxu0 0
      %4254 = vmatmul.mubr.bf16.gmra.mxu0 %v4158
      %v4255 = vpop.f32.mrf.mxu0
      %v4256 = vadd.f32 0.0, %v4255
      %v4257 = vpop.f32.mrf.mxu0
      %v4258 = vpop.f32.mrf.mxu0
      %v4259 = vadd.f32 0.0, %v4258
      %v4260 = vpop.f32.mrf.mxu0
      %4261 = vmatprep.mubr.bf16.mxu0 0
      %4262 = vmatmul.mubr.bf16.gmra.mxu0 %v4159
      %v4263 = vpop.f32.mrf.mxu0
      %v4264 = vadd.f32 0.0, %v4263
      %v4265 = vpop.f32.mrf.mxu0
      %v4266 = vpop.f32.mrf.mxu0
      %v4267 = vadd.f32 0.0, %v4266
      %v4268 = vpop.f32.mrf.mxu0
      %4269 = vmatprep.mubr.bf16.mxu0 0
      %4270 = vmatmul.mubr.bf16.gmra.mxu0 %v4160
      %v4271 = vpop.f32.mrf.mxu0
      %v4272 = vadd.f32 0.0, %v4271
      %v4273 = vpop.f32.mrf.mxu0
      %v4274 = vpop.f32.mrf.mxu0
      %v4275 = vadd.f32 0.0, %v4274
      %v4276 = vpop.f32.mrf.mxu0
      %4277 = vdwg.mxu0
      %v4278 = vadd.f32 %v3996, %v4248
      %v4279 = vadd.f32 %v3997, %v4251
      %v4280 = vadd.f32 %v3998, %v4256
      %v4281 = vadd.f32 %v3999, %v4259
      %v4282 = vadd.f32 %v4000, %v4264
      %v4283 = vadd.f32 %v4001, %v4267
      %v4284 = vadd.f32 %v4002, %v4272
      %v4285 = vadd.f32 %v4003, %v4275
      %v4286 = vld [vmem:[%s3833] sm:$0xe]
      %v4287 = vld [vmem:[%s3833 + $0x8] sm:$0xe]
      %v4288 = vld [vmem:[%s3833 + $0x10] sm:$0xe]
      %v4289 = vld [vmem:[%s3833 + $0x18] sm:$0xe]
      %v4290 = vld [vmem:[%s3833 + $0x20] sm:$0xe]
      %v4291 = vld [vmem:[%s3833 + $0x28] sm:$0xe]
      %v4292 = vld [vmem:[%s3833 + $0x30] sm:$0xe]
      %v4293 = vld [vmem:[%s3833 + $0x38] sm:$0xe]
      %v4310 = vrot.slane %v4286, 5
      %v4311 = vrot.slane %v4310, 4
      %v4312 = vrot.slane %v4005, 5
      %v4313 = vsel %vm736, %v4311, %v4312
      %v4314 = vrot.slane %v4287, 5
      %v4315 = vrot.slane %v4314, 4
      %v4316 = vrot.slane %v4007, 5
      %v4317 = vsel %vm736, %v4315, %v4316
      %v4318 = vrot.slane %v4288, 5
      %v4319 = vrot.slane %v4318, 4
      %v4320 = vrot.slane %v4009, 5
      %v4321 = vsel %vm736, %v4319, %v4320
      %v4322 = vrot.slane %v4289, 5
      %v4323 = vrot.slane %v4322, 4
      %v4324 = vrot.slane %v4011, 5
      %v4325 = vsel %vm736, %v4323, %v4324
      %v4326 = vrot.slane %v4290, 5
      %v4327 = vrot.slane %v4326, 4
      %v4328 = vrot.slane %v4013, 5
      %v4329 = vsel %vm736, %v4327, %v4328
      %v4330 = vrot.slane %v4291, 5
      %v4331 = vrot.slane %v4330, 4
      %v4332 = vrot.slane %v4015, 5
      %v4333 = vsel %vm736, %v4331, %v4332
      %v4334 = vrot.slane %v4292, 5
      %v4335 = vrot.slane %v4334, 4
      %v4336 = vrot.slane %v4017, 5
      %v4337 = vsel %vm736, %v4335, %v4336
      %v4338 = vrot.slane %v4293, 5
      %v4339 = vrot.slane %v4338, 4
      %v4340 = vrot.slane %v4019, 5
      %v4341 = vsel %vm736, %v4339, %v4340
      %s4342 = scalar_lea.vmem %s4, 512
      %v4343 = vld [vmem:[%s4342] sm:$0xf]
      %v4344 = vld [vmem:[%s4342 + $0x4] sm:$0xf]
      %v4345 = vld [vmem:[%s4342 + $0x8] sm:$0xf]
      %v4346 = vld [vmem:[%s4342 + $0xc] sm:$0xf]
      %v4347 = vld [vmem:[%s4342 + $0x10] sm:$0xf]
      %v4348 = vld [vmem:[%s4342 + $0x14] sm:$0xf]
      %v4349 = vld [vmem:[%s4342 + $0x18] sm:$0xf]
      %v4350 = vld [vmem:[%s4342 + $0x1c] sm:$0xf]
      %v4351 = vld [vmem:[%s4342 + $0x20] sm:$0xf]
      %v4352 = vld [vmem:[%s4342 + $0x24] sm:$0xf]
      %v4353 = vld [vmem:[%s4342 + $0x28] sm:$0xf]
      %v4354 = vld [vmem:[%s4342 + $0x2c] sm:$0xf]
      %v4355 = vld [vmem:[%s4342 + $0x30] sm:$0xf]
      %v4356 = vld [vmem:[%s4342 + $0x34] sm:$0xf]
      %v4357 = vld [vmem:[%s4342 + $0x38] sm:$0xf]
      %v4358 = vld [vmem:[%s4342 + $0x3c] sm:$0xf]
      %v4359 = vunpack.c.l.b16 %v4313
      %v4360 = vunpack.c.l.b16 %v4317
      %v4361 = vunpack.c.l.b16 %v4321
      %v4362 = vunpack.c.l.b16 %v4325
      %v4363 = vunpack.c.l.b16 %v4329
      %v4364 = vunpack.c.l.b16 %v4333
      %v4365 = vunpack.c.l.b16 %v4337
      %v4366 = vunpack.c.l.b16 %v4341
      %v4367 = vpack.c.b16 %v4360, %v4359
      %v4368 = vpack.c.b16 %v4362, %v4361
      %v4369 = vpack.c.b16 %v4364, %v4363
      %v4370 = vpack.c.b16 %v4366, %v4365
      %v4391 = vunpack.c.l.b16 %v4343
      %v4392 = vunpack.c.l.b16 %v4344
      %v4393 = vunpack.c.l.b16 %v4345
      %v4394 = vunpack.c.l.b16 %v4346
      %v4395 = vunpack.c.l.b16 %v4347
      %v4396 = vunpack.c.l.b16 %v4348
      %v4397 = vunpack.c.l.b16 %v4349
      %v4398 = vunpack.c.l.b16 %v4350
      %v4399 = vunpack.c.l.b16 %v4351
      %v4400 = vunpack.c.l.b16 %v4352
      %v4401 = vunpack.c.l.b16 %v4353
      %v4402 = vunpack.c.l.b16 %v4354
      %v4403 = vunpack.c.l.b16 %v4355
      %v4404 = vunpack.c.l.b16 %v4356
      %v4405 = vunpack.c.l.b16 %v4357
      %v4406 = vunpack.c.l.b16 %v4358
      %v4407 = vpack.c.b16 %v4392, %v4391
      %v4408 = vpack.c.b16 %v4394, %v4393
      %v4409 = vpack.c.b16 %v4396, %v4395
      %v4410 = vpack.c.b16 %v4398, %v4397
      %v4411 = vpack.c.b16 %v4400, %v4399
      %v4412 = vpack.c.b16 %v4402, %v4401
      %v4413 = vpack.c.b16 %v4404, %v4403
      %v4414 = vpack.c.b16 %v4406, %v4405
      %4423 = vmatprep.subr.bf16.mxu0 0
      %4424 = vmatpush1.bf16.msra.mxu0 %v4414
      %4425 = vmatprep.subr.bf16.mxu0 0
      %4426 = vmatpush1.bf16.msra.mxu0 %v4413
      %4427 = vmatprep.subr.bf16.mxu0 0
      %4428 = vmatpush1.bf16.msra.mxu0 %v4412
      %4429 = vmatprep.subr.bf16.mxu0 0
      %4430 = vmatpush1.bf16.msra.mxu0 %v4411
      %4431 = vmatprep.subr.bf16.mxu0 0
      %4432 = vmatpush1.bf16.msra.mxu0 %v4410
      %4433 = vmatprep.subr.bf16.mxu0 0
      %4434 = vmatpush1.bf16.msra.mxu0 %v4409
      %4435 = vmatprep.subr.bf16.mxu0 0
      %4436 = vmatpush1.bf16.msra.mxu0 %v4408
      %4437 = vmatprep.subr.bf16.mxu0 0
      %4438 = vmatpush1.bf16.msra.mxu0 %v4407
      %4439 = vmatprep.subr.bf16.mxu0 0
      %4440 = vmatpush2.bf16.msra.mxu0 0
      %4441 = vmatprep.subr.bf16.mxu0 0
      %4442 = vmatpush2.bf16.msra.mxu0 0
      %4443 = vmatprep.subr.bf16.mxu0 0
      %4444 = vmatpush2.bf16.msra.mxu0 0
      %4445 = vmatprep.subr.bf16.mxu0 0
      %4446 = vmatpush2.bf16.msra.mxu0 0
      %4447 = vmatprep.subr.bf16.mxu0 0
      %4448 = vmatpush2.bf16.msra.mxu0 0
      %4449 = vmatprep.subr.bf16.mxu0 0
      %4450 = vmatpush2.bf16.msra.mxu0 0
      %4451 = vmatprep.subr.bf16.mxu0 0
      %4452 = vmatpush2.bf16.msra.mxu0 0
      %4453 = vmatprep.subr.bf16.mxu0 0
      %4454 = vmatpush2.bf16.msra.mxu0 0
      %4455 = vmatprep.mubr.bf16.mxu0 0
      %4456 = vmatmul.mubr.bf16.gmra.mxu0 %v4367
      %v4457 = vpop.f32.mrf.mxu0
      %v4458 = vadd.f32 0.0, %v4457
      %v4459 = vpop.f32.mrf.mxu0
      %v4460 = vpop.f32.mrf.mxu0
      %v4461 = vadd.f32 0.0, %v4460
      %v4462 = vpop.f32.mrf.mxu0
      %4463 = vmatprep.mubr.bf16.mxu0 0
      %4464 = vmatmul.mubr.bf16.gmra.mxu0 %v4368
      %v4465 = vpop.f32.mrf.mxu0
      %v4466 = vadd.f32 0.0, %v4465
      %v4467 = vpop.f32.mrf.mxu0
      %v4468 = vpop.f32.mrf.mxu0
      %v4469 = vadd.f32 0.0, %v4468
      %v4470 = vpop.f32.mrf.mxu0
      %4471 = vmatprep.mubr.bf16.mxu0 0
      %4472 = vmatmul.mubr.bf16.gmra.mxu0 %v4369
      %v4473 = vpop.f32.mrf.mxu0
      %v4474 = vadd.f32 0.0, %v4473
      %v4475 = vpop.f32.mrf.mxu0
      %v4476 = vpop.f32.mrf.mxu0
      %v4477 = vadd.f32 0.0, %v4476
      %v4478 = vpop.f32.mrf.mxu0
      %4479 = vmatprep.mubr.bf16.mxu0 0
      %4480 = vmatmul.mubr.bf16.gmra.mxu0 %v4370
      %v4481 = vpop.f32.mrf.mxu0
      %v4482 = vadd.f32 0.0, %v4481
      %v4483 = vpop.f32.mrf.mxu0
      %v4484 = vpop.f32.mrf.mxu0
      %v4485 = vadd.f32 0.0, %v4484
      %v4486 = vpop.f32.mrf.mxu0
      %4487 = vdwg.mxu0
      %v4488 = vadd.f32 %v4278, %v4458
      %v4489 = vadd.f32 %v4279, %v4461
      %v4490 = vadd.f32 %v4280, %v4466
      %v4491 = vadd.f32 %v4281, %v4469
      %v4492 = vadd.f32 %v4282, %v4474
      %v4493 = vadd.f32 %v4283, %v4477
      %v4494 = vadd.f32 %v4284, %v4482
      %v4495 = vadd.f32 %v4285, %v4485
      %v4496 = vadd.f32 %v4488, %v4489
      %v4497 = vadd.f32 %v4496, %v4490
      %v4498 = vadd.f32 %v4497, %v4491
      %v4499 = vadd.f32 %v4498, %v4492
      %v4500 = vadd.f32 %v4499, %v4493
      %v4501 = vadd.f32 %v4500, %v4494
      %v4502 = vadd.f32 %v4501, %v4495
      %v4503 = vrot.slane %v4502, 4
      %v4504 = vadd.f32 %v4502, %v4503
      %v4505 = vrot.slane %v4504, 2
      %v4506 = vadd.f32 %v4504, %v4505
      %v4507 = vrot.slane %v4506, 1
      %v4508 = vadd.f32 %v4506, %v4507
      %v4509 = vmul.f32 %v4488, %v4488
      %v4510 = vmul.f32 %v4489, %v4489
      %v4511 = vmul.f32 %v4490, %v4490
      %v4512 = vmul.f32 %v4491, %v4491
      %v4513 = vmul.f32 %v4492, %v4492
      %v4514 = vmul.f32 %v4493, %v4493
      %v4515 = vmul.f32 %v4494, %v4494
      %v4516 = vmul.f32 %v4495, %v4495
      %v4517 = vadd.f32 %v4509, %v4510
      %v4518 = vadd.f32 %v4517, %v4511
      %v4519 = vadd.f32 %v4518, %v4512
      %v4520 = vadd.f32 %v4519, %v4513
      %v4521 = vadd.f32 %v4520, %v4514
      %v4522 = vadd.f32 %v4521, %v4515
      %v4523 = vadd.f32 %v4522, %v4516
      %v4524 = vrot.slane %v4523, 4
      %v4525 = vadd.f32 %v4523, %v4524
      %v4526 = vrot.slane %v4525, 2
      %v4527 = vadd.f32 %v4525, %v4526
      %v4528 = vrot.slane %v4527, 1
      %v4529 = vadd.f32 %v4527, %v4528
      %v4530 = vmul.f32 %v4508, 0.015625
      %v4531 = vmul.f32 %v4529, 0.015625
      %v4532 = vmul.f32 %v4530, %v4530
      %v4533 = vsub.f32 %v4531, %v4532
      %v4534 = vmax.f32 %v4533, 0.0
      %v4535 = vld [vmem:[%s5] sm:$0x1]
      %v4536 = vadd.f32 %v4534, 1e-05
      %v4537 = vrsqrt.pop %v4536
      %v4538 = vmul.f32 %v4535, %v4537
      %v4539 = vld [vmem:[%s6] sm:$0x1]
      %v4540 = vmul.f32 %v4530, %v4538
      %v4541 = vsub.f32 %v4539, %v4540
      %v4543 = vlaneseq
      %v4544 = vshrl.u32 %v4543, 7
      %v4545 = vsub.s32 0, %v4544
      %v4546 = vrot.slane %v4538, %v4545
      %v4548 = vmul.f32 %v4488, %v4546
      %v4549 = vmul.f32 %v4489, %v4546
      %v4550 = vmul.f32 %v4490, %v4546
      %v4551 = vmul.f32 %v4491, %v4546
      %v4552 = vmul.f32 %v4492, %v4546
      %v4553 = vmul.f32 %v4493, %v4546
      %v4554 = vmul.f32 %v4494, %v4546
      %v4555 = vmul.f32 %v4495, %v4546
      %v4557 = vlaneseq
      %v4558 = vshrl.u32 %v4557, 7
      %v4559 = vsub.s32 0, %v4558
      %v4560 = vrot.slane %v4541, %v4559
      %v4562 = vadd.f32 %v4548, %v4560
      %v4563 = vadd.f32 %v4549, %v4560
      %v4564 = vadd.f32 %v4550, %v4560
      %v4565 = vadd.f32 %v4551, %v4560
      %v4566 = vadd.f32 %v4552, %v4560
      %v4567 = vadd.f32 %v4553, %v4560
      %v4568 = vadd.f32 %v4554, %v4560
      %v4569 = vadd.f32 %v4555, %v4560
      %vm4570 = vcmp.ge.f32.partialorder %v4562, 0.0
      %vm4571 = vcmp.ge.f32.partialorder %v4563, 0.0
      %vm4572 = vcmp.ge.f32.partialorder %v4564, 0.0
      %vm4573 = vcmp.ge.f32.partialorder %v4565, 0.0
      %vm4574 = vcmp.ge.f32.partialorder %v4566, 0.0
      %vm4575 = vcmp.ge.f32.partialorder %v4567, 0.0
      %vm4576 = vcmp.ge.f32.partialorder %v4568, 0.0
      %vm4577 = vcmp.ge.f32.partialorder %v4569, 0.0
      %v4578 = vmul.f32 %v4562, 0.01
      %v4579 = vmul.f32 %v4563, 0.01
      %v4580 = vmul.f32 %v4564, 0.01
      %v4581 = vmul.f32 %v4565, 0.01
      %v4582 = vmul.f32 %v4566, 0.01
      %v4583 = vmul.f32 %v4567, 0.01
      %v4584 = vmul.f32 %v4568, 0.01
      %v4585 = vmul.f32 %v4569, 0.01
      %v4586 = vsel %vm4570, %v4562, %v4578
      %v4587 = vsel %vm4571, %v4563, %v4579
      %v4588 = vsel %vm4572, %v4564, %v4580
      %v4589 = vsel %vm4573, %v4565, %v4581
      %v4590 = vsel %vm4574, %v4566, %v4582
      %v4591 = vsel %vm4575, %v4567, %v4583
      %v4592 = vsel %vm4576, %v4568, %v4584
      %v4593 = vsel %vm4577, %v4569, %v4585
      %v4594 = vld [vmem:[%s923] sm:$0xf]
      %v4595 = vld [vmem:[%s923 + $0x4] sm:$0x1]
      %v4596 = vld [vmem:[%s923 + $0x8] sm:$0xf]
      %v4597 = vld [vmem:[%s923 + $0xc] sm:$0x1]
      %v4598 = vld [vmem:[%s923 + $0x10] sm:$0xf]
      %v4599 = vld [vmem:[%s923 + $0x14] sm:$0x1]
      %v4600 = vld [vmem:[%s923 + $0x18] sm:$0xf]
      %v4601 = vld [vmem:[%s923 + $0x1c] sm:$0x1]
      %v4602 = vld [vmem:[%s923 + $0x20] sm:$0xf]
      %v4603 = vld [vmem:[%s923 + $0x24] sm:$0x1]
      %v4604 = vld [vmem:[%s923 + $0x28] sm:$0xf]
      %v4605 = vld [vmem:[%s923 + $0x2c] sm:$0x1]
      %v4606 = vld [vmem:[%s923 + $0x30] sm:$0xf]
      %v4607 = vld [vmem:[%s923 + $0x34] sm:$0x1]
      %v4608 = vld [vmem:[%s923 + $0x38] sm:$0xf]
      %v4609 = vld [vmem:[%s923 + $0x3c] sm:$0x1]
      %v4610 = vunpack.c.l.bf16 %v4594
      %v4611 = vunpack.c.l.bf16 %v4595
      %v4612 = vunpack.c.l.bf16 %v4596
      %v4613 = vunpack.c.l.bf16 %v4597
      %v4614 = vunpack.c.l.bf16 %v4598
      %v4615 = vunpack.c.l.bf16 %v4599
      %v4616 = vunpack.c.l.bf16 %v4600
      %v4617 = vunpack.c.l.bf16 %v4601
      %v4618 = vunpack.c.l.bf16 %v4602
      %v4619 = vunpack.c.l.bf16 %v4603
      %v4620 = vunpack.c.l.bf16 %v4604
      %v4621 = vunpack.c.l.bf16 %v4605
      %v4622 = vunpack.c.l.bf16 %v4606
      %v4623 = vunpack.c.l.bf16 %v4607
      %v4624 = vunpack.c.l.bf16 %v4608
      %v4625 = vunpack.c.l.bf16 %v4609
      %vm4642 = vcmask 1046528
      %v4643 = vrot.slane %v4610, 1
      %v4644 = vrot.slane %v4611, 1
      %v4645 = vsel %vm4642, %v4643, %v4644
      %v4646 = vrot.slane %v4612, 1
      %v4647 = vrot.slane %v4613, 1
      %v4648 = vsel %vm4642, %v4646, %v4647
      %v4649 = vrot.slane %v4614, 1
      %v4650 = vrot.slane %v4615, 1
      %v4651 = vsel %vm4642, %v4649, %v4650
      %v4652 = vrot.slane %v4616, 1
      %v4653 = vrot.slane %v4617, 1
      %v4654 = vsel %vm4642, %v4652, %v4653
      %v4655 = vrot.slane %v4618, 1
      %v4656 = vrot.slane %v4619, 1
      %v4657 = vsel %vm4642, %v4655, %v4656
      %v4658 = vrot.slane %v4620, 1
      %v4659 = vrot.slane %v4621, 1
      %v4660 = vsel %vm4642, %v4658, %v4659
      %v4661 = vrot.slane %v4622, 1
      %v4662 = vrot.slane %v4623, 1
      %v4663 = vsel %vm4642, %v4661, %v4662
      %v4664 = vrot.slane %v4624, 1
      %v4665 = vrot.slane %v4625, 1
      %v4666 = vsel %vm4642, %v4664, %v4665
      %v4675 = vadd.f32 %v4645, %v4586
      %v4676 = vadd.f32 %v4648, %v4587
      %v4677 = vadd.f32 %v4651, %v4588
      %v4678 = vadd.f32 %v4654, %v4589
      %v4679 = vadd.f32 %v4657, %v4590
      %v4680 = vadd.f32 %v4660, %v4591
      %v4681 = vadd.f32 %v4663, %v4592
      %v4682 = vadd.f32 %v4666, %v4593
      %4683 = vst [vmem:[%s278] sm:$0xff] %v4675
      %4684 = vst [vmem:[%s278 + $0x8] sm:$0xff] %v4676
      %4685 = vst [vmem:[%s278 + $0x10] sm:$0xff] %v4677
      %4686 = vst [vmem:[%s278 + $0x18] sm:$0xff] %v4678
      %4687 = vst [vmem:[%s278 + $0x20] sm:$0xff] %v4679
      %4688 = vst [vmem:[%s278 + $0x28] sm:$0xff] %v4680
      %4689 = vst [vmem:[%s278 + $0x30] sm:$0xff] %v4681
      %4690 = vst [vmem:[%s278 + $0x38] sm:$0xff] %v4682
      %p4691 = scmp.lt.s32.totalorder %s18, 1
      %s4692 = scalar_select %p4691, %s18, 1
      %s4693 = smul.addr %s4692, 8
      %s4694 = smul.addr %s4693, 8
      %s4695 = scalar_lea.vmem %s7, %s4694
      // Predicated region
      $region49: #{conv_res_block_forward.3} parent=47 // pred_check
        %p4696 = pneg %p188
      $region50: #{conv_res_block_forward.3} parent=47 // pred_check_branch
        %4698 = sbr.rel (%p4696) target = $region52
      $region51: #{conv_res_block_forward.3} parent=47 // pred_region
        _
      $region52: #{conv_res_block_forward.3} parent=47 // pred_fallthru
        _
    $region48: #{conv_res_block_forward.3} parent=5 // pred_fallthru
      _
    %p4699 = scmp.le.s32.totalorder 2, %s13
    // Predicated region
    $region53: #{conv_res_block_forward.3} parent=5 // pred_check
      %p4700 = pneg %p4699
    $region54: #{conv_res_block_forward.3} parent=5 // pred_check_branch
      %4702 = sbr.rel (%p4700) target = $region56
    $region55: #{conv_res_block_forward.3} parent=5 // pred_region
      %s4703 = ssub.s32 %s13, 2
      // Predicated region
      $region57: #{conv_res_block_forward.3} parent=55 // pred_check
        %p4704 = pneg %p194
      $region58: #{conv_res_block_forward.3} parent=55 // pred_check_branch
        %4706 = sbr.rel (%p4704) target = $region60
      $region59: #{conv_res_block_forward.3} parent=55 // pred_region
        %p4707 = scmp.lt.s32.totalorder %s19, 1
        %s4708 = scalar_select %p4707, %s19, 1
        %s4709 = smul.addr %s4708, 8
        %s4710 = smul.addr %s4709, 8
        %s4711 = scalar_lea.vmem %s7, %s4710
      $region60: #{conv_res_block_forward.3} parent=55 // pred_fallthru
        _
    $region56: #{conv_res_block_forward.3} parent=5 // pred_fallthru
      _
  $region6: #{conv_res_block_forward.3} parent=0 // loop_footer
    %s17 = sadd.s32 1, %s13
  $region7: #{conv_res_block_forward.3} parent=0 // loop_footer_branch
    %12 = sbr.rel target = $region3
  $region8: #{conv_res_block_forward.3} parent=0 // loop_exit
    _

</llo_original>
